<compile_context>
chip_gen: v7x
topology: tpu7x:2x2x1
jax: 0.10.0
libtpu: 0.0.40
codegen_flags: <defaults>
</compile_context>

<pallas_src>
import math
import functools

import jax
import jax.numpy as jnp
from jax import lax
from jax.experimental import pallas as pl
from jax.experimental.pallas import tpu as pltpu


def _mhsa_fused_kernel(x_ref, w_ref, o_ref, *, num_heads, dim_k, dim_v):
    # x_ref : (b_tile, n, dim_in)            bf16, B_TILE batch elements per step
    # w_ref : (dim_in, 2*dim_k + dim_v)      bf16 packed [Wq*norm | Wk | Wv], grid-resident
    # o_ref : (b_tile, n, dim_v)             output block for this batch tile
    b_tile, n, dim_in = x_ref.shape
    dim_qkv = w_ref.shape[-1]
    nh = num_heads
    dk = dim_k // nh
    dv = dim_v // nh

    w = w_ref[...]
    if n % 8 == 0:
        # n is sublane-aligned -> flattening (b_tile, n) is layout-free, and the
        # projection for Q, K and V is ONE wide MXU matmul (norm_fact already
        # folded into the Wq columns at wrapper prep time).
        x2d = x_ref[...].reshape(b_tile * n, dim_in)
        qkv = jnp.dot(x2d, w, preferred_element_type=jnp.float32)
        qkv = qkv.reshape(b_tile, n, dim_qkv)          # sublane split, layout-free
    else:
        # Fallback for non-sublane-aligned n (e.g. the module's n=6 / dim=36
        # config): batched projection against a broadcast weight, avoiding an
        # unaligned reshape.
        wb = jnp.broadcast_to(w[None], (b_tile,) + w.shape)
        qkv = lax.dot_general(x_ref[...], wb, (((2,), (1,)), ((0,), (0,))),
                              preferred_element_type=jnp.float32)

    head_outs = []
    for h in range(nh):   # static unroll; slice/concat relayout amortized over b_tile
        qh = qkv[:, :, h * dk:(h + 1) * dk]                              # (b, n, dk), pre-scaled
        kh = qkv[:, :, dim_k + h * dk:dim_k + (h + 1) * dk]              # (b, n, dk)
        vh = qkv[:, :, 2 * dim_k + h * dv:2 * dim_k + (h + 1) * dv]      # (b, n, dv)

        # Batched over the b_tile batch elements (heads stay separate because the
        # contraction is only over this head's dk slice).
        s = jnp.einsum('bqd,bkd->bqk', qh, kh,
                       preferred_element_type=jnp.float32)               # (b, n, n)

        # Numerically stable softmax over the key axis, all in f32.
        s_max = jnp.max(s, axis=-1, keepdims=True)
        p = jnp.exp(s - s_max)
        p = p / jnp.sum(p, axis=-1, keepdims=True)      # exact divide; not EUP-bound

        head_outs.append(jnp.einsum('bqk,bkd->bqd', p, vh,
                                    preferred_element_type=jnp.float32))  # (b, n, dv)

    # Heads concatenated along the feature axis.  dim_v (64) < 128 lanes, so this
    # is a masked store; output bytes are already halved by the bf16 out dtype.
    o_ref[...] = jnp.concatenate(head_outs, axis=-1).astype(o_ref.dtype)


def multi_head_self_attention(x, wq, wk, wv, num_heads, *,
                              b_tile=32, out_dtype=jnp.bfloat16):
    """
    x  : (batch, n, dim_in)   float32 (cast to bf16 for DMA inside)
    wq : (dim_k, dim_in)      PyTorch nn.Linear weight layout (bias=False)
    wk : (dim_k, dim_in)
    wv : (dim_v, dim_in)
    Returns (batch, n, dim_v) in `out_dtype`, matching MultiHeadSelfAttention.forward.
    For v7x keep batch/b_tile such that the grid length is >= 2 (ideally even).
    """
    batch, n, dim_in = x.shape
    dim_k = wq.shape[0]
    dim_v = wv.shape[0]
    nh = num_heads
    assert dim_k % nh == 0 and dim_v % nh == 0, "dim_k/dim_v must be multiples of num_heads"
    dk = dim_k // nh
    norm_fact = 1.0 / math.sqrt(dk)

    # nn.Linear computes x @ W.T; pack [Wq.T * norm_fact | Wk.T | Wv.T] as one
    # (dim_in, 2*dim_k + dim_v) bf16 array so the kernel does a single projection
    # and the weight is DMA'd into VMEM exactly once (constant index_map below).
    w_all = jnp.concatenate([wq.T * norm_fact, wk.T, wv.T], axis=-1).astype(jnp.bfloat16)
    dim_qkv = 2 * dim_k + dim_v

    # Batch tiling (pad to a multiple of b_tile; zero-padded rows give zero outputs).
    b_tile = int(max(1, min(b_tile, batch)))
    padded = pl.cdiv(batch, b_tile) * b_tile
    xb = x.astype(jnp.bfloat16)
    if padded != batch:
        xb = jnp.pad(xb, ((0, padded - batch), (0, 0), (0, 0)))
    num_tiles = padded // b_tile

    kernel = functools.partial(_mhsa_fused_kernel,
                               num_heads=nh, dim_k=dim_k, dim_v=dim_v)

    flops = padded * (2 * n * dim_in * dim_qkv               # fused QKV projection
                      + nh * (2 * n * n * dk                 # per-head Q K^T
                              + 2 * n * n * (dim_v // nh)))  # per-head P @ V
    transcendentals = padded * nh * n * n                    # exp in softmax
    bytes_accessed = (xb.size * xb.dtype.itemsize
                      + w_all.size * w_all.dtype.itemsize
                      + padded * n * dim_v * jnp.dtype(out_dtype).itemsize)

    out = pl.pallas_call(
        kernel,
        out_shape=jax.ShapeDtypeStruct((padded, n, dim_v), out_dtype),
        grid_spec=pltpu.PrefetchScalarGridSpec(
            num_scalar_prefetch=0,
            grid=(num_tiles,),
            in_specs=[
                # per-tile activation block: b_tile batch elements at a time
                pl.BlockSpec((b_tile, n, dim_in), lambda b: (b, 0, 0)),
                # packed weights: constant block index -> fetched once, stays resident
                pl.BlockSpec((dim_in, dim_qkv), lambda b: (0, 0)),
            ],
            out_specs=pl.BlockSpec((b_tile, n, dim_v), lambda b: (b, 0, 0)),
        ),
        compiler_params=pltpu.CompilerParams(
            dimension_semantics=("parallel",),   # megacore-shards the batch tiles on v7x
        ),
        cost_estimate=pl.CostEstimate(
            flops=flops,
            transcendentals=transcendentals,
            bytes_accessed=bytes_accessed,
        ),
    )(xb, w_all)

    return out[:batch]


def _reference(x, wq, wk, wv, num_heads):
    """Pure-JAX f32 reference mirroring the PyTorch forward, for verification."""
    batch, n, dim_in = x.shape
    dim_k, dim_v = wq.shape[0], wv.shape[0]
    nh = num_heads
    dk, dv = dim_k // nh, dim_v // nh
    q = (x @ wq.T).reshape(batch, n, nh, dk).transpose(0, 2, 1, 3)
    k = (x @ wk.T).reshape(batch, n, nh, dk).transpose(0, 2, 1, 3)
    v = (x @ wv.T).reshape(batch, n, nh, dv).transpose(0, 2, 1, 3)
    dist = jnp.einsum("bhqd,bhkd->bhqk", q, k) * (1.0 / math.sqrt(dk))
    dist = jax.nn.softmax(dist, axis=-1)
    att = jnp.einsum("bhqk,bhkd->bhqd", dist, v)
    return att.transpose(0, 2, 1, 3).reshape(batch, n, dim_v)


if __name__ == "__main__":
    # Small shapes consistent with the module's forward: x is (batch, n, dim_in).
    # batch=8 with b_tile=4 -> grid of 2 "parallel" steps (feeds both v7x cores).
    batch, n, dim_in = 8, 16, 32
    dim_k, dim_v, num_heads = 64, 64, 8

    key = jax.random.PRNGKey(0)
    kx, kq, kk, kv = jax.random.split(key, 4)

    x = jax.random.normal(kx, (batch, n, dim_in), dtype=jnp.float32)
    # Deterministic "Linear(bias=False)" weights in PyTorch layout (out_features, in_features).
    bound = 1.0 / math.sqrt(dim_in)
    wq = jax.random.uniform(kq, (dim_k, dim_in), jnp.float32, -bound, bound)
    wk = jax.random.uniform(kk, (dim_k, dim_in), jnp.float32, -bound, bound)
    wv = jax.random.uniform(kv, (dim_v, dim_in), jnp.float32, -bound, bound)

    out = multi_head_self_attention(x, wq, wk, wv, num_heads, b_tile=4)
    out = jax.block_until_ready(out)

    ref = _reference(x, wq, wk, wv, num_heads)
    assert out.shape == (batch, n, dim_v)
    # Tolerance covers bf16 input/output rounding vs the pure-f32 reference.
    assert jnp.allclose(out.astype(jnp.float32), ref, atol=5e-2, rtol=5e-2), \
        "mismatch vs reference"

    print("KERNEL_OK")
</pallas_src>

<mosaic_0001>
module attributes {stable_mosaic.version = 11 : i64} {
  func.func @_mhsa_fused_kernel(%arg0: i32, %arg1: memref<4x16x32xbf16, #tpu.memory_space<vmem>>, %arg2: memref<32x192xbf16, #tpu.memory_space<vmem>>, %arg3: memref<4x16x64xbf16, #tpu.memory_space<vmem>>) attributes {dimension_semantics = [#tpu.dimension_semantics<parallel>], iteration_bounds = array<i64: 2>, scalar_prefetch = 0 : i64, scratch_operands = 0 : i64, tpu.core_type = #tpu.core_type<tc>, window_params = [{transform_indices = @transform_0, window_bounds = array<i64: 4, 16, 32>}, {pipeline_mode = #tpu.pipeline_mode<synchronous>, transform_indices = @transform_1, window_bounds = array<i64: 32, 192>}, {transform_indices = @transform_2, window_bounds = array<i64: 4, 16, 64>}]} {
    %c0 = arith.constant 0 : index
    %c0_0 = arith.constant 0 : index
    %0 = vector.load %arg2[%c0, %c0_0] : memref<32x192xbf16, #tpu.memory_space<vmem>>, vector<32x192xbf16>
    %c0_1 = arith.constant 0 : index
    %c0_2 = arith.constant 0 : index
    %c0_3 = arith.constant 0 : index
    %1 = vector.load %arg1[%c0_1, %c0_2, %c0_3] : memref<4x16x32xbf16, #tpu.memory_space<vmem>>, vector<4x16x32xbf16>
    %2 = vector.shape_cast %1 : vector<4x16x32xbf16> to vector<64x32xbf16>
    %cst = arith.constant dense<0.000000e+00> : vector<64x192xf32>
    %3 = tpu.matmul %2, %0, %cst {dimension_numbers = #tpu.dot_dimension_numbers<[1], [0], [0], [1], [0, 0, 1, 1], [], []>} : vector<64x32xbf16>, vector<32x192xbf16>, vector<64x192xf32> -> vector<64x192xf32>
    %4 = vector.shape_cast %3 : vector<64x192xf32> to vector<4x16x192xf32>
    %5 = vector.extract_strided_slice %4 {offsets = [0, 0, 0], sizes = [4, 16, 8], strides = [1, 1, 1]} : vector<4x16x192xf32> to vector<4x16x8xf32>
    %6 = vector.extract_strided_slice %4 {offsets = [0, 0, 64], sizes = [4, 16, 8], strides = [1, 1, 1]} : vector<4x16x192xf32> to vector<4x16x8xf32>
    %7 = vector.extract_strided_slice %4 {offsets = [0, 0, 128], sizes = [4, 16, 8], strides = [1, 1, 1]} : vector<4x16x192xf32> to vector<4x16x8xf32>
    "tpu.trace_start"() <{level = 10 : i32, message = "bqd,bkd->bqk"}> : () -> ()
    %cst_4 = arith.constant dense<0.000000e+00> : vector<4x16x16xf32>
    %8 = tpu.matmul %5, %6, %cst_4 {dimension_numbers = #tpu.dot_dimension_numbers<[2], [2], [1], [1], [0, 0, 0, 1, 1, 1], [0], [0]>} : vector<4x16x8xf32>, vector<4x16x8xf32>, vector<4x16x16xf32> -> vector<4x16x16xf32>
    "tpu.trace_stop"() : () -> ()
    %cst_5 = arith.constant dense<0xFF800000> : vector<4x16xf32>
    %9 = vector.multi_reduction <maximumf>, %8, %cst_5 [2] : vector<4x16x16xf32> to vector<4x16xf32>
    %10 = vector.shape_cast %9 : vector<4x16xf32> to vector<4x16x1xf32>
    %11 = vector.broadcast %10 : vector<4x16x1xf32> to vector<4x16x16xf32>
    %12 = arith.subf %8, %11 : vector<4x16x16xf32>
    %13 = math.exp %12 : vector<4x16x16xf32>
    %cst_6 = arith.constant dense<0.000000e+00> : vector<4x16xf32>
    %14 = vector.multi_reduction <add>, %13, %cst_6 [2] : vector<4x16x16xf32> to vector<4x16xf32>
    %15 = vector.shape_cast %14 : vector<4x16xf32> to vector<4x16x1xf32>
    %16 = vector.broadcast %15 : vector<4x16x1xf32> to vector<4x16x16xf32>
    %17 = arith.divf %13, %16 : vector<4x16x16xf32>
    "tpu.trace_start"() <{level = 10 : i32, message = "bqk,bkd->bqd"}> : () -> ()
    %cst_7 = arith.constant dense<0.000000e+00> : vector<4x16x8xf32>
    %18 = tpu.matmul %17, %7, %cst_7 {dimension_numbers = #tpu.dot_dimension_numbers<[2], [1], [1], [2], [0, 0, 0, 1, 1, 2], [0], [0]>} : vector<4x16x16xf32>, vector<4x16x8xf32>, vector<4x16x8xf32> -> vector<4x16x8xf32>
    "tpu.trace_stop"() : () -> ()
    %19 = vector.extract_strided_slice %4 {offsets = [0, 0, 8], sizes = [4, 16, 8], strides = [1, 1, 1]} : vector<4x16x192xf32> to vector<4x16x8xf32>
    %20 = vector.extract_strided_slice %4 {offsets = [0, 0, 72], sizes = [4, 16, 8], strides = [1, 1, 1]} : vector<4x16x192xf32> to vector<4x16x8xf32>
    %21 = vector.extract_strided_slice %4 {offsets = [0, 0, 136], sizes = [4, 16, 8], strides = [1, 1, 1]} : vector<4x16x192xf32> to vector<4x16x8xf32>
    "tpu.trace_start"() <{level = 10 : i32, message = "bqd,bkd->bqk"}> : () -> ()
    %cst_8 = arith.constant dense<0.000000e+00> : vector<4x16x16xf32>
    %22 = tpu.matmul %19, %20, %cst_8 {dimension_numbers = #tpu.dot_dimension_numbers<[2], [2], [1], [1], [0, 0, 0, 1, 1, 1], [0], [0]>} : vector<4x16x8xf32>, vector<4x16x8xf32>, vector<4x16x16xf32> -> vector<4x16x16xf32>
    "tpu.trace_stop"() : () -> ()
    %cst_9 = arith.constant dense<0xFF800000> : vector<4x16xf32>
    %23 = vector.multi_reduction <maximumf>, %22, %cst_9 [2] : vector<4x16x16xf32> to vector<4x16xf32>
    %24 = vector.shape_cast %23 : vector<4x16xf32> to vector<4x16x1xf32>
    %25 = vector.broadcast %24 : vector<4x16x1xf32> to vector<4x16x16xf32>
    %26 = arith.subf %22, %25 : vector<4x16x16xf32>
    %27 = math.exp %26 : vector<4x16x16xf32>
    %cst_10 = arith.constant dense<0.000000e+00> : vector<4x16xf32>
    %28 = vector.multi_reduction <add>, %27, %cst_10 [2] : vector<4x16x16xf32> to vector<4x16xf32>
    %29 = vector.shape_cast %28 : vector<4x16xf32> to vector<4x16x1xf32>
    %30 = vector.broadcast %29 : vector<4x16x1xf32> to vector<4x16x16xf32>
    %31 = arith.divf %27, %30 : vector<4x16x16xf32>
    "tpu.trace_start"() <{level = 10 : i32, message = "bqk,bkd->bqd"}> : () -> ()
    %cst_11 = arith.constant dense<0.000000e+00> : vector<4x16x8xf32>
    %32 = tpu.matmul %31, %21, %cst_11 {dimension_numbers = #tpu.dot_dimension_numbers<[2], [1], [1], [2], [0, 0, 0, 1, 1, 2], [0], [0]>} : vector<4x16x16xf32>, vector<4x16x8xf32>, vector<4x16x8xf32> -> vector<4x16x8xf32>
    "tpu.trace_stop"() : () -> ()
    %33 = vector.extract_strided_slice %4 {offsets = [0, 0, 16], sizes = [4, 16, 8], strides = [1, 1, 1]} : vector<4x16x192xf32> to vector<4x16x8xf32>
    %34 = vector.extract_strided_slice %4 {offsets = [0, 0, 80], sizes = [4, 16, 8], strides = [1, 1, 1]} : vector<4x16x192xf32> to vector<4x16x8xf32>
    %35 = vector.extract_strided_slice %4 {offsets = [0, 0, 144], sizes = [4, 16, 8], strides = [1, 1, 1]} : vector<4x16x192xf32> to vector<4x16x8xf32>
    "tpu.trace_start"() <{level = 10 : i32, message = "bqd,bkd->bqk"}> : () -> ()
    %cst_12 = arith.constant dense<0.000000e+00> : vector<4x16x16xf32>
    %36 = tpu.matmul %33, %34, %cst_12 {dimension_numbers = #tpu.dot_dimension_numbers<[2], [2], [1], [1], [0, 0, 0, 1, 1, 1], [0], [0]>} : vector<4x16x8xf32>, vector<4x16x8xf32>, vector<4x16x16xf32> -> vector<4x16x16xf32>
    "tpu.trace_stop"() : () -> ()
    %cst_13 = arith.constant dense<0xFF800000> : vector<4x16xf32>
    %37 = vector.multi_reduction <maximumf>, %36, %cst_13 [2] : vector<4x16x16xf32> to vector<4x16xf32>
    %38 = vector.shape_cast %37 : vector<4x16xf32> to vector<4x16x1xf32>
    %39 = vector.broadcast %38 : vector<4x16x1xf32> to vector<4x16x16xf32>
    %40 = arith.subf %36, %39 : vector<4x16x16xf32>
    %41 = math.exp %40 : vector<4x16x16xf32>
    %cst_14 = arith.constant dense<0.000000e+00> : vector<4x16xf32>
    %42 = vector.multi_reduction <add>, %41, %cst_14 [2] : vector<4x16x16xf32> to vector<4x16xf32>
    %43 = vector.shape_cast %42 : vector<4x16xf32> to vector<4x16x1xf32>
    %44 = vector.broadcast %43 : vector<4x16x1xf32> to vector<4x16x16xf32>
    %45 = arith.divf %41, %44 : vector<4x16x16xf32>
    "tpu.trace_start"() <{level = 10 : i32, message = "bqk,bkd->bqd"}> : () -> ()
    %cst_15 = arith.constant dense<0.000000e+00> : vector<4x16x8xf32>
    %46 = tpu.matmul %45, %35, %cst_15 {dimension_numbers = #tpu.dot_dimension_numbers<[2], [1], [1], [2], [0, 0, 0, 1, 1, 2], [0], [0]>} : vector<4x16x16xf32>, vector<4x16x8xf32>, vector<4x16x8xf32> -> vector<4x16x8xf32>
    "tpu.trace_stop"() : () -> ()
    %47 = vector.extract_strided_slice %4 {offsets = [0, 0, 24], sizes = [4, 16, 8], strides = [1, 1, 1]} : vector<4x16x192xf32> to vector<4x16x8xf32>
    %48 = vector.extract_strided_slice %4 {offsets = [0, 0, 88], sizes = [4, 16, 8], strides = [1, 1, 1]} : vector<4x16x192xf32> to vector<4x16x8xf32>
    %49 = vector.extract_strided_slice %4 {offsets = [0, 0, 152], sizes = [4, 16, 8], strides = [1, 1, 1]} : vector<4x16x192xf32> to vector<4x16x8xf32>
    "tpu.trace_start"() <{level = 10 : i32, message = "bqd,bkd->bqk"}> : () -> ()
    %cst_16 = arith.constant dense<0.000000e+00> : vector<4x16x16xf32>
    %50 = tpu.matmul %47, %48, %cst_16 {dimension_numbers = #tpu.dot_dimension_numbers<[2], [2], [1], [1], [0, 0, 0, 1, 1, 1], [0], [0]>} : vector<4x16x8xf32>, vector<4x16x8xf32>, vector<4x16x16xf32> -> vector<4x16x16xf32>
    "tpu.trace_stop"() : () -> ()
    %cst_17 = arith.constant dense<0xFF800000> : vector<4x16xf32>
    %51 = vector.multi_reduction <maximumf>, %50, %cst_17 [2] : vector<4x16x16xf32> to vector<4x16xf32>
    %52 = vector.shape_cast %51 : vector<4x16xf32> to vector<4x16x1xf32>
    %53 = vector.broadcast %52 : vector<4x16x1xf32> to vector<4x16x16xf32>
    %54 = arith.subf %50, %53 : vector<4x16x16xf32>
    %55 = math.exp %54 : vector<4x16x16xf32>
    %cst_18 = arith.constant dense<0.000000e+00> : vector<4x16xf32>
    %56 = vector.multi_reduction <add>, %55, %cst_18 [2] : vector<4x16x16xf32> to vector<4x16xf32>
    %57 = vector.shape_cast %56 : vector<4x16xf32> to vector<4x16x1xf32>
    %58 = vector.broadcast %57 : vector<4x16x1xf32> to vector<4x16x16xf32>
    %59 = arith.divf %55, %58 : vector<4x16x16xf32>
    "tpu.trace_start"() <{level = 10 : i32, message = "bqk,bkd->bqd"}> : () -> ()
    %cst_19 = arith.constant dense<0.000000e+00> : vector<4x16x8xf32>
    %60 = tpu.matmul %59, %49, %cst_19 {dimension_numbers = #tpu.dot_dimension_numbers<[2], [1], [1], [2], [0, 0, 0, 1, 1, 2], [0], [0]>} : vector<4x16x16xf32>, vector<4x16x8xf32>, vector<4x16x8xf32> -> vector<4x16x8xf32>
    "tpu.trace_stop"() : () -> ()
    %61 = vector.extract_strided_slice %4 {offsets = [0, 0, 32], sizes = [4, 16, 8], strides = [1, 1, 1]} : vector<4x16x192xf32> to vector<4x16x8xf32>
    %62 = vector.extract_strided_slice %4 {offsets = [0, 0, 96], sizes = [4, 16, 8], strides = [1, 1, 1]} : vector<4x16x192xf32> to vector<4x16x8xf32>
    %63 = vector.extract_strided_slice %4 {offsets = [0, 0, 160], sizes = [4, 16, 8], strides = [1, 1, 1]} : vector<4x16x192xf32> to vector<4x16x8xf32>
    "tpu.trace_start"() <{level = 10 : i32, message = "bqd,bkd->bqk"}> : () -> ()
    %cst_20 = arith.constant dense<0.000000e+00> : vector<4x16x16xf32>
    %64 = tpu.matmul %61, %62, %cst_20 {dimension_numbers = #tpu.dot_dimension_numbers<[2], [2], [1], [1], [0, 0, 0, 1, 1, 1], [0], [0]>} : vector<4x16x8xf32>, vector<4x16x8xf32>, vector<4x16x16xf32> -> vector<4x16x16xf32>
    "tpu.trace_stop"() : () -> ()
    %cst_21 = arith.constant dense<0xFF800000> : vector<4x16xf32>
    %65 = vector.multi_reduction <maximumf>, %64, %cst_21 [2] : vector<4x16x16xf32> to vector<4x16xf32>
    %66 = vector.shape_cast %65 : vector<4x16xf32> to vector<4x16x1xf32>
    %67 = vector.broadcast %66 : vector<4x16x1xf32> to vector<4x16x16xf32>
    %68 = arith.subf %64, %67 : vector<4x16x16xf32>
    %69 = math.exp %68 : vector<4x16x16xf32>
    %cst_22 = arith.constant dense<0.000000e+00> : vector<4x16xf32>
    %70 = vector.multi_reduction <add>, %69, %cst_22 [2] : vector<4x16x16xf32> to vector<4x16xf32>
    %71 = vector.shape_cast %70 : vector<4x16xf32> to vector<4x16x1xf32>
    %72 = vector.broadcast %71 : vector<4x16x1xf32> to vector<4x16x16xf32>
    %73 = arith.divf %69, %72 : vector<4x16x16xf32>
    "tpu.trace_start"() <{level = 10 : i32, message = "bqk,bkd->bqd"}> : () -> ()
    %cst_23 = arith.constant dense<0.000000e+00> : vector<4x16x8xf32>
    %74 = tpu.matmul %73, %63, %cst_23 {dimension_numbers = #tpu.dot_dimension_numbers<[2], [1], [1], [2], [0, 0, 0, 1, 1, 2], [0], [0]>} : vector<4x16x16xf32>, vector<4x16x8xf32>, vector<4x16x8xf32> -> vector<4x16x8xf32>
    "tpu.trace_stop"() : () -> ()
    %75 = vector.extract_strided_slice %4 {offsets = [0, 0, 40], sizes = [4, 16, 8], strides = [1, 1, 1]} : vector<4x16x192xf32> to vector<4x16x8xf32>
    %76 = vector.extract_strided_slice %4 {offsets = [0, 0, 104], sizes = [4, 16, 8], strides = [1, 1, 1]} : vector<4x16x192xf32> to vector<4x16x8xf32>
    %77 = vector.extract_strided_slice %4 {offsets = [0, 0, 168], sizes = [4, 16, 8], strides = [1, 1, 1]} : vector<4x16x192xf32> to vector<4x16x8xf32>
    "tpu.trace_start"() <{level = 10 : i32, message = "bqd,bkd->bqk"}> : () -> ()
    %cst_24 = arith.constant dense<0.000000e+00> : vector<4x16x16xf32>
    %78 = tpu.matmul %75, %76, %cst_24 {dimension_numbers = #tpu.dot_dimension_numbers<[2], [2], [1], [1], [0, 0, 0, 1, 1, 1], [0], [0]>} : vector<4x16x8xf32>, vector<4x16x8xf32>, vector<4x16x16xf32> -> vector<4x16x16xf32>
    "tpu.trace_stop"() : () -> ()
    %cst_25 = arith.constant dense<0xFF800000> : vector<4x16xf32>
    %79 = vector.multi_reduction <maximumf>, %78, %cst_25 [2] : vector<4x16x16xf32> to vector<4x16xf32>
    %80 = vector.shape_cast %79 : vector<4x16xf32> to vector<4x16x1xf32>
    %81 = vector.broadcast %80 : vector<4x16x1xf32> to vector<4x16x16xf32>
    %82 = arith.subf %78, %81 : vector<4x16x16xf32>
    %83 = math.exp %82 : vector<4x16x16xf32>
    %cst_26 = arith.constant dense<0.000000e+00> : vector<4x16xf32>
    %84 = vector.multi_reduction <add>, %83, %cst_26 [2] : vector<4x16x16xf32> to vector<4x16xf32>
    %85 = vector.shape_cast %84 : vector<4x16xf32> to vector<4x16x1xf32>
    %86 = vector.broadcast %85 : vector<4x16x1xf32> to vector<4x16x16xf32>
    %87 = arith.divf %83, %86 : vector<4x16x16xf32>
    "tpu.trace_start"() <{level = 10 : i32, message = "bqk,bkd->bqd"}> : () -> ()
    %cst_27 = arith.constant dense<0.000000e+00> : vector<4x16x8xf32>
    %88 = tpu.matmul %87, %77, %cst_27 {dimension_numbers = #tpu.dot_dimension_numbers<[2], [1], [1], [2], [0, 0, 0, 1, 1, 2], [0], [0]>} : vector<4x16x16xf32>, vector<4x16x8xf32>, vector<4x16x8xf32> -> vector<4x16x8xf32>
    "tpu.trace_stop"() : () -> ()
    %89 = vector.extract_strided_slice %4 {offsets = [0, 0, 48], sizes = [4, 16, 8], strides = [1, 1, 1]} : vector<4x16x192xf32> to vector<4x16x8xf32>
    %90 = vector.extract_strided_slice %4 {offsets = [0, 0, 112], sizes = [4, 16, 8], strides = [1, 1, 1]} : vector<4x16x192xf32> to vector<4x16x8xf32>
    %91 = vector.extract_strided_slice %4 {offsets = [0, 0, 176], sizes = [4, 16, 8], strides = [1, 1, 1]} : vector<4x16x192xf32> to vector<4x16x8xf32>
    "tpu.trace_start"() <{level = 10 : i32, message = "bqd,bkd->bqk"}> : () -> ()
    %cst_28 = arith.constant dense<0.000000e+00> : vector<4x16x16xf32>
    %92 = tpu.matmul %89, %90, %cst_28 {dimension_numbers = #tpu.dot_dimension_numbers<[2], [2], [1], [1], [0, 0, 0, 1, 1, 1], [0], [0]>} : vector<4x16x8xf32>, vector<4x16x8xf32>, vector<4x16x16xf32> -> vector<4x16x16xf32>
    "tpu.trace_stop"() : () -> ()
    %cst_29 = arith.constant dense<0xFF800000> : vector<4x16xf32>
    %93 = vector.multi_reduction <maximumf>, %92, %cst_29 [2] : vector<4x16x16xf32> to vector<4x16xf32>
    %94 = vector.shape_cast %93 : vector<4x16xf32> to vector<4x16x1xf32>
    %95 = vector.broadcast %94 : vector<4x16x1xf32> to vector<4x16x16xf32>
    %96 = arith.subf %92, %95 : vector<4x16x16xf32>
    %97 = math.exp %96 : vector<4x16x16xf32>
    %cst_30 = arith.constant dense<0.000000e+00> : vector<4x16xf32>
    %98 = vector.multi_reduction <add>, %97, %cst_30 [2] : vector<4x16x16xf32> to vector<4x16xf32>
    %99 = vector.shape_cast %98 : vector<4x16xf32> to vector<4x16x1xf32>
    %100 = vector.broadcast %99 : vector<4x16x1xf32> to vector<4x16x16xf32>
    %101 = arith.divf %97, %100 : vector<4x16x16xf32>
    "tpu.trace_start"() <{level = 10 : i32, message = "bqk,bkd->bqd"}> : () -> ()
    %cst_31 = arith.constant dense<0.000000e+00> : vector<4x16x8xf32>
    %102 = tpu.matmul %101, %91, %cst_31 {dimension_numbers = #tpu.dot_dimension_numbers<[2], [1], [1], [2], [0, 0, 0, 1, 1, 2], [0], [0]>} : vector<4x16x16xf32>, vector<4x16x8xf32>, vector<4x16x8xf32> -> vector<4x16x8xf32>
    "tpu.trace_stop"() : () -> ()
    %103 = vector.extract_strided_slice %4 {offsets = [0, 0, 56], sizes = [4, 16, 8], strides = [1, 1, 1]} : vector<4x16x192xf32> to vector<4x16x8xf32>
    %104 = vector.extract_strided_slice %4 {offsets = [0, 0, 120], sizes = [4, 16, 8], strides = [1, 1, 1]} : vector<4x16x192xf32> to vector<4x16x8xf32>
    %105 = vector.extract_strided_slice %4 {offsets = [0, 0, 184], sizes = [4, 16, 8], strides = [1, 1, 1]} : vector<4x16x192xf32> to vector<4x16x8xf32>
    "tpu.trace_start"() <{level = 10 : i32, message = "bqd,bkd->bqk"}> : () -> ()
    %cst_32 = arith.constant dense<0.000000e+00> : vector<4x16x16xf32>
    %106 = tpu.matmul %103, %104, %cst_32 {dimension_numbers = #tpu.dot_dimension_numbers<[2], [2], [1], [1], [0, 0, 0, 1, 1, 1], [0], [0]>} : vector<4x16x8xf32>, vector<4x16x8xf32>, vector<4x16x16xf32> -> vector<4x16x16xf32>
    "tpu.trace_stop"() : () -> ()
    %cst_33 = arith.constant dense<0xFF800000> : vector<4x16xf32>
    %107 = vector.multi_reduction <maximumf>, %106, %cst_33 [2] : vector<4x16x16xf32> to vector<4x16xf32>
    %108 = vector.shape_cast %107 : vector<4x16xf32> to vector<4x16x1xf32>
    %109 = vector.broadcast %108 : vector<4x16x1xf32> to vector<4x16x16xf32>
    %110 = arith.subf %106, %109 : vector<4x16x16xf32>
    %111 = math.exp %110 : vector<4x16x16xf32>
    %cst_34 = arith.constant dense<0.000000e+00> : vector<4x16xf32>
    %112 = vector.multi_reduction <add>, %111, %cst_34 [2] : vector<4x16x16xf32> to vector<4x16xf32>
    %113 = vector.shape_cast %112 : vector<4x16xf32> to vector<4x16x1xf32>
    %114 = vector.broadcast %113 : vector<4x16x1xf32> to vector<4x16x16xf32>
    %115 = arith.divf %111, %114 : vector<4x16x16xf32>
    "tpu.trace_start"() <{level = 10 : i32, message = "bqk,bkd->bqd"}> : () -> ()
    %cst_35 = arith.constant dense<0.000000e+00> : vector<4x16x8xf32>
    %116 = tpu.matmul %115, %105, %cst_35 {dimension_numbers = #tpu.dot_dimension_numbers<[2], [1], [1], [2], [0, 0, 0, 1, 1, 2], [0], [0]>} : vector<4x16x16xf32>, vector<4x16x8xf32>, vector<4x16x8xf32> -> vector<4x16x8xf32>
    "tpu.trace_stop"() : () -> ()
    %117 = tpu.concatenate %18, %32, %46, %60, %74, %88, %102, %116 in 2 : vector<4x16x8xf32>, vector<4x16x8xf32>, vector<4x16x8xf32>, vector<4x16x8xf32>, vector<4x16x8xf32>, vector<4x16x8xf32>, vector<4x16x8xf32>, vector<4x16x8xf32> -> vector<4x16x64xf32>
    %118 = arith.truncf %117 : vector<4x16x64xf32> to vector<4x16x64xbf16>
    %c0_36 = arith.constant 0 : index
    %c0_37 = arith.constant 0 : index
    %c0_38 = arith.constant 0 : index
    %119 = vector.load %arg3[%c0_36, %c0_37, %c0_38] : memref<4x16x64xbf16, #tpu.memory_space<vmem>>, vector<4x16x64xbf16>
    tpu.vector_store %arg3[%c0_36, %c0_37, %c0_38], %118 {strides = array<i32>} : memref<4x16x64xbf16, #tpu.memory_space<vmem>>, vector<4x16x64xbf16>,
    return
  }
  func.func @transform_0(%arg0: i32) -> (i32, i32, i32) {
    %c0_i32 = arith.constant 0 : i32
    %c0_i32_0 = arith.constant 0 : i32
    %c0_i32_1 = arith.constant 0 : i32
    return %arg0, %c0_i32, %c0_i32_0 : i32, i32, i32
  }
  func.func @transform_1(%arg0: i32) -> (i32, i32) {
    %c0_i32 = arith.constant 0 : i32
    %c0_i32_0 = arith.constant 0 : i32
    %c0_i32_1 = arith.constant 0 : i32
    return %c0_i32, %c0_i32_0 : i32, i32
  }
  func.func @transform_2(%arg0: i32) -> (i32, i32, i32) {
    %c0_i32 = arith.constant 0 : i32
    %c0_i32_0 = arith.constant 0 : i32
    %c0_i32_1 = arith.constant 0 : i32
    return %arg0, %c0_i32, %c0_i32_0 : i32, i32, i32
  }
}

</mosaic_0001>

<llo_original>
// kernel: tpu_custom_call.1
$region0: #{tpu_custom_call.1}
  #allocation0 [shape = 'u32[]', space=smem, size = 0x4, offset = 0x4, fixed_abs, tag = 'smem constant byte address 0x4 - core index']
  #allocation1 [shape = 'u32[144,128]{1,0:T(1,128)}', space=vmem, size = 0x12000, scoped, tag = 'internal scratch']
  %s0 = inlined_call_operand.hbm [shape: bf16[8,16,32], index: 0, kind: input, shape index: {}]
  %s1 = inlined_call_operand.hbm [shape: bf16[32,192], index: 1, kind: input, shape index: {}]
  %s2 = inlined_call_operand.hbm [shape: bf16[8,16,64], index: 2, kind: output, shape index: {}]
  %s3 = sld [smem:[#allocation0]]
  $region49: #{tpu_custom_call.1} parent=0
    _
  %s5 = ssub.s32 1, %s3
  %s6 = scalar_select 0, %s5, %s3
  $region1: #{tpu_custom_call.1} parent=0
    #allocation2 [shape = 'u8[32768]{0}', space=vmem, size = 0x8000, scoped, tag = 'input window, operand 0']
    #allocation3 [shape = 's32[2]{0}', space=sflag, size = 0x8, scoped, tag = 'scoped memory for tpu_custom_call.1']
    #allocation4 [shape = 's32[2]{0}', space=sflag, size = 0x8, scoped, tag = 'scoped memory for tpu_custom_call.1']
    #allocation5 [shape = 'u8[16384]{0}', space=vmem, size = 0x4000, scoped, tag = 'input window, operand 1, single buffered']
    #allocation6 [shape = 's32[1]{0}', space=sflag, size = 0x4, scoped, tag = 'scoped memory for tpu_custom_call.1']
    #allocation7 [shape = 'u8[32768]{0}', space=vmem, size = 0x8000, scoped, tag = 'output window, operand 0']
    %7 = vsyncpa [#allocation3], 0
    %s8 = scalar_lea.sflag [#allocation3], 1
    %9 = vsyncpa %s8, 0
    %10 = vsyncpa [#allocation6], 0
    %11 = vsyncpa [#allocation4], 0
    %s12 = scalar_lea.sflag [#allocation4], 1
    %13 = vsyncpa %s12, 0
    loop: start=0, step=1, limit=4
    $region2: #{tpu_custom_call.1} parent=1 // loop_pre_header
      _
    $region3: #{tpu_custom_call.1} parent=1 // loop_header
      %s15 = sphi 0, %s19
      %p16 = scmp.ge.s32.totalorder %s15, 4
      %s25 = sphi 0, %s27
      %s28 = sphi 0, %s25
      %s29 = sphi 0, %s28
      %s45 = sphi 0, %s29
      %s49 = sphi 0, %s49
      %s51 = sphi 0, %s49
      %s52 = sphi 0, %s51
      %s66 = sphi 0, %s52
      %s72 = sphi 0, %s74
      %s75 = sphi 0, %s72
      %s76 = sphi 0, %s75
      %s92 = sphi 0, %s76
    $region4: #{tpu_custom_call.1} parent=1 // loop_header_branch
      %18 = sbr.rel (%p16) target = $region8
    $region5: #{tpu_custom_call.1} parent=1 // loop_body
      %s20 = ssub.s32 %s15, 1
      %s21 = ssub.s32 %s15, 2
      %s22 = sadd.s32 %s15, 1
      %s23 = ssub.s32 %s15, %s22
      %p24 = scmp.eq.s32.totalorder %s23, 0
      %s26 = sadd.s32 %s25, 1
      %s27 = scalar_select %p24, %s25, %s26
      %p30 = pneg %p24
      %p31 = scmp.eq.s32.totalorder %s15, 1
      %p32 = por %p30, %p31
      %p33 = scmp.ne.s32.totalorder %s25, %s28
      %p34 = scmp.eq.s32.totalorder %s15, 0
      %p35 = por %p33, %p34
      %p36 = scmp.ne.s32.totalorder %s25, %s28
      %p37 = scmp.eq.s32.totalorder %s20, 1
      %p38 = por %p36, %p37
      %p39 = scmp.ne.s32.totalorder %s28, %s29
      %p40 = scmp.eq.s32.totalorder %s20, 0
      %p41 = por %p39, %p40
      %p42 = scmp.ne.s32.totalorder %s28, %s29
      %p43 = scmp.eq.s32.totalorder %s21, 1
      %p44 = por %p42, %p43
      %p46 = scmp.ne.s32.totalorder %s29, %s45
      %p47 = scmp.eq.s32.totalorder %s21, 0
      %p48 = por %p46, %p47
      %s50 = sadd.s32 %s49, 1
      %p53 = scmp.eq.s32.totalorder %s15, 1
      %p54 = scmp.ne.s32.totalorder %s49, %s51
      %p55 = scmp.eq.s32.totalorder %s15, 0
      %p56 = por %p54, %p55
      %p57 = scmp.ne.s32.totalorder %s49, %s51
      %p58 = scmp.eq.s32.totalorder %s20, 1
      %p59 = por %p57, %p58
      %p60 = scmp.ne.s32.totalorder %s51, %s52
      %p61 = scmp.eq.s32.totalorder %s20, 0
      %p62 = por %p60, %p61
      %p63 = scmp.ne.s32.totalorder %s51, %s52
      %p64 = scmp.eq.s32.totalorder %s21, 1
      %p65 = por %p63, %p64
      %p67 = scmp.ne.s32.totalorder %s52, %s66
      %p68 = scmp.eq.s32.totalorder %s21, 0
      %p69 = por %p67, %p68
      %s70 = ssub.s32 %s15, %s22
      %p71 = scmp.eq.s32.totalorder %s70, 0
      %s73 = sadd.s32 %s72, 1
      %s74 = scalar_select %p71, %s72, %s73
      %p77 = pneg %p71
      %p78 = scmp.eq.s32.totalorder %s15, 1
      %p79 = por %p77, %p78
      %p80 = scmp.ne.s32.totalorder %s72, %s75
      %p81 = scmp.eq.s32.totalorder %s15, 0
      %p82 = por %p80, %p81
      %p83 = scmp.ne.s32.totalorder %s72, %s75
      %p84 = scmp.eq.s32.totalorder %s20, 1
      %p85 = por %p83, %p84
      %p86 = scmp.ne.s32.totalorder %s75, %s76
      %p87 = scmp.eq.s32.totalorder %s20, 0
      %p88 = por %p86, %p87
      %p89 = scmp.ne.s32.totalorder %s75, %s76
      %p90 = scmp.eq.s32.totalorder %s21, 1
      %p91 = por %p89, %p90
      %p93 = scmp.ne.s32.totalorder %s76, %s92
      %p94 = scmp.eq.s32.totalorder %s21, 0
      %p95 = por %p93, %p94
      %p96 = scmp.le.s32.totalorder 1, %s15
      %p97 = scmp.lt.s32.totalorder %s15, 3
      %p98 = pnand %p96, %p97
      %p99 = pneg %p98
      // Predicated region
      $region9: #{tpu_custom_call.1} parent=5 // pred_check
        _
      $region10: #{tpu_custom_call.1} parent=5 // pred_check_branch
        %101 = sbr.rel (%p98) target = $region12
      $region11: #{tpu_custom_call.1} parent=5 // pred_region
        %s102 = ssub.s32 %s15, 1
        // Predicated region
        $region13: #{tpu_custom_call.1} parent=11 // pred_check
          %p103 = pneg %p62
        $region14: #{tpu_custom_call.1} parent=11 // pred_check_branch
          %105 = sbr.rel (%p103) target = $region16
        $region15: #{tpu_custom_call.1} parent=11 // pred_region
          %s107 = ssub.s32 512, 512
          %108 = vsyncadd [#allocation6], %s107
          %s109 = sshll.u32 [#allocation5], 4
          %s110 = int_to_ptr.vmem [resolvable:$true] %s109
          %115 = dma.hbm_to_vmem [thread:$0]  %s1, 512, %s110, [#allocation6], 128, 128, 8
        $region16: #{tpu_custom_call.1} parent=11 // pred_fallthru
          _
      $region12: #{tpu_custom_call.1} parent=5 // pred_fallthru
        _
      %p116 = scmp.lt.s32.totalorder %s15, 2
      // Predicated region
      $region17: #{tpu_custom_call.1} parent=5 // pred_check
        %p117 = pneg %p116
      $region18: #{tpu_custom_call.1} parent=5 // pred_check_branch
        %119 = sbr.rel (%p117) target = $region20
      $region19: #{tpu_custom_call.1} parent=5 // pred_region
        // Predicated region
        $region21: #{tpu_custom_call.1} parent=19 // pred_check
          %p120 = pneg %p35
        $region22: #{tpu_custom_call.1} parent=19 // pred_check_branch
          %122 = sbr.rel (%p120) target = $region24
        $region23: #{tpu_custom_call.1} parent=19 // pred_region
          %s123 = sand.u32 %s25, 1
          %s124 = scalar_lea.sflag [#allocation3], %s123
          %s125 = sand.u32 %s25, 1
          %s126 = smul.addr %s125, 32
          %s127 = scalar_lea.vmem [#allocation2], %s126
          %s128 = smul.u32 4, %s15
          %s130 = ssub.s32 512, 512
          %131 = vsyncadd %s124, %s130
          %s132 = smul.addr %s128, 2
          %s133 = smul.addr %s132, 64
          %s134 = scalar_lea.hbm %s0, %s133
          %s135 = sshll.u32 %s127, 4
          %s136 = int_to_ptr.vmem [resolvable:$true] %s135
          %141 = dma.hbm_to_vmem [thread:$0]  %s134, 512, %s136, %s124, 64, 64, 4
        $region24: #{tpu_custom_call.1} parent=19 // pred_fallthru
          _
      $region20: #{tpu_custom_call.1} parent=5 // pred_fallthru
        _
      %p142 = scmp.le.s32.totalorder 1, %s15
      %p143 = scmp.lt.s32.totalorder %s15, 3
      %p144 = pnand %p142, %p143
      %p145 = pneg %p144
      // Predicated region
      $region25: #{tpu_custom_call.1} parent=5 // pred_check
        _
      $region26: #{tpu_custom_call.1} parent=5 // pred_check_branch
        %147 = sbr.rel (%p144) target = $region28
      $region27: #{tpu_custom_call.1} parent=5 // pred_region
        %s148 = ssub.s32 %s15, 1
        %s149 = sand.u32 %s28, 1
        %s150 = scalar_lea.sflag [#allocation3], %s149
        %s151 = sand.u32 %s28, 1
        %s152 = smul.addr %s151, 32
        %s153 = scalar_lea.vmem [#allocation2], %s152
        // Predicated region
        $region29: #{tpu_custom_call.1} parent=27 // pred_check
          %p154 = pneg %p41
        $region30: #{tpu_custom_call.1} parent=27 // pred_check_branch
          %156 = sbr.rel (%p154) target = $region32
        $region31: #{tpu_custom_call.1} parent=27 // pred_region
          %157 = dma.done %s150, 512
        $region32: #{tpu_custom_call.1} parent=27 // pred_fallthru
          _
        // Predicated region
        $region33: #{tpu_custom_call.1} parent=27 // pred_check
          %p158 = pneg %p62
        $region34: #{tpu_custom_call.1} parent=27 // pred_check_branch
          %160 = sbr.rel (%p158) target = $region36
        $region35: #{tpu_custom_call.1} parent=27 // pred_region
          %161 = dma.done [#allocation6], 512
        $region36: #{tpu_custom_call.1} parent=27 // pred_fallthru
          _
        %s162 = sand.u32 %s28, 1
        %s163 = scalar_lea.sflag [#allocation3], %s162
        %s164 = sand.u32 %s28, 1
        %s165 = smul.addr %s164, 32
        %s166 = scalar_lea.vmem [#allocation2], %s165
        %p167 = pneg %p41
        %p168 = pneg %p38
        %p169 = pneg %p62
        %p170 = pneg %p59
        %p171 = pneg %p88
        %p172 = pneg %p85
        %s173 = sand.u32 %s75, 1
        %s174 = scalar_lea.sflag [#allocation4], %s173
        %s175 = sand.u32 %s75, 1
        %s176 = smul.addr %s175, 32
        %s177 = scalar_lea.vmem [#allocation7], %s176
        %s178 = smul.u32 4, %s20
        %s179 = smul.u32 4, %s20
        %v181 = vld [vmem:[#allocation5] sm:$0xff]
        %v182 = vld [vmem:[#allocation5 + $0x8] sm:$0xff]
        %v183 = vld [vmem:[#allocation5 + $0x10] sm:$0xff]
        %v184 = vld [vmem:[#allocation5 + $0x18] sm:$0xff]
        %v185 = vld [vmem:[%s153] sm:$0xf]
        %v186 = vld [vmem:[%s153 + $0x4] sm:$0xf]
        %v187 = vld [vmem:[%s153 + $0x8] sm:$0xf]
        %v188 = vld [vmem:[%s153 + $0xc] sm:$0xf]
        %v189 = vld [vmem:[%s153 + $0x10] sm:$0xf]
        %v190 = vld [vmem:[%s153 + $0x14] sm:$0xf]
        %v191 = vld [vmem:[%s153 + $0x18] sm:$0xf]
        %v192 = vld [vmem:[%s153 + $0x1c] sm:$0xf]
        %v201 = vunpack.c.l.b16 %v185
        %v202 = vunpack.c.l.b16 %v186
        %v203 = vunpack.c.l.b16 %v187
        %v204 = vunpack.c.l.b16 %v188
        %v205 = vunpack.c.l.b16 %v189
        %v206 = vunpack.c.l.b16 %v190
        %v207 = vunpack.c.l.b16 %v191
        %v208 = vunpack.c.l.b16 %v192
        %v209 = vpack.c.b16 %v202, %v201
        %v210 = vpack.c.b16 %v204, %v203
        %v211 = vpack.c.b16 %v206, %v205
        %v212 = vpack.c.b16 %v208, %v207
        %v217 = vunpack.c.l.b16 %v181
        %v218 = vunpack.c.h.b16 %v181
        %v219 = vunpack.c.l.b16 %v182
        %v220 = vunpack.c.h.b16 %v182
        %v221 = vunpack.c.l.b16 %v183
        %v222 = vunpack.c.h.b16 %v183
        %v223 = vunpack.c.l.b16 %v184
        %v224 = vunpack.c.h.b16 %v184
        %v225 = vpack.c.b16 %v219, %v217
        %v226 = vpack.c.b16 %v220, %v218
        %v227 = vpack.c.b16 %v223, %v221
        %v228 = vpack.c.b16 %v224, %v222
        %vm233 = vcmask 261120
        %v235 = vsel %vm233, %v209, 0
        %v238 = vsel %vm233, %v210, 0
        %v241 = vsel %vm233, %v211, 0
        %v244 = vsel %vm233, %v212, 0
        %246 = vmatprep.subr.bf16.mxu0 %v226
        %247 = vmatpush1.bf16.msra.mxu0 %v225
        %248 = vmatprep.subr.bf16.mxu0 %v228
        %249 = vmatpush1.bf16.msra.mxu0 %v227
        %250 = vmatprep.subr.bf16.mxu0 0
        %251 = vmatpush1.bf16.msra.mxu0 0
        %252 = vmatprep.subr.bf16.mxu0 0
        %253 = vmatpush1.bf16.msra.mxu0 0
        %254 = vmatprep.subr.bf16.mxu0 0
        %255 = vmatpush1.bf16.msra.mxu0 0
        %256 = vmatprep.subr.bf16.mxu0 0
        %257 = vmatpush1.bf16.msra.mxu0 0
        %258 = vmatprep.subr.bf16.mxu0 0
        %259 = vmatpush1.bf16.msra.mxu0 0
        %260 = vmatprep.subr.bf16.mxu0 0
        %261 = vmatpush1.bf16.msra.mxu0 0
        %262 = vmatprep.subr.bf16.mxu0 0
        %263 = vmatpush1.bf16.msra.mxu0 0
        %264 = vmatprep.subr.bf16.mxu0 0
        %265 = vmatpush1.bf16.msra.mxu0 0
        %266 = vmatprep.subr.bf16.mxu0 0
        %267 = vmatpush1.bf16.msra.mxu0 0
        %268 = vmatprep.subr.bf16.mxu0 0
        %269 = vmatpush1.bf16.msra.mxu0 0
        %270 = vmatprep.subr.bf16.mxu0 0
        %271 = vmatpush1.bf16.msra.mxu0 0
        %272 = vmatprep.subr.bf16.mxu0 0
        %273 = vmatpush1.bf16.msra.mxu0 0
        %274 = vmatprep.subr.bf16.mxu0 0
        %275 = vmatpush1.bf16.msra.mxu0 0
        %276 = vmatprep.subr.bf16.mxu0 0
        %277 = vmatpush1.bf16.msra.mxu0 0
        %278 = vmatprep.mubr.bf16.mxu0 0
        %279 = vmatmul.mubr.bf16.gmra.mrb[0].mxu0 %v235
        %v280 = vpop.f32.mrb[0].mxu0
        %v281 = vadd.f32 0.0, %v280
        %v282 = vpop.f32.mrb[0].mxu0
        %v283 = vadd.f32 0.0, %v282
        %v284 = vpop.f32.mrb[0].mxu0
        %v285 = vadd.f32 0.0, %v284
        %v286 = vpop.f32.mrb[0].mxu0
        %v287 = vadd.f32 0.0, %v286
        %288 = vmatprep.mubr.bf16.mxu0 0
        %289 = vmatmul.mubr.bf16.gmra.mrb[0].mxu0 %v238
        %v290 = vpop.f32.mrb[0].mxu0
        %v291 = vadd.f32 0.0, %v290
        %v292 = vpop.f32.mrb[0].mxu0
        %v293 = vadd.f32 0.0, %v292
        %v294 = vpop.f32.mrb[0].mxu0
        %v295 = vadd.f32 0.0, %v294
        %v296 = vpop.f32.mrb[0].mxu0
        %v297 = vadd.f32 0.0, %v296
        %298 = vmatprep.mubr.bf16.mxu0 0
        %299 = vmatmul.mubr.bf16.gmra.mrb[0].mxu0 %v241
        %v300 = vpop.f32.mrb[0].mxu0
        %v301 = vadd.f32 0.0, %v300
        %v302 = vpop.f32.mrb[0].mxu0
        %v303 = vadd.f32 0.0, %v302
        %v304 = vpop.f32.mrb[0].mxu0
        %v305 = vadd.f32 0.0, %v304
        %v306 = vpop.f32.mrb[0].mxu0
        %v307 = vadd.f32 0.0, %v306
        %308 = vmatprep.mubr.bf16.mxu0 0
        %309 = vmatmul.mubr.bf16.gmra.mrb[0].mxu0 %v244
        %v310 = vpop.f32.mrb[0].mxu0
        %v311 = vadd.f32 0.0, %v310
        %v312 = vpop.f32.mrb[0].mxu0
        %v313 = vadd.f32 0.0, %v312
        %v314 = vpop.f32.mrb[0].mxu0
        %v315 = vadd.f32 0.0, %v314
        %v316 = vpop.f32.mrb[0].mxu0
        %v317 = vadd.f32 0.0, %v316
        %318 = vdwg.mxu0
        %321 = vrot.lane.b32.xlu0 %v281, 64
        %v322 = vpop.permute.xlu0 %321
        %323 = vrot.lane.b32.xlu0 %v285, 64
        %v324 = vpop.permute.xlu0 %323
        %vm325 = vcmask 64512
        %v326 = vsel %vm325, %v281, 0
        %v328 = vsel %vm325, %v285, 0
        %v330 = vsel %vm325, %v322, 0
        %v332 = vsel %vm325, %v324, 0
        %334 = vmatprep.subr.mxu0 0.0
        %335 = vmatpush1.xpose.msra.mxu0 %v330
        %336 = vmatprep.subr.mxu0 0.0
        %337 = vmatpush1.xpose.msra.mxu0 %v332
        %338 = vmatprep.subr.mxu0 0.0
        %339 = vmatpush1.xpose.msra.mxu0 0.0
        %340 = vmatprep.subr.mxu0 0.0
        %341 = vmatpush1.xpose.msra.mxu0 0.0
        %342 = vmatprep.subr.mxu0 0.0
        %343 = vmatpush1.xpose.msra.mxu0 0.0
        %344 = vmatprep.subr.mxu0 0.0
        %345 = vmatpush1.xpose.msra.mxu0 0.0
        %346 = vmatprep.subr.mxu0 0.0
        %347 = vmatpush1.xpose.msra.mxu0 0.0
        %348 = vmatprep.subr.mxu0 0.0
        %349 = vmatpush1.xpose.msra.mxu0 0.0
        %350 = vmatprep.subr.mxu0 0.0
        %351 = vmatpush1.xpose.msra.mxu0 0.0
        %352 = vmatprep.subr.mxu0 0.0
        %353 = vmatpush1.xpose.msra.mxu0 0.0
        %354 = vmatprep.subr.mxu0 0.0
        %355 = vmatpush1.xpose.msra.mxu0 0.0
        %356 = vmatprep.subr.mxu0 0.0
        %357 = vmatpush1.xpose.msra.mxu0 0.0
        %358 = vmatprep.subr.mxu0 0.0
        %359 = vmatpush1.xpose.msra.mxu0 0.0
        %360 = vmatprep.subr.mxu0 0.0
        %361 = vmatpush1.xpose.msra.mxu0 0.0
        %362 = vmatprep.subr.mxu0 0.0
        %363 = vmatpush1.xpose.msra.mxu0 0.0
        %364 = vmatprep.subr.mxu0 0.0
        %365 = vmatpush1.xpose.msra.mxu0 0.0
        %366 = vmatprep.subr.mxu0 0.0
        %367 = vmatpush1.xpose.msra.mxu0 0.0
        %368 = vmatprep.subr.mxu0 0.0
        %369 = vmatpush1.xpose.msra.mxu0 0.0
        %370 = vmatprep.subr.mxu0 0.0
        %371 = vmatpush1.xpose.msra.mxu0 0.0
        %372 = vmatprep.subr.mxu0 0.0
        %373 = vmatpush1.xpose.msra.mxu0 0.0
        %374 = vmatprep.subr.mxu0 0.0
        %375 = vmatpush1.xpose.msra.mxu0 0.0
        %376 = vmatprep.subr.mxu0 0.0
        %377 = vmatpush1.xpose.msra.mxu0 0.0
        %378 = vmatprep.subr.mxu0 0.0
        %379 = vmatpush1.xpose.msra.mxu0 0.0
        %380 = vmatprep.subr.mxu0 0.0
        %381 = vmatpush1.xpose.msra.mxu0 0.0
        %382 = vmatprep.subr.mxu0 0.0
        %383 = vmatpush1.xpose.msra.mxu0 0.0
        %384 = vmatprep.subr.mxu0 0.0
        %385 = vmatpush1.xpose.msra.mxu0 0.0
        %386 = vmatprep.subr.mxu0 0.0
        %387 = vmatpush1.xpose.msra.mxu0 0.0
        %388 = vmatprep.subr.mxu0 0.0
        %389 = vmatpush1.xpose.msra.mxu0 0.0
        %390 = vmatprep.subr.mxu0 0.0
        %391 = vmatpush1.xpose.msra.mxu0 0.0
        %392 = vmatprep.subr.mxu0 0.0
        %393 = vmatpush1.xpose.msra.mxu0 0.0
        %394 = vmatprep.subr.mxu0 0.0
        %395 = vmatpush1.xpose.msra.mxu0 0.0
        %396 = vmatprep.subr.mxu0 0.0
        %397 = vmatpush1.xpose.msra.mxu0 0.0
        %398 = vmatprep.mubr.f32.mxu0 0.0
        %399 = vmatmul.mubr.f32.gmra.mrb[0].mxu0 %v326
        %v400 = vpop.f32.mrb[0].mxu0
        %v401 = vadd.f32 0.0, %v400
        %v402 = vpop.f32.mrb[0].mxu0
        %403 = vmatprep.mubr.f32.mxu0 0.0
        %404 = vmatmul.mubr.f32.gmra.mrb[0].mxu0 %v328
        %v405 = vpop.f32.mrb[0].mxu0
        %v406 = vadd.f32 0.0, %v405
        %v407 = vpop.f32.mrb[0].mxu0
        %408 = vdwg.mxu0
        %411 = vrot.lane.b32.xlu0 %v291, 64
        %v412 = vpop.permute.xlu0 %411
        %413 = vrot.lane.b32.xlu0 %v295, 64
        %v414 = vpop.permute.xlu0 %413
        %v415 = vsel %vm325, %v291, 0
        %v417 = vsel %vm325, %v295, 0
        %v419 = vsel %vm325, %v412, 0
        %v421 = vsel %vm325, %v414, 0
        %423 = vmatprep.subr.mxu0 0.0
        %424 = vmatpush1.xpose.msra.mxu0 %v419
        %425 = vmatprep.subr.mxu0 0.0
        %426 = vmatpush1.xpose.msra.mxu0 %v421
        %427 = vmatprep.subr.mxu0 0.0
        %428 = vmatpush1.xpose.msra.mxu0 0.0
        %429 = vmatprep.subr.mxu0 0.0
        %430 = vmatpush1.xpose.msra.mxu0 0.0
        %431 = vmatprep.subr.mxu0 0.0
        %432 = vmatpush1.xpose.msra.mxu0 0.0
        %433 = vmatprep.subr.mxu0 0.0
        %434 = vmatpush1.xpose.msra.mxu0 0.0
        %435 = vmatprep.subr.mxu0 0.0
        %436 = vmatpush1.xpose.msra.mxu0 0.0
        %437 = vmatprep.subr.mxu0 0.0
        %438 = vmatpush1.xpose.msra.mxu0 0.0
        %439 = vmatprep.subr.mxu0 0.0
        %440 = vmatpush1.xpose.msra.mxu0 0.0
        %441 = vmatprep.subr.mxu0 0.0
        %442 = vmatpush1.xpose.msra.mxu0 0.0
        %443 = vmatprep.subr.mxu0 0.0
        %444 = vmatpush1.xpose.msra.mxu0 0.0
        %445 = vmatprep.subr.mxu0 0.0
        %446 = vmatpush1.xpose.msra.mxu0 0.0
        %447 = vmatprep.subr.mxu0 0.0
        %448 = vmatpush1.xpose.msra.mxu0 0.0
        %449 = vmatprep.subr.mxu0 0.0
        %450 = vmatpush1.xpose.msra.mxu0 0.0
        %451 = vmatprep.subr.mxu0 0.0
        %452 = vmatpush1.xpose.msra.mxu0 0.0
        %453 = vmatprep.subr.mxu0 0.0
        %454 = vmatpush1.xpose.msra.mxu0 0.0
        %455 = vmatprep.subr.mxu0 0.0
        %456 = vmatpush1.xpose.msra.mxu0 0.0
        %457 = vmatprep.subr.mxu0 0.0
        %458 = vmatpush1.xpose.msra.mxu0 0.0
        %459 = vmatprep.subr.mxu0 0.0
        %460 = vmatpush1.xpose.msra.mxu0 0.0
        %461 = vmatprep.subr.mxu0 0.0
        %462 = vmatpush1.xpose.msra.mxu0 0.0
        %463 = vmatprep.subr.mxu0 0.0
        %464 = vmatpush1.xpose.msra.mxu0 0.0
        %465 = vmatprep.subr.mxu0 0.0
        %466 = vmatpush1.xpose.msra.mxu0 0.0
        %467 = vmatprep.subr.mxu0 0.0
        %468 = vmatpush1.xpose.msra.mxu0 0.0
        %469 = vmatprep.subr.mxu0 0.0
        %470 = vmatpush1.xpose.msra.mxu0 0.0
        %471 = vmatprep.subr.mxu0 0.0
        %472 = vmatpush1.xpose.msra.mxu0 0.0
        %473 = vmatprep.subr.mxu0 0.0
        %474 = vmatpush1.xpose.msra.mxu0 0.0
        %475 = vmatprep.subr.mxu0 0.0
        %476 = vmatpush1.xpose.msra.mxu0 0.0
        %477 = vmatprep.subr.mxu0 0.0
        %478 = vmatpush1.xpose.msra.mxu0 0.0
        %479 = vmatprep.subr.mxu0 0.0
        %480 = vmatpush1.xpose.msra.mxu0 0.0
        %481 = vmatprep.subr.mxu0 0.0
        %482 = vmatpush1.xpose.msra.mxu0 0.0
        %483 = vmatprep.subr.mxu0 0.0
        %484 = vmatpush1.xpose.msra.mxu0 0.0
        %485 = vmatprep.subr.mxu0 0.0
        %486 = vmatpush1.xpose.msra.mxu0 0.0
        %487 = vmatprep.mubr.f32.mxu0 0.0
        %488 = vmatmul.mubr.f32.gmra.mrb[0].mxu0 %v415
        %v489 = vpop.f32.mrb[0].mxu0
        %v490 = vadd.f32 0.0, %v489
        %v491 = vpop.f32.mrb[0].mxu0
        %492 = vmatprep.mubr.f32.mxu0 0.0
        %493 = vmatmul.mubr.f32.gmra.mrb[0].mxu0 %v417
        %v494 = vpop.f32.mrb[0].mxu0
        %v495 = vadd.f32 0.0, %v494
        %v496 = vpop.f32.mrb[0].mxu0
        %497 = vdwg.mxu0
        %500 = vrot.lane.b32.xlu0 %v301, 64
        %v501 = vpop.permute.xlu0 %500
        %502 = vrot.lane.b32.xlu0 %v305, 64
        %v503 = vpop.permute.xlu0 %502
        %v504 = vsel %vm325, %v301, 0
        %v506 = vsel %vm325, %v305, 0
        %v508 = vsel %vm325, %v501, 0
        %v510 = vsel %vm325, %v503, 0
        %512 = vmatprep.subr.mxu0 0.0
        %513 = vmatpush1.xpose.msra.mxu0 %v508
        %514 = vmatprep.subr.mxu0 0.0
        %515 = vmatpush1.xpose.msra.mxu0 %v510
        %516 = vmatprep.subr.mxu0 0.0
        %517 = vmatpush1.xpose.msra.mxu0 0.0
        %518 = vmatprep.subr.mxu0 0.0
        %519 = vmatpush1.xpose.msra.mxu0 0.0
        %520 = vmatprep.subr.mxu0 0.0
        %521 = vmatpush1.xpose.msra.mxu0 0.0
        %522 = vmatprep.subr.mxu0 0.0
        %523 = vmatpush1.xpose.msra.mxu0 0.0
        %524 = vmatprep.subr.mxu0 0.0
        %525 = vmatpush1.xpose.msra.mxu0 0.0
        %526 = vmatprep.subr.mxu0 0.0
        %527 = vmatpush1.xpose.msra.mxu0 0.0
        %528 = vmatprep.subr.mxu0 0.0
        %529 = vmatpush1.xpose.msra.mxu0 0.0
        %530 = vmatprep.subr.mxu0 0.0
        %531 = vmatpush1.xpose.msra.mxu0 0.0
        %532 = vmatprep.subr.mxu0 0.0
        %533 = vmatpush1.xpose.msra.mxu0 0.0
        %534 = vmatprep.subr.mxu0 0.0
        %535 = vmatpush1.xpose.msra.mxu0 0.0
        %536 = vmatprep.subr.mxu0 0.0
        %537 = vmatpush1.xpose.msra.mxu0 0.0
        %538 = vmatprep.subr.mxu0 0.0
        %539 = vmatpush1.xpose.msra.mxu0 0.0
        %540 = vmatprep.subr.mxu0 0.0
        %541 = vmatpush1.xpose.msra.mxu0 0.0
        %542 = vmatprep.subr.mxu0 0.0
        %543 = vmatpush1.xpose.msra.mxu0 0.0
        %544 = vmatprep.subr.mxu0 0.0
        %545 = vmatpush1.xpose.msra.mxu0 0.0
        %546 = vmatprep.subr.mxu0 0.0
        %547 = vmatpush1.xpose.msra.mxu0 0.0
        %548 = vmatprep.subr.mxu0 0.0
        %549 = vmatpush1.xpose.msra.mxu0 0.0
        %550 = vmatprep.subr.mxu0 0.0
        %551 = vmatpush1.xpose.msra.mxu0 0.0
        %552 = vmatprep.subr.mxu0 0.0
        %553 = vmatpush1.xpose.msra.mxu0 0.0
        %554 = vmatprep.subr.mxu0 0.0
        %555 = vmatpush1.xpose.msra.mxu0 0.0
        %556 = vmatprep.subr.mxu0 0.0
        %557 = vmatpush1.xpose.msra.mxu0 0.0
        %558 = vmatprep.subr.mxu0 0.0
        %559 = vmatpush1.xpose.msra.mxu0 0.0
        %560 = vmatprep.subr.mxu0 0.0
        %561 = vmatpush1.xpose.msra.mxu0 0.0
        %562 = vmatprep.subr.mxu0 0.0
        %563 = vmatpush1.xpose.msra.mxu0 0.0
        %564 = vmatprep.subr.mxu0 0.0
        %565 = vmatpush1.xpose.msra.mxu0 0.0
        %566 = vmatprep.subr.mxu0 0.0
        %567 = vmatpush1.xpose.msra.mxu0 0.0
        %568 = vmatprep.subr.mxu0 0.0
        %569 = vmatpush1.xpose.msra.mxu0 0.0
        %570 = vmatprep.subr.mxu0 0.0
        %571 = vmatpush1.xpose.msra.mxu0 0.0
        %572 = vmatprep.subr.mxu0 0.0
        %573 = vmatpush1.xpose.msra.mxu0 0.0
        %574 = vmatprep.subr.mxu0 0.0
        %575 = vmatpush1.xpose.msra.mxu0 0.0
        %576 = vmatprep.mubr.f32.mxu0 0.0
        %577 = vmatmul.mubr.f32.gmra.mrb[0].mxu0 %v504
        %v578 = vpop.f32.mrb[0].mxu0
        %v579 = vadd.f32 0.0, %v578
        %v580 = vpop.f32.mrb[0].mxu0
        %581 = vmatprep.mubr.f32.mxu0 0.0
        %582 = vmatmul.mubr.f32.gmra.mrb[0].mxu0 %v506
        %v583 = vpop.f32.mrb[0].mxu0
        %v584 = vadd.f32 0.0, %v583
        %v585 = vpop.f32.mrb[0].mxu0
        %586 = vdwg.mxu0
        %589 = vrot.lane.b32.xlu0 %v311, 64
        %v590 = vpop.permute.xlu0 %589
        %591 = vrot.lane.b32.xlu0 %v315, 64
        %v592 = vpop.permute.xlu0 %591
        %v593 = vsel %vm325, %v311, 0
        %v595 = vsel %vm325, %v315, 0
        %v597 = vsel %vm325, %v590, 0
        %v599 = vsel %vm325, %v592, 0
        %601 = vmatprep.subr.mxu0 0.0
        %602 = vmatpush1.xpose.msra.mxu0 %v597
        %603 = vmatprep.subr.mxu0 0.0
        %604 = vmatpush1.xpose.msra.mxu0 %v599
        %605 = vmatprep.subr.mxu0 0.0
        %606 = vmatpush1.xpose.msra.mxu0 0.0
        %607 = vmatprep.subr.mxu0 0.0
        %608 = vmatpush1.xpose.msra.mxu0 0.0
        %609 = vmatprep.subr.mxu0 0.0
        %610 = vmatpush1.xpose.msra.mxu0 0.0
        %611 = vmatprep.subr.mxu0 0.0
        %612 = vmatpush1.xpose.msra.mxu0 0.0
        %613 = vmatprep.subr.mxu0 0.0
        %614 = vmatpush1.xpose.msra.mxu0 0.0
        %615 = vmatprep.subr.mxu0 0.0
        %616 = vmatpush1.xpose.msra.mxu0 0.0
        %617 = vmatprep.subr.mxu0 0.0
        %618 = vmatpush1.xpose.msra.mxu0 0.0
        %619 = vmatprep.subr.mxu0 0.0
        %620 = vmatpush1.xpose.msra.mxu0 0.0
        %621 = vmatprep.subr.mxu0 0.0
        %622 = vmatpush1.xpose.msra.mxu0 0.0
        %623 = vmatprep.subr.mxu0 0.0
        %624 = vmatpush1.xpose.msra.mxu0 0.0
        %625 = vmatprep.subr.mxu0 0.0
        %626 = vmatpush1.xpose.msra.mxu0 0.0
        %627 = vmatprep.subr.mxu0 0.0
        %628 = vmatpush1.xpose.msra.mxu0 0.0
        %629 = vmatprep.subr.mxu0 0.0
        %630 = vmatpush1.xpose.msra.mxu0 0.0
        %631 = vmatprep.subr.mxu0 0.0
        %632 = vmatpush1.xpose.msra.mxu0 0.0
        %633 = vmatprep.subr.mxu0 0.0
        %634 = vmatpush1.xpose.msra.mxu0 0.0
        %635 = vmatprep.subr.mxu0 0.0
        %636 = vmatpush1.xpose.msra.mxu0 0.0
        %637 = vmatprep.subr.mxu0 0.0
        %638 = vmatpush1.xpose.msra.mxu0 0.0
        %639 = vmatprep.subr.mxu0 0.0
        %640 = vmatpush1.xpose.msra.mxu0 0.0
        %641 = vmatprep.subr.mxu0 0.0
        %642 = vmatpush1.xpose.msra.mxu0 0.0
        %643 = vmatprep.subr.mxu0 0.0
        %644 = vmatpush1.xpose.msra.mxu0 0.0
        %645 = vmatprep.subr.mxu0 0.0
        %646 = vmatpush1.xpose.msra.mxu0 0.0
        %647 = vmatprep.subr.mxu0 0.0
        %648 = vmatpush1.xpose.msra.mxu0 0.0
        %649 = vmatprep.subr.mxu0 0.0
        %650 = vmatpush1.xpose.msra.mxu0 0.0
        %651 = vmatprep.subr.mxu0 0.0
        %652 = vmatpush1.xpose.msra.mxu0 0.0
        %653 = vmatprep.subr.mxu0 0.0
        %654 = vmatpush1.xpose.msra.mxu0 0.0
        %655 = vmatprep.subr.mxu0 0.0
        %656 = vmatpush1.xpose.msra.mxu0 0.0
        %657 = vmatprep.subr.mxu0 0.0
        %658 = vmatpush1.xpose.msra.mxu0 0.0
        %659 = vmatprep.subr.mxu0 0.0
        %660 = vmatpush1.xpose.msra.mxu0 0.0
        %661 = vmatprep.subr.mxu0 0.0
        %662 = vmatpush1.xpose.msra.mxu0 0.0
        %663 = vmatprep.subr.mxu0 0.0
        %664 = vmatpush1.xpose.msra.mxu0 0.0
        %665 = vmatprep.mubr.f32.mxu0 0.0
        %666 = vmatmul.mubr.f32.gmra.mrb[0].mxu0 %v593
        %v667 = vpop.f32.mrb[0].mxu0
        %v668 = vadd.f32 0.0, %v667
        %v669 = vpop.f32.mrb[0].mxu0
        %670 = vmatprep.mubr.f32.mxu0 0.0
        %671 = vmatmul.mubr.f32.gmra.mrb[0].mxu0 %v595
        %v672 = vpop.f32.mrb[0].mxu0
        %v673 = vadd.f32 0.0, %v672
        %v674 = vpop.f32.mrb[0].mxu0
        %675 = vdwg.mxu0
        %vm676 = vcmask 130048
        %v677 = vsel %vm676, %v401, -inf
        %678 = vmax.xlane.f32.xlu0 %v677
        %v679 = vpop.xlane.xlu0 %678
        %v680 = vsel %vm676, %v406, -inf
        %681 = vmax.xlane.f32.xlu0 %v680
        %v682 = vpop.xlane.xlu0 %681
        %v683 = vsel %vm676, %v490, -inf
        %684 = vmax.xlane.f32.xlu0 %v683
        %v685 = vpop.xlane.xlu0 %684
        %v686 = vsel %vm676, %v495, -inf
        %687 = vmax.xlane.f32.xlu0 %v686
        %v688 = vpop.xlane.xlu0 %687
        %v689 = vsel %vm676, %v579, -inf
        %690 = vmax.xlane.f32.xlu0 %v689
        %v691 = vpop.xlane.xlu0 %690
        %v692 = vsel %vm676, %v584, -inf
        %693 = vmax.xlane.f32.xlu0 %v692
        %v694 = vpop.xlane.xlu0 %693
        %v695 = vsel %vm676, %v668, -inf
        %696 = vmax.xlane.f32.xlu0 %v695
        %v697 = vpop.xlane.xlu0 %696
        %v698 = vsel %vm676, %v673, -inf
        %699 = vmax.xlane.f32.xlu0 %v698
        %v700 = vpop.xlane.xlu0 %699
        %v701 = vsub.f32 %v401, %v679
        %v702 = vsub.f32 %v406, %v682
        %v703 = vsub.f32 %v490, %v685
        %v704 = vsub.f32 %v495, %v688
        %v705 = vsub.f32 %v579, %v691
        %v706 = vsub.f32 %v584, %v694
        %v707 = vsub.f32 %v668, %v697
        %v708 = vsub.f32 %v673, %v700
        %v709 = vmul.f32 %v701, 1.442695
        %v710 = vpow.pop %v709
        %v711 = vmul.f32 %v702, 1.442695
        %v712 = vpow.pop %v711
        %v713 = vmul.f32 %v703, 1.442695
        %v714 = vpow.pop %v713
        %v715 = vmul.f32 %v704, 1.442695
        %v716 = vpow.pop %v715
        %v717 = vmul.f32 %v705, 1.442695
        %v718 = vpow.pop %v717
        %v719 = vmul.f32 %v706, 1.442695
        %v720 = vpow.pop %v719
        %v721 = vmul.f32 %v707, 1.442695
        %v722 = vpow.pop %v721
        %v723 = vmul.f32 %v708, 1.442695
        %v724 = vpow.pop %v723
        %v725 = vsel %vm676, %v710, 0.0
        %726 = vadd.xlane.f32.xlu0 %v725
        %v727 = vpop.xlane.xlu0 %726
        %v728 = vsel %vm676, %v712, 0.0
        %729 = vadd.xlane.f32.xlu0 %v728
        %v730 = vpop.xlane.xlu0 %729
        %v731 = vsel %vm676, %v714, 0.0
        %732 = vadd.xlane.f32.xlu0 %v731
        %v733 = vpop.xlane.xlu0 %732
        %v734 = vsel %vm676, %v716, 0.0
        %735 = vadd.xlane.f32.xlu0 %v734
        %v736 = vpop.xlane.xlu0 %735
        %v737 = vsel %vm676, %v718, 0.0
        %738 = vadd.xlane.f32.xlu0 %v737
        %v739 = vpop.xlane.xlu0 %738
        %v740 = vsel %vm676, %v720, 0.0
        %741 = vadd.xlane.f32.xlu0 %v740
        %v742 = vpop.xlane.xlu0 %741
        %v743 = vsel %vm676, %v722, 0.0
        %744 = vadd.xlane.f32.xlu0 %v743
        %v745 = vpop.xlane.xlu0 %744
        %v746 = vsel %vm676, %v724, 0.0
        %747 = vadd.xlane.f32.xlu0 %v746
        %v748 = vpop.xlane.xlu0 %747
        %v749 = vrcp.pop %v727
        %v750 = vmul.f32 %v710, %v749
        %v751 = vrcp.pop %v730
        %v752 = vmul.f32 %v712, %v751
        %v753 = vrcp.pop %v733
        %v754 = vmul.f32 %v714, %v753
        %v755 = vrcp.pop %v736
        %v756 = vmul.f32 %v716, %v755
        %v757 = vrcp.pop %v739
        %v758 = vmul.f32 %v718, %v757
        %v759 = vrcp.pop %v742
        %v760 = vmul.f32 %v720, %v759
        %v761 = vrcp.pop %v745
        %v762 = vmul.f32 %v722, %v761
        %v763 = vrcp.pop %v748
        %v764 = vmul.f32 %v724, %v763
        %v766 = vsel %vm676, %v750, 0
        %v769 = vsel %vm676, %v752, 0
        %771 = vmatprep.subr.mxu0 0.0
        %772 = vmatpush1.msra.mxu0 %v283
        %773 = vmatprep.subr.mxu0 0.0
        %774 = vmatpush1.msra.mxu0 %v287
        %775 = vmatprep.subr.mxu0 0.0
        %776 = vmatpush1.msra.mxu0 0.0
        %777 = vmatprep.subr.mxu0 0.0
        %778 = vmatpush1.msra.mxu0 0.0
        %779 = vmatprep.subr.mxu0 0.0
        %780 = vmatpush1.msra.mxu0 0.0
        %781 = vmatprep.subr.mxu0 0.0
        %782 = vmatpush1.msra.mxu0 0.0
        %783 = vmatprep.subr.mxu0 0.0
        %784 = vmatpush1.msra.mxu0 0.0
        %785 = vmatprep.subr.mxu0 0.0
        %786 = vmatpush1.msra.mxu0 0.0
        %787 = vmatprep.subr.mxu0 0.0
        %788 = vmatpush1.msra.mxu0 0.0
        %789 = vmatprep.subr.mxu0 0.0
        %790 = vmatpush1.msra.mxu0 0.0
        %791 = vmatprep.subr.mxu0 0.0
        %792 = vmatpush1.msra.mxu0 0.0
        %793 = vmatprep.subr.mxu0 0.0
        %794 = vmatpush1.msra.mxu0 0.0
        %795 = vmatprep.subr.mxu0 0.0
        %796 = vmatpush1.msra.mxu0 0.0
        %797 = vmatprep.subr.mxu0 0.0
        %798 = vmatpush1.msra.mxu0 0.0
        %799 = vmatprep.subr.mxu0 0.0
        %800 = vmatpush1.msra.mxu0 0.0
        %801 = vmatprep.subr.mxu0 0.0
        %802 = vmatpush1.msra.mxu0 0.0
        %803 = vmatprep.subr.mxu0 0.0
        %804 = vmatpush1.msra.mxu0 0.0
        %805 = vmatprep.subr.mxu0 0.0
        %806 = vmatpush1.msra.mxu0 0.0
        %807 = vmatprep.subr.mxu0 0.0
        %808 = vmatpush1.msra.mxu0 0.0
        %809 = vmatprep.subr.mxu0 0.0
        %810 = vmatpush1.msra.mxu0 0.0
        %811 = vmatprep.subr.mxu0 0.0
        %812 = vmatpush1.msra.mxu0 0.0
        %813 = vmatprep.subr.mxu0 0.0
        %814 = vmatpush1.msra.mxu0 0.0
        %815 = vmatprep.subr.mxu0 0.0
        %816 = vmatpush1.msra.mxu0 0.0
        %817 = vmatprep.subr.mxu0 0.0
        %818 = vmatpush1.msra.mxu0 0.0
        %819 = vmatprep.subr.mxu0 0.0
        %820 = vmatpush1.msra.mxu0 0.0
        %821 = vmatprep.subr.mxu0 0.0
        %822 = vmatpush1.msra.mxu0 0.0
        %823 = vmatprep.subr.mxu0 0.0
        %824 = vmatpush1.msra.mxu0 0.0
        %825 = vmatprep.subr.mxu0 0.0
        %826 = vmatpush1.msra.mxu0 0.0
        %827 = vmatprep.subr.mxu0 0.0
        %828 = vmatpush1.msra.mxu0 0.0
        %829 = vmatprep.subr.mxu0 0.0
        %830 = vmatpush1.msra.mxu0 0.0
        %831 = vmatprep.subr.mxu0 0.0
        %832 = vmatpush1.msra.mxu0 0.0
        %833 = vmatprep.subr.mxu0 0.0
        %834 = vmatpush1.msra.mxu0 0.0
        %835 = vmatprep.mubr.f32.mxu0 0.0
        %836 = vmatmul.mubr.f32.gmra.mrb[0].mxu0 %v766
        %v837 = vpop.f32.mrb[0].mxu0
        %v838 = vadd.f32 0.0, %v837
        %v839 = vpop.f32.mrb[0].mxu0
        %840 = vmatprep.mubr.f32.mxu0 0.0
        %841 = vmatmul.mubr.f32.gmra.mrb[0].mxu0 %v769
        %v842 = vpop.f32.mrb[0].mxu0
        %v843 = vadd.f32 0.0, %v842
        %v844 = vpop.f32.mrb[0].mxu0
        %845 = vdwg.mxu0
        %v847 = vsel %vm676, %v754, 0
        %v850 = vsel %vm676, %v756, 0
        %852 = vmatprep.subr.mxu0 0.0
        %853 = vmatpush1.msra.mxu0 %v293
        %854 = vmatprep.subr.mxu0 0.0
        %855 = vmatpush1.msra.mxu0 %v297
        %856 = vmatprep.subr.mxu0 0.0
        %857 = vmatpush1.msra.mxu0 0.0
        %858 = vmatprep.subr.mxu0 0.0
        %859 = vmatpush1.msra.mxu0 0.0
        %860 = vmatprep.subr.mxu0 0.0
        %861 = vmatpush1.msra.mxu0 0.0
        %862 = vmatprep.subr.mxu0 0.0
        %863 = vmatpush1.msra.mxu0 0.0
        %864 = vmatprep.subr.mxu0 0.0
        %865 = vmatpush1.msra.mxu0 0.0
        %866 = vmatprep.subr.mxu0 0.0
        %867 = vmatpush1.msra.mxu0 0.0
        %868 = vmatprep.subr.mxu0 0.0
        %869 = vmatpush1.msra.mxu0 0.0
        %870 = vmatprep.subr.mxu0 0.0
        %871 = vmatpush1.msra.mxu0 0.0
        %872 = vmatprep.subr.mxu0 0.0
        %873 = vmatpush1.msra.mxu0 0.0
        %874 = vmatprep.subr.mxu0 0.0
        %875 = vmatpush1.msra.mxu0 0.0
        %876 = vmatprep.subr.mxu0 0.0
        %877 = vmatpush1.msra.mxu0 0.0
        %878 = vmatprep.subr.mxu0 0.0
        %879 = vmatpush1.msra.mxu0 0.0
        %880 = vmatprep.subr.mxu0 0.0
        %881 = vmatpush1.msra.mxu0 0.0
        %882 = vmatprep.subr.mxu0 0.0
        %883 = vmatpush1.msra.mxu0 0.0
        %884 = vmatprep.subr.mxu0 0.0
        %885 = vmatpush1.msra.mxu0 0.0
        %886 = vmatprep.subr.mxu0 0.0
        %887 = vmatpush1.msra.mxu0 0.0
        %888 = vmatprep.subr.mxu0 0.0
        %889 = vmatpush1.msra.mxu0 0.0
        %890 = vmatprep.subr.mxu0 0.0
        %891 = vmatpush1.msra.mxu0 0.0
        %892 = vmatprep.subr.mxu0 0.0
        %893 = vmatpush1.msra.mxu0 0.0
        %894 = vmatprep.subr.mxu0 0.0
        %895 = vmatpush1.msra.mxu0 0.0
        %896 = vmatprep.subr.mxu0 0.0
        %897 = vmatpush1.msra.mxu0 0.0
        %898 = vmatprep.subr.mxu0 0.0
        %899 = vmatpush1.msra.mxu0 0.0
        %900 = vmatprep.subr.mxu0 0.0
        %901 = vmatpush1.msra.mxu0 0.0
        %902 = vmatprep.subr.mxu0 0.0
        %903 = vmatpush1.msra.mxu0 0.0
        %904 = vmatprep.subr.mxu0 0.0
        %905 = vmatpush1.msra.mxu0 0.0
        %906 = vmatprep.subr.mxu0 0.0
        %907 = vmatpush1.msra.mxu0 0.0
        %908 = vmatprep.subr.mxu0 0.0
        %909 = vmatpush1.msra.mxu0 0.0
        %910 = vmatprep.subr.mxu0 0.0
        %911 = vmatpush1.msra.mxu0 0.0
        %912 = vmatprep.subr.mxu0 0.0
        %913 = vmatpush1.msra.mxu0 0.0
        %914 = vmatprep.subr.mxu0 0.0
        %915 = vmatpush1.msra.mxu0 0.0
        %916 = vmatprep.mubr.f32.mxu0 0.0
        %917 = vmatmul.mubr.f32.gmra.mrb[0].mxu0 %v847
        %v918 = vpop.f32.mrb[0].mxu0
        %v919 = vadd.f32 0.0, %v918
        %v920 = vpop.f32.mrb[0].mxu0
        %921 = vmatprep.mubr.f32.mxu0 0.0
        %922 = vmatmul.mubr.f32.gmra.mrb[0].mxu0 %v850
        %v923 = vpop.f32.mrb[0].mxu0
        %v924 = vadd.f32 0.0, %v923
        %v925 = vpop.f32.mrb[0].mxu0
        %926 = vdwg.mxu0
        %v928 = vsel %vm676, %v758, 0
        %v931 = vsel %vm676, %v760, 0
        %933 = vmatprep.subr.mxu0 0.0
        %934 = vmatpush1.msra.mxu0 %v303
        %935 = vmatprep.subr.mxu0 0.0
        %936 = vmatpush1.msra.mxu0 %v307
        %937 = vmatprep.subr.mxu0 0.0
        %938 = vmatpush1.msra.mxu0 0.0
        %939 = vmatprep.subr.mxu0 0.0
        %940 = vmatpush1.msra.mxu0 0.0
        %941 = vmatprep.subr.mxu0 0.0
        %942 = vmatpush1.msra.mxu0 0.0
        %943 = vmatprep.subr.mxu0 0.0
        %944 = vmatpush1.msra.mxu0 0.0
        %945 = vmatprep.subr.mxu0 0.0
        %946 = vmatpush1.msra.mxu0 0.0
        %947 = vmatprep.subr.mxu0 0.0
        %948 = vmatpush1.msra.mxu0 0.0
        %949 = vmatprep.subr.mxu0 0.0
        %950 = vmatpush1.msra.mxu0 0.0
        %951 = vmatprep.subr.mxu0 0.0
        %952 = vmatpush1.msra.mxu0 0.0
        %953 = vmatprep.subr.mxu0 0.0
        %954 = vmatpush1.msra.mxu0 0.0
        %955 = vmatprep.subr.mxu0 0.0
        %956 = vmatpush1.msra.mxu0 0.0
        %957 = vmatprep.subr.mxu0 0.0
        %958 = vmatpush1.msra.mxu0 0.0
        %959 = vmatprep.subr.mxu0 0.0
        %960 = vmatpush1.msra.mxu0 0.0
        %961 = vmatprep.subr.mxu0 0.0
        %962 = vmatpush1.msra.mxu0 0.0
        %963 = vmatprep.subr.mxu0 0.0
        %964 = vmatpush1.msra.mxu0 0.0
        %965 = vmatprep.subr.mxu0 0.0
        %966 = vmatpush1.msra.mxu0 0.0
        %967 = vmatprep.subr.mxu0 0.0
        %968 = vmatpush1.msra.mxu0 0.0
        %969 = vmatprep.subr.mxu0 0.0
        %970 = vmatpush1.msra.mxu0 0.0
        %971 = vmatprep.subr.mxu0 0.0
        %972 = vmatpush1.msra.mxu0 0.0
        %973 = vmatprep.subr.mxu0 0.0
        %974 = vmatpush1.msra.mxu0 0.0
        %975 = vmatprep.subr.mxu0 0.0
        %976 = vmatpush1.msra.mxu0 0.0
        %977 = vmatprep.subr.mxu0 0.0
        %978 = vmatpush1.msra.mxu0 0.0
        %979 = vmatprep.subr.mxu0 0.0
        %980 = vmatpush1.msra.mxu0 0.0
        %981 = vmatprep.subr.mxu0 0.0
        %982 = vmatpush1.msra.mxu0 0.0
        %983 = vmatprep.subr.mxu0 0.0
        %984 = vmatpush1.msra.mxu0 0.0
        %985 = vmatprep.subr.mxu0 0.0
        %986 = vmatpush1.msra.mxu0 0.0
        %987 = vmatprep.subr.mxu0 0.0
        %988 = vmatpush1.msra.mxu0 0.0
        %989 = vmatprep.subr.mxu0 0.0
        %990 = vmatpush1.msra.mxu0 0.0
        %991 = vmatprep.subr.mxu0 0.0
        %992 = vmatpush1.msra.mxu0 0.0
        %993 = vmatprep.subr.mxu0 0.0
        %994 = vmatpush1.msra.mxu0 0.0
        %995 = vmatprep.subr.mxu0 0.0
        %996 = vmatpush1.msra.mxu0 0.0
        %997 = vmatprep.mubr.f32.mxu0 0.0
        %998 = vmatmul.mubr.f32.gmra.mrb[0].mxu0 %v928
        %v999 = vpop.f32.mrb[0].mxu0
        %v1000 = vadd.f32 0.0, %v999
        %v1001 = vpop.f32.mrb[0].mxu0
        %1002 = vmatprep.mubr.f32.mxu0 0.0
        %1003 = vmatmul.mubr.f32.gmra.mrb[0].mxu0 %v931
        %v1004 = vpop.f32.mrb[0].mxu0
        %v1005 = vadd.f32 0.0, %v1004
        %v1006 = vpop.f32.mrb[0].mxu0
        %1007 = vdwg.mxu0
        %v1009 = vsel %vm676, %v762, 0
        %v1012 = vsel %vm676, %v764, 0
        %1014 = vmatprep.subr.mxu0 0.0
        %1015 = vmatpush1.msra.mxu0 %v313
        %1016 = vmatprep.subr.mxu0 0.0
        %1017 = vmatpush1.msra.mxu0 %v317
        %1018 = vmatprep.subr.mxu0 0.0
        %1019 = vmatpush1.msra.mxu0 0.0
        %1020 = vmatprep.subr.mxu0 0.0
        %1021 = vmatpush1.msra.mxu0 0.0
        %1022 = vmatprep.subr.mxu0 0.0
        %1023 = vmatpush1.msra.mxu0 0.0
        %1024 = vmatprep.subr.mxu0 0.0
        %1025 = vmatpush1.msra.mxu0 0.0
        %1026 = vmatprep.subr.mxu0 0.0
        %1027 = vmatpush1.msra.mxu0 0.0
        %1028 = vmatprep.subr.mxu0 0.0
        %1029 = vmatpush1.msra.mxu0 0.0
        %1030 = vmatprep.subr.mxu0 0.0
        %1031 = vmatpush1.msra.mxu0 0.0
        %1032 = vmatprep.subr.mxu0 0.0
        %1033 = vmatpush1.msra.mxu0 0.0
        %1034 = vmatprep.subr.mxu0 0.0
        %1035 = vmatpush1.msra.mxu0 0.0
        %1036 = vmatprep.subr.mxu0 0.0
        %1037 = vmatpush1.msra.mxu0 0.0
        %1038 = vmatprep.subr.mxu0 0.0
        %1039 = vmatpush1.msra.mxu0 0.0
        %1040 = vmatprep.subr.mxu0 0.0
        %1041 = vmatpush1.msra.mxu0 0.0
        %1042 = vmatprep.subr.mxu0 0.0
        %1043 = vmatpush1.msra.mxu0 0.0
        %1044 = vmatprep.subr.mxu0 0.0
        %1045 = vmatpush1.msra.mxu0 0.0
        %1046 = vmatprep.subr.mxu0 0.0
        %1047 = vmatpush1.msra.mxu0 0.0
        %1048 = vmatprep.subr.mxu0 0.0
        %1049 = vmatpush1.msra.mxu0 0.0
        %1050 = vmatprep.subr.mxu0 0.0
        %1051 = vmatpush1.msra.mxu0 0.0
        %1052 = vmatprep.subr.mxu0 0.0
        %1053 = vmatpush1.msra.mxu0 0.0
        %1054 = vmatprep.subr.mxu0 0.0
        %1055 = vmatpush1.msra.mxu0 0.0
        %1056 = vmatprep.subr.mxu0 0.0
        %1057 = vmatpush1.msra.mxu0 0.0
        %1058 = vmatprep.subr.mxu0 0.0
        %1059 = vmatpush1.msra.mxu0 0.0
        %1060 = vmatprep.subr.mxu0 0.0
        %1061 = vmatpush1.msra.mxu0 0.0
        %1062 = vmatprep.subr.mxu0 0.0
        %1063 = vmatpush1.msra.mxu0 0.0
        %1064 = vmatprep.subr.mxu0 0.0
        %1065 = vmatpush1.msra.mxu0 0.0
        %1066 = vmatprep.subr.mxu0 0.0
        %1067 = vmatpush1.msra.mxu0 0.0
        %1068 = vmatprep.subr.mxu0 0.0
        %1069 = vmatpush1.msra.mxu0 0.0
        %1070 = vmatprep.subr.mxu0 0.0
        %1071 = vmatpush1.msra.mxu0 0.0
        %1072 = vmatprep.subr.mxu0 0.0
        %1073 = vmatpush1.msra.mxu0 0.0
        %1074 = vmatprep.subr.mxu0 0.0
        %1075 = vmatpush1.msra.mxu0 0.0
        %1076 = vmatprep.subr.mxu0 0.0
        %1077 = vmatpush1.msra.mxu0 0.0
        %1078 = vmatprep.mubr.f32.mxu0 0.0
        %1079 = vmatmul.mubr.f32.gmra.mrb[0].mxu0 %v1009
        %v1080 = vpop.f32.mrb[0].mxu0
        %v1081 = vadd.f32 0.0, %v1080
        %v1082 = vpop.f32.mrb[0].mxu0
        %1083 = vmatprep.mubr.f32.mxu0 0.0
        %1084 = vmatmul.mubr.f32.gmra.mrb[0].mxu0 %v1012
        %v1085 = vpop.f32.mrb[0].mxu0
        %v1086 = vadd.f32 0.0, %v1085
        %v1087 = vpop.f32.mrb[0].mxu0
        %1088 = vdwg.mxu0
        %1089 = vrot.lane.b32.xlu0 %v281, 120
        %v1090 = vpop.permute.xlu0 %1089
        %1091 = vrot.lane.b32.xlu0 %v285, 120
        %v1092 = vpop.permute.xlu0 %1091
        %1093 = vrot.lane.b32.xlu0 %v281, 56
        %v1094 = vpop.permute.xlu0 %1093
        %1095 = vrot.lane.b32.xlu0 %v285, 56
        %v1096 = vpop.permute.xlu0 %1095
        %v1097 = vsel %vm325, %v1090, 0
        %v1099 = vsel %vm325, %v1092, 0
        %v1101 = vsel %vm325, %v1094, 0
        %v1103 = vsel %vm325, %v1096, 0
        %1105 = vmatprep.subr.mxu0 0.0
        %1106 = vmatpush1.xpose.msra.mxu0 %v1101
        %1107 = vmatprep.subr.mxu0 0.0
        %1108 = vmatpush1.xpose.msra.mxu0 %v1103
        %1109 = vmatprep.subr.mxu0 0.0
        %1110 = vmatpush1.xpose.msra.mxu0 0.0
        %1111 = vmatprep.subr.mxu0 0.0
        %1112 = vmatpush1.xpose.msra.mxu0 0.0
        %1113 = vmatprep.subr.mxu0 0.0
        %1114 = vmatpush1.xpose.msra.mxu0 0.0
        %1115 = vmatprep.subr.mxu0 0.0
        %1116 = vmatpush1.xpose.msra.mxu0 0.0
        %1117 = vmatprep.subr.mxu0 0.0
        %1118 = vmatpush1.xpose.msra.mxu0 0.0
        %1119 = vmatprep.subr.mxu0 0.0
        %1120 = vmatpush1.xpose.msra.mxu0 0.0
        %1121 = vmatprep.subr.mxu0 0.0
        %1122 = vmatpush1.xpose.msra.mxu0 0.0
        %1123 = vmatprep.subr.mxu0 0.0
        %1124 = vmatpush1.xpose.msra.mxu0 0.0
        %1125 = vmatprep.subr.mxu0 0.0
        %1126 = vmatpush1.xpose.msra.mxu0 0.0
        %1127 = vmatprep.subr.mxu0 0.0
        %1128 = vmatpush1.xpose.msra.mxu0 0.0
        %1129 = vmatprep.subr.mxu0 0.0
        %1130 = vmatpush1.xpose.msra.mxu0 0.0
        %1131 = vmatprep.subr.mxu0 0.0
        %1132 = vmatpush1.xpose.msra.mxu0 0.0
        %1133 = vmatprep.subr.mxu0 0.0
        %1134 = vmatpush1.xpose.msra.mxu0 0.0
        %1135 = vmatprep.subr.mxu0 0.0
        %1136 = vmatpush1.xpose.msra.mxu0 0.0
        %1137 = vmatprep.subr.mxu0 0.0
        %1138 = vmatpush1.xpose.msra.mxu0 0.0
        %1139 = vmatprep.subr.mxu0 0.0
        %1140 = vmatpush1.xpose.msra.mxu0 0.0
        %1141 = vmatprep.subr.mxu0 0.0
        %1142 = vmatpush1.xpose.msra.mxu0 0.0
        %1143 = vmatprep.subr.mxu0 0.0
        %1144 = vmatpush1.xpose.msra.mxu0 0.0
        %1145 = vmatprep.subr.mxu0 0.0
        %1146 = vmatpush1.xpose.msra.mxu0 0.0
        %1147 = vmatprep.subr.mxu0 0.0
        %1148 = vmatpush1.xpose.msra.mxu0 0.0
        %1149 = vmatprep.subr.mxu0 0.0
        %1150 = vmatpush1.xpose.msra.mxu0 0.0
        %1151 = vmatprep.subr.mxu0 0.0
        %1152 = vmatpush1.xpose.msra.mxu0 0.0
        %1153 = vmatprep.subr.mxu0 0.0
        %1154 = vmatpush1.xpose.msra.mxu0 0.0
        %1155 = vmatprep.subr.mxu0 0.0
        %1156 = vmatpush1.xpose.msra.mxu0 0.0
        %1157 = vmatprep.subr.mxu0 0.0
        %1158 = vmatpush1.xpose.msra.mxu0 0.0
        %1159 = vmatprep.subr.mxu0 0.0
        %1160 = vmatpush1.xpose.msra.mxu0 0.0
        %1161 = vmatprep.subr.mxu0 0.0
        %1162 = vmatpush1.xpose.msra.mxu0 0.0
        %1163 = vmatprep.subr.mxu0 0.0
        %1164 = vmatpush1.xpose.msra.mxu0 0.0
        %1165 = vmatprep.subr.mxu0 0.0
        %1166 = vmatpush1.xpose.msra.mxu0 0.0
        %1167 = vmatprep.subr.mxu0 0.0
        %1168 = vmatpush1.xpose.msra.mxu0 0.0
        %1169 = vmatprep.mubr.f32.mxu0 0.0
        %1170 = vmatmul.mubr.f32.gmra.mrb[0].mxu0 %v1097
        %v1171 = vpop.f32.mrb[0].mxu0
        %v1172 = vadd.f32 0.0, %v1171
        %v1173 = vpop.f32.mrb[0].mxu0
        %1174 = vmatprep.mubr.f32.mxu0 0.0
        %1175 = vmatmul.mubr.f32.gmra.mrb[0].mxu0 %v1099
        %v1176 = vpop.f32.mrb[0].mxu0
        %v1177 = vadd.f32 0.0, %v1176
        %v1178 = vpop.f32.mrb[0].mxu0
        %1179 = vdwg.mxu0
        %1180 = vrot.lane.b32.xlu0 %v291, 120
        %v1181 = vpop.permute.xlu0 %1180
        %1182 = vrot.lane.b32.xlu0 %v295, 120
        %v1183 = vpop.permute.xlu0 %1182
        %1184 = vrot.lane.b32.xlu0 %v291, 56
        %v1185 = vpop.permute.xlu0 %1184
        %1186 = vrot.lane.b32.xlu0 %v295, 56
        %v1187 = vpop.permute.xlu0 %1186
        %v1188 = vsel %vm325, %v1181, 0
        %v1190 = vsel %vm325, %v1183, 0
        %v1192 = vsel %vm325, %v1185, 0
        %v1194 = vsel %vm325, %v1187, 0
        %1196 = vmatprep.subr.mxu0 0.0
        %1197 = vmatpush1.xpose.msra.mxu0 %v1192
        %1198 = vmatprep.subr.mxu0 0.0
        %1199 = vmatpush1.xpose.msra.mxu0 %v1194
        %1200 = vmatprep.subr.mxu0 0.0
        %1201 = vmatpush1.xpose.msra.mxu0 0.0
        %1202 = vmatprep.subr.mxu0 0.0
        %1203 = vmatpush1.xpose.msra.mxu0 0.0
        %1204 = vmatprep.subr.mxu0 0.0
        %1205 = vmatpush1.xpose.msra.mxu0 0.0
        %1206 = vmatprep.subr.mxu0 0.0
        %1207 = vmatpush1.xpose.msra.mxu0 0.0
        %1208 = vmatprep.subr.mxu0 0.0
        %1209 = vmatpush1.xpose.msra.mxu0 0.0
        %1210 = vmatprep.subr.mxu0 0.0
        %1211 = vmatpush1.xpose.msra.mxu0 0.0
        %1212 = vmatprep.subr.mxu0 0.0
        %1213 = vmatpush1.xpose.msra.mxu0 0.0
        %1214 = vmatprep.subr.mxu0 0.0
        %1215 = vmatpush1.xpose.msra.mxu0 0.0
        %1216 = vmatprep.subr.mxu0 0.0
        %1217 = vmatpush1.xpose.msra.mxu0 0.0
        %1218 = vmatprep.subr.mxu0 0.0
        %1219 = vmatpush1.xpose.msra.mxu0 0.0
        %1220 = vmatprep.subr.mxu0 0.0
        %1221 = vmatpush1.xpose.msra.mxu0 0.0
        %1222 = vmatprep.subr.mxu0 0.0
        %1223 = vmatpush1.xpose.msra.mxu0 0.0
        %1224 = vmatprep.subr.mxu0 0.0
        %1225 = vmatpush1.xpose.msra.mxu0 0.0
        %1226 = vmatprep.subr.mxu0 0.0
        %1227 = vmatpush1.xpose.msra.mxu0 0.0
        %1228 = vmatprep.subr.mxu0 0.0
        %1229 = vmatpush1.xpose.msra.mxu0 0.0
        %1230 = vmatprep.subr.mxu0 0.0
        %1231 = vmatpush1.xpose.msra.mxu0 0.0
        %1232 = vmatprep.subr.mxu0 0.0
        %1233 = vmatpush1.xpose.msra.mxu0 0.0
        %1234 = vmatprep.subr.mxu0 0.0
        %1235 = vmatpush1.xpose.msra.mxu0 0.0
        %1236 = vmatprep.subr.mxu0 0.0
        %1237 = vmatpush1.xpose.msra.mxu0 0.0
        %1238 = vmatprep.subr.mxu0 0.0
        %1239 = vmatpush1.xpose.msra.mxu0 0.0
        %1240 = vmatprep.subr.mxu0 0.0
        %1241 = vmatpush1.xpose.msra.mxu0 0.0
        %1242 = vmatprep.subr.mxu0 0.0
        %1243 = vmatpush1.xpose.msra.mxu0 0.0
        %1244 = vmatprep.subr.mxu0 0.0
        %1245 = vmatpush1.xpose.msra.mxu0 0.0
        %1246 = vmatprep.subr.mxu0 0.0
        %1247 = vmatpush1.xpose.msra.mxu0 0.0
        %1248 = vmatprep.subr.mxu0 0.0
        %1249 = vmatpush1.xpose.msra.mxu0 0.0
        %1250 = vmatprep.subr.mxu0 0.0
        %1251 = vmatpush1.xpose.msra.mxu0 0.0
        %1252 = vmatprep.subr.mxu0 0.0
        %1253 = vmatpush1.xpose.msra.mxu0 0.0
        %1254 = vmatprep.subr.mxu0 0.0
        %1255 = vmatpush1.xpose.msra.mxu0 0.0
        %1256 = vmatprep.subr.mxu0 0.0
        %1257 = vmatpush1.xpose.msra.mxu0 0.0
        %1258 = vmatprep.subr.mxu0 0.0
        %1259 = vmatpush1.xpose.msra.mxu0 0.0
        %1260 = vmatprep.mubr.f32.mxu0 0.0
        %1261 = vmatmul.mubr.f32.gmra.mrb[0].mxu0 %v1188
        %v1262 = vpop.f32.mrb[0].mxu0
        %v1263 = vadd.f32 0.0, %v1262
        %v1264 = vpop.f32.mrb[0].mxu0
        %1265 = vmatprep.mubr.f32.mxu0 0.0
        %1266 = vmatmul.mubr.f32.gmra.mrb[0].mxu0 %v1190
        %v1267 = vpop.f32.mrb[0].mxu0
        %v1268 = vadd.f32 0.0, %v1267
        %v1269 = vpop.f32.mrb[0].mxu0
        %1270 = vdwg.mxu0
        %1271 = vrot.lane.b32.xlu0 %v301, 120
        %v1272 = vpop.permute.xlu0 %1271
        %1273 = vrot.lane.b32.xlu0 %v305, 120
        %v1274 = vpop.permute.xlu0 %1273
        %1275 = vrot.lane.b32.xlu0 %v301, 56
        %v1276 = vpop.permute.xlu0 %1275
        %1277 = vrot.lane.b32.xlu0 %v305, 56
        %v1278 = vpop.permute.xlu0 %1277
        %v1279 = vsel %vm325, %v1272, 0
        %v1281 = vsel %vm325, %v1274, 0
        %v1283 = vsel %vm325, %v1276, 0
        %v1285 = vsel %vm325, %v1278, 0
        %1287 = vmatprep.subr.mxu0 0.0
        %1288 = vmatpush1.xpose.msra.mxu0 %v1283
        %1289 = vmatprep.subr.mxu0 0.0
        %1290 = vmatpush1.xpose.msra.mxu0 %v1285
        %1291 = vmatprep.subr.mxu0 0.0
        %1292 = vmatpush1.xpose.msra.mxu0 0.0
        %1293 = vmatprep.subr.mxu0 0.0
        %1294 = vmatpush1.xpose.msra.mxu0 0.0
        %1295 = vmatprep.subr.mxu0 0.0
        %1296 = vmatpush1.xpose.msra.mxu0 0.0
        %1297 = vmatprep.subr.mxu0 0.0
        %1298 = vmatpush1.xpose.msra.mxu0 0.0
        %1299 = vmatprep.subr.mxu0 0.0
        %1300 = vmatpush1.xpose.msra.mxu0 0.0
        %1301 = vmatprep.subr.mxu0 0.0
        %1302 = vmatpush1.xpose.msra.mxu0 0.0
        %1303 = vmatprep.subr.mxu0 0.0
        %1304 = vmatpush1.xpose.msra.mxu0 0.0
        %1305 = vmatprep.subr.mxu0 0.0
        %1306 = vmatpush1.xpose.msra.mxu0 0.0
        %1307 = vmatprep.subr.mxu0 0.0
        %1308 = vmatpush1.xpose.msra.mxu0 0.0
        %1309 = vmatprep.subr.mxu0 0.0
        %1310 = vmatpush1.xpose.msra.mxu0 0.0
        %1311 = vmatprep.subr.mxu0 0.0
        %1312 = vmatpush1.xpose.msra.mxu0 0.0
        %1313 = vmatprep.subr.mxu0 0.0
        %1314 = vmatpush1.xpose.msra.mxu0 0.0
        %1315 = vmatprep.subr.mxu0 0.0
        %1316 = vmatpush1.xpose.msra.mxu0 0.0
        %1317 = vmatprep.subr.mxu0 0.0
        %1318 = vmatpush1.xpose.msra.mxu0 0.0
        %1319 = vmatprep.subr.mxu0 0.0
        %1320 = vmatpush1.xpose.msra.mxu0 0.0
        %1321 = vmatprep.subr.mxu0 0.0
        %1322 = vmatpush1.xpose.msra.mxu0 0.0
        %1323 = vmatprep.subr.mxu0 0.0
        %1324 = vmatpush1.xpose.msra.mxu0 0.0
        %1325 = vmatprep.subr.mxu0 0.0
        %1326 = vmatpush1.xpose.msra.mxu0 0.0
        %1327 = vmatprep.subr.mxu0 0.0
        %1328 = vmatpush1.xpose.msra.mxu0 0.0
        %1329 = vmatprep.subr.mxu0 0.0
        %1330 = vmatpush1.xpose.msra.mxu0 0.0
        %1331 = vmatprep.subr.mxu0 0.0
        %1332 = vmatpush1.xpose.msra.mxu0 0.0
        %1333 = vmatprep.subr.mxu0 0.0
        %1334 = vmatpush1.xpose.msra.mxu0 0.0
        %1335 = vmatprep.subr.mxu0 0.0
        %1336 = vmatpush1.xpose.msra.mxu0 0.0
        %1337 = vmatprep.subr.mxu0 0.0
        %1338 = vmatpush1.xpose.msra.mxu0 0.0
        %1339 = vmatprep.subr.mxu0 0.0
        %1340 = vmatpush1.xpose.msra.mxu0 0.0
        %1341 = vmatprep.subr.mxu0 0.0
        %1342 = vmatpush1.xpose.msra.mxu0 0.0
        %1343 = vmatprep.subr.mxu0 0.0
        %1344 = vmatpush1.xpose.msra.mxu0 0.0
        %1345 = vmatprep.subr.mxu0 0.0
        %1346 = vmatpush1.xpose.msra.mxu0 0.0
        %1347 = vmatprep.subr.mxu0 0.0
        %1348 = vmatpush1.xpose.msra.mxu0 0.0
        %1349 = vmatprep.subr.mxu0 0.0
        %1350 = vmatpush1.xpose.msra.mxu0 0.0
        %1351 = vmatprep.mubr.f32.mxu0 0.0
        %1352 = vmatmul.mubr.f32.gmra.mrb[0].mxu0 %v1279
        %v1353 = vpop.f32.mrb[0].mxu0
        %v1354 = vadd.f32 0.0, %v1353
        %v1355 = vpop.f32.mrb[0].mxu0
        %1356 = vmatprep.mubr.f32.mxu0 0.0
        %1357 = vmatmul.mubr.f32.gmra.mrb[0].mxu0 %v1281
        %v1358 = vpop.f32.mrb[0].mxu0
        %v1359 = vadd.f32 0.0, %v1358
        %v1360 = vpop.f32.mrb[0].mxu0
        %1361 = vdwg.mxu0
        %1362 = vrot.lane.b32.xlu0 %v311, 120
        %v1363 = vpop.permute.xlu0 %1362
        %1364 = vrot.lane.b32.xlu0 %v315, 120
        %v1365 = vpop.permute.xlu0 %1364
        %1366 = vrot.lane.b32.xlu0 %v311, 56
        %v1367 = vpop.permute.xlu0 %1366
        %1368 = vrot.lane.b32.xlu0 %v315, 56
        %v1369 = vpop.permute.xlu0 %1368
        %v1370 = vsel %vm325, %v1363, 0
        %v1372 = vsel %vm325, %v1365, 0
        %v1374 = vsel %vm325, %v1367, 0
        %v1376 = vsel %vm325, %v1369, 0
        %1378 = vmatprep.subr.mxu0 0.0
        %1379 = vmatpush1.xpose.msra.mxu0 %v1374
        %1380 = vmatprep.subr.mxu0 0.0
        %1381 = vmatpush1.xpose.msra.mxu0 %v1376
        %1382 = vmatprep.subr.mxu0 0.0
        %1383 = vmatpush1.xpose.msra.mxu0 0.0
        %1384 = vmatprep.subr.mxu0 0.0
        %1385 = vmatpush1.xpose.msra.mxu0 0.0
        %1386 = vmatprep.subr.mxu0 0.0
        %1387 = vmatpush1.xpose.msra.mxu0 0.0
        %1388 = vmatprep.subr.mxu0 0.0
        %1389 = vmatpush1.xpose.msra.mxu0 0.0
        %1390 = vmatprep.subr.mxu0 0.0
        %1391 = vmatpush1.xpose.msra.mxu0 0.0
        %1392 = vmatprep.subr.mxu0 0.0
        %1393 = vmatpush1.xpose.msra.mxu0 0.0
        %1394 = vmatprep.subr.mxu0 0.0
        %1395 = vmatpush1.xpose.msra.mxu0 0.0
        %1396 = vmatprep.subr.mxu0 0.0
        %1397 = vmatpush1.xpose.msra.mxu0 0.0
        %1398 = vmatprep.subr.mxu0 0.0
        %1399 = vmatpush1.xpose.msra.mxu0 0.0
        %1400 = vmatprep.subr.mxu0 0.0
        %1401 = vmatpush1.xpose.msra.mxu0 0.0
        %1402 = vmatprep.subr.mxu0 0.0
        %1403 = vmatpush1.xpose.msra.mxu0 0.0
        %1404 = vmatprep.subr.mxu0 0.0
        %1405 = vmatpush1.xpose.msra.mxu0 0.0
        %1406 = vmatprep.subr.mxu0 0.0
        %1407 = vmatpush1.xpose.msra.mxu0 0.0
        %1408 = vmatprep.subr.mxu0 0.0
        %1409 = vmatpush1.xpose.msra.mxu0 0.0
        %1410 = vmatprep.subr.mxu0 0.0
        %1411 = vmatpush1.xpose.msra.mxu0 0.0
        %1412 = vmatprep.subr.mxu0 0.0
        %1413 = vmatpush1.xpose.msra.mxu0 0.0
        %1414 = vmatprep.subr.mxu0 0.0
        %1415 = vmatpush1.xpose.msra.mxu0 0.0
        %1416 = vmatprep.subr.mxu0 0.0
        %1417 = vmatpush1.xpose.msra.mxu0 0.0
        %1418 = vmatprep.subr.mxu0 0.0
        %1419 = vmatpush1.xpose.msra.mxu0 0.0
        %1420 = vmatprep.subr.mxu0 0.0
        %1421 = vmatpush1.xpose.msra.mxu0 0.0
        %1422 = vmatprep.subr.mxu0 0.0
        %1423 = vmatpush1.xpose.msra.mxu0 0.0
        %1424 = vmatprep.subr.mxu0 0.0
        %1425 = vmatpush1.xpose.msra.mxu0 0.0
        %1426 = vmatprep.subr.mxu0 0.0
        %1427 = vmatpush1.xpose.msra.mxu0 0.0
        %1428 = vmatprep.subr.mxu0 0.0
        %1429 = vmatpush1.xpose.msra.mxu0 0.0
        %1430 = vmatprep.subr.mxu0 0.0
        %1431 = vmatpush1.xpose.msra.mxu0 0.0
        %1432 = vmatprep.subr.mxu0 0.0
        %1433 = vmatpush1.xpose.msra.mxu0 0.0
        %1434 = vmatprep.subr.mxu0 0.0
        %1435 = vmatpush1.xpose.msra.mxu0 0.0
        %1436 = vmatprep.subr.mxu0 0.0
        %1437 = vmatpush1.xpose.msra.mxu0 0.0
        %1438 = vmatprep.subr.mxu0 0.0
        %1439 = vmatpush1.xpose.msra.mxu0 0.0
        %1440 = vmatprep.subr.mxu0 0.0
        %1441 = vmatpush1.xpose.msra.mxu0 0.0
        %1442 = vmatprep.mubr.f32.mxu0 0.0
        %1443 = vmatmul.mubr.f32.gmra.mrb[0].mxu0 %v1370
        %v1444 = vpop.f32.mrb[0].mxu0
        %v1445 = vadd.f32 0.0, %v1444
        %v1446 = vpop.f32.mrb[0].mxu0
        %1447 = vmatprep.mubr.f32.mxu0 0.0
        %1448 = vmatmul.mubr.f32.gmra.mrb[0].mxu0 %v1372
        %v1449 = vpop.f32.mrb[0].mxu0
        %v1450 = vadd.f32 0.0, %v1449
        %v1451 = vpop.f32.mrb[0].mxu0
        %1452 = vdwg.mxu0
        %v1453 = vsel %vm676, %v1172, -inf
        %1454 = vmax.xlane.f32.xlu0 %v1453
        %v1455 = vpop.xlane.xlu0 %1454
        %v1456 = vsel %vm676, %v1177, -inf
        %1457 = vmax.xlane.f32.xlu0 %v1456
        %v1458 = vpop.xlane.xlu0 %1457
        %v1459 = vsel %vm676, %v1263, -inf
        %1460 = vmax.xlane.f32.xlu0 %v1459
        %v1461 = vpop.xlane.xlu0 %1460
        %v1462 = vsel %vm676, %v1268, -inf
        %1463 = vmax.xlane.f32.xlu0 %v1462
        %v1464 = vpop.xlane.xlu0 %1463
        %v1465 = vsel %vm676, %v1354, -inf
        %1466 = vmax.xlane.f32.xlu0 %v1465
        %v1467 = vpop.xlane.xlu0 %1466
        %v1468 = vsel %vm676, %v1359, -inf
        %1469 = vmax.xlane.f32.xlu0 %v1468
        %v1470 = vpop.xlane.xlu0 %1469
        %v1471 = vsel %vm676, %v1445, -inf
        %1472 = vmax.xlane.f32.xlu0 %v1471
        %v1473 = vpop.xlane.xlu0 %1472
        %v1474 = vsel %vm676, %v1450, -inf
        %1475 = vmax.xlane.f32.xlu0 %v1474
        %v1476 = vpop.xlane.xlu0 %1475
        %v1477 = vsub.f32 %v1172, %v1455
        %v1478 = vsub.f32 %v1177, %v1458
        %v1479 = vsub.f32 %v1263, %v1461
        %v1480 = vsub.f32 %v1268, %v1464
        %v1481 = vsub.f32 %v1354, %v1467
        %v1482 = vsub.f32 %v1359, %v1470
        %v1483 = vsub.f32 %v1445, %v1473
        %v1484 = vsub.f32 %v1450, %v1476
        %v1485 = vmul.f32 %v1477, 1.442695
        %v1486 = vpow.pop %v1485
        %v1487 = vmul.f32 %v1478, 1.442695
        %v1488 = vpow.pop %v1487
        %v1489 = vmul.f32 %v1479, 1.442695
        %v1490 = vpow.pop %v1489
        %v1491 = vmul.f32 %v1480, 1.442695
        %v1492 = vpow.pop %v1491
        %v1493 = vmul.f32 %v1481, 1.442695
        %v1494 = vpow.pop %v1493
        %v1495 = vmul.f32 %v1482, 1.442695
        %v1496 = vpow.pop %v1495
        %v1497 = vmul.f32 %v1483, 1.442695
        %v1498 = vpow.pop %v1497
        %v1499 = vmul.f32 %v1484, 1.442695
        %v1500 = vpow.pop %v1499
        %v1501 = vsel %vm676, %v1486, 0.0
        %1502 = vadd.xlane.f32.xlu0 %v1501
        %v1503 = vpop.xlane.xlu0 %1502
        %v1504 = vsel %vm676, %v1488, 0.0
        %1505 = vadd.xlane.f32.xlu0 %v1504
        %v1506 = vpop.xlane.xlu0 %1505
        %v1507 = vsel %vm676, %v1490, 0.0
        %1508 = vadd.xlane.f32.xlu0 %v1507
        %v1509 = vpop.xlane.xlu0 %1508
        %v1510 = vsel %vm676, %v1492, 0.0
        %1511 = vadd.xlane.f32.xlu0 %v1510
        %v1512 = vpop.xlane.xlu0 %1511
        %v1513 = vsel %vm676, %v1494, 0.0
        %1514 = vadd.xlane.f32.xlu0 %v1513
        %v1515 = vpop.xlane.xlu0 %1514
        %v1516 = vsel %vm676, %v1496, 0.0
        %1517 = vadd.xlane.f32.xlu0 %v1516
        %v1518 = vpop.xlane.xlu0 %1517
        %v1519 = vsel %vm676, %v1498, 0.0
        %1520 = vadd.xlane.f32.xlu0 %v1519
        %v1521 = vpop.xlane.xlu0 %1520
        %v1522 = vsel %vm676, %v1500, 0.0
        %1523 = vadd.xlane.f32.xlu0 %v1522
        %v1524 = vpop.xlane.xlu0 %1523
        %v1525 = vrcp.pop %v1503
        %v1526 = vmul.f32 %v1486, %v1525
        %v1527 = vrcp.pop %v1506
        %v1528 = vmul.f32 %v1488, %v1527
        %v1529 = vrcp.pop %v1509
        %v1530 = vmul.f32 %v1490, %v1529
        %v1531 = vrcp.pop %v1512
        %v1532 = vmul.f32 %v1492, %v1531
        %v1533 = vrcp.pop %v1515
        %v1534 = vmul.f32 %v1494, %v1533
        %v1535 = vrcp.pop %v1518
        %v1536 = vmul.f32 %v1496, %v1535
        %v1537 = vrcp.pop %v1521
        %v1538 = vmul.f32 %v1498, %v1537
        %v1539 = vrcp.pop %v1524
        %v1540 = vmul.f32 %v1500, %v1539
        %1543 = vrot.lane.b32.xlu0 %v283, 120
        %v1544 = vpop.permute.xlu0 %1543
        %1545 = vrot.lane.b32.xlu0 %v287, 120
        %v1546 = vpop.permute.xlu0 %1545
        %v1550 = vsel %vm676, %v1526, 0
        %v1553 = vsel %vm676, %v1528, 0
        %1555 = vmatprep.subr.mxu0 0.0
        %1556 = vmatpush1.msra.mxu0 %v1544
        %1557 = vmatprep.subr.mxu0 0.0
        %1558 = vmatpush1.msra.mxu0 %v1546
        %1559 = vmatprep.subr.mxu0 0.0
        %1560 = vmatpush1.msra.mxu0 0.0
        %1561 = vmatprep.subr.mxu0 0.0
        %1562 = vmatpush1.msra.mxu0 0.0
        %1563 = vmatprep.subr.mxu0 0.0
        %1564 = vmatpush1.msra.mxu0 0.0
        %1565 = vmatprep.subr.mxu0 0.0
        %1566 = vmatpush1.msra.mxu0 0.0
        %1567 = vmatprep.subr.mxu0 0.0
        %1568 = vmatpush1.msra.mxu0 0.0
        %1569 = vmatprep.subr.mxu0 0.0
        %1570 = vmatpush1.msra.mxu0 0.0
        %1571 = vmatprep.subr.mxu0 0.0
        %1572 = vmatpush1.msra.mxu0 0.0
        %1573 = vmatprep.subr.mxu0 0.0
        %1574 = vmatpush1.msra.mxu0 0.0
        %1575 = vmatprep.subr.mxu0 0.0
        %1576 = vmatpush1.msra.mxu0 0.0
        %1577 = vmatprep.subr.mxu0 0.0
        %1578 = vmatpush1.msra.mxu0 0.0
        %1579 = vmatprep.subr.mxu0 0.0
        %1580 = vmatpush1.msra.mxu0 0.0
        %1581 = vmatprep.subr.mxu0 0.0
        %1582 = vmatpush1.msra.mxu0 0.0
        %1583 = vmatprep.subr.mxu0 0.0
        %1584 = vmatpush1.msra.mxu0 0.0
        %1585 = vmatprep.subr.mxu0 0.0
        %1586 = vmatpush1.msra.mxu0 0.0
        %1587 = vmatprep.subr.mxu0 0.0
        %1588 = vmatpush1.msra.mxu0 0.0
        %1589 = vmatprep.subr.mxu0 0.0
        %1590 = vmatpush1.msra.mxu0 0.0
        %1591 = vmatprep.subr.mxu0 0.0
        %1592 = vmatpush1.msra.mxu0 0.0
        %1593 = vmatprep.subr.mxu0 0.0
        %1594 = vmatpush1.msra.mxu0 0.0
        %1595 = vmatprep.subr.mxu0 0.0
        %1596 = vmatpush1.msra.mxu0 0.0
        %1597 = vmatprep.subr.mxu0 0.0
        %1598 = vmatpush1.msra.mxu0 0.0
        %1599 = vmatprep.subr.mxu0 0.0
        %1600 = vmatpush1.msra.mxu0 0.0
        %1601 = vmatprep.subr.mxu0 0.0
        %1602 = vmatpush1.msra.mxu0 0.0
        %1603 = vmatprep.subr.mxu0 0.0
        %1604 = vmatpush1.msra.mxu0 0.0
        %1605 = vmatprep.subr.mxu0 0.0
        %1606 = vmatpush1.msra.mxu0 0.0
        %1607 = vmatprep.subr.mxu0 0.0
        %1608 = vmatpush1.msra.mxu0 0.0
        %1609 = vmatprep.subr.mxu0 0.0
        %1610 = vmatpush1.msra.mxu0 0.0
        %1611 = vmatprep.subr.mxu0 0.0
        %1612 = vmatpush1.msra.mxu0 0.0
        %1613 = vmatprep.subr.mxu0 0.0
        %1614 = vmatpush1.msra.mxu0 0.0
        %1615 = vmatprep.subr.mxu0 0.0
        %1616 = vmatpush1.msra.mxu0 0.0
        %1617 = vmatprep.subr.mxu0 0.0
        %1618 = vmatpush1.msra.mxu0 0.0
        %1619 = vmatprep.mubr.f32.mxu0 0.0
        %1620 = vmatmul.mubr.f32.gmra.mrb[0].mxu0 %v1550
        %v1621 = vpop.f32.mrb[0].mxu0
        %v1622 = vadd.f32 0.0, %v1621
        %v1623 = vpop.f32.mrb[0].mxu0
        %1624 = vmatprep.mubr.f32.mxu0 0.0
        %1625 = vmatmul.mubr.f32.gmra.mrb[0].mxu0 %v1553
        %v1626 = vpop.f32.mrb[0].mxu0
        %v1627 = vadd.f32 0.0, %v1626
        %v1628 = vpop.f32.mrb[0].mxu0
        %1629 = vdwg.mxu0
        %1632 = vrot.lane.b32.xlu0 %v293, 120
        %v1633 = vpop.permute.xlu0 %1632
        %1634 = vrot.lane.b32.xlu0 %v297, 120
        %v1635 = vpop.permute.xlu0 %1634
        %v1639 = vsel %vm676, %v1530, 0
        %v1642 = vsel %vm676, %v1532, 0
        %1644 = vmatprep.subr.mxu0 0.0
        %1645 = vmatpush1.msra.mxu0 %v1633
        %1646 = vmatprep.subr.mxu0 0.0
        %1647 = vmatpush1.msra.mxu0 %v1635
        %1648 = vmatprep.subr.mxu0 0.0
        %1649 = vmatpush1.msra.mxu0 0.0
        %1650 = vmatprep.subr.mxu0 0.0
        %1651 = vmatpush1.msra.mxu0 0.0
        %1652 = vmatprep.subr.mxu0 0.0
        %1653 = vmatpush1.msra.mxu0 0.0
        %1654 = vmatprep.subr.mxu0 0.0
        %1655 = vmatpush1.msra.mxu0 0.0
        %1656 = vmatprep.subr.mxu0 0.0
        %1657 = vmatpush1.msra.mxu0 0.0
        %1658 = vmatprep.subr.mxu0 0.0
        %1659 = vmatpush1.msra.mxu0 0.0
        %1660 = vmatprep.subr.mxu0 0.0
        %1661 = vmatpush1.msra.mxu0 0.0
        %1662 = vmatprep.subr.mxu0 0.0
        %1663 = vmatpush1.msra.mxu0 0.0
        %1664 = vmatprep.subr.mxu0 0.0
        %1665 = vmatpush1.msra.mxu0 0.0
        %1666 = vmatprep.subr.mxu0 0.0
        %1667 = vmatpush1.msra.mxu0 0.0
        %1668 = vmatprep.subr.mxu0 0.0
        %1669 = vmatpush1.msra.mxu0 0.0
        %1670 = vmatprep.subr.mxu0 0.0
        %1671 = vmatpush1.msra.mxu0 0.0
        %1672 = vmatprep.subr.mxu0 0.0
        %1673 = vmatpush1.msra.mxu0 0.0
        %1674 = vmatprep.subr.mxu0 0.0
        %1675 = vmatpush1.msra.mxu0 0.0
        %1676 = vmatprep.subr.mxu0 0.0
        %1677 = vmatpush1.msra.mxu0 0.0
        %1678 = vmatprep.subr.mxu0 0.0
        %1679 = vmatpush1.msra.mxu0 0.0
        %1680 = vmatprep.subr.mxu0 0.0
        %1681 = vmatpush1.msra.mxu0 0.0
        %1682 = vmatprep.subr.mxu0 0.0
        %1683 = vmatpush1.msra.mxu0 0.0
        %1684 = vmatprep.subr.mxu0 0.0
        %1685 = vmatpush1.msra.mxu0 0.0
        %1686 = vmatprep.subr.mxu0 0.0
        %1687 = vmatpush1.msra.mxu0 0.0
        %1688 = vmatprep.subr.mxu0 0.0
        %1689 = vmatpush1.msra.mxu0 0.0
        %1690 = vmatprep.subr.mxu0 0.0
        %1691 = vmatpush1.msra.mxu0 0.0
        %1692 = vmatprep.subr.mxu0 0.0
        %1693 = vmatpush1.msra.mxu0 0.0
        %1694 = vmatprep.subr.mxu0 0.0
        %1695 = vmatpush1.msra.mxu0 0.0
        %1696 = vmatprep.subr.mxu0 0.0
        %1697 = vmatpush1.msra.mxu0 0.0
        %1698 = vmatprep.subr.mxu0 0.0
        %1699 = vmatpush1.msra.mxu0 0.0
        %1700 = vmatprep.subr.mxu0 0.0
        %1701 = vmatpush1.msra.mxu0 0.0
        %1702 = vmatprep.subr.mxu0 0.0
        %1703 = vmatpush1.msra.mxu0 0.0
        %1704 = vmatprep.subr.mxu0 0.0
        %1705 = vmatpush1.msra.mxu0 0.0
        %1706 = vmatprep.subr.mxu0 0.0
        %1707 = vmatpush1.msra.mxu0 0.0
        %1708 = vmatprep.mubr.f32.mxu0 0.0
        %1709 = vmatmul.mubr.f32.gmra.mrb[0].mxu0 %v1639
        %v1710 = vpop.f32.mrb[0].mxu0
        %v1711 = vadd.f32 0.0, %v1710
        %v1712 = vpop.f32.mrb[0].mxu0
        %1713 = vmatprep.mubr.f32.mxu0 0.0
        %1714 = vmatmul.mubr.f32.gmra.mrb[0].mxu0 %v1642
        %v1715 = vpop.f32.mrb[0].mxu0
        %v1716 = vadd.f32 0.0, %v1715
        %v1717 = vpop.f32.mrb[0].mxu0
        %1718 = vdwg.mxu0
        %1721 = vrot.lane.b32.xlu0 %v303, 120
        %v1722 = vpop.permute.xlu0 %1721
        %1723 = vrot.lane.b32.xlu0 %v307, 120
        %v1724 = vpop.permute.xlu0 %1723
        %v1728 = vsel %vm676, %v1534, 0
        %v1731 = vsel %vm676, %v1536, 0
        %1733 = vmatprep.subr.mxu0 0.0
        %1734 = vmatpush1.msra.mxu0 %v1722
        %1735 = vmatprep.subr.mxu0 0.0
        %1736 = vmatpush1.msra.mxu0 %v1724
        %1737 = vmatprep.subr.mxu0 0.0
        %1738 = vmatpush1.msra.mxu0 0.0
        %1739 = vmatprep.subr.mxu0 0.0
        %1740 = vmatpush1.msra.mxu0 0.0
        %1741 = vmatprep.subr.mxu0 0.0
        %1742 = vmatpush1.msra.mxu0 0.0
        %1743 = vmatprep.subr.mxu0 0.0
        %1744 = vmatpush1.msra.mxu0 0.0
        %1745 = vmatprep.subr.mxu0 0.0
        %1746 = vmatpush1.msra.mxu0 0.0
        %1747 = vmatprep.subr.mxu0 0.0
        %1748 = vmatpush1.msra.mxu0 0.0
        %1749 = vmatprep.subr.mxu0 0.0
        %1750 = vmatpush1.msra.mxu0 0.0
        %1751 = vmatprep.subr.mxu0 0.0
        %1752 = vmatpush1.msra.mxu0 0.0
        %1753 = vmatprep.subr.mxu0 0.0
        %1754 = vmatpush1.msra.mxu0 0.0
        %1755 = vmatprep.subr.mxu0 0.0
        %1756 = vmatpush1.msra.mxu0 0.0
        %1757 = vmatprep.subr.mxu0 0.0
        %1758 = vmatpush1.msra.mxu0 0.0
        %1759 = vmatprep.subr.mxu0 0.0
        %1760 = vmatpush1.msra.mxu0 0.0
        %1761 = vmatprep.subr.mxu0 0.0
        %1762 = vmatpush1.msra.mxu0 0.0
        %1763 = vmatprep.subr.mxu0 0.0
        %1764 = vmatpush1.msra.mxu0 0.0
        %1765 = vmatprep.subr.mxu0 0.0
        %1766 = vmatpush1.msra.mxu0 0.0
        %1767 = vmatprep.subr.mxu0 0.0
        %1768 = vmatpush1.msra.mxu0 0.0
        %1769 = vmatprep.subr.mxu0 0.0
        %1770 = vmatpush1.msra.mxu0 0.0
        %1771 = vmatprep.subr.mxu0 0.0
        %1772 = vmatpush1.msra.mxu0 0.0
        %1773 = vmatprep.subr.mxu0 0.0
        %1774 = vmatpush1.msra.mxu0 0.0
        %1775 = vmatprep.subr.mxu0 0.0
        %1776 = vmatpush1.msra.mxu0 0.0
        %1777 = vmatprep.subr.mxu0 0.0
        %1778 = vmatpush1.msra.mxu0 0.0
        %1779 = vmatprep.subr.mxu0 0.0
        %1780 = vmatpush1.msra.mxu0 0.0
        %1781 = vmatprep.subr.mxu0 0.0
        %1782 = vmatpush1.msra.mxu0 0.0
        %1783 = vmatprep.subr.mxu0 0.0
        %1784 = vmatpush1.msra.mxu0 0.0
        %1785 = vmatprep.subr.mxu0 0.0
        %1786 = vmatpush1.msra.mxu0 0.0
        %1787 = vmatprep.subr.mxu0 0.0
        %1788 = vmatpush1.msra.mxu0 0.0
        %1789 = vmatprep.subr.mxu0 0.0
        %1790 = vmatpush1.msra.mxu0 0.0
        %1791 = vmatprep.subr.mxu0 0.0
        %1792 = vmatpush1.msra.mxu0 0.0
        %1793 = vmatprep.subr.mxu0 0.0
        %1794 = vmatpush1.msra.mxu0 0.0
        %1795 = vmatprep.subr.mxu0 0.0
        %1796 = vmatpush1.msra.mxu0 0.0
        %1797 = vmatprep.mubr.f32.mxu0 0.0
        %1798 = vmatmul.mubr.f32.gmra.mrb[0].mxu0 %v1728
        %v1799 = vpop.f32.mrb[0].mxu0
        %v1800 = vadd.f32 0.0, %v1799
        %v1801 = vpop.f32.mrb[0].mxu0
        %1802 = vmatprep.mubr.f32.mxu0 0.0
        %1803 = vmatmul.mubr.f32.gmra.mrb[0].mxu0 %v1731
        %v1804 = vpop.f32.mrb[0].mxu0
        %v1805 = vadd.f32 0.0, %v1804
        %v1806 = vpop.f32.mrb[0].mxu0
        %1807 = vdwg.mxu0
        %1810 = vrot.lane.b32.xlu0 %v313, 120
        %v1811 = vpop.permute.xlu0 %1810
        %1812 = vrot.lane.b32.xlu0 %v317, 120
        %v1813 = vpop.permute.xlu0 %1812
        %v1817 = vsel %vm676, %v1538, 0
        %v1820 = vsel %vm676, %v1540, 0
        %1822 = vmatprep.subr.mxu0 0.0
        %1823 = vmatpush1.msra.mxu0 %v1811
        %1824 = vmatprep.subr.mxu0 0.0
        %1825 = vmatpush1.msra.mxu0 %v1813
        %1826 = vmatprep.subr.mxu0 0.0
        %1827 = vmatpush1.msra.mxu0 0.0
        %1828 = vmatprep.subr.mxu0 0.0
        %1829 = vmatpush1.msra.mxu0 0.0
        %1830 = vmatprep.subr.mxu0 0.0
        %1831 = vmatpush1.msra.mxu0 0.0
        %1832 = vmatprep.subr.mxu0 0.0
        %1833 = vmatpush1.msra.mxu0 0.0
        %1834 = vmatprep.subr.mxu0 0.0
        %1835 = vmatpush1.msra.mxu0 0.0
        %1836 = vmatprep.subr.mxu0 0.0
        %1837 = vmatpush1.msra.mxu0 0.0
        %1838 = vmatprep.subr.mxu0 0.0
        %1839 = vmatpush1.msra.mxu0 0.0
        %1840 = vmatprep.subr.mxu0 0.0
        %1841 = vmatpush1.msra.mxu0 0.0
        %1842 = vmatprep.subr.mxu0 0.0
        %1843 = vmatpush1.msra.mxu0 0.0
        %1844 = vmatprep.subr.mxu0 0.0
        %1845 = vmatpush1.msra.mxu0 0.0
        %1846 = vmatprep.subr.mxu0 0.0
        %1847 = vmatpush1.msra.mxu0 0.0
        %1848 = vmatprep.subr.mxu0 0.0
        %1849 = vmatpush1.msra.mxu0 0.0
        %1850 = vmatprep.subr.mxu0 0.0
        %1851 = vmatpush1.msra.mxu0 0.0
        %1852 = vmatprep.subr.mxu0 0.0
        %1853 = vmatpush1.msra.mxu0 0.0
        %1854 = vmatprep.subr.mxu0 0.0
        %1855 = vmatpush1.msra.mxu0 0.0
        %1856 = vmatprep.subr.mxu0 0.0
        %1857 = vmatpush1.msra.mxu0 0.0
        %1858 = vmatprep.subr.mxu0 0.0
        %1859 = vmatpush1.msra.mxu0 0.0
        %1860 = vmatprep.subr.mxu0 0.0
        %1861 = vmatpush1.msra.mxu0 0.0
        %1862 = vmatprep.subr.mxu0 0.0
        %1863 = vmatpush1.msra.mxu0 0.0
        %1864 = vmatprep.subr.mxu0 0.0
        %1865 = vmatpush1.msra.mxu0 0.0
        %1866 = vmatprep.subr.mxu0 0.0
        %1867 = vmatpush1.msra.mxu0 0.0
        %1868 = vmatprep.subr.mxu0 0.0
        %1869 = vmatpush1.msra.mxu0 0.0
        %1870 = vmatprep.subr.mxu0 0.0
        %1871 = vmatpush1.msra.mxu0 0.0
        %1872 = vmatprep.subr.mxu0 0.0
        %1873 = vmatpush1.msra.mxu0 0.0
        %1874 = vmatprep.subr.mxu0 0.0
        %1875 = vmatpush1.msra.mxu0 0.0
        %1876 = vmatprep.subr.mxu0 0.0
        %1877 = vmatpush1.msra.mxu0 0.0
        %1878 = vmatprep.subr.mxu0 0.0
        %1879 = vmatpush1.msra.mxu0 0.0
        %1880 = vmatprep.subr.mxu0 0.0
        %1881 = vmatpush1.msra.mxu0 0.0
        %1882 = vmatprep.subr.mxu0 0.0
        %1883 = vmatpush1.msra.mxu0 0.0
        %1884 = vmatprep.subr.mxu0 0.0
        %1885 = vmatpush1.msra.mxu0 0.0
        %1886 = vmatprep.mubr.f32.mxu0 0.0
        %1887 = vmatmul.mubr.f32.gmra.mrb[0].mxu0 %v1817
        %v1888 = vpop.f32.mrb[0].mxu0
        %v1889 = vadd.f32 0.0, %v1888
        %v1890 = vpop.f32.mrb[0].mxu0
        %1891 = vmatprep.mubr.f32.mxu0 0.0
        %1892 = vmatmul.mubr.f32.gmra.mrb[0].mxu0 %v1820
        %v1893 = vpop.f32.mrb[0].mxu0
        %v1894 = vadd.f32 0.0, %v1893
        %v1895 = vpop.f32.mrb[0].mxu0
        %1896 = vdwg.mxu0
        %1897 = vrot.lane.b32.xlu0 %v281, 112
        %v1898 = vpop.permute.xlu0 %1897
        %1899 = vrot.lane.b32.xlu0 %v285, 112
        %v1900 = vpop.permute.xlu0 %1899
        %1901 = vrot.lane.b32.xlu0 %v281, 48
        %v1902 = vpop.permute.xlu0 %1901
        %1903 = vrot.lane.b32.xlu0 %v285, 48
        %v1904 = vpop.permute.xlu0 %1903
        %v1905 = vsel %vm325, %v1898, 0
        %v1907 = vsel %vm325, %v1900, 0
        %v1909 = vsel %vm325, %v1902, 0
        %v1911 = vsel %vm325, %v1904, 0
        %1913 = vmatprep.subr.mxu0 0.0
        %1914 = vmatpush1.xpose.msra.mxu0 %v1909
        %1915 = vmatprep.subr.mxu0 0.0
        %1916 = vmatpush1.xpose.msra.mxu0 %v1911
        %1917 = vmatprep.subr.mxu0 0.0
        %1918 = vmatpush1.xpose.msra.mxu0 0.0
        %1919 = vmatprep.subr.mxu0 0.0
        %1920 = vmatpush1.xpose.msra.mxu0 0.0
        %1921 = vmatprep.subr.mxu0 0.0
        %1922 = vmatpush1.xpose.msra.mxu0 0.0
        %1923 = vmatprep.subr.mxu0 0.0
        %1924 = vmatpush1.xpose.msra.mxu0 0.0
        %1925 = vmatprep.subr.mxu0 0.0
        %1926 = vmatpush1.xpose.msra.mxu0 0.0
        %1927 = vmatprep.subr.mxu0 0.0
        %1928 = vmatpush1.xpose.msra.mxu0 0.0
        %1929 = vmatprep.subr.mxu0 0.0
        %1930 = vmatpush1.xpose.msra.mxu0 0.0
        %1931 = vmatprep.subr.mxu0 0.0
        %1932 = vmatpush1.xpose.msra.mxu0 0.0
        %1933 = vmatprep.subr.mxu0 0.0
        %1934 = vmatpush1.xpose.msra.mxu0 0.0
        %1935 = vmatprep.subr.mxu0 0.0
        %1936 = vmatpush1.xpose.msra.mxu0 0.0
        %1937 = vmatprep.subr.mxu0 0.0
        %1938 = vmatpush1.xpose.msra.mxu0 0.0
        %1939 = vmatprep.subr.mxu0 0.0
        %1940 = vmatpush1.xpose.msra.mxu0 0.0
        %1941 = vmatprep.subr.mxu0 0.0
        %1942 = vmatpush1.xpose.msra.mxu0 0.0
        %1943 = vmatprep.subr.mxu0 0.0
        %1944 = vmatpush1.xpose.msra.mxu0 0.0
        %1945 = vmatprep.subr.mxu0 0.0
        %1946 = vmatpush1.xpose.msra.mxu0 0.0
        %1947 = vmatprep.subr.mxu0 0.0
        %1948 = vmatpush1.xpose.msra.mxu0 0.0
        %1949 = vmatprep.subr.mxu0 0.0
        %1950 = vmatpush1.xpose.msra.mxu0 0.0
        %1951 = vmatprep.subr.mxu0 0.0
        %1952 = vmatpush1.xpose.msra.mxu0 0.0
        %1953 = vmatprep.subr.mxu0 0.0
        %1954 = vmatpush1.xpose.msra.mxu0 0.0
        %1955 = vmatprep.subr.mxu0 0.0
        %1956 = vmatpush1.xpose.msra.mxu0 0.0
        %1957 = vmatprep.subr.mxu0 0.0
        %1958 = vmatpush1.xpose.msra.mxu0 0.0
        %1959 = vmatprep.subr.mxu0 0.0
        %1960 = vmatpush1.xpose.msra.mxu0 0.0
        %1961 = vmatprep.subr.mxu0 0.0
        %1962 = vmatpush1.xpose.msra.mxu0 0.0
        %1963 = vmatprep.subr.mxu0 0.0
        %1964 = vmatpush1.xpose.msra.mxu0 0.0
        %1965 = vmatprep.subr.mxu0 0.0
        %1966 = vmatpush1.xpose.msra.mxu0 0.0
        %1967 = vmatprep.subr.mxu0 0.0
        %1968 = vmatpush1.xpose.msra.mxu0 0.0
        %1969 = vmatprep.subr.mxu0 0.0
        %1970 = vmatpush1.xpose.msra.mxu0 0.0
        %1971 = vmatprep.subr.mxu0 0.0
        %1972 = vmatpush1.xpose.msra.mxu0 0.0
        %1973 = vmatprep.subr.mxu0 0.0
        %1974 = vmatpush1.xpose.msra.mxu0 0.0
        %1975 = vmatprep.subr.mxu0 0.0
        %1976 = vmatpush1.xpose.msra.mxu0 0.0
        %1977 = vmatprep.mubr.f32.mxu0 0.0
        %1978 = vmatmul.mubr.f32.gmra.mrb[0].mxu0 %v1905
        %v1979 = vpop.f32.mrb[0].mxu0
        %v1980 = vadd.f32 0.0, %v1979
        %v1981 = vpop.f32.mrb[0].mxu0
        %1982 = vmatprep.mubr.f32.mxu0 0.0
        %1983 = vmatmul.mubr.f32.gmra.mrb[0].mxu0 %v1907
        %v1984 = vpop.f32.mrb[0].mxu0
        %v1985 = vadd.f32 0.0, %v1984
        %v1986 = vpop.f32.mrb[0].mxu0
        %1987 = vdwg.mxu0
        %1988 = vrot.lane.b32.xlu0 %v291, 112
        %v1989 = vpop.permute.xlu0 %1988
        %1990 = vrot.lane.b32.xlu0 %v295, 112
        %v1991 = vpop.permute.xlu0 %1990
        %1992 = vrot.lane.b32.xlu0 %v291, 48
        %v1993 = vpop.permute.xlu0 %1992
        %1994 = vrot.lane.b32.xlu0 %v295, 48
        %v1995 = vpop.permute.xlu0 %1994
        %v1996 = vsel %vm325, %v1989, 0
        %v1998 = vsel %vm325, %v1991, 0
        %v2000 = vsel %vm325, %v1993, 0
        %v2002 = vsel %vm325, %v1995, 0
        %2004 = vmatprep.subr.mxu0 0.0
        %2005 = vmatpush1.xpose.msra.mxu0 %v2000
        %2006 = vmatprep.subr.mxu0 0.0
        %2007 = vmatpush1.xpose.msra.mxu0 %v2002
        %2008 = vmatprep.subr.mxu0 0.0
        %2009 = vmatpush1.xpose.msra.mxu0 0.0
        %2010 = vmatprep.subr.mxu0 0.0
        %2011 = vmatpush1.xpose.msra.mxu0 0.0
        %2012 = vmatprep.subr.mxu0 0.0
        %2013 = vmatpush1.xpose.msra.mxu0 0.0
        %2014 = vmatprep.subr.mxu0 0.0
        %2015 = vmatpush1.xpose.msra.mxu0 0.0
        %2016 = vmatprep.subr.mxu0 0.0
        %2017 = vmatpush1.xpose.msra.mxu0 0.0
        %2018 = vmatprep.subr.mxu0 0.0
        %2019 = vmatpush1.xpose.msra.mxu0 0.0
        %2020 = vmatprep.subr.mxu0 0.0
        %2021 = vmatpush1.xpose.msra.mxu0 0.0
        %2022 = vmatprep.subr.mxu0 0.0
        %2023 = vmatpush1.xpose.msra.mxu0 0.0
        %2024 = vmatprep.subr.mxu0 0.0
        %2025 = vmatpush1.xpose.msra.mxu0 0.0
        %2026 = vmatprep.subr.mxu0 0.0
        %2027 = vmatpush1.xpose.msra.mxu0 0.0
        %2028 = vmatprep.subr.mxu0 0.0
        %2029 = vmatpush1.xpose.msra.mxu0 0.0
        %2030 = vmatprep.subr.mxu0 0.0
        %2031 = vmatpush1.xpose.msra.mxu0 0.0
        %2032 = vmatprep.subr.mxu0 0.0
        %2033 = vmatpush1.xpose.msra.mxu0 0.0
        %2034 = vmatprep.subr.mxu0 0.0
        %2035 = vmatpush1.xpose.msra.mxu0 0.0
        %2036 = vmatprep.subr.mxu0 0.0
        %2037 = vmatpush1.xpose.msra.mxu0 0.0
        %2038 = vmatprep.subr.mxu0 0.0
        %2039 = vmatpush1.xpose.msra.mxu0 0.0
        %2040 = vmatprep.subr.mxu0 0.0
        %2041 = vmatpush1.xpose.msra.mxu0 0.0
        %2042 = vmatprep.subr.mxu0 0.0
        %2043 = vmatpush1.xpose.msra.mxu0 0.0
        %2044 = vmatprep.subr.mxu0 0.0
        %2045 = vmatpush1.xpose.msra.mxu0 0.0
        %2046 = vmatprep.subr.mxu0 0.0
        %2047 = vmatpush1.xpose.msra.mxu0 0.0
        %2048 = vmatprep.subr.mxu0 0.0
        %2049 = vmatpush1.xpose.msra.mxu0 0.0
        %2050 = vmatprep.subr.mxu0 0.0
        %2051 = vmatpush1.xpose.msra.mxu0 0.0
        %2052 = vmatprep.subr.mxu0 0.0
        %2053 = vmatpush1.xpose.msra.mxu0 0.0
        %2054 = vmatprep.subr.mxu0 0.0
        %2055 = vmatpush1.xpose.msra.mxu0 0.0
        %2056 = vmatprep.subr.mxu0 0.0
        %2057 = vmatpush1.xpose.msra.mxu0 0.0
        %2058 = vmatprep.subr.mxu0 0.0
        %2059 = vmatpush1.xpose.msra.mxu0 0.0
        %2060 = vmatprep.subr.mxu0 0.0
        %2061 = vmatpush1.xpose.msra.mxu0 0.0
        %2062 = vmatprep.subr.mxu0 0.0
        %2063 = vmatpush1.xpose.msra.mxu0 0.0
        %2064 = vmatprep.subr.mxu0 0.0
        %2065 = vmatpush1.xpose.msra.mxu0 0.0
        %2066 = vmatprep.subr.mxu0 0.0
        %2067 = vmatpush1.xpose.msra.mxu0 0.0
        %2068 = vmatprep.mubr.f32.mxu0 0.0
        %2069 = vmatmul.mubr.f32.gmra.mrb[0].mxu0 %v1996
        %v2070 = vpop.f32.mrb[0].mxu0
        %v2071 = vadd.f32 0.0, %v2070
        %v2072 = vpop.f32.mrb[0].mxu0
        %2073 = vmatprep.mubr.f32.mxu0 0.0
        %2074 = vmatmul.mubr.f32.gmra.mrb[0].mxu0 %v1998
        %v2075 = vpop.f32.mrb[0].mxu0
        %v2076 = vadd.f32 0.0, %v2075
        %v2077 = vpop.f32.mrb[0].mxu0
        %2078 = vdwg.mxu0
        %2079 = vrot.lane.b32.xlu0 %v301, 112
        %v2080 = vpop.permute.xlu0 %2079
        %2081 = vrot.lane.b32.xlu0 %v305, 112
        %v2082 = vpop.permute.xlu0 %2081
        %2083 = vrot.lane.b32.xlu0 %v301, 48
        %v2084 = vpop.permute.xlu0 %2083
        %2085 = vrot.lane.b32.xlu0 %v305, 48
        %v2086 = vpop.permute.xlu0 %2085
        %v2087 = vsel %vm325, %v2080, 0
        %v2089 = vsel %vm325, %v2082, 0
        %v2091 = vsel %vm325, %v2084, 0
        %v2093 = vsel %vm325, %v2086, 0
        %2095 = vmatprep.subr.mxu0 0.0
        %2096 = vmatpush1.xpose.msra.mxu0 %v2091
        %2097 = vmatprep.subr.mxu0 0.0
        %2098 = vmatpush1.xpose.msra.mxu0 %v2093
        %2099 = vmatprep.subr.mxu0 0.0
        %2100 = vmatpush1.xpose.msra.mxu0 0.0
        %2101 = vmatprep.subr.mxu0 0.0
        %2102 = vmatpush1.xpose.msra.mxu0 0.0
        %2103 = vmatprep.subr.mxu0 0.0
        %2104 = vmatpush1.xpose.msra.mxu0 0.0
        %2105 = vmatprep.subr.mxu0 0.0
        %2106 = vmatpush1.xpose.msra.mxu0 0.0
        %2107 = vmatprep.subr.mxu0 0.0
        %2108 = vmatpush1.xpose.msra.mxu0 0.0
        %2109 = vmatprep.subr.mxu0 0.0
        %2110 = vmatpush1.xpose.msra.mxu0 0.0
        %2111 = vmatprep.subr.mxu0 0.0
        %2112 = vmatpush1.xpose.msra.mxu0 0.0
        %2113 = vmatprep.subr.mxu0 0.0
        %2114 = vmatpush1.xpose.msra.mxu0 0.0
        %2115 = vmatprep.subr.mxu0 0.0
        %2116 = vmatpush1.xpose.msra.mxu0 0.0
        %2117 = vmatprep.subr.mxu0 0.0
        %2118 = vmatpush1.xpose.msra.mxu0 0.0
        %2119 = vmatprep.subr.mxu0 0.0
        %2120 = vmatpush1.xpose.msra.mxu0 0.0
        %2121 = vmatprep.subr.mxu0 0.0
        %2122 = vmatpush1.xpose.msra.mxu0 0.0
        %2123 = vmatprep.subr.mxu0 0.0
        %2124 = vmatpush1.xpose.msra.mxu0 0.0
        %2125 = vmatprep.subr.mxu0 0.0
        %2126 = vmatpush1.xpose.msra.mxu0 0.0
        %2127 = vmatprep.subr.mxu0 0.0
        %2128 = vmatpush1.xpose.msra.mxu0 0.0
        %2129 = vmatprep.subr.mxu0 0.0
        %2130 = vmatpush1.xpose.msra.mxu0 0.0
        %2131 = vmatprep.subr.mxu0 0.0
        %2132 = vmatpush1.xpose.msra.mxu0 0.0
        %2133 = vmatprep.subr.mxu0 0.0
        %2134 = vmatpush1.xpose.msra.mxu0 0.0
        %2135 = vmatprep.subr.mxu0 0.0
        %2136 = vmatpush1.xpose.msra.mxu0 0.0
        %2137 = vmatprep.subr.mxu0 0.0
        %2138 = vmatpush1.xpose.msra.mxu0 0.0
        %2139 = vmatprep.subr.mxu0 0.0
        %2140 = vmatpush1.xpose.msra.mxu0 0.0
        %2141 = vmatprep.subr.mxu0 0.0
        %2142 = vmatpush1.xpose.msra.mxu0 0.0
        %2143 = vmatprep.subr.mxu0 0.0
        %2144 = vmatpush1.xpose.msra.mxu0 0.0
        %2145 = vmatprep.subr.mxu0 0.0
        %2146 = vmatpush1.xpose.msra.mxu0 0.0
        %2147 = vmatprep.subr.mxu0 0.0
        %2148 = vmatpush1.xpose.msra.mxu0 0.0
        %2149 = vmatprep.subr.mxu0 0.0
        %2150 = vmatpush1.xpose.msra.mxu0 0.0
        %2151 = vmatprep.subr.mxu0 0.0
        %2152 = vmatpush1.xpose.msra.mxu0 0.0
        %2153 = vmatprep.subr.mxu0 0.0
        %2154 = vmatpush1.xpose.msra.mxu0 0.0
        %2155 = vmatprep.subr.mxu0 0.0
        %2156 = vmatpush1.xpose.msra.mxu0 0.0
        %2157 = vmatprep.subr.mxu0 0.0
        %2158 = vmatpush1.xpose.msra.mxu0 0.0
        %2159 = vmatprep.mubr.f32.mxu0 0.0
        %2160 = vmatmul.mubr.f32.gmra.mrb[0].mxu0 %v2087
        %v2161 = vpop.f32.mrb[0].mxu0
        %v2162 = vadd.f32 0.0, %v2161
        %v2163 = vpop.f32.mrb[0].mxu0
        %2164 = vmatprep.mubr.f32.mxu0 0.0
        %2165 = vmatmul.mubr.f32.gmra.mrb[0].mxu0 %v2089
        %v2166 = vpop.f32.mrb[0].mxu0
        %v2167 = vadd.f32 0.0, %v2166
        %v2168 = vpop.f32.mrb[0].mxu0
        %2169 = vdwg.mxu0
        %2170 = vrot.lane.b32.xlu0 %v311, 112
        %v2171 = vpop.permute.xlu0 %2170
        %2172 = vrot.lane.b32.xlu0 %v315, 112
        %v2173 = vpop.permute.xlu0 %2172
        %2174 = vrot.lane.b32.xlu0 %v311, 48
        %v2175 = vpop.permute.xlu0 %2174
        %2176 = vrot.lane.b32.xlu0 %v315, 48
        %v2177 = vpop.permute.xlu0 %2176
        %v2178 = vsel %vm325, %v2171, 0
        %v2180 = vsel %vm325, %v2173, 0
        %v2182 = vsel %vm325, %v2175, 0
        %v2184 = vsel %vm325, %v2177, 0
        %2186 = vmatprep.subr.mxu0 0.0
        %2187 = vmatpush1.xpose.msra.mxu0 %v2182
        %2188 = vmatprep.subr.mxu0 0.0
        %2189 = vmatpush1.xpose.msra.mxu0 %v2184
        %2190 = vmatprep.subr.mxu0 0.0
        %2191 = vmatpush1.xpose.msra.mxu0 0.0
        %2192 = vmatprep.subr.mxu0 0.0
        %2193 = vmatpush1.xpose.msra.mxu0 0.0
        %2194 = vmatprep.subr.mxu0 0.0
        %2195 = vmatpush1.xpose.msra.mxu0 0.0
        %2196 = vmatprep.subr.mxu0 0.0
        %2197 = vmatpush1.xpose.msra.mxu0 0.0
        %2198 = vmatprep.subr.mxu0 0.0
        %2199 = vmatpush1.xpose.msra.mxu0 0.0
        %2200 = vmatprep.subr.mxu0 0.0
        %2201 = vmatpush1.xpose.msra.mxu0 0.0
        %2202 = vmatprep.subr.mxu0 0.0
        %2203 = vmatpush1.xpose.msra.mxu0 0.0
        %2204 = vmatprep.subr.mxu0 0.0
        %2205 = vmatpush1.xpose.msra.mxu0 0.0
        %2206 = vmatprep.subr.mxu0 0.0
        %2207 = vmatpush1.xpose.msra.mxu0 0.0
        %2208 = vmatprep.subr.mxu0 0.0
        %2209 = vmatpush1.xpose.msra.mxu0 0.0
        %2210 = vmatprep.subr.mxu0 0.0
        %2211 = vmatpush1.xpose.msra.mxu0 0.0
        %2212 = vmatprep.subr.mxu0 0.0
        %2213 = vmatpush1.xpose.msra.mxu0 0.0
        %2214 = vmatprep.subr.mxu0 0.0
        %2215 = vmatpush1.xpose.msra.mxu0 0.0
        %2216 = vmatprep.subr.mxu0 0.0
        %2217 = vmatpush1.xpose.msra.mxu0 0.0
        %2218 = vmatprep.subr.mxu0 0.0
        %2219 = vmatpush1.xpose.msra.mxu0 0.0
        %2220 = vmatprep.subr.mxu0 0.0
        %2221 = vmatpush1.xpose.msra.mxu0 0.0
        %2222 = vmatprep.subr.mxu0 0.0
        %2223 = vmatpush1.xpose.msra.mxu0 0.0
        %2224 = vmatprep.subr.mxu0 0.0
        %2225 = vmatpush1.xpose.msra.mxu0 0.0
        %2226 = vmatprep.subr.mxu0 0.0
        %2227 = vmatpush1.xpose.msra.mxu0 0.0
        %2228 = vmatprep.subr.mxu0 0.0
        %2229 = vmatpush1.xpose.msra.mxu0 0.0
        %2230 = vmatprep.subr.mxu0 0.0
        %2231 = vmatpush1.xpose.msra.mxu0 0.0
        %2232 = vmatprep.subr.mxu0 0.0
        %2233 = vmatpush1.xpose.msra.mxu0 0.0
        %2234 = vmatprep.subr.mxu0 0.0
        %2235 = vmatpush1.xpose.msra.mxu0 0.0
        %2236 = vmatprep.subr.mxu0 0.0
        %2237 = vmatpush1.xpose.msra.mxu0 0.0
        %2238 = vmatprep.subr.mxu0 0.0
        %2239 = vmatpush1.xpose.msra.mxu0 0.0
        %2240 = vmatprep.subr.mxu0 0.0
        %2241 = vmatpush1.xpose.msra.mxu0 0.0
        %2242 = vmatprep.subr.mxu0 0.0
        %2243 = vmatpush1.xpose.msra.mxu0 0.0
        %2244 = vmatprep.subr.mxu0 0.0
        %2245 = vmatpush1.xpose.msra.mxu0 0.0
        %2246 = vmatprep.subr.mxu0 0.0
        %2247 = vmatpush1.xpose.msra.mxu0 0.0
        %2248 = vmatprep.subr.mxu0 0.0
        %2249 = vmatpush1.xpose.msra.mxu0 0.0
        %2250 = vmatprep.mubr.f32.mxu0 0.0
        %2251 = vmatmul.mubr.f32.gmra.mrb[0].mxu0 %v2178
        %v2252 = vpop.f32.mrb[0].mxu0
        %v2253 = vadd.f32 0.0, %v2252
        %v2254 = vpop.f32.mrb[0].mxu0
        %2255 = vmatprep.mubr.f32.mxu0 0.0
        %2256 = vmatmul.mubr.f32.gmra.mrb[0].mxu0 %v2180
        %v2257 = vpop.f32.mrb[0].mxu0
        %v2258 = vadd.f32 0.0, %v2257
        %v2259 = vpop.f32.mrb[0].mxu0
        %2260 = vdwg.mxu0
        %v2261 = vsel %vm676, %v1980, -inf
        %2262 = vmax.xlane.f32.xlu0 %v2261
        %v2263 = vpop.xlane.xlu0 %2262
        %v2264 = vsel %vm676, %v1985, -inf
        %2265 = vmax.xlane.f32.xlu0 %v2264
        %v2266 = vpop.xlane.xlu0 %2265
        %v2267 = vsel %vm676, %v2071, -inf
        %2268 = vmax.xlane.f32.xlu0 %v2267
        %v2269 = vpop.xlane.xlu0 %2268
        %v2270 = vsel %vm676, %v2076, -inf
        %2271 = vmax.xlane.f32.xlu0 %v2270
        %v2272 = vpop.xlane.xlu0 %2271
        %v2273 = vsel %vm676, %v2162, -inf
        %2274 = vmax.xlane.f32.xlu0 %v2273
        %v2275 = vpop.xlane.xlu0 %2274
        %v2276 = vsel %vm676, %v2167, -inf
        %2277 = vmax.xlane.f32.xlu0 %v2276
        %v2278 = vpop.xlane.xlu0 %2277
        %v2279 = vsel %vm676, %v2253, -inf
        %2280 = vmax.xlane.f32.xlu0 %v2279
        %v2281 = vpop.xlane.xlu0 %2280
        %v2282 = vsel %vm676, %v2258, -inf
        %2283 = vmax.xlane.f32.xlu0 %v2282
        %v2284 = vpop.xlane.xlu0 %2283
        %v2285 = vsub.f32 %v1980, %v2263
        %v2286 = vsub.f32 %v1985, %v2266
        %v2287 = vsub.f32 %v2071, %v2269
        %v2288 = vsub.f32 %v2076, %v2272
        %v2289 = vsub.f32 %v2162, %v2275
        %v2290 = vsub.f32 %v2167, %v2278
        %v2291 = vsub.f32 %v2253, %v2281
        %v2292 = vsub.f32 %v2258, %v2284
        %v2293 = vmul.f32 %v2285, 1.442695
        %v2294 = vpow.pop %v2293
        %v2295 = vmul.f32 %v2286, 1.442695
        %v2296 = vpow.pop %v2295
        %v2297 = vmul.f32 %v2287, 1.442695
        %v2298 = vpow.pop %v2297
        %v2299 = vmul.f32 %v2288, 1.442695
        %v2300 = vpow.pop %v2299
        %v2301 = vmul.f32 %v2289, 1.442695
        %v2302 = vpow.pop %v2301
        %v2303 = vmul.f32 %v2290, 1.442695
        %v2304 = vpow.pop %v2303
        %v2305 = vmul.f32 %v2291, 1.442695
        %v2306 = vpow.pop %v2305
        %v2307 = vmul.f32 %v2292, 1.442695
        %v2308 = vpow.pop %v2307
        %v2309 = vsel %vm676, %v2294, 0.0
        %2310 = vadd.xlane.f32.xlu0 %v2309
        %v2311 = vpop.xlane.xlu0 %2310
        %v2312 = vsel %vm676, %v2296, 0.0
        %2313 = vadd.xlane.f32.xlu0 %v2312
        %v2314 = vpop.xlane.xlu0 %2313
        %v2315 = vsel %vm676, %v2298, 0.0
        %2316 = vadd.xlane.f32.xlu0 %v2315
        %v2317 = vpop.xlane.xlu0 %2316
        %v2318 = vsel %vm676, %v2300, 0.0
        %2319 = vadd.xlane.f32.xlu0 %v2318
        %v2320 = vpop.xlane.xlu0 %2319
        %v2321 = vsel %vm676, %v2302, 0.0
        %2322 = vadd.xlane.f32.xlu0 %v2321
        %v2323 = vpop.xlane.xlu0 %2322
        %v2324 = vsel %vm676, %v2304, 0.0
        %2325 = vadd.xlane.f32.xlu0 %v2324
        %v2326 = vpop.xlane.xlu0 %2325
        %v2327 = vsel %vm676, %v2306, 0.0
        %2328 = vadd.xlane.f32.xlu0 %v2327
        %v2329 = vpop.xlane.xlu0 %2328
        %v2330 = vsel %vm676, %v2308, 0.0
        %2331 = vadd.xlane.f32.xlu0 %v2330
        %v2332 = vpop.xlane.xlu0 %2331
        %v2333 = vrcp.pop %v2311
        %v2334 = vmul.f32 %v2294, %v2333
        %v2335 = vrcp.pop %v2314
        %v2336 = vmul.f32 %v2296, %v2335
        %v2337 = vrcp.pop %v2317
        %v2338 = vmul.f32 %v2298, %v2337
        %v2339 = vrcp.pop %v2320
        %v2340 = vmul.f32 %v2300, %v2339
        %v2341 = vrcp.pop %v2323
        %v2342 = vmul.f32 %v2302, %v2341
        %v2343 = vrcp.pop %v2326
        %v2344 = vmul.f32 %v2304, %v2343
        %v2345 = vrcp.pop %v2329
        %v2346 = vmul.f32 %v2306, %v2345
        %v2347 = vrcp.pop %v2332
        %v2348 = vmul.f32 %v2308, %v2347
        %2349 = vrot.lane.b32.xlu0 %v283, 112
        %v2350 = vpop.permute.xlu0 %2349
        %2351 = vrot.lane.b32.xlu0 %v287, 112
        %v2352 = vpop.permute.xlu0 %2351
        %v2356 = vsel %vm676, %v2334, 0
        %v2359 = vsel %vm676, %v2336, 0
        %2361 = vmatprep.subr.mxu0 0.0
        %2362 = vmatpush1.msra.mxu0 %v2350
        %2363 = vmatprep.subr.mxu0 0.0
        %2364 = vmatpush1.msra.mxu0 %v2352
        %2365 = vmatprep.subr.mxu0 0.0
        %2366 = vmatpush1.msra.mxu0 0.0
        %2367 = vmatprep.subr.mxu0 0.0
        %2368 = vmatpush1.msra.mxu0 0.0
        %2369 = vmatprep.subr.mxu0 0.0
        %2370 = vmatpush1.msra.mxu0 0.0
        %2371 = vmatprep.subr.mxu0 0.0
        %2372 = vmatpush1.msra.mxu0 0.0
        %2373 = vmatprep.subr.mxu0 0.0
        %2374 = vmatpush1.msra.mxu0 0.0
        %2375 = vmatprep.subr.mxu0 0.0
        %2376 = vmatpush1.msra.mxu0 0.0
        %2377 = vmatprep.subr.mxu0 0.0
        %2378 = vmatpush1.msra.mxu0 0.0
        %2379 = vmatprep.subr.mxu0 0.0
        %2380 = vmatpush1.msra.mxu0 0.0
        %2381 = vmatprep.subr.mxu0 0.0
        %2382 = vmatpush1.msra.mxu0 0.0
        %2383 = vmatprep.subr.mxu0 0.0
        %2384 = vmatpush1.msra.mxu0 0.0
        %2385 = vmatprep.subr.mxu0 0.0
        %2386 = vmatpush1.msra.mxu0 0.0
        %2387 = vmatprep.subr.mxu0 0.0
        %2388 = vmatpush1.msra.mxu0 0.0
        %2389 = vmatprep.subr.mxu0 0.0
        %2390 = vmatpush1.msra.mxu0 0.0
        %2391 = vmatprep.subr.mxu0 0.0
        %2392 = vmatpush1.msra.mxu0 0.0
        %2393 = vmatprep.subr.mxu0 0.0
        %2394 = vmatpush1.msra.mxu0 0.0
        %2395 = vmatprep.subr.mxu0 0.0
        %2396 = vmatpush1.msra.mxu0 0.0
        %2397 = vmatprep.subr.mxu0 0.0
        %2398 = vmatpush1.msra.mxu0 0.0
        %2399 = vmatprep.subr.mxu0 0.0
        %2400 = vmatpush1.msra.mxu0 0.0
        %2401 = vmatprep.subr.mxu0 0.0
        %2402 = vmatpush1.msra.mxu0 0.0
        %2403 = vmatprep.subr.mxu0 0.0
        %2404 = vmatpush1.msra.mxu0 0.0
        %2405 = vmatprep.subr.mxu0 0.0
        %2406 = vmatpush1.msra.mxu0 0.0
        %2407 = vmatprep.subr.mxu0 0.0
        %2408 = vmatpush1.msra.mxu0 0.0
        %2409 = vmatprep.subr.mxu0 0.0
        %2410 = vmatpush1.msra.mxu0 0.0
        %2411 = vmatprep.subr.mxu0 0.0
        %2412 = vmatpush1.msra.mxu0 0.0
        %2413 = vmatprep.subr.mxu0 0.0
        %2414 = vmatpush1.msra.mxu0 0.0
        %2415 = vmatprep.subr.mxu0 0.0
        %2416 = vmatpush1.msra.mxu0 0.0
        %2417 = vmatprep.subr.mxu0 0.0
        %2418 = vmatpush1.msra.mxu0 0.0
        %2419 = vmatprep.subr.mxu0 0.0
        %2420 = vmatpush1.msra.mxu0 0.0
        %2421 = vmatprep.subr.mxu0 0.0
        %2422 = vmatpush1.msra.mxu0 0.0
        %2423 = vmatprep.subr.mxu0 0.0
        %2424 = vmatpush1.msra.mxu0 0.0
        %2425 = vmatprep.mubr.f32.mxu0 0.0
        %2426 = vmatmul.mubr.f32.gmra.mrb[0].mxu0 %v2356
        %v2427 = vpop.f32.mrb[0].mxu0
        %v2428 = vadd.f32 0.0, %v2427
        %v2429 = vpop.f32.mrb[0].mxu0
        %2430 = vmatprep.mubr.f32.mxu0 0.0
        %2431 = vmatmul.mubr.f32.gmra.mrb[0].mxu0 %v2359
        %v2432 = vpop.f32.mrb[0].mxu0
        %v2433 = vadd.f32 0.0, %v2432
        %v2434 = vpop.f32.mrb[0].mxu0
        %2435 = vdwg.mxu0
        %2436 = vrot.lane.b32.xlu0 %v293, 112
        %v2437 = vpop.permute.xlu0 %2436
        %2438 = vrot.lane.b32.xlu0 %v297, 112
        %v2439 = vpop.permute.xlu0 %2438
        %v2443 = vsel %vm676, %v2338, 0
        %v2446 = vsel %vm676, %v2340, 0
        %2448 = vmatprep.subr.mxu0 0.0
        %2449 = vmatpush1.msra.mxu0 %v2437
        %2450 = vmatprep.subr.mxu0 0.0
        %2451 = vmatpush1.msra.mxu0 %v2439
        %2452 = vmatprep.subr.mxu0 0.0
        %2453 = vmatpush1.msra.mxu0 0.0
        %2454 = vmatprep.subr.mxu0 0.0
        %2455 = vmatpush1.msra.mxu0 0.0
        %2456 = vmatprep.subr.mxu0 0.0
        %2457 = vmatpush1.msra.mxu0 0.0
        %2458 = vmatprep.subr.mxu0 0.0
        %2459 = vmatpush1.msra.mxu0 0.0
        %2460 = vmatprep.subr.mxu0 0.0
        %2461 = vmatpush1.msra.mxu0 0.0
        %2462 = vmatprep.subr.mxu0 0.0
        %2463 = vmatpush1.msra.mxu0 0.0
        %2464 = vmatprep.subr.mxu0 0.0
        %2465 = vmatpush1.msra.mxu0 0.0
        %2466 = vmatprep.subr.mxu0 0.0
        %2467 = vmatpush1.msra.mxu0 0.0
        %2468 = vmatprep.subr.mxu0 0.0
        %2469 = vmatpush1.msra.mxu0 0.0
        %2470 = vmatprep.subr.mxu0 0.0
        %2471 = vmatpush1.msra.mxu0 0.0
        %2472 = vmatprep.subr.mxu0 0.0
        %2473 = vmatpush1.msra.mxu0 0.0
        %2474 = vmatprep.subr.mxu0 0.0
        %2475 = vmatpush1.msra.mxu0 0.0
        %2476 = vmatprep.subr.mxu0 0.0
        %2477 = vmatpush1.msra.mxu0 0.0
        %2478 = vmatprep.subr.mxu0 0.0
        %2479 = vmatpush1.msra.mxu0 0.0
        %2480 = vmatprep.subr.mxu0 0.0
        %2481 = vmatpush1.msra.mxu0 0.0
        %2482 = vmatprep.subr.mxu0 0.0
        %2483 = vmatpush1.msra.mxu0 0.0
        %2484 = vmatprep.subr.mxu0 0.0
        %2485 = vmatpush1.msra.mxu0 0.0
        %2486 = vmatprep.subr.mxu0 0.0
        %2487 = vmatpush1.msra.mxu0 0.0
        %2488 = vmatprep.subr.mxu0 0.0
        %2489 = vmatpush1.msra.mxu0 0.0
        %2490 = vmatprep.subr.mxu0 0.0
        %2491 = vmatpush1.msra.mxu0 0.0
        %2492 = vmatprep.subr.mxu0 0.0
        %2493 = vmatpush1.msra.mxu0 0.0
        %2494 = vmatprep.subr.mxu0 0.0
        %2495 = vmatpush1.msra.mxu0 0.0
        %2496 = vmatprep.subr.mxu0 0.0
        %2497 = vmatpush1.msra.mxu0 0.0
        %2498 = vmatprep.subr.mxu0 0.0
        %2499 = vmatpush1.msra.mxu0 0.0
        %2500 = vmatprep.subr.mxu0 0.0
        %2501 = vmatpush1.msra.mxu0 0.0
        %2502 = vmatprep.subr.mxu0 0.0
        %2503 = vmatpush1.msra.mxu0 0.0
        %2504 = vmatprep.subr.mxu0 0.0
        %2505 = vmatpush1.msra.mxu0 0.0
        %2506 = vmatprep.subr.mxu0 0.0
        %2507 = vmatpush1.msra.mxu0 0.0
        %2508 = vmatprep.subr.mxu0 0.0
        %2509 = vmatpush1.msra.mxu0 0.0
        %2510 = vmatprep.subr.mxu0 0.0
        %2511 = vmatpush1.msra.mxu0 0.0
        %2512 = vmatprep.mubr.f32.mxu0 0.0
        %2513 = vmatmul.mubr.f32.gmra.mrb[0].mxu0 %v2443
        %v2514 = vpop.f32.mrb[0].mxu0
        %v2515 = vadd.f32 0.0, %v2514
        %v2516 = vpop.f32.mrb[0].mxu0
        %2517 = vmatprep.mubr.f32.mxu0 0.0
        %2518 = vmatmul.mubr.f32.gmra.mrb[0].mxu0 %v2446
        %v2519 = vpop.f32.mrb[0].mxu0
        %v2520 = vadd.f32 0.0, %v2519
        %v2521 = vpop.f32.mrb[0].mxu0
        %2522 = vdwg.mxu0
        %2523 = vrot.lane.b32.xlu0 %v303, 112
        %v2524 = vpop.permute.xlu0 %2523
        %2525 = vrot.lane.b32.xlu0 %v307, 112
        %v2526 = vpop.permute.xlu0 %2525
        %v2530 = vsel %vm676, %v2342, 0
        %v2533 = vsel %vm676, %v2344, 0
        %2535 = vmatprep.subr.mxu0 0.0
        %2536 = vmatpush1.msra.mxu0 %v2524
        %2537 = vmatprep.subr.mxu0 0.0
        %2538 = vmatpush1.msra.mxu0 %v2526
        %2539 = vmatprep.subr.mxu0 0.0
        %2540 = vmatpush1.msra.mxu0 0.0
        %2541 = vmatprep.subr.mxu0 0.0
        %2542 = vmatpush1.msra.mxu0 0.0
        %2543 = vmatprep.subr.mxu0 0.0
        %2544 = vmatpush1.msra.mxu0 0.0
        %2545 = vmatprep.subr.mxu0 0.0
        %2546 = vmatpush1.msra.mxu0 0.0
        %2547 = vmatprep.subr.mxu0 0.0
        %2548 = vmatpush1.msra.mxu0 0.0
        %2549 = vmatprep.subr.mxu0 0.0
        %2550 = vmatpush1.msra.mxu0 0.0
        %2551 = vmatprep.subr.mxu0 0.0
        %2552 = vmatpush1.msra.mxu0 0.0
        %2553 = vmatprep.subr.mxu0 0.0
        %2554 = vmatpush1.msra.mxu0 0.0
        %2555 = vmatprep.subr.mxu0 0.0
        %2556 = vmatpush1.msra.mxu0 0.0
        %2557 = vmatprep.subr.mxu0 0.0
        %2558 = vmatpush1.msra.mxu0 0.0
        %2559 = vmatprep.subr.mxu0 0.0
        %2560 = vmatpush1.msra.mxu0 0.0
        %2561 = vmatprep.subr.mxu0 0.0
        %2562 = vmatpush1.msra.mxu0 0.0
        %2563 = vmatprep.subr.mxu0 0.0
        %2564 = vmatpush1.msra.mxu0 0.0
        %2565 = vmatprep.subr.mxu0 0.0
        %2566 = vmatpush1.msra.mxu0 0.0
        %2567 = vmatprep.subr.mxu0 0.0
        %2568 = vmatpush1.msra.mxu0 0.0
        %2569 = vmatprep.subr.mxu0 0.0
        %2570 = vmatpush1.msra.mxu0 0.0
        %2571 = vmatprep.subr.mxu0 0.0
        %2572 = vmatpush1.msra.mxu0 0.0
        %2573 = vmatprep.subr.mxu0 0.0
        %2574 = vmatpush1.msra.mxu0 0.0
        %2575 = vmatprep.subr.mxu0 0.0
        %2576 = vmatpush1.msra.mxu0 0.0
        %2577 = vmatprep.subr.mxu0 0.0
        %2578 = vmatpush1.msra.mxu0 0.0
        %2579 = vmatprep.subr.mxu0 0.0
        %2580 = vmatpush1.msra.mxu0 0.0
        %2581 = vmatprep.subr.mxu0 0.0
        %2582 = vmatpush1.msra.mxu0 0.0
        %2583 = vmatprep.subr.mxu0 0.0
        %2584 = vmatpush1.msra.mxu0 0.0
        %2585 = vmatprep.subr.mxu0 0.0
        %2586 = vmatpush1.msra.mxu0 0.0
        %2587 = vmatprep.subr.mxu0 0.0
        %2588 = vmatpush1.msra.mxu0 0.0
        %2589 = vmatprep.subr.mxu0 0.0
        %2590 = vmatpush1.msra.mxu0 0.0
        %2591 = vmatprep.subr.mxu0 0.0
        %2592 = vmatpush1.msra.mxu0 0.0
        %2593 = vmatprep.subr.mxu0 0.0
        %2594 = vmatpush1.msra.mxu0 0.0
        %2595 = vmatprep.subr.mxu0 0.0
        %2596 = vmatpush1.msra.mxu0 0.0
        %2597 = vmatprep.subr.mxu0 0.0
        %2598 = vmatpush1.msra.mxu0 0.0
        %2599 = vmatprep.mubr.f32.mxu0 0.0
        %2600 = vmatmul.mubr.f32.gmra.mrb[0].mxu0 %v2530
        %v2601 = vpop.f32.mrb[0].mxu0
        %v2602 = vadd.f32 0.0, %v2601
        %v2603 = vpop.f32.mrb[0].mxu0
        %2604 = vmatprep.mubr.f32.mxu0 0.0
        %2605 = vmatmul.mubr.f32.gmra.mrb[0].mxu0 %v2533
        %v2606 = vpop.f32.mrb[0].mxu0
        %v2607 = vadd.f32 0.0, %v2606
        %v2608 = vpop.f32.mrb[0].mxu0
        %2609 = vdwg.mxu0
        %2610 = vrot.lane.b32.xlu0 %v313, 112
        %v2611 = vpop.permute.xlu0 %2610
        %2612 = vrot.lane.b32.xlu0 %v317, 112
        %v2613 = vpop.permute.xlu0 %2612
        %v2617 = vsel %vm676, %v2346, 0
        %v2620 = vsel %vm676, %v2348, 0
        %2622 = vmatprep.subr.mxu0 0.0
        %2623 = vmatpush1.msra.mxu0 %v2611
        %2624 = vmatprep.subr.mxu0 0.0
        %2625 = vmatpush1.msra.mxu0 %v2613
        %2626 = vmatprep.subr.mxu0 0.0
        %2627 = vmatpush1.msra.mxu0 0.0
        %2628 = vmatprep.subr.mxu0 0.0
        %2629 = vmatpush1.msra.mxu0 0.0
        %2630 = vmatprep.subr.mxu0 0.0
        %2631 = vmatpush1.msra.mxu0 0.0
        %2632 = vmatprep.subr.mxu0 0.0
        %2633 = vmatpush1.msra.mxu0 0.0
        %2634 = vmatprep.subr.mxu0 0.0
        %2635 = vmatpush1.msra.mxu0 0.0
        %2636 = vmatprep.subr.mxu0 0.0
        %2637 = vmatpush1.msra.mxu0 0.0
        %2638 = vmatprep.subr.mxu0 0.0
        %2639 = vmatpush1.msra.mxu0 0.0
        %2640 = vmatprep.subr.mxu0 0.0
        %2641 = vmatpush1.msra.mxu0 0.0
        %2642 = vmatprep.subr.mxu0 0.0
        %2643 = vmatpush1.msra.mxu0 0.0
        %2644 = vmatprep.subr.mxu0 0.0
        %2645 = vmatpush1.msra.mxu0 0.0
        %2646 = vmatprep.subr.mxu0 0.0
        %2647 = vmatpush1.msra.mxu0 0.0
        %2648 = vmatprep.subr.mxu0 0.0
        %2649 = vmatpush1.msra.mxu0 0.0
        %2650 = vmatprep.subr.mxu0 0.0
        %2651 = vmatpush1.msra.mxu0 0.0
        %2652 = vmatprep.subr.mxu0 0.0
        %2653 = vmatpush1.msra.mxu0 0.0
        %2654 = vmatprep.subr.mxu0 0.0
        %2655 = vmatpush1.msra.mxu0 0.0
        %2656 = vmatprep.subr.mxu0 0.0
        %2657 = vmatpush1.msra.mxu0 0.0
        %2658 = vmatprep.subr.mxu0 0.0
        %2659 = vmatpush1.msra.mxu0 0.0
        %2660 = vmatprep.subr.mxu0 0.0
        %2661 = vmatpush1.msra.mxu0 0.0
        %2662 = vmatprep.subr.mxu0 0.0
        %2663 = vmatpush1.msra.mxu0 0.0
        %2664 = vmatprep.subr.mxu0 0.0
        %2665 = vmatpush1.msra.mxu0 0.0
        %2666 = vmatprep.subr.mxu0 0.0
        %2667 = vmatpush1.msra.mxu0 0.0
        %2668 = vmatprep.subr.mxu0 0.0
        %2669 = vmatpush1.msra.mxu0 0.0
        %2670 = vmatprep.subr.mxu0 0.0
        %2671 = vmatpush1.msra.mxu0 0.0
        %2672 = vmatprep.subr.mxu0 0.0
        %2673 = vmatpush1.msra.mxu0 0.0
        %2674 = vmatprep.subr.mxu0 0.0
        %2675 = vmatpush1.msra.mxu0 0.0
        %2676 = vmatprep.subr.mxu0 0.0
        %2677 = vmatpush1.msra.mxu0 0.0
        %2678 = vmatprep.subr.mxu0 0.0
        %2679 = vmatpush1.msra.mxu0 0.0
        %2680 = vmatprep.subr.mxu0 0.0
        %2681 = vmatpush1.msra.mxu0 0.0
        %2682 = vmatprep.subr.mxu0 0.0
        %2683 = vmatpush1.msra.mxu0 0.0
        %2684 = vmatprep.subr.mxu0 0.0
        %2685 = vmatpush1.msra.mxu0 0.0
        %2686 = vmatprep.mubr.f32.mxu0 0.0
        %2687 = vmatmul.mubr.f32.gmra.mrb[0].mxu0 %v2617
        %v2688 = vpop.f32.mrb[0].mxu0
        %v2689 = vadd.f32 0.0, %v2688
        %v2690 = vpop.f32.mrb[0].mxu0
        %2691 = vmatprep.mubr.f32.mxu0 0.0
        %2692 = vmatmul.mubr.f32.gmra.mrb[0].mxu0 %v2620
        %v2693 = vpop.f32.mrb[0].mxu0
        %v2694 = vadd.f32 0.0, %v2693
        %v2695 = vpop.f32.mrb[0].mxu0
        %2696 = vdwg.mxu0
        %2697 = vrot.lane.b32.xlu0 %v281, 104
        %v2698 = vpop.permute.xlu0 %2697
        %2699 = vrot.lane.b32.xlu0 %v285, 104
        %v2700 = vpop.permute.xlu0 %2699
        %2701 = vrot.lane.b32.xlu0 %v281, 40
        %v2702 = vpop.permute.xlu0 %2701
        %2703 = vrot.lane.b32.xlu0 %v285, 40
        %v2704 = vpop.permute.xlu0 %2703
        %v2705 = vsel %vm325, %v2698, 0
        %v2707 = vsel %vm325, %v2700, 0
        %v2709 = vsel %vm325, %v2702, 0
        %v2711 = vsel %vm325, %v2704, 0
        %2713 = vmatprep.subr.mxu0 0.0
        %2714 = vmatpush1.xpose.msra.mxu0 %v2709
        %2715 = vmatprep.subr.mxu0 0.0
        %2716 = vmatpush1.xpose.msra.mxu0 %v2711
        %2717 = vmatprep.subr.mxu0 0.0
        %2718 = vmatpush1.xpose.msra.mxu0 0.0
        %2719 = vmatprep.subr.mxu0 0.0
        %2720 = vmatpush1.xpose.msra.mxu0 0.0
        %2721 = vmatprep.subr.mxu0 0.0
        %2722 = vmatpush1.xpose.msra.mxu0 0.0
        %2723 = vmatprep.subr.mxu0 0.0
        %2724 = vmatpush1.xpose.msra.mxu0 0.0
        %2725 = vmatprep.subr.mxu0 0.0
        %2726 = vmatpush1.xpose.msra.mxu0 0.0
        %2727 = vmatprep.subr.mxu0 0.0
        %2728 = vmatpush1.xpose.msra.mxu0 0.0
        %2729 = vmatprep.subr.mxu0 0.0
        %2730 = vmatpush1.xpose.msra.mxu0 0.0
        %2731 = vmatprep.subr.mxu0 0.0
        %2732 = vmatpush1.xpose.msra.mxu0 0.0
        %2733 = vmatprep.subr.mxu0 0.0
        %2734 = vmatpush1.xpose.msra.mxu0 0.0
        %2735 = vmatprep.subr.mxu0 0.0
        %2736 = vmatpush1.xpose.msra.mxu0 0.0
        %2737 = vmatprep.subr.mxu0 0.0
        %2738 = vmatpush1.xpose.msra.mxu0 0.0
        %2739 = vmatprep.subr.mxu0 0.0
        %2740 = vmatpush1.xpose.msra.mxu0 0.0
        %2741 = vmatprep.subr.mxu0 0.0
        %2742 = vmatpush1.xpose.msra.mxu0 0.0
        %2743 = vmatprep.subr.mxu0 0.0
        %2744 = vmatpush1.xpose.msra.mxu0 0.0
        %2745 = vmatprep.subr.mxu0 0.0
        %2746 = vmatpush1.xpose.msra.mxu0 0.0
        %2747 = vmatprep.subr.mxu0 0.0
        %2748 = vmatpush1.xpose.msra.mxu0 0.0
        %2749 = vmatprep.subr.mxu0 0.0
        %2750 = vmatpush1.xpose.msra.mxu0 0.0
        %2751 = vmatprep.subr.mxu0 0.0
        %2752 = vmatpush1.xpose.msra.mxu0 0.0
        %2753 = vmatprep.subr.mxu0 0.0
        %2754 = vmatpush1.xpose.msra.mxu0 0.0
        %2755 = vmatprep.subr.mxu0 0.0
        %2756 = vmatpush1.xpose.msra.mxu0 0.0
        %2757 = vmatprep.subr.mxu0 0.0
        %2758 = vmatpush1.xpose.msra.mxu0 0.0
        %2759 = vmatprep.subr.mxu0 0.0
        %2760 = vmatpush1.xpose.msra.mxu0 0.0
        %2761 = vmatprep.subr.mxu0 0.0
        %2762 = vmatpush1.xpose.msra.mxu0 0.0
        %2763 = vmatprep.subr.mxu0 0.0
        %2764 = vmatpush1.xpose.msra.mxu0 0.0
        %2765 = vmatprep.subr.mxu0 0.0
        %2766 = vmatpush1.xpose.msra.mxu0 0.0
        %2767 = vmatprep.subr.mxu0 0.0
        %2768 = vmatpush1.xpose.msra.mxu0 0.0
        %2769 = vmatprep.subr.mxu0 0.0
        %2770 = vmatpush1.xpose.msra.mxu0 0.0
        %2771 = vmatprep.subr.mxu0 0.0
        %2772 = vmatpush1.xpose.msra.mxu0 0.0
        %2773 = vmatprep.subr.mxu0 0.0
        %2774 = vmatpush1.xpose.msra.mxu0 0.0
        %2775 = vmatprep.subr.mxu0 0.0
        %2776 = vmatpush1.xpose.msra.mxu0 0.0
        %2777 = vmatprep.mubr.f32.mxu0 0.0
        %2778 = vmatmul.mubr.f32.gmra.mrb[0].mxu0 %v2705
        %v2779 = vpop.f32.mrb[0].mxu0
        %v2780 = vadd.f32 0.0, %v2779
        %v2781 = vpop.f32.mrb[0].mxu0
        %2782 = vmatprep.mubr.f32.mxu0 0.0
        %2783 = vmatmul.mubr.f32.gmra.mrb[0].mxu0 %v2707
        %v2784 = vpop.f32.mrb[0].mxu0
        %v2785 = vadd.f32 0.0, %v2784
        %v2786 = vpop.f32.mrb[0].mxu0
        %2787 = vdwg.mxu0
        %2788 = vrot.lane.b32.xlu0 %v291, 104
        %v2789 = vpop.permute.xlu0 %2788
        %2790 = vrot.lane.b32.xlu0 %v295, 104
        %v2791 = vpop.permute.xlu0 %2790
        %2792 = vrot.lane.b32.xlu0 %v291, 40
        %v2793 = vpop.permute.xlu0 %2792
        %2794 = vrot.lane.b32.xlu0 %v295, 40
        %v2795 = vpop.permute.xlu0 %2794
        %v2796 = vsel %vm325, %v2789, 0
        %v2798 = vsel %vm325, %v2791, 0
        %v2800 = vsel %vm325, %v2793, 0
        %v2802 = vsel %vm325, %v2795, 0
        %2804 = vmatprep.subr.mxu0 0.0
        %2805 = vmatpush1.xpose.msra.mxu0 %v2800
        %2806 = vmatprep.subr.mxu0 0.0
        %2807 = vmatpush1.xpose.msra.mxu0 %v2802
        %2808 = vmatprep.subr.mxu0 0.0
        %2809 = vmatpush1.xpose.msra.mxu0 0.0
        %2810 = vmatprep.subr.mxu0 0.0
        %2811 = vmatpush1.xpose.msra.mxu0 0.0
        %2812 = vmatprep.subr.mxu0 0.0
        %2813 = vmatpush1.xpose.msra.mxu0 0.0
        %2814 = vmatprep.subr.mxu0 0.0
        %2815 = vmatpush1.xpose.msra.mxu0 0.0
        %2816 = vmatprep.subr.mxu0 0.0
        %2817 = vmatpush1.xpose.msra.mxu0 0.0
        %2818 = vmatprep.subr.mxu0 0.0
        %2819 = vmatpush1.xpose.msra.mxu0 0.0
        %2820 = vmatprep.subr.mxu0 0.0
        %2821 = vmatpush1.xpose.msra.mxu0 0.0
        %2822 = vmatprep.subr.mxu0 0.0
        %2823 = vmatpush1.xpose.msra.mxu0 0.0
        %2824 = vmatprep.subr.mxu0 0.0
        %2825 = vmatpush1.xpose.msra.mxu0 0.0
        %2826 = vmatprep.subr.mxu0 0.0
        %2827 = vmatpush1.xpose.msra.mxu0 0.0
        %2828 = vmatprep.subr.mxu0 0.0
        %2829 = vmatpush1.xpose.msra.mxu0 0.0
        %2830 = vmatprep.subr.mxu0 0.0
        %2831 = vmatpush1.xpose.msra.mxu0 0.0
        %2832 = vmatprep.subr.mxu0 0.0
        %2833 = vmatpush1.xpose.msra.mxu0 0.0
        %2834 = vmatprep.subr.mxu0 0.0
        %2835 = vmatpush1.xpose.msra.mxu0 0.0
        %2836 = vmatprep.subr.mxu0 0.0
        %2837 = vmatpush1.xpose.msra.mxu0 0.0
        %2838 = vmatprep.subr.mxu0 0.0
        %2839 = vmatpush1.xpose.msra.mxu0 0.0
        %2840 = vmatprep.subr.mxu0 0.0
        %2841 = vmatpush1.xpose.msra.mxu0 0.0
        %2842 = vmatprep.subr.mxu0 0.0
        %2843 = vmatpush1.xpose.msra.mxu0 0.0
        %2844 = vmatprep.subr.mxu0 0.0
        %2845 = vmatpush1.xpose.msra.mxu0 0.0
        %2846 = vmatprep.subr.mxu0 0.0
        %2847 = vmatpush1.xpose.msra.mxu0 0.0
        %2848 = vmatprep.subr.mxu0 0.0
        %2849 = vmatpush1.xpose.msra.mxu0 0.0
        %2850 = vmatprep.subr.mxu0 0.0
        %2851 = vmatpush1.xpose.msra.mxu0 0.0
        %2852 = vmatprep.subr.mxu0 0.0
        %2853 = vmatpush1.xpose.msra.mxu0 0.0
        %2854 = vmatprep.subr.mxu0 0.0
        %2855 = vmatpush1.xpose.msra.mxu0 0.0
        %2856 = vmatprep.subr.mxu0 0.0
        %2857 = vmatpush1.xpose.msra.mxu0 0.0
        %2858 = vmatprep.subr.mxu0 0.0
        %2859 = vmatpush1.xpose.msra.mxu0 0.0
        %2860 = vmatprep.subr.mxu0 0.0
        %2861 = vmatpush1.xpose.msra.mxu0 0.0
        %2862 = vmatprep.subr.mxu0 0.0
        %2863 = vmatpush1.xpose.msra.mxu0 0.0
        %2864 = vmatprep.subr.mxu0 0.0
        %2865 = vmatpush1.xpose.msra.mxu0 0.0
        %2866 = vmatprep.subr.mxu0 0.0
        %2867 = vmatpush1.xpose.msra.mxu0 0.0
        %2868 = vmatprep.mubr.f32.mxu0 0.0
        %2869 = vmatmul.mubr.f32.gmra.mrb[0].mxu0 %v2796
        %v2870 = vpop.f32.mrb[0].mxu0
        %v2871 = vadd.f32 0.0, %v2870
        %v2872 = vpop.f32.mrb[0].mxu0
        %2873 = vmatprep.mubr.f32.mxu0 0.0
        %2874 = vmatmul.mubr.f32.gmra.mrb[0].mxu0 %v2798
        %v2875 = vpop.f32.mrb[0].mxu0
        %v2876 = vadd.f32 0.0, %v2875
        %v2877 = vpop.f32.mrb[0].mxu0
        %2878 = vdwg.mxu0
        %2879 = vrot.lane.b32.xlu0 %v301, 104
        %v2880 = vpop.permute.xlu0 %2879
        %2881 = vrot.lane.b32.xlu0 %v305, 104
        %v2882 = vpop.permute.xlu0 %2881
        %2883 = vrot.lane.b32.xlu0 %v301, 40
        %v2884 = vpop.permute.xlu0 %2883
        %2885 = vrot.lane.b32.xlu0 %v305, 40
        %v2886 = vpop.permute.xlu0 %2885
        %v2887 = vsel %vm325, %v2880, 0
        %v2889 = vsel %vm325, %v2882, 0
        %v2891 = vsel %vm325, %v2884, 0
        %v2893 = vsel %vm325, %v2886, 0
        %2895 = vmatprep.subr.mxu0 0.0
        %2896 = vmatpush1.xpose.msra.mxu0 %v2891
        %2897 = vmatprep.subr.mxu0 0.0
        %2898 = vmatpush1.xpose.msra.mxu0 %v2893
        %2899 = vmatprep.subr.mxu0 0.0
        %2900 = vmatpush1.xpose.msra.mxu0 0.0
        %2901 = vmatprep.subr.mxu0 0.0
        %2902 = vmatpush1.xpose.msra.mxu0 0.0
        %2903 = vmatprep.subr.mxu0 0.0
        %2904 = vmatpush1.xpose.msra.mxu0 0.0
        %2905 = vmatprep.subr.mxu0 0.0
        %2906 = vmatpush1.xpose.msra.mxu0 0.0
        %2907 = vmatprep.subr.mxu0 0.0
        %2908 = vmatpush1.xpose.msra.mxu0 0.0
        %2909 = vmatprep.subr.mxu0 0.0
        %2910 = vmatpush1.xpose.msra.mxu0 0.0
        %2911 = vmatprep.subr.mxu0 0.0
        %2912 = vmatpush1.xpose.msra.mxu0 0.0
        %2913 = vmatprep.subr.mxu0 0.0
        %2914 = vmatpush1.xpose.msra.mxu0 0.0
        %2915 = vmatprep.subr.mxu0 0.0
        %2916 = vmatpush1.xpose.msra.mxu0 0.0
        %2917 = vmatprep.subr.mxu0 0.0
        %2918 = vmatpush1.xpose.msra.mxu0 0.0
        %2919 = vmatprep.subr.mxu0 0.0
        %2920 = vmatpush1.xpose.msra.mxu0 0.0
        %2921 = vmatprep.subr.mxu0 0.0
        %2922 = vmatpush1.xpose.msra.mxu0 0.0
        %2923 = vmatprep.subr.mxu0 0.0
        %2924 = vmatpush1.xpose.msra.mxu0 0.0
        %2925 = vmatprep.subr.mxu0 0.0
        %2926 = vmatpush1.xpose.msra.mxu0 0.0
        %2927 = vmatprep.subr.mxu0 0.0
        %2928 = vmatpush1.xpose.msra.mxu0 0.0
        %2929 = vmatprep.subr.mxu0 0.0
        %2930 = vmatpush1.xpose.msra.mxu0 0.0
        %2931 = vmatprep.subr.mxu0 0.0
        %2932 = vmatpush1.xpose.msra.mxu0 0.0
        %2933 = vmatprep.subr.mxu0 0.0
        %2934 = vmatpush1.xpose.msra.mxu0 0.0
        %2935 = vmatprep.subr.mxu0 0.0
        %2936 = vmatpush1.xpose.msra.mxu0 0.0
        %2937 = vmatprep.subr.mxu0 0.0
        %2938 = vmatpush1.xpose.msra.mxu0 0.0
        %2939 = vmatprep.subr.mxu0 0.0
        %2940 = vmatpush1.xpose.msra.mxu0 0.0
        %2941 = vmatprep.subr.mxu0 0.0
        %2942 = vmatpush1.xpose.msra.mxu0 0.0
        %2943 = vmatprep.subr.mxu0 0.0
        %2944 = vmatpush1.xpose.msra.mxu0 0.0
        %2945 = vmatprep.subr.mxu0 0.0
        %2946 = vmatpush1.xpose.msra.mxu0 0.0
        %2947 = vmatprep.subr.mxu0 0.0
        %2948 = vmatpush1.xpose.msra.mxu0 0.0
        %2949 = vmatprep.subr.mxu0 0.0
        %2950 = vmatpush1.xpose.msra.mxu0 0.0
        %2951 = vmatprep.subr.mxu0 0.0
        %2952 = vmatpush1.xpose.msra.mxu0 0.0
        %2953 = vmatprep.subr.mxu0 0.0
        %2954 = vmatpush1.xpose.msra.mxu0 0.0
        %2955 = vmatprep.subr.mxu0 0.0
        %2956 = vmatpush1.xpose.msra.mxu0 0.0
        %2957 = vmatprep.subr.mxu0 0.0
        %2958 = vmatpush1.xpose.msra.mxu0 0.0
        %2959 = vmatprep.mubr.f32.mxu0 0.0
        %2960 = vmatmul.mubr.f32.gmra.mrb[0].mxu0 %v2887
        %v2961 = vpop.f32.mrb[0].mxu0
        %v2962 = vadd.f32 0.0, %v2961
        %v2963 = vpop.f32.mrb[0].mxu0
        %2964 = vmatprep.mubr.f32.mxu0 0.0
        %2965 = vmatmul.mubr.f32.gmra.mrb[0].mxu0 %v2889
        %v2966 = vpop.f32.mrb[0].mxu0
        %v2967 = vadd.f32 0.0, %v2966
        %v2968 = vpop.f32.mrb[0].mxu0
        %2969 = vdwg.mxu0
        %2970 = vrot.lane.b32.xlu0 %v311, 104
        %v2971 = vpop.permute.xlu0 %2970
        %2972 = vrot.lane.b32.xlu0 %v315, 104
        %v2973 = vpop.permute.xlu0 %2972
        %2974 = vrot.lane.b32.xlu0 %v311, 40
        %v2975 = vpop.permute.xlu0 %2974
        %2976 = vrot.lane.b32.xlu0 %v315, 40
        %v2977 = vpop.permute.xlu0 %2976
        %v2978 = vsel %vm325, %v2971, 0
        %v2980 = vsel %vm325, %v2973, 0
        %v2982 = vsel %vm325, %v2975, 0
        %v2984 = vsel %vm325, %v2977, 0
        %2986 = vmatprep.subr.mxu0 0.0
        %2987 = vmatpush1.xpose.msra.mxu0 %v2982
        %2988 = vmatprep.subr.mxu0 0.0
        %2989 = vmatpush1.xpose.msra.mxu0 %v2984
        %2990 = vmatprep.subr.mxu0 0.0
        %2991 = vmatpush1.xpose.msra.mxu0 0.0
        %2992 = vmatprep.subr.mxu0 0.0
        %2993 = vmatpush1.xpose.msra.mxu0 0.0
        %2994 = vmatprep.subr.mxu0 0.0
        %2995 = vmatpush1.xpose.msra.mxu0 0.0
        %2996 = vmatprep.subr.mxu0 0.0
        %2997 = vmatpush1.xpose.msra.mxu0 0.0
        %2998 = vmatprep.subr.mxu0 0.0
        %2999 = vmatpush1.xpose.msra.mxu0 0.0
        %3000 = vmatprep.subr.mxu0 0.0
        %3001 = vmatpush1.xpose.msra.mxu0 0.0
        %3002 = vmatprep.subr.mxu0 0.0
        %3003 = vmatpush1.xpose.msra.mxu0 0.0
        %3004 = vmatprep.subr.mxu0 0.0
        %3005 = vmatpush1.xpose.msra.mxu0 0.0
        %3006 = vmatprep.subr.mxu0 0.0
        %3007 = vmatpush1.xpose.msra.mxu0 0.0
        %3008 = vmatprep.subr.mxu0 0.0
        %3009 = vmatpush1.xpose.msra.mxu0 0.0
        %3010 = vmatprep.subr.mxu0 0.0
        %3011 = vmatpush1.xpose.msra.mxu0 0.0
        %3012 = vmatprep.subr.mxu0 0.0
        %3013 = vmatpush1.xpose.msra.mxu0 0.0
        %3014 = vmatprep.subr.mxu0 0.0
        %3015 = vmatpush1.xpose.msra.mxu0 0.0
        %3016 = vmatprep.subr.mxu0 0.0
        %3017 = vmatpush1.xpose.msra.mxu0 0.0
        %3018 = vmatprep.subr.mxu0 0.0
        %3019 = vmatpush1.xpose.msra.mxu0 0.0
        %3020 = vmatprep.subr.mxu0 0.0
        %3021 = vmatpush1.xpose.msra.mxu0 0.0
        %3022 = vmatprep.subr.mxu0 0.0
        %3023 = vmatpush1.xpose.msra.mxu0 0.0
        %3024 = vmatprep.subr.mxu0 0.0
        %3025 = vmatpush1.xpose.msra.mxu0 0.0
        %3026 = vmatprep.subr.mxu0 0.0
        %3027 = vmatpush1.xpose.msra.mxu0 0.0
        %3028 = vmatprep.subr.mxu0 0.0
        %3029 = vmatpush1.xpose.msra.mxu0 0.0
        %3030 = vmatprep.subr.mxu0 0.0
        %3031 = vmatpush1.xpose.msra.mxu0 0.0
        %3032 = vmatprep.subr.mxu0 0.0
        %3033 = vmatpush1.xpose.msra.mxu0 0.0
        %3034 = vmatprep.subr.mxu0 0.0
        %3035 = vmatpush1.xpose.msra.mxu0 0.0
        %3036 = vmatprep.subr.mxu0 0.0
        %3037 = vmatpush1.xpose.msra.mxu0 0.0
        %3038 = vmatprep.subr.mxu0 0.0
        %3039 = vmatpush1.xpose.msra.mxu0 0.0
        %3040 = vmatprep.subr.mxu0 0.0
        %3041 = vmatpush1.xpose.msra.mxu0 0.0
        %3042 = vmatprep.subr.mxu0 0.0
        %3043 = vmatpush1.xpose.msra.mxu0 0.0
        %3044 = vmatprep.subr.mxu0 0.0
        %3045 = vmatpush1.xpose.msra.mxu0 0.0
        %3046 = vmatprep.subr.mxu0 0.0
        %3047 = vmatpush1.xpose.msra.mxu0 0.0
        %3048 = vmatprep.subr.mxu0 0.0
        %3049 = vmatpush1.xpose.msra.mxu0 0.0
        %3050 = vmatprep.mubr.f32.mxu0 0.0
        %3051 = vmatmul.mubr.f32.gmra.mrb[0].mxu0 %v2978
        %v3052 = vpop.f32.mrb[0].mxu0
        %v3053 = vadd.f32 0.0, %v3052
        %v3054 = vpop.f32.mrb[0].mxu0
        %3055 = vmatprep.mubr.f32.mxu0 0.0
        %3056 = vmatmul.mubr.f32.gmra.mrb[0].mxu0 %v2980
        %v3057 = vpop.f32.mrb[0].mxu0
        %v3058 = vadd.f32 0.0, %v3057
        %v3059 = vpop.f32.mrb[0].mxu0
        %3060 = vdwg.mxu0
        %v3061 = vsel %vm676, %v2780, -inf
        %3062 = vmax.xlane.f32.xlu0 %v3061
        %v3063 = vpop.xlane.xlu0 %3062
        %v3064 = vsel %vm676, %v2785, -inf
        %3065 = vmax.xlane.f32.xlu0 %v3064
        %v3066 = vpop.xlane.xlu0 %3065
        %v3067 = vsel %vm676, %v2871, -inf
        %3068 = vmax.xlane.f32.xlu0 %v3067
        %v3069 = vpop.xlane.xlu0 %3068
        %v3070 = vsel %vm676, %v2876, -inf
        %3071 = vmax.xlane.f32.xlu0 %v3070
        %v3072 = vpop.xlane.xlu0 %3071
        %v3073 = vsel %vm676, %v2962, -inf
        %3074 = vmax.xlane.f32.xlu0 %v3073
        %v3075 = vpop.xlane.xlu0 %3074
        %v3076 = vsel %vm676, %v2967, -inf
        %3077 = vmax.xlane.f32.xlu0 %v3076
        %v3078 = vpop.xlane.xlu0 %3077
        %v3079 = vsel %vm676, %v3053, -inf
        %3080 = vmax.xlane.f32.xlu0 %v3079
        %v3081 = vpop.xlane.xlu0 %3080
        %v3082 = vsel %vm676, %v3058, -inf
        %3083 = vmax.xlane.f32.xlu0 %v3082
        %v3084 = vpop.xlane.xlu0 %3083
        %v3085 = vsub.f32 %v2780, %v3063
        %v3086 = vsub.f32 %v2785, %v3066
        %v3087 = vsub.f32 %v2871, %v3069
        %v3088 = vsub.f32 %v2876, %v3072
        %v3089 = vsub.f32 %v2962, %v3075
        %v3090 = vsub.f32 %v2967, %v3078
        %v3091 = vsub.f32 %v3053, %v3081
        %v3092 = vsub.f32 %v3058, %v3084
        %v3093 = vmul.f32 %v3085, 1.442695
        %v3094 = vpow.pop %v3093
        %v3095 = vmul.f32 %v3086, 1.442695
        %v3096 = vpow.pop %v3095
        %v3097 = vmul.f32 %v3087, 1.442695
        %v3098 = vpow.pop %v3097
        %v3099 = vmul.f32 %v3088, 1.442695
        %v3100 = vpow.pop %v3099
        %v3101 = vmul.f32 %v3089, 1.442695
        %v3102 = vpow.pop %v3101
        %v3103 = vmul.f32 %v3090, 1.442695
        %v3104 = vpow.pop %v3103
        %v3105 = vmul.f32 %v3091, 1.442695
        %v3106 = vpow.pop %v3105
        %v3107 = vmul.f32 %v3092, 1.442695
        %v3108 = vpow.pop %v3107
        %v3109 = vsel %vm676, %v3094, 0.0
        %3110 = vadd.xlane.f32.xlu0 %v3109
        %v3111 = vpop.xlane.xlu0 %3110
        %v3112 = vsel %vm676, %v3096, 0.0
        %3113 = vadd.xlane.f32.xlu0 %v3112
        %v3114 = vpop.xlane.xlu0 %3113
        %v3115 = vsel %vm676, %v3098, 0.0
        %3116 = vadd.xlane.f32.xlu0 %v3115
        %v3117 = vpop.xlane.xlu0 %3116
        %v3118 = vsel %vm676, %v3100, 0.0
        %3119 = vadd.xlane.f32.xlu0 %v3118
        %v3120 = vpop.xlane.xlu0 %3119
        %v3121 = vsel %vm676, %v3102, 0.0
        %3122 = vadd.xlane.f32.xlu0 %v3121
        %v3123 = vpop.xlane.xlu0 %3122
        %v3124 = vsel %vm676, %v3104, 0.0
        %3125 = vadd.xlane.f32.xlu0 %v3124
        %v3126 = vpop.xlane.xlu0 %3125
        %v3127 = vsel %vm676, %v3106, 0.0
        %3128 = vadd.xlane.f32.xlu0 %v3127
        %v3129 = vpop.xlane.xlu0 %3128
        %v3130 = vsel %vm676, %v3108, 0.0
        %3131 = vadd.xlane.f32.xlu0 %v3130
        %v3132 = vpop.xlane.xlu0 %3131
        %v3133 = vrcp.pop %v3111
        %v3134 = vmul.f32 %v3094, %v3133
        %v3135 = vrcp.pop %v3114
        %v3136 = vmul.f32 %v3096, %v3135
        %v3137 = vrcp.pop %v3117
        %v3138 = vmul.f32 %v3098, %v3137
        %v3139 = vrcp.pop %v3120
        %v3140 = vmul.f32 %v3100, %v3139
        %v3141 = vrcp.pop %v3123
        %v3142 = vmul.f32 %v3102, %v3141
        %v3143 = vrcp.pop %v3126
        %v3144 = vmul.f32 %v3104, %v3143
        %v3145 = vrcp.pop %v3129
        %v3146 = vmul.f32 %v3106, %v3145
        %v3147 = vrcp.pop %v3132
        %v3148 = vmul.f32 %v3108, %v3147
        %3149 = vrot.lane.b32.xlu0 %v283, 104
        %v3150 = vpop.permute.xlu0 %3149
        %3151 = vrot.lane.b32.xlu0 %v287, 104
        %v3152 = vpop.permute.xlu0 %3151
        %v3156 = vsel %vm676, %v3134, 0
        %v3159 = vsel %vm676, %v3136, 0
        %3161 = vmatprep.subr.mxu0 0.0
        %3162 = vmatpush1.msra.mxu0 %v3150
        %3163 = vmatprep.subr.mxu0 0.0
        %3164 = vmatpush1.msra.mxu0 %v3152
        %3165 = vmatprep.subr.mxu0 0.0
        %3166 = vmatpush1.msra.mxu0 0.0
        %3167 = vmatprep.subr.mxu0 0.0
        %3168 = vmatpush1.msra.mxu0 0.0
        %3169 = vmatprep.subr.mxu0 0.0
        %3170 = vmatpush1.msra.mxu0 0.0
        %3171 = vmatprep.subr.mxu0 0.0
        %3172 = vmatpush1.msra.mxu0 0.0
        %3173 = vmatprep.subr.mxu0 0.0
        %3174 = vmatpush1.msra.mxu0 0.0
        %3175 = vmatprep.subr.mxu0 0.0
        %3176 = vmatpush1.msra.mxu0 0.0
        %3177 = vmatprep.subr.mxu0 0.0
        %3178 = vmatpush1.msra.mxu0 0.0
        %3179 = vmatprep.subr.mxu0 0.0
        %3180 = vmatpush1.msra.mxu0 0.0
        %3181 = vmatprep.subr.mxu0 0.0
        %3182 = vmatpush1.msra.mxu0 0.0
        %3183 = vmatprep.subr.mxu0 0.0
        %3184 = vmatpush1.msra.mxu0 0.0
        %3185 = vmatprep.subr.mxu0 0.0
        %3186 = vmatpush1.msra.mxu0 0.0
        %3187 = vmatprep.subr.mxu0 0.0
        %3188 = vmatpush1.msra.mxu0 0.0
        %3189 = vmatprep.subr.mxu0 0.0
        %3190 = vmatpush1.msra.mxu0 0.0
        %3191 = vmatprep.subr.mxu0 0.0
        %3192 = vmatpush1.msra.mxu0 0.0
        %3193 = vmatprep.subr.mxu0 0.0
        %3194 = vmatpush1.msra.mxu0 0.0
        %3195 = vmatprep.subr.mxu0 0.0
        %3196 = vmatpush1.msra.mxu0 0.0
        %3197 = vmatprep.subr.mxu0 0.0
        %3198 = vmatpush1.msra.mxu0 0.0
        %3199 = vmatprep.subr.mxu0 0.0
        %3200 = vmatpush1.msra.mxu0 0.0
        %3201 = vmatprep.subr.mxu0 0.0
        %3202 = vmatpush1.msra.mxu0 0.0
        %3203 = vmatprep.subr.mxu0 0.0
        %3204 = vmatpush1.msra.mxu0 0.0
        %3205 = vmatprep.subr.mxu0 0.0
        %3206 = vmatpush1.msra.mxu0 0.0
        %3207 = vmatprep.subr.mxu0 0.0
        %3208 = vmatpush1.msra.mxu0 0.0
        %3209 = vmatprep.subr.mxu0 0.0
        %3210 = vmatpush1.msra.mxu0 0.0
        %3211 = vmatprep.subr.mxu0 0.0
        %3212 = vmatpush1.msra.mxu0 0.0
        %3213 = vmatprep.subr.mxu0 0.0
        %3214 = vmatpush1.msra.mxu0 0.0
        %3215 = vmatprep.subr.mxu0 0.0
        %3216 = vmatpush1.msra.mxu0 0.0
        %3217 = vmatprep.subr.mxu0 0.0
        %3218 = vmatpush1.msra.mxu0 0.0
        %3219 = vmatprep.subr.mxu0 0.0
        %3220 = vmatpush1.msra.mxu0 0.0
        %3221 = vmatprep.subr.mxu0 0.0
        %3222 = vmatpush1.msra.mxu0 0.0
        %3223 = vmatprep.subr.mxu0 0.0
        %3224 = vmatpush1.msra.mxu0 0.0
        %3225 = vmatprep.mubr.f32.mxu0 0.0
        %3226 = vmatmul.mubr.f32.gmra.mrb[0].mxu0 %v3156
        %v3227 = vpop.f32.mrb[0].mxu0
        %v3228 = vadd.f32 0.0, %v3227
        %v3229 = vpop.f32.mrb[0].mxu0
        %3230 = vmatprep.mubr.f32.mxu0 0.0
        %3231 = vmatmul.mubr.f32.gmra.mrb[0].mxu0 %v3159
        %v3232 = vpop.f32.mrb[0].mxu0
        %v3233 = vadd.f32 0.0, %v3232
        %v3234 = vpop.f32.mrb[0].mxu0
        %3235 = vdwg.mxu0
        %3236 = vrot.lane.b32.xlu0 %v293, 104
        %v3237 = vpop.permute.xlu0 %3236
        %3238 = vrot.lane.b32.xlu0 %v297, 104
        %v3239 = vpop.permute.xlu0 %3238
        %v3243 = vsel %vm676, %v3138, 0
        %v3246 = vsel %vm676, %v3140, 0
        %3248 = vmatprep.subr.mxu0 0.0
        %3249 = vmatpush1.msra.mxu0 %v3237
        %3250 = vmatprep.subr.mxu0 0.0
        %3251 = vmatpush1.msra.mxu0 %v3239
        %3252 = vmatprep.subr.mxu0 0.0
        %3253 = vmatpush1.msra.mxu0 0.0
        %3254 = vmatprep.subr.mxu0 0.0
        %3255 = vmatpush1.msra.mxu0 0.0
        %3256 = vmatprep.subr.mxu0 0.0
        %3257 = vmatpush1.msra.mxu0 0.0
        %3258 = vmatprep.subr.mxu0 0.0
        %3259 = vmatpush1.msra.mxu0 0.0
        %3260 = vmatprep.subr.mxu0 0.0
        %3261 = vmatpush1.msra.mxu0 0.0
        %3262 = vmatprep.subr.mxu0 0.0
        %3263 = vmatpush1.msra.mxu0 0.0
        %3264 = vmatprep.subr.mxu0 0.0
        %3265 = vmatpush1.msra.mxu0 0.0
        %3266 = vmatprep.subr.mxu0 0.0
        %3267 = vmatpush1.msra.mxu0 0.0
        %3268 = vmatprep.subr.mxu0 0.0
        %3269 = vmatpush1.msra.mxu0 0.0
        %3270 = vmatprep.subr.mxu0 0.0
        %3271 = vmatpush1.msra.mxu0 0.0
        %3272 = vmatprep.subr.mxu0 0.0
        %3273 = vmatpush1.msra.mxu0 0.0
        %3274 = vmatprep.subr.mxu0 0.0
        %3275 = vmatpush1.msra.mxu0 0.0
        %3276 = vmatprep.subr.mxu0 0.0
        %3277 = vmatpush1.msra.mxu0 0.0
        %3278 = vmatprep.subr.mxu0 0.0
        %3279 = vmatpush1.msra.mxu0 0.0
        %3280 = vmatprep.subr.mxu0 0.0
        %3281 = vmatpush1.msra.mxu0 0.0
        %3282 = vmatprep.subr.mxu0 0.0
        %3283 = vmatpush1.msra.mxu0 0.0
        %3284 = vmatprep.subr.mxu0 0.0
        %3285 = vmatpush1.msra.mxu0 0.0
        %3286 = vmatprep.subr.mxu0 0.0
        %3287 = vmatpush1.msra.mxu0 0.0
        %3288 = vmatprep.subr.mxu0 0.0
        %3289 = vmatpush1.msra.mxu0 0.0
        %3290 = vmatprep.subr.mxu0 0.0
        %3291 = vmatpush1.msra.mxu0 0.0
        %3292 = vmatprep.subr.mxu0 0.0
        %3293 = vmatpush1.msra.mxu0 0.0
        %3294 = vmatprep.subr.mxu0 0.0
        %3295 = vmatpush1.msra.mxu0 0.0
        %3296 = vmatprep.subr.mxu0 0.0
        %3297 = vmatpush1.msra.mxu0 0.0
        %3298 = vmatprep.subr.mxu0 0.0
        %3299 = vmatpush1.msra.mxu0 0.0
        %3300 = vmatprep.subr.mxu0 0.0
        %3301 = vmatpush1.msra.mxu0 0.0
        %3302 = vmatprep.subr.mxu0 0.0
        %3303 = vmatpush1.msra.mxu0 0.0
        %3304 = vmatprep.subr.mxu0 0.0
        %3305 = vmatpush1.msra.mxu0 0.0
        %3306 = vmatprep.subr.mxu0 0.0
        %3307 = vmatpush1.msra.mxu0 0.0
        %3308 = vmatprep.subr.mxu0 0.0
        %3309 = vmatpush1.msra.mxu0 0.0
        %3310 = vmatprep.subr.mxu0 0.0
        %3311 = vmatpush1.msra.mxu0 0.0
        %3312 = vmatprep.mubr.f32.mxu0 0.0
        %3313 = vmatmul.mubr.f32.gmra.mrb[0].mxu0 %v3243
        %v3314 = vpop.f32.mrb[0].mxu0
        %v3315 = vadd.f32 0.0, %v3314
        %v3316 = vpop.f32.mrb[0].mxu0
        %3317 = vmatprep.mubr.f32.mxu0 0.0
        %3318 = vmatmul.mubr.f32.gmra.mrb[0].mxu0 %v3246
        %v3319 = vpop.f32.mrb[0].mxu0
        %v3320 = vadd.f32 0.0, %v3319
        %v3321 = vpop.f32.mrb[0].mxu0
        %3322 = vdwg.mxu0
        %3323 = vrot.lane.b32.xlu0 %v303, 104
        %v3324 = vpop.permute.xlu0 %3323
        %3325 = vrot.lane.b32.xlu0 %v307, 104
        %v3326 = vpop.permute.xlu0 %3325
        %v3330 = vsel %vm676, %v3142, 0
        %v3333 = vsel %vm676, %v3144, 0
        %3335 = vmatprep.subr.mxu0 0.0
        %3336 = vmatpush1.msra.mxu0 %v3324
        %3337 = vmatprep.subr.mxu0 0.0
        %3338 = vmatpush1.msra.mxu0 %v3326
        %3339 = vmatprep.subr.mxu0 0.0
        %3340 = vmatpush1.msra.mxu0 0.0
        %3341 = vmatprep.subr.mxu0 0.0
        %3342 = vmatpush1.msra.mxu0 0.0
        %3343 = vmatprep.subr.mxu0 0.0
        %3344 = vmatpush1.msra.mxu0 0.0
        %3345 = vmatprep.subr.mxu0 0.0
        %3346 = vmatpush1.msra.mxu0 0.0
        %3347 = vmatprep.subr.mxu0 0.0
        %3348 = vmatpush1.msra.mxu0 0.0
        %3349 = vmatprep.subr.mxu0 0.0
        %3350 = vmatpush1.msra.mxu0 0.0
        %3351 = vmatprep.subr.mxu0 0.0
        %3352 = vmatpush1.msra.mxu0 0.0
        %3353 = vmatprep.subr.mxu0 0.0
        %3354 = vmatpush1.msra.mxu0 0.0
        %3355 = vmatprep.subr.mxu0 0.0
        %3356 = vmatpush1.msra.mxu0 0.0
        %3357 = vmatprep.subr.mxu0 0.0
        %3358 = vmatpush1.msra.mxu0 0.0
        %3359 = vmatprep.subr.mxu0 0.0
        %3360 = vmatpush1.msra.mxu0 0.0
        %3361 = vmatprep.subr.mxu0 0.0
        %3362 = vmatpush1.msra.mxu0 0.0
        %3363 = vmatprep.subr.mxu0 0.0
        %3364 = vmatpush1.msra.mxu0 0.0
        %3365 = vmatprep.subr.mxu0 0.0
        %3366 = vmatpush1.msra.mxu0 0.0
        %3367 = vmatprep.subr.mxu0 0.0
        %3368 = vmatpush1.msra.mxu0 0.0
        %3369 = vmatprep.subr.mxu0 0.0
        %3370 = vmatpush1.msra.mxu0 0.0
        %3371 = vmatprep.subr.mxu0 0.0
        %3372 = vmatpush1.msra.mxu0 0.0
        %3373 = vmatprep.subr.mxu0 0.0
        %3374 = vmatpush1.msra.mxu0 0.0
        %3375 = vmatprep.subr.mxu0 0.0
        %3376 = vmatpush1.msra.mxu0 0.0
        %3377 = vmatprep.subr.mxu0 0.0
        %3378 = vmatpush1.msra.mxu0 0.0
        %3379 = vmatprep.subr.mxu0 0.0
        %3380 = vmatpush1.msra.mxu0 0.0
        %3381 = vmatprep.subr.mxu0 0.0
        %3382 = vmatpush1.msra.mxu0 0.0
        %3383 = vmatprep.subr.mxu0 0.0
        %3384 = vmatpush1.msra.mxu0 0.0
        %3385 = vmatprep.subr.mxu0 0.0
        %3386 = vmatpush1.msra.mxu0 0.0
        %3387 = vmatprep.subr.mxu0 0.0
        %3388 = vmatpush1.msra.mxu0 0.0
        %3389 = vmatprep.subr.mxu0 0.0
        %3390 = vmatpush1.msra.mxu0 0.0
        %3391 = vmatprep.subr.mxu0 0.0
        %3392 = vmatpush1.msra.mxu0 0.0
        %3393 = vmatprep.subr.mxu0 0.0
        %3394 = vmatpush1.msra.mxu0 0.0
        %3395 = vmatprep.subr.mxu0 0.0
        %3396 = vmatpush1.msra.mxu0 0.0
        %3397 = vmatprep.subr.mxu0 0.0
        %3398 = vmatpush1.msra.mxu0 0.0
        %3399 = vmatprep.mubr.f32.mxu0 0.0
        %3400 = vmatmul.mubr.f32.gmra.mrb[0].mxu0 %v3330
        %v3401 = vpop.f32.mrb[0].mxu0
        %v3402 = vadd.f32 0.0, %v3401
        %v3403 = vpop.f32.mrb[0].mxu0
        %3404 = vmatprep.mubr.f32.mxu0 0.0
        %3405 = vmatmul.mubr.f32.gmra.mrb[0].mxu0 %v3333
        %v3406 = vpop.f32.mrb[0].mxu0
        %v3407 = vadd.f32 0.0, %v3406
        %v3408 = vpop.f32.mrb[0].mxu0
        %3409 = vdwg.mxu0
        %3410 = vrot.lane.b32.xlu0 %v313, 104
        %v3411 = vpop.permute.xlu0 %3410
        %3412 = vrot.lane.b32.xlu0 %v317, 104
        %v3413 = vpop.permute.xlu0 %3412
        %v3417 = vsel %vm676, %v3146, 0
        %v3420 = vsel %vm676, %v3148, 0
        %3422 = vmatprep.subr.mxu0 0.0
        %3423 = vmatpush1.msra.mxu0 %v3411
        %3424 = vmatprep.subr.mxu0 0.0
        %3425 = vmatpush1.msra.mxu0 %v3413
        %3426 = vmatprep.subr.mxu0 0.0
        %3427 = vmatpush1.msra.mxu0 0.0
        %3428 = vmatprep.subr.mxu0 0.0
        %3429 = vmatpush1.msra.mxu0 0.0
        %3430 = vmatprep.subr.mxu0 0.0
        %3431 = vmatpush1.msra.mxu0 0.0
        %3432 = vmatprep.subr.mxu0 0.0
        %3433 = vmatpush1.msra.mxu0 0.0
        %3434 = vmatprep.subr.mxu0 0.0
        %3435 = vmatpush1.msra.mxu0 0.0
        %3436 = vmatprep.subr.mxu0 0.0
        %3437 = vmatpush1.msra.mxu0 0.0
        %3438 = vmatprep.subr.mxu0 0.0
        %3439 = vmatpush1.msra.mxu0 0.0
        %3440 = vmatprep.subr.mxu0 0.0
        %3441 = vmatpush1.msra.mxu0 0.0
        %3442 = vmatprep.subr.mxu0 0.0
        %3443 = vmatpush1.msra.mxu0 0.0
        %3444 = vmatprep.subr.mxu0 0.0
        %3445 = vmatpush1.msra.mxu0 0.0
        %3446 = vmatprep.subr.mxu0 0.0
        %3447 = vmatpush1.msra.mxu0 0.0
        %3448 = vmatprep.subr.mxu0 0.0
        %3449 = vmatpush1.msra.mxu0 0.0
        %3450 = vmatprep.subr.mxu0 0.0
        %3451 = vmatpush1.msra.mxu0 0.0
        %3452 = vmatprep.subr.mxu0 0.0
        %3453 = vmatpush1.msra.mxu0 0.0
        %3454 = vmatprep.subr.mxu0 0.0
        %3455 = vmatpush1.msra.mxu0 0.0
        %3456 = vmatprep.subr.mxu0 0.0
        %3457 = vmatpush1.msra.mxu0 0.0
        %3458 = vmatprep.subr.mxu0 0.0
        %3459 = vmatpush1.msra.mxu0 0.0
        %3460 = vmatprep.subr.mxu0 0.0
        %3461 = vmatpush1.msra.mxu0 0.0
        %3462 = vmatprep.subr.mxu0 0.0
        %3463 = vmatpush1.msra.mxu0 0.0
        %3464 = vmatprep.subr.mxu0 0.0
        %3465 = vmatpush1.msra.mxu0 0.0
        %3466 = vmatprep.subr.mxu0 0.0
        %3467 = vmatpush1.msra.mxu0 0.0
        %3468 = vmatprep.subr.mxu0 0.0
        %3469 = vmatpush1.msra.mxu0 0.0
        %3470 = vmatprep.subr.mxu0 0.0
        %3471 = vmatpush1.msra.mxu0 0.0
        %3472 = vmatprep.subr.mxu0 0.0
        %3473 = vmatpush1.msra.mxu0 0.0
        %3474 = vmatprep.subr.mxu0 0.0
        %3475 = vmatpush1.msra.mxu0 0.0
        %3476 = vmatprep.subr.mxu0 0.0
        %3477 = vmatpush1.msra.mxu0 0.0
        %3478 = vmatprep.subr.mxu0 0.0
        %3479 = vmatpush1.msra.mxu0 0.0
        %3480 = vmatprep.subr.mxu0 0.0
        %3481 = vmatpush1.msra.mxu0 0.0
        %3482 = vmatprep.subr.mxu0 0.0
        %3483 = vmatpush1.msra.mxu0 0.0
        %3484 = vmatprep.subr.mxu0 0.0
        %3485 = vmatpush1.msra.mxu0 0.0
        %3486 = vmatprep.mubr.f32.mxu0 0.0
        %3487 = vmatmul.mubr.f32.gmra.mrb[0].mxu0 %v3417
        %v3488 = vpop.f32.mrb[0].mxu0
        %v3489 = vadd.f32 0.0, %v3488
        %v3490 = vpop.f32.mrb[0].mxu0
        %3491 = vmatprep.mubr.f32.mxu0 0.0
        %3492 = vmatmul.mubr.f32.gmra.mrb[0].mxu0 %v3420
        %v3493 = vpop.f32.mrb[0].mxu0
        %v3494 = vadd.f32 0.0, %v3493
        %v3495 = vpop.f32.mrb[0].mxu0
        %3496 = vdwg.mxu0
        %3497 = vrot.lane.b32.xlu0 %v281, 96
        %v3498 = vpop.permute.xlu0 %3497
        %3499 = vrot.lane.b32.xlu0 %v285, 96
        %v3500 = vpop.permute.xlu0 %3499
        %3501 = vrot.lane.b32.xlu0 %v281, 32
        %v3502 = vpop.permute.xlu0 %3501
        %3503 = vrot.lane.b32.xlu0 %v285, 32
        %v3504 = vpop.permute.xlu0 %3503
        %v3505 = vsel %vm325, %v3498, 0
        %v3507 = vsel %vm325, %v3500, 0
        %v3509 = vsel %vm325, %v3502, 0
        %v3511 = vsel %vm325, %v3504, 0
        %3513 = vmatprep.subr.mxu0 0.0
        %3514 = vmatpush1.xpose.msra.mxu0 %v3509
        %3515 = vmatprep.subr.mxu0 0.0
        %3516 = vmatpush1.xpose.msra.mxu0 %v3511
        %3517 = vmatprep.subr.mxu0 0.0
        %3518 = vmatpush1.xpose.msra.mxu0 0.0
        %3519 = vmatprep.subr.mxu0 0.0
        %3520 = vmatpush1.xpose.msra.mxu0 0.0
        %3521 = vmatprep.subr.mxu0 0.0
        %3522 = vmatpush1.xpose.msra.mxu0 0.0
        %3523 = vmatprep.subr.mxu0 0.0
        %3524 = vmatpush1.xpose.msra.mxu0 0.0
        %3525 = vmatprep.subr.mxu0 0.0
        %3526 = vmatpush1.xpose.msra.mxu0 0.0
        %3527 = vmatprep.subr.mxu0 0.0
        %3528 = vmatpush1.xpose.msra.mxu0 0.0
        %3529 = vmatprep.subr.mxu0 0.0
        %3530 = vmatpush1.xpose.msra.mxu0 0.0
        %3531 = vmatprep.subr.mxu0 0.0
        %3532 = vmatpush1.xpose.msra.mxu0 0.0
        %3533 = vmatprep.subr.mxu0 0.0
        %3534 = vmatpush1.xpose.msra.mxu0 0.0
        %3535 = vmatprep.subr.mxu0 0.0
        %3536 = vmatpush1.xpose.msra.mxu0 0.0
        %3537 = vmatprep.subr.mxu0 0.0
        %3538 = vmatpush1.xpose.msra.mxu0 0.0
        %3539 = vmatprep.subr.mxu0 0.0
        %3540 = vmatpush1.xpose.msra.mxu0 0.0
        %3541 = vmatprep.subr.mxu0 0.0
        %3542 = vmatpush1.xpose.msra.mxu0 0.0
        %3543 = vmatprep.subr.mxu0 0.0
        %3544 = vmatpush1.xpose.msra.mxu0 0.0
        %3545 = vmatprep.subr.mxu0 0.0
        %3546 = vmatpush1.xpose.msra.mxu0 0.0
        %3547 = vmatprep.subr.mxu0 0.0
        %3548 = vmatpush1.xpose.msra.mxu0 0.0
        %3549 = vmatprep.subr.mxu0 0.0
        %3550 = vmatpush1.xpose.msra.mxu0 0.0
        %3551 = vmatprep.subr.mxu0 0.0
        %3552 = vmatpush1.xpose.msra.mxu0 0.0
        %3553 = vmatprep.subr.mxu0 0.0
        %3554 = vmatpush1.xpose.msra.mxu0 0.0
        %3555 = vmatprep.subr.mxu0 0.0
        %3556 = vmatpush1.xpose.msra.mxu0 0.0
        %3557 = vmatprep.subr.mxu0 0.0
        %3558 = vmatpush1.xpose.msra.mxu0 0.0
        %3559 = vmatprep.subr.mxu0 0.0
        %3560 = vmatpush1.xpose.msra.mxu0 0.0
        %3561 = vmatprep.subr.mxu0 0.0
        %3562 = vmatpush1.xpose.msra.mxu0 0.0
        %3563 = vmatprep.subr.mxu0 0.0
        %3564 = vmatpush1.xpose.msra.mxu0 0.0
        %3565 = vmatprep.subr.mxu0 0.0
        %3566 = vmatpush1.xpose.msra.mxu0 0.0
        %3567 = vmatprep.subr.mxu0 0.0
        %3568 = vmatpush1.xpose.msra.mxu0 0.0
        %3569 = vmatprep.subr.mxu0 0.0
        %3570 = vmatpush1.xpose.msra.mxu0 0.0
        %3571 = vmatprep.subr.mxu0 0.0
        %3572 = vmatpush1.xpose.msra.mxu0 0.0
        %3573 = vmatprep.subr.mxu0 0.0
        %3574 = vmatpush1.xpose.msra.mxu0 0.0
        %3575 = vmatprep.subr.mxu0 0.0
        %3576 = vmatpush1.xpose.msra.mxu0 0.0
        %3577 = vmatprep.mubr.f32.mxu0 0.0
        %3578 = vmatmul.mubr.f32.gmra.mrb[0].mxu0 %v3505
        %v3579 = vpop.f32.mrb[0].mxu0
        %v3580 = vadd.f32 0.0, %v3579
        %v3581 = vpop.f32.mrb[0].mxu0
        %3582 = vmatprep.mubr.f32.mxu0 0.0
        %3583 = vmatmul.mubr.f32.gmra.mrb[0].mxu0 %v3507
        %v3584 = vpop.f32.mrb[0].mxu0
        %v3585 = vadd.f32 0.0, %v3584
        %v3586 = vpop.f32.mrb[0].mxu0
        %3587 = vdwg.mxu0
        %3588 = vrot.lane.b32.xlu0 %v291, 96
        %v3589 = vpop.permute.xlu0 %3588
        %3590 = vrot.lane.b32.xlu0 %v295, 96
        %v3591 = vpop.permute.xlu0 %3590
        %3592 = vrot.lane.b32.xlu0 %v291, 32
        %v3593 = vpop.permute.xlu0 %3592
        %3594 = vrot.lane.b32.xlu0 %v295, 32
        %v3595 = vpop.permute.xlu0 %3594
        %v3596 = vsel %vm325, %v3589, 0
        %v3598 = vsel %vm325, %v3591, 0
        %v3600 = vsel %vm325, %v3593, 0
        %v3602 = vsel %vm325, %v3595, 0
        %3604 = vmatprep.subr.mxu0 0.0
        %3605 = vmatpush1.xpose.msra.mxu0 %v3600
        %3606 = vmatprep.subr.mxu0 0.0
        %3607 = vmatpush1.xpose.msra.mxu0 %v3602
        %3608 = vmatprep.subr.mxu0 0.0
        %3609 = vmatpush1.xpose.msra.mxu0 0.0
        %3610 = vmatprep.subr.mxu0 0.0
        %3611 = vmatpush1.xpose.msra.mxu0 0.0
        %3612 = vmatprep.subr.mxu0 0.0
        %3613 = vmatpush1.xpose.msra.mxu0 0.0
        %3614 = vmatprep.subr.mxu0 0.0
        %3615 = vmatpush1.xpose.msra.mxu0 0.0
        %3616 = vmatprep.subr.mxu0 0.0
        %3617 = vmatpush1.xpose.msra.mxu0 0.0
        %3618 = vmatprep.subr.mxu0 0.0
        %3619 = vmatpush1.xpose.msra.mxu0 0.0
        %3620 = vmatprep.subr.mxu0 0.0
        %3621 = vmatpush1.xpose.msra.mxu0 0.0
        %3622 = vmatprep.subr.mxu0 0.0
        %3623 = vmatpush1.xpose.msra.mxu0 0.0
        %3624 = vmatprep.subr.mxu0 0.0
        %3625 = vmatpush1.xpose.msra.mxu0 0.0
        %3626 = vmatprep.subr.mxu0 0.0
        %3627 = vmatpush1.xpose.msra.mxu0 0.0
        %3628 = vmatprep.subr.mxu0 0.0
        %3629 = vmatpush1.xpose.msra.mxu0 0.0
        %3630 = vmatprep.subr.mxu0 0.0
        %3631 = vmatpush1.xpose.msra.mxu0 0.0
        %3632 = vmatprep.subr.mxu0 0.0
        %3633 = vmatpush1.xpose.msra.mxu0 0.0
        %3634 = vmatprep.subr.mxu0 0.0
        %3635 = vmatpush1.xpose.msra.mxu0 0.0
        %3636 = vmatprep.subr.mxu0 0.0
        %3637 = vmatpush1.xpose.msra.mxu0 0.0
        %3638 = vmatprep.subr.mxu0 0.0
        %3639 = vmatpush1.xpose.msra.mxu0 0.0
        %3640 = vmatprep.subr.mxu0 0.0
        %3641 = vmatpush1.xpose.msra.mxu0 0.0
        %3642 = vmatprep.subr.mxu0 0.0
        %3643 = vmatpush1.xpose.msra.mxu0 0.0
        %3644 = vmatprep.subr.mxu0 0.0
        %3645 = vmatpush1.xpose.msra.mxu0 0.0
        %3646 = vmatprep.subr.mxu0 0.0
        %3647 = vmatpush1.xpose.msra.mxu0 0.0
        %3648 = vmatprep.subr.mxu0 0.0
        %3649 = vmatpush1.xpose.msra.mxu0 0.0
        %3650 = vmatprep.subr.mxu0 0.0
        %3651 = vmatpush1.xpose.msra.mxu0 0.0
        %3652 = vmatprep.subr.mxu0 0.0
        %3653 = vmatpush1.xpose.msra.mxu0 0.0
        %3654 = vmatprep.subr.mxu0 0.0
        %3655 = vmatpush1.xpose.msra.mxu0 0.0
        %3656 = vmatprep.subr.mxu0 0.0
        %3657 = vmatpush1.xpose.msra.mxu0 0.0
        %3658 = vmatprep.subr.mxu0 0.0
        %3659 = vmatpush1.xpose.msra.mxu0 0.0
        %3660 = vmatprep.subr.mxu0 0.0
        %3661 = vmatpush1.xpose.msra.mxu0 0.0
        %3662 = vmatprep.subr.mxu0 0.0
        %3663 = vmatpush1.xpose.msra.mxu0 0.0
        %3664 = vmatprep.subr.mxu0 0.0
        %3665 = vmatpush1.xpose.msra.mxu0 0.0
        %3666 = vmatprep.subr.mxu0 0.0
        %3667 = vmatpush1.xpose.msra.mxu0 0.0
        %3668 = vmatprep.mubr.f32.mxu0 0.0
        %3669 = vmatmul.mubr.f32.gmra.mrb[0].mxu0 %v3596
        %v3670 = vpop.f32.mrb[0].mxu0
        %v3671 = vadd.f32 0.0, %v3670
        %v3672 = vpop.f32.mrb[0].mxu0
        %3673 = vmatprep.mubr.f32.mxu0 0.0
        %3674 = vmatmul.mubr.f32.gmra.mrb[0].mxu0 %v3598
        %v3675 = vpop.f32.mrb[0].mxu0
        %v3676 = vadd.f32 0.0, %v3675
        %v3677 = vpop.f32.mrb[0].mxu0
        %3678 = vdwg.mxu0
        %3679 = vrot.lane.b32.xlu0 %v301, 96
        %v3680 = vpop.permute.xlu0 %3679
        %3681 = vrot.lane.b32.xlu0 %v305, 96
        %v3682 = vpop.permute.xlu0 %3681
        %3683 = vrot.lane.b32.xlu0 %v301, 32
        %v3684 = vpop.permute.xlu0 %3683
        %3685 = vrot.lane.b32.xlu0 %v305, 32
        %v3686 = vpop.permute.xlu0 %3685
        %v3687 = vsel %vm325, %v3680, 0
        %v3689 = vsel %vm325, %v3682, 0
        %v3691 = vsel %vm325, %v3684, 0
        %v3693 = vsel %vm325, %v3686, 0
        %3695 = vmatprep.subr.mxu0 0.0
        %3696 = vmatpush1.xpose.msra.mxu0 %v3691
        %3697 = vmatprep.subr.mxu0 0.0
        %3698 = vmatpush1.xpose.msra.mxu0 %v3693
        %3699 = vmatprep.subr.mxu0 0.0
        %3700 = vmatpush1.xpose.msra.mxu0 0.0
        %3701 = vmatprep.subr.mxu0 0.0
        %3702 = vmatpush1.xpose.msra.mxu0 0.0
        %3703 = vmatprep.subr.mxu0 0.0
        %3704 = vmatpush1.xpose.msra.mxu0 0.0
        %3705 = vmatprep.subr.mxu0 0.0
        %3706 = vmatpush1.xpose.msra.mxu0 0.0
        %3707 = vmatprep.subr.mxu0 0.0
        %3708 = vmatpush1.xpose.msra.mxu0 0.0
        %3709 = vmatprep.subr.mxu0 0.0
        %3710 = vmatpush1.xpose.msra.mxu0 0.0
        %3711 = vmatprep.subr.mxu0 0.0
        %3712 = vmatpush1.xpose.msra.mxu0 0.0
        %3713 = vmatprep.subr.mxu0 0.0
        %3714 = vmatpush1.xpose.msra.mxu0 0.0
        %3715 = vmatprep.subr.mxu0 0.0
        %3716 = vmatpush1.xpose.msra.mxu0 0.0
        %3717 = vmatprep.subr.mxu0 0.0
        %3718 = vmatpush1.xpose.msra.mxu0 0.0
        %3719 = vmatprep.subr.mxu0 0.0
        %3720 = vmatpush1.xpose.msra.mxu0 0.0
        %3721 = vmatprep.subr.mxu0 0.0
        %3722 = vmatpush1.xpose.msra.mxu0 0.0
        %3723 = vmatprep.subr.mxu0 0.0
        %3724 = vmatpush1.xpose.msra.mxu0 0.0
        %3725 = vmatprep.subr.mxu0 0.0
        %3726 = vmatpush1.xpose.msra.mxu0 0.0
        %3727 = vmatprep.subr.mxu0 0.0
        %3728 = vmatpush1.xpose.msra.mxu0 0.0
        %3729 = vmatprep.subr.mxu0 0.0
        %3730 = vmatpush1.xpose.msra.mxu0 0.0
        %3731 = vmatprep.subr.mxu0 0.0
        %3732 = vmatpush1.xpose.msra.mxu0 0.0
        %3733 = vmatprep.subr.mxu0 0.0
        %3734 = vmatpush1.xpose.msra.mxu0 0.0
        %3735 = vmatprep.subr.mxu0 0.0
        %3736 = vmatpush1.xpose.msra.mxu0 0.0
        %3737 = vmatprep.subr.mxu0 0.0
        %3738 = vmatpush1.xpose.msra.mxu0 0.0
        %3739 = vmatprep.subr.mxu0 0.0
        %3740 = vmatpush1.xpose.msra.mxu0 0.0
        %3741 = vmatprep.subr.mxu0 0.0
        %3742 = vmatpush1.xpose.msra.mxu0 0.0
        %3743 = vmatprep.subr.mxu0 0.0
        %3744 = vmatpush1.xpose.msra.mxu0 0.0
        %3745 = vmatprep.subr.mxu0 0.0
        %3746 = vmatpush1.xpose.msra.mxu0 0.0
        %3747 = vmatprep.subr.mxu0 0.0
        %3748 = vmatpush1.xpose.msra.mxu0 0.0
        %3749 = vmatprep.subr.mxu0 0.0
        %3750 = vmatpush1.xpose.msra.mxu0 0.0
        %3751 = vmatprep.subr.mxu0 0.0
        %3752 = vmatpush1.xpose.msra.mxu0 0.0
        %3753 = vmatprep.subr.mxu0 0.0
        %3754 = vmatpush1.xpose.msra.mxu0 0.0
        %3755 = vmatprep.subr.mxu0 0.0
        %3756 = vmatpush1.xpose.msra.mxu0 0.0
        %3757 = vmatprep.subr.mxu0 0.0
        %3758 = vmatpush1.xpose.msra.mxu0 0.0
        %3759 = vmatprep.mubr.f32.mxu0 0.0
        %3760 = vmatmul.mubr.f32.gmra.mrb[0].mxu0 %v3687
        %v3761 = vpop.f32.mrb[0].mxu0
        %v3762 = vadd.f32 0.0, %v3761
        %v3763 = vpop.f32.mrb[0].mxu0
        %3764 = vmatprep.mubr.f32.mxu0 0.0
        %3765 = vmatmul.mubr.f32.gmra.mrb[0].mxu0 %v3689
        %v3766 = vpop.f32.mrb[0].mxu0
        %v3767 = vadd.f32 0.0, %v3766
        %v3768 = vpop.f32.mrb[0].mxu0
        %3769 = vdwg.mxu0
        %3770 = vrot.lane.b32.xlu0 %v311, 96
        %v3771 = vpop.permute.xlu0 %3770
        %3772 = vrot.lane.b32.xlu0 %v315, 96
        %v3773 = vpop.permute.xlu0 %3772
        %3774 = vrot.lane.b32.xlu0 %v311, 32
        %v3775 = vpop.permute.xlu0 %3774
        %3776 = vrot.lane.b32.xlu0 %v315, 32
        %v3777 = vpop.permute.xlu0 %3776
        %v3778 = vsel %vm325, %v3771, 0
        %v3780 = vsel %vm325, %v3773, 0
        %v3782 = vsel %vm325, %v3775, 0
        %v3784 = vsel %vm325, %v3777, 0
        %3786 = vmatprep.subr.mxu0 0.0
        %3787 = vmatpush1.xpose.msra.mxu0 %v3782
        %3788 = vmatprep.subr.mxu0 0.0
        %3789 = vmatpush1.xpose.msra.mxu0 %v3784
        %3790 = vmatprep.subr.mxu0 0.0
        %3791 = vmatpush1.xpose.msra.mxu0 0.0
        %3792 = vmatprep.subr.mxu0 0.0
        %3793 = vmatpush1.xpose.msra.mxu0 0.0
        %3794 = vmatprep.subr.mxu0 0.0
        %3795 = vmatpush1.xpose.msra.mxu0 0.0
        %3796 = vmatprep.subr.mxu0 0.0
        %3797 = vmatpush1.xpose.msra.mxu0 0.0
        %3798 = vmatprep.subr.mxu0 0.0
        %3799 = vmatpush1.xpose.msra.mxu0 0.0
        %3800 = vmatprep.subr.mxu0 0.0
        %3801 = vmatpush1.xpose.msra.mxu0 0.0
        %3802 = vmatprep.subr.mxu0 0.0
        %3803 = vmatpush1.xpose.msra.mxu0 0.0
        %3804 = vmatprep.subr.mxu0 0.0
        %3805 = vmatpush1.xpose.msra.mxu0 0.0
        %3806 = vmatprep.subr.mxu0 0.0
        %3807 = vmatpush1.xpose.msra.mxu0 0.0
        %3808 = vmatprep.subr.mxu0 0.0
        %3809 = vmatpush1.xpose.msra.mxu0 0.0
        %3810 = vmatprep.subr.mxu0 0.0
        %3811 = vmatpush1.xpose.msra.mxu0 0.0
        %3812 = vmatprep.subr.mxu0 0.0
        %3813 = vmatpush1.xpose.msra.mxu0 0.0
        %3814 = vmatprep.subr.mxu0 0.0
        %3815 = vmatpush1.xpose.msra.mxu0 0.0
        %3816 = vmatprep.subr.mxu0 0.0
        %3817 = vmatpush1.xpose.msra.mxu0 0.0
        %3818 = vmatprep.subr.mxu0 0.0
        %3819 = vmatpush1.xpose.msra.mxu0 0.0
        %3820 = vmatprep.subr.mxu0 0.0
        %3821 = vmatpush1.xpose.msra.mxu0 0.0
        %3822 = vmatprep.subr.mxu0 0.0
        %3823 = vmatpush1.xpose.msra.mxu0 0.0
        %3824 = vmatprep.subr.mxu0 0.0
        %3825 = vmatpush1.xpose.msra.mxu0 0.0
        %3826 = vmatprep.subr.mxu0 0.0
        %3827 = vmatpush1.xpose.msra.mxu0 0.0
        %3828 = vmatprep.subr.mxu0 0.0
        %3829 = vmatpush1.xpose.msra.mxu0 0.0
        %3830 = vmatprep.subr.mxu0 0.0
        %3831 = vmatpush1.xpose.msra.mxu0 0.0
        %3832 = vmatprep.subr.mxu0 0.0
        %3833 = vmatpush1.xpose.msra.mxu0 0.0
        %3834 = vmatprep.subr.mxu0 0.0
        %3835 = vmatpush1.xpose.msra.mxu0 0.0
        %3836 = vmatprep.subr.mxu0 0.0
        %3837 = vmatpush1.xpose.msra.mxu0 0.0
        %3838 = vmatprep.subr.mxu0 0.0
        %3839 = vmatpush1.xpose.msra.mxu0 0.0
        %3840 = vmatprep.subr.mxu0 0.0
        %3841 = vmatpush1.xpose.msra.mxu0 0.0
        %3842 = vmatprep.subr.mxu0 0.0
        %3843 = vmatpush1.xpose.msra.mxu0 0.0
        %3844 = vmatprep.subr.mxu0 0.0
        %3845 = vmatpush1.xpose.msra.mxu0 0.0
        %3846 = vmatprep.subr.mxu0 0.0
        %3847 = vmatpush1.xpose.msra.mxu0 0.0
        %3848 = vmatprep.subr.mxu0 0.0
        %3849 = vmatpush1.xpose.msra.mxu0 0.0
        %3850 = vmatprep.mubr.f32.mxu0 0.0
        %3851 = vmatmul.mubr.f32.gmra.mrb[0].mxu0 %v3778
        %v3852 = vpop.f32.mrb[0].mxu0
        %v3853 = vadd.f32 0.0, %v3852
        %v3854 = vpop.f32.mrb[0].mxu0
        %3855 = vmatprep.mubr.f32.mxu0 0.0
        %3856 = vmatmul.mubr.f32.gmra.mrb[0].mxu0 %v3780
        %v3857 = vpop.f32.mrb[0].mxu0
        %v3858 = vadd.f32 0.0, %v3857
        %v3859 = vpop.f32.mrb[0].mxu0
        %3860 = vdwg.mxu0
        %v3861 = vsel %vm676, %v3580, -inf
        %3862 = vmax.xlane.f32.xlu0 %v3861
        %v3863 = vpop.xlane.xlu0 %3862
        %v3864 = vsel %vm676, %v3585, -inf
        %3865 = vmax.xlane.f32.xlu0 %v3864
        %v3866 = vpop.xlane.xlu0 %3865
        %v3867 = vsel %vm676, %v3671, -inf
        %3868 = vmax.xlane.f32.xlu0 %v3867
        %v3869 = vpop.xlane.xlu0 %3868
        %v3870 = vsel %vm676, %v3676, -inf
        %3871 = vmax.xlane.f32.xlu0 %v3870
        %v3872 = vpop.xlane.xlu0 %3871
        %v3873 = vsel %vm676, %v3762, -inf
        %3874 = vmax.xlane.f32.xlu0 %v3873
        %v3875 = vpop.xlane.xlu0 %3874
        %v3876 = vsel %vm676, %v3767, -inf
        %3877 = vmax.xlane.f32.xlu0 %v3876
        %v3878 = vpop.xlane.xlu0 %3877
        %v3879 = vsel %vm676, %v3853, -inf
        %3880 = vmax.xlane.f32.xlu0 %v3879
        %v3881 = vpop.xlane.xlu0 %3880
        %v3882 = vsel %vm676, %v3858, -inf
        %3883 = vmax.xlane.f32.xlu0 %v3882
        %v3884 = vpop.xlane.xlu0 %3883
        %v3885 = vsub.f32 %v3580, %v3863
        %v3886 = vsub.f32 %v3585, %v3866
        %v3887 = vsub.f32 %v3671, %v3869
        %v3888 = vsub.f32 %v3676, %v3872
        %v3889 = vsub.f32 %v3762, %v3875
        %v3890 = vsub.f32 %v3767, %v3878
        %v3891 = vsub.f32 %v3853, %v3881
        %v3892 = vsub.f32 %v3858, %v3884
        %v3893 = vmul.f32 %v3885, 1.442695
        %v3894 = vpow.pop %v3893
        %v3895 = vmul.f32 %v3886, 1.442695
        %v3896 = vpow.pop %v3895
        %v3897 = vmul.f32 %v3887, 1.442695
        %v3898 = vpow.pop %v3897
        %v3899 = vmul.f32 %v3888, 1.442695
        %v3900 = vpow.pop %v3899
        %v3901 = vmul.f32 %v3889, 1.442695
        %v3902 = vpow.pop %v3901
        %v3903 = vmul.f32 %v3890, 1.442695
        %v3904 = vpow.pop %v3903
        %v3905 = vmul.f32 %v3891, 1.442695
        %v3906 = vpow.pop %v3905
        %v3907 = vmul.f32 %v3892, 1.442695
        %v3908 = vpow.pop %v3907
        %v3909 = vsel %vm676, %v3894, 0.0
        %3910 = vadd.xlane.f32.xlu0 %v3909
        %v3911 = vpop.xlane.xlu0 %3910
        %v3912 = vsel %vm676, %v3896, 0.0
        %3913 = vadd.xlane.f32.xlu0 %v3912
        %v3914 = vpop.xlane.xlu0 %3913
        %v3915 = vsel %vm676, %v3898, 0.0
        %3916 = vadd.xlane.f32.xlu0 %v3915
        %v3917 = vpop.xlane.xlu0 %3916
        %v3918 = vsel %vm676, %v3900, 0.0
        %3919 = vadd.xlane.f32.xlu0 %v3918
        %v3920 = vpop.xlane.xlu0 %3919
        %v3921 = vsel %vm676, %v3902, 0.0
        %3922 = vadd.xlane.f32.xlu0 %v3921
        %v3923 = vpop.xlane.xlu0 %3922
        %v3924 = vsel %vm676, %v3904, 0.0
        %3925 = vadd.xlane.f32.xlu0 %v3924
        %v3926 = vpop.xlane.xlu0 %3925
        %v3927 = vsel %vm676, %v3906, 0.0
        %3928 = vadd.xlane.f32.xlu0 %v3927
        %v3929 = vpop.xlane.xlu0 %3928
        %v3930 = vsel %vm676, %v3908, 0.0
        %3931 = vadd.xlane.f32.xlu0 %v3930
        %v3932 = vpop.xlane.xlu0 %3931
        %v3933 = vrcp.pop %v3911
        %v3934 = vmul.f32 %v3894, %v3933
        %v3935 = vrcp.pop %v3914
        %v3936 = vmul.f32 %v3896, %v3935
        %v3937 = vrcp.pop %v3917
        %v3938 = vmul.f32 %v3898, %v3937
        %v3939 = vrcp.pop %v3920
        %v3940 = vmul.f32 %v3900, %v3939
        %v3941 = vrcp.pop %v3923
        %v3942 = vmul.f32 %v3902, %v3941
        %v3943 = vrcp.pop %v3926
        %v3944 = vmul.f32 %v3904, %v3943
        %v3945 = vrcp.pop %v3929
        %v3946 = vmul.f32 %v3906, %v3945
        %v3947 = vrcp.pop %v3932
        %v3948 = vmul.f32 %v3908, %v3947
        %3949 = vrot.lane.b32.xlu0 %v283, 96
        %v3950 = vpop.permute.xlu0 %3949
        %3951 = vrot.lane.b32.xlu0 %v287, 96
        %v3952 = vpop.permute.xlu0 %3951
        %v3956 = vsel %vm676, %v3934, 0
        %v3959 = vsel %vm676, %v3936, 0
        %3961 = vmatprep.subr.mxu0 0.0
        %3962 = vmatpush1.msra.mxu0 %v3950
        %3963 = vmatprep.subr.mxu0 0.0
        %3964 = vmatpush1.msra.mxu0 %v3952
        %3965 = vmatprep.subr.mxu0 0.0
        %3966 = vmatpush1.msra.mxu0 0.0
        %3967 = vmatprep.subr.mxu0 0.0
        %3968 = vmatpush1.msra.mxu0 0.0
        %3969 = vmatprep.subr.mxu0 0.0
        %3970 = vmatpush1.msra.mxu0 0.0
        %3971 = vmatprep.subr.mxu0 0.0
        %3972 = vmatpush1.msra.mxu0 0.0
        %3973 = vmatprep.subr.mxu0 0.0
        %3974 = vmatpush1.msra.mxu0 0.0
        %3975 = vmatprep.subr.mxu0 0.0
        %3976 = vmatpush1.msra.mxu0 0.0
        %3977 = vmatprep.subr.mxu0 0.0
        %3978 = vmatpush1.msra.mxu0 0.0
        %3979 = vmatprep.subr.mxu0 0.0
        %3980 = vmatpush1.msra.mxu0 0.0
        %3981 = vmatprep.subr.mxu0 0.0
        %3982 = vmatpush1.msra.mxu0 0.0
        %3983 = vmatprep.subr.mxu0 0.0
        %3984 = vmatpush1.msra.mxu0 0.0
        %3985 = vmatprep.subr.mxu0 0.0
        %3986 = vmatpush1.msra.mxu0 0.0
        %3987 = vmatprep.subr.mxu0 0.0
        %3988 = vmatpush1.msra.mxu0 0.0
        %3989 = vmatprep.subr.mxu0 0.0
        %3990 = vmatpush1.msra.mxu0 0.0
        %3991 = vmatprep.subr.mxu0 0.0
        %3992 = vmatpush1.msra.mxu0 0.0
        %3993 = vmatprep.subr.mxu0 0.0
        %3994 = vmatpush1.msra.mxu0 0.0
        %3995 = vmatprep.subr.mxu0 0.0
        %3996 = vmatpush1.msra.mxu0 0.0
        %3997 = vmatprep.subr.mxu0 0.0
        %3998 = vmatpush1.msra.mxu0 0.0
        %3999 = vmatprep.subr.mxu0 0.0
        %4000 = vmatpush1.msra.mxu0 0.0
        %4001 = vmatprep.subr.mxu0 0.0
        %4002 = vmatpush1.msra.mxu0 0.0
        %4003 = vmatprep.subr.mxu0 0.0
        %4004 = vmatpush1.msra.mxu0 0.0
        %4005 = vmatprep.subr.mxu0 0.0
        %4006 = vmatpush1.msra.mxu0 0.0
        %4007 = vmatprep.subr.mxu0 0.0
        %4008 = vmatpush1.msra.mxu0 0.0
        %4009 = vmatprep.subr.mxu0 0.0
        %4010 = vmatpush1.msra.mxu0 0.0
        %4011 = vmatprep.subr.mxu0 0.0
        %4012 = vmatpush1.msra.mxu0 0.0
        %4013 = vmatprep.subr.mxu0 0.0
        %4014 = vmatpush1.msra.mxu0 0.0
        %4015 = vmatprep.subr.mxu0 0.0
        %4016 = vmatpush1.msra.mxu0 0.0
        %4017 = vmatprep.subr.mxu0 0.0
        %4018 = vmatpush1.msra.mxu0 0.0
        %4019 = vmatprep.subr.mxu0 0.0
        %4020 = vmatpush1.msra.mxu0 0.0
        %4021 = vmatprep.subr.mxu0 0.0
        %4022 = vmatpush1.msra.mxu0 0.0
        %4023 = vmatprep.subr.mxu0 0.0
        %4024 = vmatpush1.msra.mxu0 0.0
        %4025 = vmatprep.mubr.f32.mxu0 0.0
        %4026 = vmatmul.mubr.f32.gmra.mrb[0].mxu0 %v3956
        %v4027 = vpop.f32.mrb[0].mxu0
        %v4028 = vadd.f32 0.0, %v4027
        %v4029 = vpop.f32.mrb[0].mxu0
        %4030 = vmatprep.mubr.f32.mxu0 0.0
        %4031 = vmatmul.mubr.f32.gmra.mrb[0].mxu0 %v3959
        %v4032 = vpop.f32.mrb[0].mxu0
        %v4033 = vadd.f32 0.0, %v4032
        %v4034 = vpop.f32.mrb[0].mxu0
        %4035 = vdwg.mxu0
        %4036 = vrot.lane.b32.xlu0 %v293, 96
        %v4037 = vpop.permute.xlu0 %4036
        %4038 = vrot.lane.b32.xlu0 %v297, 96
        %v4039 = vpop.permute.xlu0 %4038
        %v4043 = vsel %vm676, %v3938, 0
        %v4046 = vsel %vm676, %v3940, 0
        %4048 = vmatprep.subr.mxu0 0.0
        %4049 = vmatpush1.msra.mxu0 %v4037
        %4050 = vmatprep.subr.mxu0 0.0
        %4051 = vmatpush1.msra.mxu0 %v4039
        %4052 = vmatprep.subr.mxu0 0.0
        %4053 = vmatpush1.msra.mxu0 0.0
        %4054 = vmatprep.subr.mxu0 0.0
        %4055 = vmatpush1.msra.mxu0 0.0
        %4056 = vmatprep.subr.mxu0 0.0
        %4057 = vmatpush1.msra.mxu0 0.0
        %4058 = vmatprep.subr.mxu0 0.0
        %4059 = vmatpush1.msra.mxu0 0.0
        %4060 = vmatprep.subr.mxu0 0.0
        %4061 = vmatpush1.msra.mxu0 0.0
        %4062 = vmatprep.subr.mxu0 0.0
        %4063 = vmatpush1.msra.mxu0 0.0
        %4064 = vmatprep.subr.mxu0 0.0
        %4065 = vmatpush1.msra.mxu0 0.0
        %4066 = vmatprep.subr.mxu0 0.0
        %4067 = vmatpush1.msra.mxu0 0.0
        %4068 = vmatprep.subr.mxu0 0.0
        %4069 = vmatpush1.msra.mxu0 0.0
        %4070 = vmatprep.subr.mxu0 0.0
        %4071 = vmatpush1.msra.mxu0 0.0
        %4072 = vmatprep.subr.mxu0 0.0
        %4073 = vmatpush1.msra.mxu0 0.0
        %4074 = vmatprep.subr.mxu0 0.0
        %4075 = vmatpush1.msra.mxu0 0.0
        %4076 = vmatprep.subr.mxu0 0.0
        %4077 = vmatpush1.msra.mxu0 0.0
        %4078 = vmatprep.subr.mxu0 0.0
        %4079 = vmatpush1.msra.mxu0 0.0
        %4080 = vmatprep.subr.mxu0 0.0
        %4081 = vmatpush1.msra.mxu0 0.0
        %4082 = vmatprep.subr.mxu0 0.0
        %4083 = vmatpush1.msra.mxu0 0.0
        %4084 = vmatprep.subr.mxu0 0.0
        %4085 = vmatpush1.msra.mxu0 0.0
        %4086 = vmatprep.subr.mxu0 0.0
        %4087 = vmatpush1.msra.mxu0 0.0
        %4088 = vmatprep.subr.mxu0 0.0
        %4089 = vmatpush1.msra.mxu0 0.0
        %4090 = vmatprep.subr.mxu0 0.0
        %4091 = vmatpush1.msra.mxu0 0.0
        %4092 = vmatprep.subr.mxu0 0.0
        %4093 = vmatpush1.msra.mxu0 0.0
        %4094 = vmatprep.subr.mxu0 0.0
        %4095 = vmatpush1.msra.mxu0 0.0
        %4096 = vmatprep.subr.mxu0 0.0
        %4097 = vmatpush1.msra.mxu0 0.0
        %4098 = vmatprep.subr.mxu0 0.0
        %4099 = vmatpush1.msra.mxu0 0.0
        %4100 = vmatprep.subr.mxu0 0.0
        %4101 = vmatpush1.msra.mxu0 0.0
        %4102 = vmatprep.subr.mxu0 0.0
        %4103 = vmatpush1.msra.mxu0 0.0
        %4104 = vmatprep.subr.mxu0 0.0
        %4105 = vmatpush1.msra.mxu0 0.0
        %4106 = vmatprep.subr.mxu0 0.0
        %4107 = vmatpush1.msra.mxu0 0.0
        %4108 = vmatprep.subr.mxu0 0.0
        %4109 = vmatpush1.msra.mxu0 0.0
        %4110 = vmatprep.subr.mxu0 0.0
        %4111 = vmatpush1.msra.mxu0 0.0
        %4112 = vmatprep.mubr.f32.mxu0 0.0
        %4113 = vmatmul.mubr.f32.gmra.mrb[0].mxu0 %v4043
        %v4114 = vpop.f32.mrb[0].mxu0
        %v4115 = vadd.f32 0.0, %v4114
        %v4116 = vpop.f32.mrb[0].mxu0
        %4117 = vmatprep.mubr.f32.mxu0 0.0
        %4118 = vmatmul.mubr.f32.gmra.mrb[0].mxu0 %v4046
        %v4119 = vpop.f32.mrb[0].mxu0
        %v4120 = vadd.f32 0.0, %v4119
        %v4121 = vpop.f32.mrb[0].mxu0
        %4122 = vdwg.mxu0
        %4123 = vrot.lane.b32.xlu0 %v303, 96
        %v4124 = vpop.permute.xlu0 %4123
        %4125 = vrot.lane.b32.xlu0 %v307, 96
        %v4126 = vpop.permute.xlu0 %4125
        %v4130 = vsel %vm676, %v3942, 0
        %v4133 = vsel %vm676, %v3944, 0
        %4135 = vmatprep.subr.mxu0 0.0
        %4136 = vmatpush1.msra.mxu0 %v4124
        %4137 = vmatprep.subr.mxu0 0.0
        %4138 = vmatpush1.msra.mxu0 %v4126
        %4139 = vmatprep.subr.mxu0 0.0
        %4140 = vmatpush1.msra.mxu0 0.0
        %4141 = vmatprep.subr.mxu0 0.0
        %4142 = vmatpush1.msra.mxu0 0.0
        %4143 = vmatprep.subr.mxu0 0.0
        %4144 = vmatpush1.msra.mxu0 0.0
        %4145 = vmatprep.subr.mxu0 0.0
        %4146 = vmatpush1.msra.mxu0 0.0
        %4147 = vmatprep.subr.mxu0 0.0
        %4148 = vmatpush1.msra.mxu0 0.0
        %4149 = vmatprep.subr.mxu0 0.0
        %4150 = vmatpush1.msra.mxu0 0.0
        %4151 = vmatprep.subr.mxu0 0.0
        %4152 = vmatpush1.msra.mxu0 0.0
        %4153 = vmatprep.subr.mxu0 0.0
        %4154 = vmatpush1.msra.mxu0 0.0
        %4155 = vmatprep.subr.mxu0 0.0
        %4156 = vmatpush1.msra.mxu0 0.0
        %4157 = vmatprep.subr.mxu0 0.0
        %4158 = vmatpush1.msra.mxu0 0.0
        %4159 = vmatprep.subr.mxu0 0.0
        %4160 = vmatpush1.msra.mxu0 0.0
        %4161 = vmatprep.subr.mxu0 0.0
        %4162 = vmatpush1.msra.mxu0 0.0
        %4163 = vmatprep.subr.mxu0 0.0
        %4164 = vmatpush1.msra.mxu0 0.0
        %4165 = vmatprep.subr.mxu0 0.0
        %4166 = vmatpush1.msra.mxu0 0.0
        %4167 = vmatprep.subr.mxu0 0.0
        %4168 = vmatpush1.msra.mxu0 0.0
        %4169 = vmatprep.subr.mxu0 0.0
        %4170 = vmatpush1.msra.mxu0 0.0
        %4171 = vmatprep.subr.mxu0 0.0
        %4172 = vmatpush1.msra.mxu0 0.0
        %4173 = vmatprep.subr.mxu0 0.0
        %4174 = vmatpush1.msra.mxu0 0.0
        %4175 = vmatprep.subr.mxu0 0.0
        %4176 = vmatpush1.msra.mxu0 0.0
        %4177 = vmatprep.subr.mxu0 0.0
        %4178 = vmatpush1.msra.mxu0 0.0
        %4179 = vmatprep.subr.mxu0 0.0
        %4180 = vmatpush1.msra.mxu0 0.0
        %4181 = vmatprep.subr.mxu0 0.0
        %4182 = vmatpush1.msra.mxu0 0.0
        %4183 = vmatprep.subr.mxu0 0.0
        %4184 = vmatpush1.msra.mxu0 0.0
        %4185 = vmatprep.subr.mxu0 0.0
        %4186 = vmatpush1.msra.mxu0 0.0
        %4187 = vmatprep.subr.mxu0 0.0
        %4188 = vmatpush1.msra.mxu0 0.0
        %4189 = vmatprep.subr.mxu0 0.0
        %4190 = vmatpush1.msra.mxu0 0.0
        %4191 = vmatprep.subr.mxu0 0.0
        %4192 = vmatpush1.msra.mxu0 0.0
        %4193 = vmatprep.subr.mxu0 0.0
        %4194 = vmatpush1.msra.mxu0 0.0
        %4195 = vmatprep.subr.mxu0 0.0
        %4196 = vmatpush1.msra.mxu0 0.0
        %4197 = vmatprep.subr.mxu0 0.0
        %4198 = vmatpush1.msra.mxu0 0.0
        %4199 = vmatprep.mubr.f32.mxu0 0.0
        %4200 = vmatmul.mubr.f32.gmra.mrb[0].mxu0 %v4130
        %v4201 = vpop.f32.mrb[0].mxu0
        %v4202 = vadd.f32 0.0, %v4201
        %v4203 = vpop.f32.mrb[0].mxu0
        %4204 = vmatprep.mubr.f32.mxu0 0.0
        %4205 = vmatmul.mubr.f32.gmra.mrb[0].mxu0 %v4133
        %v4206 = vpop.f32.mrb[0].mxu0
        %v4207 = vadd.f32 0.0, %v4206
        %v4208 = vpop.f32.mrb[0].mxu0
        %4209 = vdwg.mxu0
        %4210 = vrot.lane.b32.xlu0 %v313, 96
        %v4211 = vpop.permute.xlu0 %4210
        %4212 = vrot.lane.b32.xlu0 %v317, 96
        %v4213 = vpop.permute.xlu0 %4212
        %v4217 = vsel %vm676, %v3946, 0
        %v4220 = vsel %vm676, %v3948, 0
        %4222 = vmatprep.subr.mxu0 0.0
        %4223 = vmatpush1.msra.mxu0 %v4211
        %4224 = vmatprep.subr.mxu0 0.0
        %4225 = vmatpush1.msra.mxu0 %v4213
        %4226 = vmatprep.subr.mxu0 0.0
        %4227 = vmatpush1.msra.mxu0 0.0
        %4228 = vmatprep.subr.mxu0 0.0
        %4229 = vmatpush1.msra.mxu0 0.0
        %4230 = vmatprep.subr.mxu0 0.0
        %4231 = vmatpush1.msra.mxu0 0.0
        %4232 = vmatprep.subr.mxu0 0.0
        %4233 = vmatpush1.msra.mxu0 0.0
        %4234 = vmatprep.subr.mxu0 0.0
        %4235 = vmatpush1.msra.mxu0 0.0
        %4236 = vmatprep.subr.mxu0 0.0
        %4237 = vmatpush1.msra.mxu0 0.0
        %4238 = vmatprep.subr.mxu0 0.0
        %4239 = vmatpush1.msra.mxu0 0.0
        %4240 = vmatprep.subr.mxu0 0.0
        %4241 = vmatpush1.msra.mxu0 0.0
        %4242 = vmatprep.subr.mxu0 0.0
        %4243 = vmatpush1.msra.mxu0 0.0
        %4244 = vmatprep.subr.mxu0 0.0
        %4245 = vmatpush1.msra.mxu0 0.0
        %4246 = vmatprep.subr.mxu0 0.0
        %4247 = vmatpush1.msra.mxu0 0.0
        %4248 = vmatprep.subr.mxu0 0.0
        %4249 = vmatpush1.msra.mxu0 0.0
        %4250 = vmatprep.subr.mxu0 0.0
        %4251 = vmatpush1.msra.mxu0 0.0
        %4252 = vmatprep.subr.mxu0 0.0
        %4253 = vmatpush1.msra.mxu0 0.0
        %4254 = vmatprep.subr.mxu0 0.0
        %4255 = vmatpush1.msra.mxu0 0.0
        %4256 = vmatprep.subr.mxu0 0.0
        %4257 = vmatpush1.msra.mxu0 0.0
        %4258 = vmatprep.subr.mxu0 0.0
        %4259 = vmatpush1.msra.mxu0 0.0
        %4260 = vmatprep.subr.mxu0 0.0
        %4261 = vmatpush1.msra.mxu0 0.0
        %4262 = vmatprep.subr.mxu0 0.0
        %4263 = vmatpush1.msra.mxu0 0.0
        %4264 = vmatprep.subr.mxu0 0.0
        %4265 = vmatpush1.msra.mxu0 0.0
        %4266 = vmatprep.subr.mxu0 0.0
        %4267 = vmatpush1.msra.mxu0 0.0
        %4268 = vmatprep.subr.mxu0 0.0
        %4269 = vmatpush1.msra.mxu0 0.0
        %4270 = vmatprep.subr.mxu0 0.0
        %4271 = vmatpush1.msra.mxu0 0.0
        %4272 = vmatprep.subr.mxu0 0.0
        %4273 = vmatpush1.msra.mxu0 0.0
        %4274 = vmatprep.subr.mxu0 0.0
        %4275 = vmatpush1.msra.mxu0 0.0
        %4276 = vmatprep.subr.mxu0 0.0
        %4277 = vmatpush1.msra.mxu0 0.0
        %4278 = vmatprep.subr.mxu0 0.0
        %4279 = vmatpush1.msra.mxu0 0.0
        %4280 = vmatprep.subr.mxu0 0.0
        %4281 = vmatpush1.msra.mxu0 0.0
        %4282 = vmatprep.subr.mxu0 0.0
        %4283 = vmatpush1.msra.mxu0 0.0
        %4284 = vmatprep.subr.mxu0 0.0
        %4285 = vmatpush1.msra.mxu0 0.0
        %4286 = vmatprep.mubr.f32.mxu0 0.0
        %4287 = vmatmul.mubr.f32.gmra.mrb[0].mxu0 %v4217
        %v4288 = vpop.f32.mrb[0].mxu0
        %v4289 = vadd.f32 0.0, %v4288
        %v4290 = vpop.f32.mrb[0].mxu0
        %4291 = vmatprep.mubr.f32.mxu0 0.0
        %4292 = vmatmul.mubr.f32.gmra.mrb[0].mxu0 %v4220
        %v4293 = vpop.f32.mrb[0].mxu0
        %v4294 = vadd.f32 0.0, %v4293
        %v4295 = vpop.f32.mrb[0].mxu0
        %4296 = vdwg.mxu0
        %4297 = vrot.lane.b32.xlu0 %v281, 88
        %v4298 = vpop.permute.xlu0 %4297
        %4299 = vrot.lane.b32.xlu0 %v285, 88
        %v4300 = vpop.permute.xlu0 %4299
        %4301 = vrot.lane.b32.xlu0 %v281, 24
        %v4302 = vpop.permute.xlu0 %4301
        %4303 = vrot.lane.b32.xlu0 %v285, 24
        %v4304 = vpop.permute.xlu0 %4303
        %v4305 = vsel %vm325, %v4298, 0
        %v4307 = vsel %vm325, %v4300, 0
        %v4309 = vsel %vm325, %v4302, 0
        %v4311 = vsel %vm325, %v4304, 0
        %4313 = vmatprep.subr.mxu0 0.0
        %4314 = vmatpush1.xpose.msra.mxu0 %v4309
        %4315 = vmatprep.subr.mxu0 0.0
        %4316 = vmatpush1.xpose.msra.mxu0 %v4311
        %4317 = vmatprep.subr.mxu0 0.0
        %4318 = vmatpush1.xpose.msra.mxu0 0.0
        %4319 = vmatprep.subr.mxu0 0.0
        %4320 = vmatpush1.xpose.msra.mxu0 0.0
        %4321 = vmatprep.subr.mxu0 0.0
        %4322 = vmatpush1.xpose.msra.mxu0 0.0
        %4323 = vmatprep.subr.mxu0 0.0
        %4324 = vmatpush1.xpose.msra.mxu0 0.0
        %4325 = vmatprep.subr.mxu0 0.0
        %4326 = vmatpush1.xpose.msra.mxu0 0.0
        %4327 = vmatprep.subr.mxu0 0.0
        %4328 = vmatpush1.xpose.msra.mxu0 0.0
        %4329 = vmatprep.subr.mxu0 0.0
        %4330 = vmatpush1.xpose.msra.mxu0 0.0
        %4331 = vmatprep.subr.mxu0 0.0
        %4332 = vmatpush1.xpose.msra.mxu0 0.0
        %4333 = vmatprep.subr.mxu0 0.0
        %4334 = vmatpush1.xpose.msra.mxu0 0.0
        %4335 = vmatprep.subr.mxu0 0.0
        %4336 = vmatpush1.xpose.msra.mxu0 0.0
        %4337 = vmatprep.subr.mxu0 0.0
        %4338 = vmatpush1.xpose.msra.mxu0 0.0
        %4339 = vmatprep.subr.mxu0 0.0
        %4340 = vmatpush1.xpose.msra.mxu0 0.0
        %4341 = vmatprep.subr.mxu0 0.0
        %4342 = vmatpush1.xpose.msra.mxu0 0.0
        %4343 = vmatprep.subr.mxu0 0.0
        %4344 = vmatpush1.xpose.msra.mxu0 0.0
        %4345 = vmatprep.subr.mxu0 0.0
        %4346 = vmatpush1.xpose.msra.mxu0 0.0
        %4347 = vmatprep.subr.mxu0 0.0
        %4348 = vmatpush1.xpose.msra.mxu0 0.0
        %4349 = vmatprep.subr.mxu0 0.0
        %4350 = vmatpush1.xpose.msra.mxu0 0.0
        %4351 = vmatprep.subr.mxu0 0.0
        %4352 = vmatpush1.xpose.msra.mxu0 0.0
        %4353 = vmatprep.subr.mxu0 0.0
        %4354 = vmatpush1.xpose.msra.mxu0 0.0
        %4355 = vmatprep.subr.mxu0 0.0
        %4356 = vmatpush1.xpose.msra.mxu0 0.0
        %4357 = vmatprep.subr.mxu0 0.0
        %4358 = vmatpush1.xpose.msra.mxu0 0.0
        %4359 = vmatprep.subr.mxu0 0.0
        %4360 = vmatpush1.xpose.msra.mxu0 0.0
        %4361 = vmatprep.subr.mxu0 0.0
        %4362 = vmatpush1.xpose.msra.mxu0 0.0
        %4363 = vmatprep.subr.mxu0 0.0
        %4364 = vmatpush1.xpose.msra.mxu0 0.0
        %4365 = vmatprep.subr.mxu0 0.0
        %4366 = vmatpush1.xpose.msra.mxu0 0.0
        %4367 = vmatprep.subr.mxu0 0.0
        %4368 = vmatpush1.xpose.msra.mxu0 0.0
        %4369 = vmatprep.subr.mxu0 0.0
        %4370 = vmatpush1.xpose.msra.mxu0 0.0
        %4371 = vmatprep.subr.mxu0 0.0
        %4372 = vmatpush1.xpose.msra.mxu0 0.0
        %4373 = vmatprep.subr.mxu0 0.0
        %4374 = vmatpush1.xpose.msra.mxu0 0.0
        %4375 = vmatprep.subr.mxu0 0.0
        %4376 = vmatpush1.xpose.msra.mxu0 0.0
        %4377 = vmatprep.mubr.f32.mxu0 0.0
        %4378 = vmatmul.mubr.f32.gmra.mrb[0].mxu0 %v4305
        %v4379 = vpop.f32.mrb[0].mxu0
        %v4380 = vadd.f32 0.0, %v4379
        %v4381 = vpop.f32.mrb[0].mxu0
        %4382 = vmatprep.mubr.f32.mxu0 0.0
        %4383 = vmatmul.mubr.f32.gmra.mrb[0].mxu0 %v4307
        %v4384 = vpop.f32.mrb[0].mxu0
        %v4385 = vadd.f32 0.0, %v4384
        %v4386 = vpop.f32.mrb[0].mxu0
        %4387 = vdwg.mxu0
        %4388 = vrot.lane.b32.xlu0 %v291, 88
        %v4389 = vpop.permute.xlu0 %4388
        %4390 = vrot.lane.b32.xlu0 %v295, 88
        %v4391 = vpop.permute.xlu0 %4390
        %4392 = vrot.lane.b32.xlu0 %v291, 24
        %v4393 = vpop.permute.xlu0 %4392
        %4394 = vrot.lane.b32.xlu0 %v295, 24
        %v4395 = vpop.permute.xlu0 %4394
        %v4396 = vsel %vm325, %v4389, 0
        %v4398 = vsel %vm325, %v4391, 0
        %v4400 = vsel %vm325, %v4393, 0
        %v4402 = vsel %vm325, %v4395, 0
        %4404 = vmatprep.subr.mxu0 0.0
        %4405 = vmatpush1.xpose.msra.mxu0 %v4400
        %4406 = vmatprep.subr.mxu0 0.0
        %4407 = vmatpush1.xpose.msra.mxu0 %v4402
        %4408 = vmatprep.subr.mxu0 0.0
        %4409 = vmatpush1.xpose.msra.mxu0 0.0
        %4410 = vmatprep.subr.mxu0 0.0
        %4411 = vmatpush1.xpose.msra.mxu0 0.0
        %4412 = vmatprep.subr.mxu0 0.0
        %4413 = vmatpush1.xpose.msra.mxu0 0.0
        %4414 = vmatprep.subr.mxu0 0.0
        %4415 = vmatpush1.xpose.msra.mxu0 0.0
        %4416 = vmatprep.subr.mxu0 0.0
        %4417 = vmatpush1.xpose.msra.mxu0 0.0
        %4418 = vmatprep.subr.mxu0 0.0
        %4419 = vmatpush1.xpose.msra.mxu0 0.0
        %4420 = vmatprep.subr.mxu0 0.0
        %4421 = vmatpush1.xpose.msra.mxu0 0.0
        %4422 = vmatprep.subr.mxu0 0.0
        %4423 = vmatpush1.xpose.msra.mxu0 0.0
        %4424 = vmatprep.subr.mxu0 0.0
        %4425 = vmatpush1.xpose.msra.mxu0 0.0
        %4426 = vmatprep.subr.mxu0 0.0
        %4427 = vmatpush1.xpose.msra.mxu0 0.0
        %4428 = vmatprep.subr.mxu0 0.0
        %4429 = vmatpush1.xpose.msra.mxu0 0.0
        %4430 = vmatprep.subr.mxu0 0.0
        %4431 = vmatpush1.xpose.msra.mxu0 0.0
        %4432 = vmatprep.subr.mxu0 0.0
        %4433 = vmatpush1.xpose.msra.mxu0 0.0
        %4434 = vmatprep.subr.mxu0 0.0
        %4435 = vmatpush1.xpose.msra.mxu0 0.0
        %4436 = vmatprep.subr.mxu0 0.0
        %4437 = vmatpush1.xpose.msra.mxu0 0.0
        %4438 = vmatprep.subr.mxu0 0.0
        %4439 = vmatpush1.xpose.msra.mxu0 0.0
        %4440 = vmatprep.subr.mxu0 0.0
        %4441 = vmatpush1.xpose.msra.mxu0 0.0
        %4442 = vmatprep.subr.mxu0 0.0
        %4443 = vmatpush1.xpose.msra.mxu0 0.0
        %4444 = vmatprep.subr.mxu0 0.0
        %4445 = vmatpush1.xpose.msra.mxu0 0.0
        %4446 = vmatprep.subr.mxu0 0.0
        %4447 = vmatpush1.xpose.msra.mxu0 0.0
        %4448 = vmatprep.subr.mxu0 0.0
        %4449 = vmatpush1.xpose.msra.mxu0 0.0
        %4450 = vmatprep.subr.mxu0 0.0
        %4451 = vmatpush1.xpose.msra.mxu0 0.0
        %4452 = vmatprep.subr.mxu0 0.0
        %4453 = vmatpush1.xpose.msra.mxu0 0.0
        %4454 = vmatprep.subr.mxu0 0.0
        %4455 = vmatpush1.xpose.msra.mxu0 0.0
        %4456 = vmatprep.subr.mxu0 0.0
        %4457 = vmatpush1.xpose.msra.mxu0 0.0
        %4458 = vmatprep.subr.mxu0 0.0
        %4459 = vmatpush1.xpose.msra.mxu0 0.0
        %4460 = vmatprep.subr.mxu0 0.0
        %4461 = vmatpush1.xpose.msra.mxu0 0.0
        %4462 = vmatprep.subr.mxu0 0.0
        %4463 = vmatpush1.xpose.msra.mxu0 0.0
        %4464 = vmatprep.subr.mxu0 0.0
        %4465 = vmatpush1.xpose.msra.mxu0 0.0
        %4466 = vmatprep.subr.mxu0 0.0
        %4467 = vmatpush1.xpose.msra.mxu0 0.0
        %4468 = vmatprep.mubr.f32.mxu0 0.0
        %4469 = vmatmul.mubr.f32.gmra.mrb[0].mxu0 %v4396
        %v4470 = vpop.f32.mrb[0].mxu0
        %v4471 = vadd.f32 0.0, %v4470
        %v4472 = vpop.f32.mrb[0].mxu0
        %4473 = vmatprep.mubr.f32.mxu0 0.0
        %4474 = vmatmul.mubr.f32.gmra.mrb[0].mxu0 %v4398
        %v4475 = vpop.f32.mrb[0].mxu0
        %v4476 = vadd.f32 0.0, %v4475
        %v4477 = vpop.f32.mrb[0].mxu0
        %4478 = vdwg.mxu0
        %4479 = vrot.lane.b32.xlu0 %v301, 88
        %v4480 = vpop.permute.xlu0 %4479
        %4481 = vrot.lane.b32.xlu0 %v305, 88
        %v4482 = vpop.permute.xlu0 %4481
        %4483 = vrot.lane.b32.xlu0 %v301, 24
        %v4484 = vpop.permute.xlu0 %4483
        %4485 = vrot.lane.b32.xlu0 %v305, 24
        %v4486 = vpop.permute.xlu0 %4485
        %v4487 = vsel %vm325, %v4480, 0
        %v4489 = vsel %vm325, %v4482, 0
        %v4491 = vsel %vm325, %v4484, 0
        %v4493 = vsel %vm325, %v4486, 0
        %4495 = vmatprep.subr.mxu0 0.0
        %4496 = vmatpush1.xpose.msra.mxu0 %v4491
        %4497 = vmatprep.subr.mxu0 0.0
        %4498 = vmatpush1.xpose.msra.mxu0 %v4493
        %4499 = vmatprep.subr.mxu0 0.0
        %4500 = vmatpush1.xpose.msra.mxu0 0.0
        %4501 = vmatprep.subr.mxu0 0.0
        %4502 = vmatpush1.xpose.msra.mxu0 0.0
        %4503 = vmatprep.subr.mxu0 0.0
        %4504 = vmatpush1.xpose.msra.mxu0 0.0
        %4505 = vmatprep.subr.mxu0 0.0
        %4506 = vmatpush1.xpose.msra.mxu0 0.0
        %4507 = vmatprep.subr.mxu0 0.0
        %4508 = vmatpush1.xpose.msra.mxu0 0.0
        %4509 = vmatprep.subr.mxu0 0.0
        %4510 = vmatpush1.xpose.msra.mxu0 0.0
        %4511 = vmatprep.subr.mxu0 0.0
        %4512 = vmatpush1.xpose.msra.mxu0 0.0
        %4513 = vmatprep.subr.mxu0 0.0
        %4514 = vmatpush1.xpose.msra.mxu0 0.0
        %4515 = vmatprep.subr.mxu0 0.0
        %4516 = vmatpush1.xpose.msra.mxu0 0.0
        %4517 = vmatprep.subr.mxu0 0.0
        %4518 = vmatpush1.xpose.msra.mxu0 0.0
        %4519 = vmatprep.subr.mxu0 0.0
        %4520 = vmatpush1.xpose.msra.mxu0 0.0
        %4521 = vmatprep.subr.mxu0 0.0
        %4522 = vmatpush1.xpose.msra.mxu0 0.0
        %4523 = vmatprep.subr.mxu0 0.0
        %4524 = vmatpush1.xpose.msra.mxu0 0.0
        %4525 = vmatprep.subr.mxu0 0.0
        %4526 = vmatpush1.xpose.msra.mxu0 0.0
        %4527 = vmatprep.subr.mxu0 0.0
        %4528 = vmatpush1.xpose.msra.mxu0 0.0
        %4529 = vmatprep.subr.mxu0 0.0
        %4530 = vmatpush1.xpose.msra.mxu0 0.0
        %4531 = vmatprep.subr.mxu0 0.0
        %4532 = vmatpush1.xpose.msra.mxu0 0.0
        %4533 = vmatprep.subr.mxu0 0.0
        %4534 = vmatpush1.xpose.msra.mxu0 0.0
        %4535 = vmatprep.subr.mxu0 0.0
        %4536 = vmatpush1.xpose.msra.mxu0 0.0
        %4537 = vmatprep.subr.mxu0 0.0
        %4538 = vmatpush1.xpose.msra.mxu0 0.0
        %4539 = vmatprep.subr.mxu0 0.0
        %4540 = vmatpush1.xpose.msra.mxu0 0.0
        %4541 = vmatprep.subr.mxu0 0.0
        %4542 = vmatpush1.xpose.msra.mxu0 0.0
        %4543 = vmatprep.subr.mxu0 0.0
        %4544 = vmatpush1.xpose.msra.mxu0 0.0
        %4545 = vmatprep.subr.mxu0 0.0
        %4546 = vmatpush1.xpose.msra.mxu0 0.0
        %4547 = vmatprep.subr.mxu0 0.0
        %4548 = vmatpush1.xpose.msra.mxu0 0.0
        %4549 = vmatprep.subr.mxu0 0.0
        %4550 = vmatpush1.xpose.msra.mxu0 0.0
        %4551 = vmatprep.subr.mxu0 0.0
        %4552 = vmatpush1.xpose.msra.mxu0 0.0
        %4553 = vmatprep.subr.mxu0 0.0
        %4554 = vmatpush1.xpose.msra.mxu0 0.0
        %4555 = vmatprep.subr.mxu0 0.0
        %4556 = vmatpush1.xpose.msra.mxu0 0.0
        %4557 = vmatprep.subr.mxu0 0.0
        %4558 = vmatpush1.xpose.msra.mxu0 0.0
        %4559 = vmatprep.mubr.f32.mxu0 0.0
        %4560 = vmatmul.mubr.f32.gmra.mrb[0].mxu0 %v4487
        %v4561 = vpop.f32.mrb[0].mxu0
        %v4562 = vadd.f32 0.0, %v4561
        %v4563 = vpop.f32.mrb[0].mxu0
        %4564 = vmatprep.mubr.f32.mxu0 0.0
        %4565 = vmatmul.mubr.f32.gmra.mrb[0].mxu0 %v4489
        %v4566 = vpop.f32.mrb[0].mxu0
        %v4567 = vadd.f32 0.0, %v4566
        %v4568 = vpop.f32.mrb[0].mxu0
        %4569 = vdwg.mxu0
        %4570 = vrot.lane.b32.xlu0 %v311, 88
        %v4571 = vpop.permute.xlu0 %4570
        %4572 = vrot.lane.b32.xlu0 %v315, 88
        %v4573 = vpop.permute.xlu0 %4572
        %4574 = vrot.lane.b32.xlu0 %v311, 24
        %v4575 = vpop.permute.xlu0 %4574
        %4576 = vrot.lane.b32.xlu0 %v315, 24
        %v4577 = vpop.permute.xlu0 %4576
        %v4578 = vsel %vm325, %v4571, 0
        %v4580 = vsel %vm325, %v4573, 0
        %v4582 = vsel %vm325, %v4575, 0
        %v4584 = vsel %vm325, %v4577, 0
        %4586 = vmatprep.subr.mxu0 0.0
        %4587 = vmatpush1.xpose.msra.mxu0 %v4582
        %4588 = vmatprep.subr.mxu0 0.0
        %4589 = vmatpush1.xpose.msra.mxu0 %v4584
        %4590 = vmatprep.subr.mxu0 0.0
        %4591 = vmatpush1.xpose.msra.mxu0 0.0
        %4592 = vmatprep.subr.mxu0 0.0
        %4593 = vmatpush1.xpose.msra.mxu0 0.0
        %4594 = vmatprep.subr.mxu0 0.0
        %4595 = vmatpush1.xpose.msra.mxu0 0.0
        %4596 = vmatprep.subr.mxu0 0.0
        %4597 = vmatpush1.xpose.msra.mxu0 0.0
        %4598 = vmatprep.subr.mxu0 0.0
        %4599 = vmatpush1.xpose.msra.mxu0 0.0
        %4600 = vmatprep.subr.mxu0 0.0
        %4601 = vmatpush1.xpose.msra.mxu0 0.0
        %4602 = vmatprep.subr.mxu0 0.0
        %4603 = vmatpush1.xpose.msra.mxu0 0.0
        %4604 = vmatprep.subr.mxu0 0.0
        %4605 = vmatpush1.xpose.msra.mxu0 0.0
        %4606 = vmatprep.subr.mxu0 0.0
        %4607 = vmatpush1.xpose.msra.mxu0 0.0
        %4608 = vmatprep.subr.mxu0 0.0
        %4609 = vmatpush1.xpose.msra.mxu0 0.0
        %4610 = vmatprep.subr.mxu0 0.0
        %4611 = vmatpush1.xpose.msra.mxu0 0.0
        %4612 = vmatprep.subr.mxu0 0.0
        %4613 = vmatpush1.xpose.msra.mxu0 0.0
        %4614 = vmatprep.subr.mxu0 0.0
        %4615 = vmatpush1.xpose.msra.mxu0 0.0
        %4616 = vmatprep.subr.mxu0 0.0
        %4617 = vmatpush1.xpose.msra.mxu0 0.0
        %4618 = vmatprep.subr.mxu0 0.0
        %4619 = vmatpush1.xpose.msra.mxu0 0.0
        %4620 = vmatprep.subr.mxu0 0.0
        %4621 = vmatpush1.xpose.msra.mxu0 0.0
        %4622 = vmatprep.subr.mxu0 0.0
        %4623 = vmatpush1.xpose.msra.mxu0 0.0
        %4624 = vmatprep.subr.mxu0 0.0
        %4625 = vmatpush1.xpose.msra.mxu0 0.0
        %4626 = vmatprep.subr.mxu0 0.0
        %4627 = vmatpush1.xpose.msra.mxu0 0.0
        %4628 = vmatprep.subr.mxu0 0.0
        %4629 = vmatpush1.xpose.msra.mxu0 0.0
        %4630 = vmatprep.subr.mxu0 0.0
        %4631 = vmatpush1.xpose.msra.mxu0 0.0
        %4632 = vmatprep.subr.mxu0 0.0
        %4633 = vmatpush1.xpose.msra.mxu0 0.0
        %4634 = vmatprep.subr.mxu0 0.0
        %4635 = vmatpush1.xpose.msra.mxu0 0.0
        %4636 = vmatprep.subr.mxu0 0.0
        %4637 = vmatpush1.xpose.msra.mxu0 0.0
        %4638 = vmatprep.subr.mxu0 0.0
        %4639 = vmatpush1.xpose.msra.mxu0 0.0
        %4640 = vmatprep.subr.mxu0 0.0
        %4641 = vmatpush1.xpose.msra.mxu0 0.0
        %4642 = vmatprep.subr.mxu0 0.0
        %4643 = vmatpush1.xpose.msra.mxu0 0.0
        %4644 = vmatprep.subr.mxu0 0.0
        %4645 = vmatpush1.xpose.msra.mxu0 0.0
        %4646 = vmatprep.subr.mxu0 0.0
        %4647 = vmatpush1.xpose.msra.mxu0 0.0
        %4648 = vmatprep.subr.mxu0 0.0
        %4649 = vmatpush1.xpose.msra.mxu0 0.0
        %4650 = vmatprep.mubr.f32.mxu0 0.0
        %4651 = vmatmul.mubr.f32.gmra.mrb[0].mxu0 %v4578
        %v4652 = vpop.f32.mrb[0].mxu0
        %v4653 = vadd.f32 0.0, %v4652
        %v4654 = vpop.f32.mrb[0].mxu0
        %4655 = vmatprep.mubr.f32.mxu0 0.0
        %4656 = vmatmul.mubr.f32.gmra.mrb[0].mxu0 %v4580
        %v4657 = vpop.f32.mrb[0].mxu0
        %v4658 = vadd.f32 0.0, %v4657
        %v4659 = vpop.f32.mrb[0].mxu0
        %4660 = vdwg.mxu0
        %v4661 = vsel %vm676, %v4380, -inf
        %4662 = vmax.xlane.f32.xlu0 %v4661
        %v4663 = vpop.xlane.xlu0 %4662
        %v4664 = vsel %vm676, %v4385, -inf
        %4665 = vmax.xlane.f32.xlu0 %v4664
        %v4666 = vpop.xlane.xlu0 %4665
        %v4667 = vsel %vm676, %v4471, -inf
        %4668 = vmax.xlane.f32.xlu0 %v4667
        %v4669 = vpop.xlane.xlu0 %4668
        %v4670 = vsel %vm676, %v4476, -inf
        %4671 = vmax.xlane.f32.xlu0 %v4670
        %v4672 = vpop.xlane.xlu0 %4671
        %v4673 = vsel %vm676, %v4562, -inf
        %4674 = vmax.xlane.f32.xlu0 %v4673
        %v4675 = vpop.xlane.xlu0 %4674
        %v4676 = vsel %vm676, %v4567, -inf
        %4677 = vmax.xlane.f32.xlu0 %v4676
        %v4678 = vpop.xlane.xlu0 %4677
        %v4679 = vsel %vm676, %v4653, -inf
        %4680 = vmax.xlane.f32.xlu0 %v4679
        %v4681 = vpop.xlane.xlu0 %4680
        %v4682 = vsel %vm676, %v4658, -inf
        %4683 = vmax.xlane.f32.xlu0 %v4682
        %v4684 = vpop.xlane.xlu0 %4683
        %v4685 = vsub.f32 %v4380, %v4663
        %v4686 = vsub.f32 %v4385, %v4666
        %v4687 = vsub.f32 %v4471, %v4669
        %v4688 = vsub.f32 %v4476, %v4672
        %v4689 = vsub.f32 %v4562, %v4675
        %v4690 = vsub.f32 %v4567, %v4678
        %v4691 = vsub.f32 %v4653, %v4681
        %v4692 = vsub.f32 %v4658, %v4684
        %v4693 = vmul.f32 %v4685, 1.442695
        %v4694 = vpow.pop %v4693
        %v4695 = vmul.f32 %v4686, 1.442695
        %v4696 = vpow.pop %v4695
        %v4697 = vmul.f32 %v4687, 1.442695
        %v4698 = vpow.pop %v4697
        %v4699 = vmul.f32 %v4688, 1.442695
        %v4700 = vpow.pop %v4699
        %v4701 = vmul.f32 %v4689, 1.442695
        %v4702 = vpow.pop %v4701
        %v4703 = vmul.f32 %v4690, 1.442695
        %v4704 = vpow.pop %v4703
        %v4705 = vmul.f32 %v4691, 1.442695
        %v4706 = vpow.pop %v4705
        %v4707 = vmul.f32 %v4692, 1.442695
        %v4708 = vpow.pop %v4707
        %v4709 = vsel %vm676, %v4694, 0.0
        %4710 = vadd.xlane.f32.xlu0 %v4709
        %v4711 = vpop.xlane.xlu0 %4710
        %v4712 = vsel %vm676, %v4696, 0.0
        %4713 = vadd.xlane.f32.xlu0 %v4712
        %v4714 = vpop.xlane.xlu0 %4713
        %v4715 = vsel %vm676, %v4698, 0.0
        %4716 = vadd.xlane.f32.xlu0 %v4715
        %v4717 = vpop.xlane.xlu0 %4716
        %v4718 = vsel %vm676, %v4700, 0.0
        %4719 = vadd.xlane.f32.xlu0 %v4718
        %v4720 = vpop.xlane.xlu0 %4719
        %v4721 = vsel %vm676, %v4702, 0.0
        %4722 = vadd.xlane.f32.xlu0 %v4721
        %v4723 = vpop.xlane.xlu0 %4722
        %v4724 = vsel %vm676, %v4704, 0.0
        %4725 = vadd.xlane.f32.xlu0 %v4724
        %v4726 = vpop.xlane.xlu0 %4725
        %v4727 = vsel %vm676, %v4706, 0.0
        %4728 = vadd.xlane.f32.xlu0 %v4727
        %v4729 = vpop.xlane.xlu0 %4728
        %v4730 = vsel %vm676, %v4708, 0.0
        %4731 = vadd.xlane.f32.xlu0 %v4730
        %v4732 = vpop.xlane.xlu0 %4731
        %v4733 = vrcp.pop %v4711
        %v4734 = vmul.f32 %v4694, %v4733
        %v4735 = vrcp.pop %v4714
        %v4736 = vmul.f32 %v4696, %v4735
        %v4737 = vrcp.pop %v4717
        %v4738 = vmul.f32 %v4698, %v4737
        %v4739 = vrcp.pop %v4720
        %v4740 = vmul.f32 %v4700, %v4739
        %v4741 = vrcp.pop %v4723
        %v4742 = vmul.f32 %v4702, %v4741
        %v4743 = vrcp.pop %v4726
        %v4744 = vmul.f32 %v4704, %v4743
        %v4745 = vrcp.pop %v4729
        %v4746 = vmul.f32 %v4706, %v4745
        %v4747 = vrcp.pop %v4732
        %v4748 = vmul.f32 %v4708, %v4747
        %4749 = vrot.lane.b32.xlu0 %v283, 88
        %v4750 = vpop.permute.xlu0 %4749
        %4751 = vrot.lane.b32.xlu0 %v287, 88
        %v4752 = vpop.permute.xlu0 %4751
        %v4756 = vsel %vm676, %v4734, 0
        %v4759 = vsel %vm676, %v4736, 0
        %4761 = vmatprep.subr.mxu0 0.0
        %4762 = vmatpush1.msra.mxu0 %v4750
        %4763 = vmatprep.subr.mxu0 0.0
        %4764 = vmatpush1.msra.mxu0 %v4752
        %4765 = vmatprep.subr.mxu0 0.0
        %4766 = vmatpush1.msra.mxu0 0.0
        %4767 = vmatprep.subr.mxu0 0.0
        %4768 = vmatpush1.msra.mxu0 0.0
        %4769 = vmatprep.subr.mxu0 0.0
        %4770 = vmatpush1.msra.mxu0 0.0
        %4771 = vmatprep.subr.mxu0 0.0
        %4772 = vmatpush1.msra.mxu0 0.0
        %4773 = vmatprep.subr.mxu0 0.0
        %4774 = vmatpush1.msra.mxu0 0.0
        %4775 = vmatprep.subr.mxu0 0.0
        %4776 = vmatpush1.msra.mxu0 0.0
        %4777 = vmatprep.subr.mxu0 0.0
        %4778 = vmatpush1.msra.mxu0 0.0
        %4779 = vmatprep.subr.mxu0 0.0
        %4780 = vmatpush1.msra.mxu0 0.0
        %4781 = vmatprep.subr.mxu0 0.0
        %4782 = vmatpush1.msra.mxu0 0.0
        %4783 = vmatprep.subr.mxu0 0.0
        %4784 = vmatpush1.msra.mxu0 0.0
        %4785 = vmatprep.subr.mxu0 0.0
        %4786 = vmatpush1.msra.mxu0 0.0
        %4787 = vmatprep.subr.mxu0 0.0
        %4788 = vmatpush1.msra.mxu0 0.0
        %4789 = vmatprep.subr.mxu0 0.0
        %4790 = vmatpush1.msra.mxu0 0.0
        %4791 = vmatprep.subr.mxu0 0.0
        %4792 = vmatpush1.msra.mxu0 0.0
        %4793 = vmatprep.subr.mxu0 0.0
        %4794 = vmatpush1.msra.mxu0 0.0
        %4795 = vmatprep.subr.mxu0 0.0
        %4796 = vmatpush1.msra.mxu0 0.0
        %4797 = vmatprep.subr.mxu0 0.0
        %4798 = vmatpush1.msra.mxu0 0.0
        %4799 = vmatprep.subr.mxu0 0.0
        %4800 = vmatpush1.msra.mxu0 0.0
        %4801 = vmatprep.subr.mxu0 0.0
        %4802 = vmatpush1.msra.mxu0 0.0
        %4803 = vmatprep.subr.mxu0 0.0
        %4804 = vmatpush1.msra.mxu0 0.0
        %4805 = vmatprep.subr.mxu0 0.0
        %4806 = vmatpush1.msra.mxu0 0.0
        %4807 = vmatprep.subr.mxu0 0.0
        %4808 = vmatpush1.msra.mxu0 0.0
        %4809 = vmatprep.subr.mxu0 0.0
        %4810 = vmatpush1.msra.mxu0 0.0
        %4811 = vmatprep.subr.mxu0 0.0
        %4812 = vmatpush1.msra.mxu0 0.0
        %4813 = vmatprep.subr.mxu0 0.0
        %4814 = vmatpush1.msra.mxu0 0.0
        %4815 = vmatprep.subr.mxu0 0.0
        %4816 = vmatpush1.msra.mxu0 0.0
        %4817 = vmatprep.subr.mxu0 0.0
        %4818 = vmatpush1.msra.mxu0 0.0
        %4819 = vmatprep.subr.mxu0 0.0
        %4820 = vmatpush1.msra.mxu0 0.0
        %4821 = vmatprep.subr.mxu0 0.0
        %4822 = vmatpush1.msra.mxu0 0.0
        %4823 = vmatprep.subr.mxu0 0.0
        %4824 = vmatpush1.msra.mxu0 0.0
        %4825 = vmatprep.mubr.f32.mxu0 0.0
        %4826 = vmatmul.mubr.f32.gmra.mrb[0].mxu0 %v4756
        %v4827 = vpop.f32.mrb[0].mxu0
        %v4828 = vadd.f32 0.0, %v4827
        %v4829 = vpop.f32.mrb[0].mxu0
        %4830 = vmatprep.mubr.f32.mxu0 0.0
        %4831 = vmatmul.mubr.f32.gmra.mrb[0].mxu0 %v4759
        %v4832 = vpop.f32.mrb[0].mxu0
        %v4833 = vadd.f32 0.0, %v4832
        %v4834 = vpop.f32.mrb[0].mxu0
        %4835 = vdwg.mxu0
        %4836 = vrot.lane.b32.xlu0 %v293, 88
        %v4837 = vpop.permute.xlu0 %4836
        %4838 = vrot.lane.b32.xlu0 %v297, 88
        %v4839 = vpop.permute.xlu0 %4838
        %v4843 = vsel %vm676, %v4738, 0
        %v4846 = vsel %vm676, %v4740, 0
        %4848 = vmatprep.subr.mxu0 0.0
        %4849 = vmatpush1.msra.mxu0 %v4837
        %4850 = vmatprep.subr.mxu0 0.0
        %4851 = vmatpush1.msra.mxu0 %v4839
        %4852 = vmatprep.subr.mxu0 0.0
        %4853 = vmatpush1.msra.mxu0 0.0
        %4854 = vmatprep.subr.mxu0 0.0
        %4855 = vmatpush1.msra.mxu0 0.0
        %4856 = vmatprep.subr.mxu0 0.0
        %4857 = vmatpush1.msra.mxu0 0.0
        %4858 = vmatprep.subr.mxu0 0.0
        %4859 = vmatpush1.msra.mxu0 0.0
        %4860 = vmatprep.subr.mxu0 0.0
        %4861 = vmatpush1.msra.mxu0 0.0
        %4862 = vmatprep.subr.mxu0 0.0
        %4863 = vmatpush1.msra.mxu0 0.0
        %4864 = vmatprep.subr.mxu0 0.0
        %4865 = vmatpush1.msra.mxu0 0.0
        %4866 = vmatprep.subr.mxu0 0.0
        %4867 = vmatpush1.msra.mxu0 0.0
        %4868 = vmatprep.subr.mxu0 0.0
        %4869 = vmatpush1.msra.mxu0 0.0
        %4870 = vmatprep.subr.mxu0 0.0
        %4871 = vmatpush1.msra.mxu0 0.0
        %4872 = vmatprep.subr.mxu0 0.0
        %4873 = vmatpush1.msra.mxu0 0.0
        %4874 = vmatprep.subr.mxu0 0.0
        %4875 = vmatpush1.msra.mxu0 0.0
        %4876 = vmatprep.subr.mxu0 0.0
        %4877 = vmatpush1.msra.mxu0 0.0
        %4878 = vmatprep.subr.mxu0 0.0
        %4879 = vmatpush1.msra.mxu0 0.0
        %4880 = vmatprep.subr.mxu0 0.0
        %4881 = vmatpush1.msra.mxu0 0.0
        %4882 = vmatprep.subr.mxu0 0.0
        %4883 = vmatpush1.msra.mxu0 0.0
        %4884 = vmatprep.subr.mxu0 0.0
        %4885 = vmatpush1.msra.mxu0 0.0
        %4886 = vmatprep.subr.mxu0 0.0
        %4887 = vmatpush1.msra.mxu0 0.0
        %4888 = vmatprep.subr.mxu0 0.0
        %4889 = vmatpush1.msra.mxu0 0.0
        %4890 = vmatprep.subr.mxu0 0.0
        %4891 = vmatpush1.msra.mxu0 0.0
        %4892 = vmatprep.subr.mxu0 0.0
        %4893 = vmatpush1.msra.mxu0 0.0
        %4894 = vmatprep.subr.mxu0 0.0
        %4895 = vmatpush1.msra.mxu0 0.0
        %4896 = vmatprep.subr.mxu0 0.0
        %4897 = vmatpush1.msra.mxu0 0.0
        %4898 = vmatprep.subr.mxu0 0.0
        %4899 = vmatpush1.msra.mxu0 0.0
        %4900 = vmatprep.subr.mxu0 0.0
        %4901 = vmatpush1.msra.mxu0 0.0
        %4902 = vmatprep.subr.mxu0 0.0
        %4903 = vmatpush1.msra.mxu0 0.0
        %4904 = vmatprep.subr.mxu0 0.0
        %4905 = vmatpush1.msra.mxu0 0.0
        %4906 = vmatprep.subr.mxu0 0.0
        %4907 = vmatpush1.msra.mxu0 0.0
        %4908 = vmatprep.subr.mxu0 0.0
        %4909 = vmatpush1.msra.mxu0 0.0
        %4910 = vmatprep.subr.mxu0 0.0
        %4911 = vmatpush1.msra.mxu0 0.0
        %4912 = vmatprep.mubr.f32.mxu0 0.0
        %4913 = vmatmul.mubr.f32.gmra.mrb[0].mxu0 %v4843
        %v4914 = vpop.f32.mrb[0].mxu0
        %v4915 = vadd.f32 0.0, %v4914
        %v4916 = vpop.f32.mrb[0].mxu0
        %4917 = vmatprep.mubr.f32.mxu0 0.0
        %4918 = vmatmul.mubr.f32.gmra.mrb[0].mxu0 %v4846
        %v4919 = vpop.f32.mrb[0].mxu0
        %v4920 = vadd.f32 0.0, %v4919
        %v4921 = vpop.f32.mrb[0].mxu0
        %4922 = vdwg.mxu0
        %4923 = vrot.lane.b32.xlu0 %v303, 88
        %v4924 = vpop.permute.xlu0 %4923
        %4925 = vrot.lane.b32.xlu0 %v307, 88
        %v4926 = vpop.permute.xlu0 %4925
        %v4930 = vsel %vm676, %v4742, 0
        %v4933 = vsel %vm676, %v4744, 0
        %4935 = vmatprep.subr.mxu0 0.0
        %4936 = vmatpush1.msra.mxu0 %v4924
        %4937 = vmatprep.subr.mxu0 0.0
        %4938 = vmatpush1.msra.mxu0 %v4926
        %4939 = vmatprep.subr.mxu0 0.0
        %4940 = vmatpush1.msra.mxu0 0.0
        %4941 = vmatprep.subr.mxu0 0.0
        %4942 = vmatpush1.msra.mxu0 0.0
        %4943 = vmatprep.subr.mxu0 0.0
        %4944 = vmatpush1.msra.mxu0 0.0
        %4945 = vmatprep.subr.mxu0 0.0
        %4946 = vmatpush1.msra.mxu0 0.0
        %4947 = vmatprep.subr.mxu0 0.0
        %4948 = vmatpush1.msra.mxu0 0.0
        %4949 = vmatprep.subr.mxu0 0.0
        %4950 = vmatpush1.msra.mxu0 0.0
        %4951 = vmatprep.subr.mxu0 0.0
        %4952 = vmatpush1.msra.mxu0 0.0
        %4953 = vmatprep.subr.mxu0 0.0
        %4954 = vmatpush1.msra.mxu0 0.0
        %4955 = vmatprep.subr.mxu0 0.0
        %4956 = vmatpush1.msra.mxu0 0.0
        %4957 = vmatprep.subr.mxu0 0.0
        %4958 = vmatpush1.msra.mxu0 0.0
        %4959 = vmatprep.subr.mxu0 0.0
        %4960 = vmatpush1.msra.mxu0 0.0
        %4961 = vmatprep.subr.mxu0 0.0
        %4962 = vmatpush1.msra.mxu0 0.0
        %4963 = vmatprep.subr.mxu0 0.0
        %4964 = vmatpush1.msra.mxu0 0.0
        %4965 = vmatprep.subr.mxu0 0.0
        %4966 = vmatpush1.msra.mxu0 0.0
        %4967 = vmatprep.subr.mxu0 0.0
        %4968 = vmatpush1.msra.mxu0 0.0
        %4969 = vmatprep.subr.mxu0 0.0
        %4970 = vmatpush1.msra.mxu0 0.0
        %4971 = vmatprep.subr.mxu0 0.0
        %4972 = vmatpush1.msra.mxu0 0.0
        %4973 = vmatprep.subr.mxu0 0.0
        %4974 = vmatpush1.msra.mxu0 0.0
        %4975 = vmatprep.subr.mxu0 0.0
        %4976 = vmatpush1.msra.mxu0 0.0
        %4977 = vmatprep.subr.mxu0 0.0
        %4978 = vmatpush1.msra.mxu0 0.0
        %4979 = vmatprep.subr.mxu0 0.0
        %4980 = vmatpush1.msra.mxu0 0.0
        %4981 = vmatprep.subr.mxu0 0.0
        %4982 = vmatpush1.msra.mxu0 0.0
        %4983 = vmatprep.subr.mxu0 0.0
        %4984 = vmatpush1.msra.mxu0 0.0
        %4985 = vmatprep.subr.mxu0 0.0
        %4986 = vmatpush1.msra.mxu0 0.0
        %4987 = vmatprep.subr.mxu0 0.0
        %4988 = vmatpush1.msra.mxu0 0.0
        %4989 = vmatprep.subr.mxu0 0.0
        %4990 = vmatpush1.msra.mxu0 0.0
        %4991 = vmatprep.subr.mxu0 0.0
        %4992 = vmatpush1.msra.mxu0 0.0
        %4993 = vmatprep.subr.mxu0 0.0
        %4994 = vmatpush1.msra.mxu0 0.0
        %4995 = vmatprep.subr.mxu0 0.0
        %4996 = vmatpush1.msra.mxu0 0.0
        %4997 = vmatprep.subr.mxu0 0.0
        %4998 = vmatpush1.msra.mxu0 0.0
        %4999 = vmatprep.mubr.f32.mxu0 0.0
        %5000 = vmatmul.mubr.f32.gmra.mrb[0].mxu0 %v4930
        %v5001 = vpop.f32.mrb[0].mxu0
        %v5002 = vadd.f32 0.0, %v5001
        %v5003 = vpop.f32.mrb[0].mxu0
        %5004 = vmatprep.mubr.f32.mxu0 0.0
        %5005 = vmatmul.mubr.f32.gmra.mrb[0].mxu0 %v4933
        %v5006 = vpop.f32.mrb[0].mxu0
        %v5007 = vadd.f32 0.0, %v5006
        %v5008 = vpop.f32.mrb[0].mxu0
        %5009 = vdwg.mxu0
        %5010 = vrot.lane.b32.xlu0 %v313, 88
        %v5011 = vpop.permute.xlu0 %5010
        %5012 = vrot.lane.b32.xlu0 %v317, 88
        %v5013 = vpop.permute.xlu0 %5012
        %v5017 = vsel %vm676, %v4746, 0
        %v5020 = vsel %vm676, %v4748, 0
        %5022 = vmatprep.subr.mxu0 0.0
        %5023 = vmatpush1.msra.mxu0 %v5011
        %5024 = vmatprep.subr.mxu0 0.0
        %5025 = vmatpush1.msra.mxu0 %v5013
        %5026 = vmatprep.subr.mxu0 0.0
        %5027 = vmatpush1.msra.mxu0 0.0
        %5028 = vmatprep.subr.mxu0 0.0
        %5029 = vmatpush1.msra.mxu0 0.0
        %5030 = vmatprep.subr.mxu0 0.0
        %5031 = vmatpush1.msra.mxu0 0.0
        %5032 = vmatprep.subr.mxu0 0.0
        %5033 = vmatpush1.msra.mxu0 0.0
        %5034 = vmatprep.subr.mxu0 0.0
        %5035 = vmatpush1.msra.mxu0 0.0
        %5036 = vmatprep.subr.mxu0 0.0
        %5037 = vmatpush1.msra.mxu0 0.0
        %5038 = vmatprep.subr.mxu0 0.0
        %5039 = vmatpush1.msra.mxu0 0.0
        %5040 = vmatprep.subr.mxu0 0.0
        %5041 = vmatpush1.msra.mxu0 0.0
        %5042 = vmatprep.subr.mxu0 0.0
        %5043 = vmatpush1.msra.mxu0 0.0
        %5044 = vmatprep.subr.mxu0 0.0
        %5045 = vmatpush1.msra.mxu0 0.0
        %5046 = vmatprep.subr.mxu0 0.0
        %5047 = vmatpush1.msra.mxu0 0.0
        %5048 = vmatprep.subr.mxu0 0.0
        %5049 = vmatpush1.msra.mxu0 0.0
        %5050 = vmatprep.subr.mxu0 0.0
        %5051 = vmatpush1.msra.mxu0 0.0
        %5052 = vmatprep.subr.mxu0 0.0
        %5053 = vmatpush1.msra.mxu0 0.0
        %5054 = vmatprep.subr.mxu0 0.0
        %5055 = vmatpush1.msra.mxu0 0.0
        %5056 = vmatprep.subr.mxu0 0.0
        %5057 = vmatpush1.msra.mxu0 0.0
        %5058 = vmatprep.subr.mxu0 0.0
        %5059 = vmatpush1.msra.mxu0 0.0
        %5060 = vmatprep.subr.mxu0 0.0
        %5061 = vmatpush1.msra.mxu0 0.0
        %5062 = vmatprep.subr.mxu0 0.0
        %5063 = vmatpush1.msra.mxu0 0.0
        %5064 = vmatprep.subr.mxu0 0.0
        %5065 = vmatpush1.msra.mxu0 0.0
        %5066 = vmatprep.subr.mxu0 0.0
        %5067 = vmatpush1.msra.mxu0 0.0
        %5068 = vmatprep.subr.mxu0 0.0
        %5069 = vmatpush1.msra.mxu0 0.0
        %5070 = vmatprep.subr.mxu0 0.0
        %5071 = vmatpush1.msra.mxu0 0.0
        %5072 = vmatprep.subr.mxu0 0.0
        %5073 = vmatpush1.msra.mxu0 0.0
        %5074 = vmatprep.subr.mxu0 0.0
        %5075 = vmatpush1.msra.mxu0 0.0
        %5076 = vmatprep.subr.mxu0 0.0
        %5077 = vmatpush1.msra.mxu0 0.0
        %5078 = vmatprep.subr.mxu0 0.0
        %5079 = vmatpush1.msra.mxu0 0.0
        %5080 = vmatprep.subr.mxu0 0.0
        %5081 = vmatpush1.msra.mxu0 0.0
        %5082 = vmatprep.subr.mxu0 0.0
        %5083 = vmatpush1.msra.mxu0 0.0
        %5084 = vmatprep.subr.mxu0 0.0
        %5085 = vmatpush1.msra.mxu0 0.0
        %5086 = vmatprep.mubr.f32.mxu0 0.0
        %5087 = vmatmul.mubr.f32.gmra.mrb[0].mxu0 %v5017
        %v5088 = vpop.f32.mrb[0].mxu0
        %v5089 = vadd.f32 0.0, %v5088
        %v5090 = vpop.f32.mrb[0].mxu0
        %5091 = vmatprep.mubr.f32.mxu0 0.0
        %5092 = vmatmul.mubr.f32.gmra.mrb[0].mxu0 %v5020
        %v5093 = vpop.f32.mrb[0].mxu0
        %v5094 = vadd.f32 0.0, %v5093
        %v5095 = vpop.f32.mrb[0].mxu0
        %5096 = vdwg.mxu0
        %5097 = vrot.lane.b32.xlu0 %v281, 80
        %v5098 = vpop.permute.xlu0 %5097
        %5099 = vrot.lane.b32.xlu0 %v285, 80
        %v5100 = vpop.permute.xlu0 %5099
        %5101 = vrot.lane.b32.xlu0 %v281, 16
        %v5102 = vpop.permute.xlu0 %5101
        %5103 = vrot.lane.b32.xlu0 %v285, 16
        %v5104 = vpop.permute.xlu0 %5103
        %v5105 = vsel %vm325, %v5098, 0
        %v5107 = vsel %vm325, %v5100, 0
        %v5109 = vsel %vm325, %v5102, 0
        %v5111 = vsel %vm325, %v5104, 0
        %5113 = vmatprep.subr.mxu0 0.0
        %5114 = vmatpush1.xpose.msra.mxu0 %v5109
        %5115 = vmatprep.subr.mxu0 0.0
        %5116 = vmatpush1.xpose.msra.mxu0 %v5111
        %5117 = vmatprep.subr.mxu0 0.0
        %5118 = vmatpush1.xpose.msra.mxu0 0.0
        %5119 = vmatprep.subr.mxu0 0.0
        %5120 = vmatpush1.xpose.msra.mxu0 0.0
        %5121 = vmatprep.subr.mxu0 0.0
        %5122 = vmatpush1.xpose.msra.mxu0 0.0
        %5123 = vmatprep.subr.mxu0 0.0
        %5124 = vmatpush1.xpose.msra.mxu0 0.0
        %5125 = vmatprep.subr.mxu0 0.0
        %5126 = vmatpush1.xpose.msra.mxu0 0.0
        %5127 = vmatprep.subr.mxu0 0.0
        %5128 = vmatpush1.xpose.msra.mxu0 0.0
        %5129 = vmatprep.subr.mxu0 0.0
        %5130 = vmatpush1.xpose.msra.mxu0 0.0
        %5131 = vmatprep.subr.mxu0 0.0
        %5132 = vmatpush1.xpose.msra.mxu0 0.0
        %5133 = vmatprep.subr.mxu0 0.0
        %5134 = vmatpush1.xpose.msra.mxu0 0.0
        %5135 = vmatprep.subr.mxu0 0.0
        %5136 = vmatpush1.xpose.msra.mxu0 0.0
        %5137 = vmatprep.subr.mxu0 0.0
        %5138 = vmatpush1.xpose.msra.mxu0 0.0
        %5139 = vmatprep.subr.mxu0 0.0
        %5140 = vmatpush1.xpose.msra.mxu0 0.0
        %5141 = vmatprep.subr.mxu0 0.0
        %5142 = vmatpush1.xpose.msra.mxu0 0.0
        %5143 = vmatprep.subr.mxu0 0.0
        %5144 = vmatpush1.xpose.msra.mxu0 0.0
        %5145 = vmatprep.subr.mxu0 0.0
        %5146 = vmatpush1.xpose.msra.mxu0 0.0
        %5147 = vmatprep.subr.mxu0 0.0
        %5148 = vmatpush1.xpose.msra.mxu0 0.0
        %5149 = vmatprep.subr.mxu0 0.0
        %5150 = vmatpush1.xpose.msra.mxu0 0.0
        %5151 = vmatprep.subr.mxu0 0.0
        %5152 = vmatpush1.xpose.msra.mxu0 0.0
        %5153 = vmatprep.subr.mxu0 0.0
        %5154 = vmatpush1.xpose.msra.mxu0 0.0
        %5155 = vmatprep.subr.mxu0 0.0
        %5156 = vmatpush1.xpose.msra.mxu0 0.0
        %5157 = vmatprep.subr.mxu0 0.0
        %5158 = vmatpush1.xpose.msra.mxu0 0.0
        %5159 = vmatprep.subr.mxu0 0.0
        %5160 = vmatpush1.xpose.msra.mxu0 0.0
        %5161 = vmatprep.subr.mxu0 0.0
        %5162 = vmatpush1.xpose.msra.mxu0 0.0
        %5163 = vmatprep.subr.mxu0 0.0
        %5164 = vmatpush1.xpose.msra.mxu0 0.0
        %5165 = vmatprep.subr.mxu0 0.0
        %5166 = vmatpush1.xpose.msra.mxu0 0.0
        %5167 = vmatprep.subr.mxu0 0.0
        %5168 = vmatpush1.xpose.msra.mxu0 0.0
        %5169 = vmatprep.subr.mxu0 0.0
        %5170 = vmatpush1.xpose.msra.mxu0 0.0
        %5171 = vmatprep.subr.mxu0 0.0
        %5172 = vmatpush1.xpose.msra.mxu0 0.0
        %5173 = vmatprep.subr.mxu0 0.0
        %5174 = vmatpush1.xpose.msra.mxu0 0.0
        %5175 = vmatprep.subr.mxu0 0.0
        %5176 = vmatpush1.xpose.msra.mxu0 0.0
        %5177 = vmatprep.mubr.f32.mxu0 0.0
        %5178 = vmatmul.mubr.f32.gmra.mrb[0].mxu0 %v5105
        %v5179 = vpop.f32.mrb[0].mxu0
        %v5180 = vadd.f32 0.0, %v5179
        %v5181 = vpop.f32.mrb[0].mxu0
        %5182 = vmatprep.mubr.f32.mxu0 0.0
        %5183 = vmatmul.mubr.f32.gmra.mrb[0].mxu0 %v5107
        %v5184 = vpop.f32.mrb[0].mxu0
        %v5185 = vadd.f32 0.0, %v5184
        %v5186 = vpop.f32.mrb[0].mxu0
        %5187 = vdwg.mxu0
        %5188 = vrot.lane.b32.xlu0 %v291, 80
        %v5189 = vpop.permute.xlu0 %5188
        %5190 = vrot.lane.b32.xlu0 %v295, 80
        %v5191 = vpop.permute.xlu0 %5190
        %5192 = vrot.lane.b32.xlu0 %v291, 16
        %v5193 = vpop.permute.xlu0 %5192
        %5194 = vrot.lane.b32.xlu0 %v295, 16
        %v5195 = vpop.permute.xlu0 %5194
        %v5196 = vsel %vm325, %v5189, 0
        %v5198 = vsel %vm325, %v5191, 0
        %v5200 = vsel %vm325, %v5193, 0
        %v5202 = vsel %vm325, %v5195, 0
        %5204 = vmatprep.subr.mxu0 0.0
        %5205 = vmatpush1.xpose.msra.mxu0 %v5200
        %5206 = vmatprep.subr.mxu0 0.0
        %5207 = vmatpush1.xpose.msra.mxu0 %v5202
        %5208 = vmatprep.subr.mxu0 0.0
        %5209 = vmatpush1.xpose.msra.mxu0 0.0
        %5210 = vmatprep.subr.mxu0 0.0
        %5211 = vmatpush1.xpose.msra.mxu0 0.0
        %5212 = vmatprep.subr.mxu0 0.0
        %5213 = vmatpush1.xpose.msra.mxu0 0.0
        %5214 = vmatprep.subr.mxu0 0.0
        %5215 = vmatpush1.xpose.msra.mxu0 0.0
        %5216 = vmatprep.subr.mxu0 0.0
        %5217 = vmatpush1.xpose.msra.mxu0 0.0
        %5218 = vmatprep.subr.mxu0 0.0
        %5219 = vmatpush1.xpose.msra.mxu0 0.0
        %5220 = vmatprep.subr.mxu0 0.0
        %5221 = vmatpush1.xpose.msra.mxu0 0.0
        %5222 = vmatprep.subr.mxu0 0.0
        %5223 = vmatpush1.xpose.msra.mxu0 0.0
        %5224 = vmatprep.subr.mxu0 0.0
        %5225 = vmatpush1.xpose.msra.mxu0 0.0
        %5226 = vmatprep.subr.mxu0 0.0
        %5227 = vmatpush1.xpose.msra.mxu0 0.0
        %5228 = vmatprep.subr.mxu0 0.0
        %5229 = vmatpush1.xpose.msra.mxu0 0.0
        %5230 = vmatprep.subr.mxu0 0.0
        %5231 = vmatpush1.xpose.msra.mxu0 0.0
        %5232 = vmatprep.subr.mxu0 0.0
        %5233 = vmatpush1.xpose.msra.mxu0 0.0
        %5234 = vmatprep.subr.mxu0 0.0
        %5235 = vmatpush1.xpose.msra.mxu0 0.0
        %5236 = vmatprep.subr.mxu0 0.0
        %5237 = vmatpush1.xpose.msra.mxu0 0.0
        %5238 = vmatprep.subr.mxu0 0.0
        %5239 = vmatpush1.xpose.msra.mxu0 0.0
        %5240 = vmatprep.subr.mxu0 0.0
        %5241 = vmatpush1.xpose.msra.mxu0 0.0
        %5242 = vmatprep.subr.mxu0 0.0
        %5243 = vmatpush1.xpose.msra.mxu0 0.0
        %5244 = vmatprep.subr.mxu0 0.0
        %5245 = vmatpush1.xpose.msra.mxu0 0.0
        %5246 = vmatprep.subr.mxu0 0.0
        %5247 = vmatpush1.xpose.msra.mxu0 0.0
        %5248 = vmatprep.subr.mxu0 0.0
        %5249 = vmatpush1.xpose.msra.mxu0 0.0
        %5250 = vmatprep.subr.mxu0 0.0
        %5251 = vmatpush1.xpose.msra.mxu0 0.0
        %5252 = vmatprep.subr.mxu0 0.0
        %5253 = vmatpush1.xpose.msra.mxu0 0.0
        %5254 = vmatprep.subr.mxu0 0.0
        %5255 = vmatpush1.xpose.msra.mxu0 0.0
        %5256 = vmatprep.subr.mxu0 0.0
        %5257 = vmatpush1.xpose.msra.mxu0 0.0
        %5258 = vmatprep.subr.mxu0 0.0
        %5259 = vmatpush1.xpose.msra.mxu0 0.0
        %5260 = vmatprep.subr.mxu0 0.0
        %5261 = vmatpush1.xpose.msra.mxu0 0.0
        %5262 = vmatprep.subr.mxu0 0.0
        %5263 = vmatpush1.xpose.msra.mxu0 0.0
        %5264 = vmatprep.subr.mxu0 0.0
        %5265 = vmatpush1.xpose.msra.mxu0 0.0
        %5266 = vmatprep.subr.mxu0 0.0
        %5267 = vmatpush1.xpose.msra.mxu0 0.0
        %5268 = vmatprep.mubr.f32.mxu0 0.0
        %5269 = vmatmul.mubr.f32.gmra.mrb[0].mxu0 %v5196
        %v5270 = vpop.f32.mrb[0].mxu0
        %v5271 = vadd.f32 0.0, %v5270
        %v5272 = vpop.f32.mrb[0].mxu0
        %5273 = vmatprep.mubr.f32.mxu0 0.0
        %5274 = vmatmul.mubr.f32.gmra.mrb[0].mxu0 %v5198
        %v5275 = vpop.f32.mrb[0].mxu0
        %v5276 = vadd.f32 0.0, %v5275
        %v5277 = vpop.f32.mrb[0].mxu0
        %5278 = vdwg.mxu0
        %5279 = vrot.lane.b32.xlu0 %v301, 80
        %v5280 = vpop.permute.xlu0 %5279
        %5281 = vrot.lane.b32.xlu0 %v305, 80
        %v5282 = vpop.permute.xlu0 %5281
        %5283 = vrot.lane.b32.xlu0 %v301, 16
        %v5284 = vpop.permute.xlu0 %5283
        %5285 = vrot.lane.b32.xlu0 %v305, 16
        %v5286 = vpop.permute.xlu0 %5285
        %v5287 = vsel %vm325, %v5280, 0
        %v5289 = vsel %vm325, %v5282, 0
        %v5291 = vsel %vm325, %v5284, 0
        %v5293 = vsel %vm325, %v5286, 0
        %5295 = vmatprep.subr.mxu0 0.0
        %5296 = vmatpush1.xpose.msra.mxu0 %v5291
        %5297 = vmatprep.subr.mxu0 0.0
        %5298 = vmatpush1.xpose.msra.mxu0 %v5293
        %5299 = vmatprep.subr.mxu0 0.0
        %5300 = vmatpush1.xpose.msra.mxu0 0.0
        %5301 = vmatprep.subr.mxu0 0.0
        %5302 = vmatpush1.xpose.msra.mxu0 0.0
        %5303 = vmatprep.subr.mxu0 0.0
        %5304 = vmatpush1.xpose.msra.mxu0 0.0
        %5305 = vmatprep.subr.mxu0 0.0
        %5306 = vmatpush1.xpose.msra.mxu0 0.0
        %5307 = vmatprep.subr.mxu0 0.0
        %5308 = vmatpush1.xpose.msra.mxu0 0.0
        %5309 = vmatprep.subr.mxu0 0.0
        %5310 = vmatpush1.xpose.msra.mxu0 0.0
        %5311 = vmatprep.subr.mxu0 0.0
        %5312 = vmatpush1.xpose.msra.mxu0 0.0
        %5313 = vmatprep.subr.mxu0 0.0
        %5314 = vmatpush1.xpose.msra.mxu0 0.0
        %5315 = vmatprep.subr.mxu0 0.0
        %5316 = vmatpush1.xpose.msra.mxu0 0.0
        %5317 = vmatprep.subr.mxu0 0.0
        %5318 = vmatpush1.xpose.msra.mxu0 0.0
        %5319 = vmatprep.subr.mxu0 0.0
        %5320 = vmatpush1.xpose.msra.mxu0 0.0
        %5321 = vmatprep.subr.mxu0 0.0
        %5322 = vmatpush1.xpose.msra.mxu0 0.0
        %5323 = vmatprep.subr.mxu0 0.0
        %5324 = vmatpush1.xpose.msra.mxu0 0.0
        %5325 = vmatprep.subr.mxu0 0.0
        %5326 = vmatpush1.xpose.msra.mxu0 0.0
        %5327 = vmatprep.subr.mxu0 0.0
        %5328 = vmatpush1.xpose.msra.mxu0 0.0
        %5329 = vmatprep.subr.mxu0 0.0
        %5330 = vmatpush1.xpose.msra.mxu0 0.0
        %5331 = vmatprep.subr.mxu0 0.0
        %5332 = vmatpush1.xpose.msra.mxu0 0.0
        %5333 = vmatprep.subr.mxu0 0.0
        %5334 = vmatpush1.xpose.msra.mxu0 0.0
        %5335 = vmatprep.subr.mxu0 0.0
        %5336 = vmatpush1.xpose.msra.mxu0 0.0
        %5337 = vmatprep.subr.mxu0 0.0
        %5338 = vmatpush1.xpose.msra.mxu0 0.0
        %5339 = vmatprep.subr.mxu0 0.0
        %5340 = vmatpush1.xpose.msra.mxu0 0.0
        %5341 = vmatprep.subr.mxu0 0.0
        %5342 = vmatpush1.xpose.msra.mxu0 0.0
        %5343 = vmatprep.subr.mxu0 0.0
        %5344 = vmatpush1.xpose.msra.mxu0 0.0
        %5345 = vmatprep.subr.mxu0 0.0
        %5346 = vmatpush1.xpose.msra.mxu0 0.0
        %5347 = vmatprep.subr.mxu0 0.0
        %5348 = vmatpush1.xpose.msra.mxu0 0.0
        %5349 = vmatprep.subr.mxu0 0.0
        %5350 = vmatpush1.xpose.msra.mxu0 0.0
        %5351 = vmatprep.subr.mxu0 0.0
        %5352 = vmatpush1.xpose.msra.mxu0 0.0
        %5353 = vmatprep.subr.mxu0 0.0
        %5354 = vmatpush1.xpose.msra.mxu0 0.0
        %5355 = vmatprep.subr.mxu0 0.0
        %5356 = vmatpush1.xpose.msra.mxu0 0.0
        %5357 = vmatprep.subr.mxu0 0.0
        %5358 = vmatpush1.xpose.msra.mxu0 0.0
        %5359 = vmatprep.mubr.f32.mxu0 0.0
        %5360 = vmatmul.mubr.f32.gmra.mrb[0].mxu0 %v5287
        %v5361 = vpop.f32.mrb[0].mxu0
        %v5362 = vadd.f32 0.0, %v5361
        %v5363 = vpop.f32.mrb[0].mxu0
        %5364 = vmatprep.mubr.f32.mxu0 0.0
        %5365 = vmatmul.mubr.f32.gmra.mrb[0].mxu0 %v5289
        %v5366 = vpop.f32.mrb[0].mxu0
        %v5367 = vadd.f32 0.0, %v5366
        %v5368 = vpop.f32.mrb[0].mxu0
        %5369 = vdwg.mxu0
        %5370 = vrot.lane.b32.xlu0 %v311, 80
        %v5371 = vpop.permute.xlu0 %5370
        %5372 = vrot.lane.b32.xlu0 %v315, 80
        %v5373 = vpop.permute.xlu0 %5372
        %5374 = vrot.lane.b32.xlu0 %v311, 16
        %v5375 = vpop.permute.xlu0 %5374
        %5376 = vrot.lane.b32.xlu0 %v315, 16
        %v5377 = vpop.permute.xlu0 %5376
        %v5378 = vsel %vm325, %v5371, 0
        %v5380 = vsel %vm325, %v5373, 0
        %v5382 = vsel %vm325, %v5375, 0
        %v5384 = vsel %vm325, %v5377, 0
        %5386 = vmatprep.subr.mxu0 0.0
        %5387 = vmatpush1.xpose.msra.mxu0 %v5382
        %5388 = vmatprep.subr.mxu0 0.0
        %5389 = vmatpush1.xpose.msra.mxu0 %v5384
        %5390 = vmatprep.subr.mxu0 0.0
        %5391 = vmatpush1.xpose.msra.mxu0 0.0
        %5392 = vmatprep.subr.mxu0 0.0
        %5393 = vmatpush1.xpose.msra.mxu0 0.0
        %5394 = vmatprep.subr.mxu0 0.0
        %5395 = vmatpush1.xpose.msra.mxu0 0.0
        %5396 = vmatprep.subr.mxu0 0.0
        %5397 = vmatpush1.xpose.msra.mxu0 0.0
        %5398 = vmatprep.subr.mxu0 0.0
        %5399 = vmatpush1.xpose.msra.mxu0 0.0
        %5400 = vmatprep.subr.mxu0 0.0
        %5401 = vmatpush1.xpose.msra.mxu0 0.0
        %5402 = vmatprep.subr.mxu0 0.0
        %5403 = vmatpush1.xpose.msra.mxu0 0.0
        %5404 = vmatprep.subr.mxu0 0.0
        %5405 = vmatpush1.xpose.msra.mxu0 0.0
        %5406 = vmatprep.subr.mxu0 0.0
        %5407 = vmatpush1.xpose.msra.mxu0 0.0
        %5408 = vmatprep.subr.mxu0 0.0
        %5409 = vmatpush1.xpose.msra.mxu0 0.0
        %5410 = vmatprep.subr.mxu0 0.0
        %5411 = vmatpush1.xpose.msra.mxu0 0.0
        %5412 = vmatprep.subr.mxu0 0.0
        %5413 = vmatpush1.xpose.msra.mxu0 0.0
        %5414 = vmatprep.subr.mxu0 0.0
        %5415 = vmatpush1.xpose.msra.mxu0 0.0
        %5416 = vmatprep.subr.mxu0 0.0
        %5417 = vmatpush1.xpose.msra.mxu0 0.0
        %5418 = vmatprep.subr.mxu0 0.0
        %5419 = vmatpush1.xpose.msra.mxu0 0.0
        %5420 = vmatprep.subr.mxu0 0.0
        %5421 = vmatpush1.xpose.msra.mxu0 0.0
        %5422 = vmatprep.subr.mxu0 0.0
        %5423 = vmatpush1.xpose.msra.mxu0 0.0
        %5424 = vmatprep.subr.mxu0 0.0
        %5425 = vmatpush1.xpose.msra.mxu0 0.0
        %5426 = vmatprep.subr.mxu0 0.0
        %5427 = vmatpush1.xpose.msra.mxu0 0.0
        %5428 = vmatprep.subr.mxu0 0.0
        %5429 = vmatpush1.xpose.msra.mxu0 0.0
        %5430 = vmatprep.subr.mxu0 0.0
        %5431 = vmatpush1.xpose.msra.mxu0 0.0
        %5432 = vmatprep.subr.mxu0 0.0
        %5433 = vmatpush1.xpose.msra.mxu0 0.0
        %5434 = vmatprep.subr.mxu0 0.0
        %5435 = vmatpush1.xpose.msra.mxu0 0.0
        %5436 = vmatprep.subr.mxu0 0.0
        %5437 = vmatpush1.xpose.msra.mxu0 0.0
        %5438 = vmatprep.subr.mxu0 0.0
        %5439 = vmatpush1.xpose.msra.mxu0 0.0
        %5440 = vmatprep.subr.mxu0 0.0
        %5441 = vmatpush1.xpose.msra.mxu0 0.0
        %5442 = vmatprep.subr.mxu0 0.0
        %5443 = vmatpush1.xpose.msra.mxu0 0.0
        %5444 = vmatprep.subr.mxu0 0.0
        %5445 = vmatpush1.xpose.msra.mxu0 0.0
        %5446 = vmatprep.subr.mxu0 0.0
        %5447 = vmatpush1.xpose.msra.mxu0 0.0
        %5448 = vmatprep.subr.mxu0 0.0
        %5449 = vmatpush1.xpose.msra.mxu0 0.0
        %5450 = vmatprep.mubr.f32.mxu0 0.0
        %5451 = vmatmul.mubr.f32.gmra.mrb[0].mxu0 %v5378
        %v5452 = vpop.f32.mrb[0].mxu0
        %v5453 = vadd.f32 0.0, %v5452
        %v5454 = vpop.f32.mrb[0].mxu0
        %5455 = vmatprep.mubr.f32.mxu0 0.0
        %5456 = vmatmul.mubr.f32.gmra.mrb[0].mxu0 %v5380
        %v5457 = vpop.f32.mrb[0].mxu0
        %v5458 = vadd.f32 0.0, %v5457
        %v5459 = vpop.f32.mrb[0].mxu0
        %5460 = vdwg.mxu0
        %v5461 = vsel %vm676, %v5180, -inf
        %5462 = vmax.xlane.f32.xlu0 %v5461
        %v5463 = vpop.xlane.xlu0 %5462
        %v5464 = vsel %vm676, %v5185, -inf
        %5465 = vmax.xlane.f32.xlu0 %v5464
        %v5466 = vpop.xlane.xlu0 %5465
        %v5467 = vsel %vm676, %v5271, -inf
        %5468 = vmax.xlane.f32.xlu0 %v5467
        %v5469 = vpop.xlane.xlu0 %5468
        %v5470 = vsel %vm676, %v5276, -inf
        %5471 = vmax.xlane.f32.xlu0 %v5470
        %v5472 = vpop.xlane.xlu0 %5471
        %v5473 = vsel %vm676, %v5362, -inf
        %5474 = vmax.xlane.f32.xlu0 %v5473
        %v5475 = vpop.xlane.xlu0 %5474
        %v5476 = vsel %vm676, %v5367, -inf
        %5477 = vmax.xlane.f32.xlu0 %v5476
        %v5478 = vpop.xlane.xlu0 %5477
        %v5479 = vsel %vm676, %v5453, -inf
        %5480 = vmax.xlane.f32.xlu0 %v5479
        %v5481 = vpop.xlane.xlu0 %5480
        %v5482 = vsel %vm676, %v5458, -inf
        %5483 = vmax.xlane.f32.xlu0 %v5482
        %v5484 = vpop.xlane.xlu0 %5483
        %v5485 = vsub.f32 %v5180, %v5463
        %v5486 = vsub.f32 %v5185, %v5466
        %v5487 = vsub.f32 %v5271, %v5469
        %v5488 = vsub.f32 %v5276, %v5472
        %v5489 = vsub.f32 %v5362, %v5475
        %v5490 = vsub.f32 %v5367, %v5478
        %v5491 = vsub.f32 %v5453, %v5481
        %v5492 = vsub.f32 %v5458, %v5484
        %v5493 = vmul.f32 %v5485, 1.442695
        %v5494 = vpow.pop %v5493
        %v5495 = vmul.f32 %v5486, 1.442695
        %v5496 = vpow.pop %v5495
        %v5497 = vmul.f32 %v5487, 1.442695
        %v5498 = vpow.pop %v5497
        %v5499 = vmul.f32 %v5488, 1.442695
        %v5500 = vpow.pop %v5499
        %v5501 = vmul.f32 %v5489, 1.442695
        %v5502 = vpow.pop %v5501
        %v5503 = vmul.f32 %v5490, 1.442695
        %v5504 = vpow.pop %v5503
        %v5505 = vmul.f32 %v5491, 1.442695
        %v5506 = vpow.pop %v5505
        %v5507 = vmul.f32 %v5492, 1.442695
        %v5508 = vpow.pop %v5507
        %v5509 = vsel %vm676, %v5494, 0.0
        %5510 = vadd.xlane.f32.xlu0 %v5509
        %v5511 = vpop.xlane.xlu0 %5510
        %v5512 = vsel %vm676, %v5496, 0.0
        %5513 = vadd.xlane.f32.xlu0 %v5512
        %v5514 = vpop.xlane.xlu0 %5513
        %v5515 = vsel %vm676, %v5498, 0.0
        %5516 = vadd.xlane.f32.xlu0 %v5515
        %v5517 = vpop.xlane.xlu0 %5516
        %v5518 = vsel %vm676, %v5500, 0.0
        %5519 = vadd.xlane.f32.xlu0 %v5518
        %v5520 = vpop.xlane.xlu0 %5519
        %v5521 = vsel %vm676, %v5502, 0.0
        %5522 = vadd.xlane.f32.xlu0 %v5521
        %v5523 = vpop.xlane.xlu0 %5522
        %v5524 = vsel %vm676, %v5504, 0.0
        %5525 = vadd.xlane.f32.xlu0 %v5524
        %v5526 = vpop.xlane.xlu0 %5525
        %v5527 = vsel %vm676, %v5506, 0.0
        %5528 = vadd.xlane.f32.xlu0 %v5527
        %v5529 = vpop.xlane.xlu0 %5528
        %v5530 = vsel %vm676, %v5508, 0.0
        %5531 = vadd.xlane.f32.xlu0 %v5530
        %v5532 = vpop.xlane.xlu0 %5531
        %v5533 = vrcp.pop %v5511
        %v5534 = vmul.f32 %v5494, %v5533
        %v5535 = vrcp.pop %v5514
        %v5536 = vmul.f32 %v5496, %v5535
        %v5537 = vrcp.pop %v5517
        %v5538 = vmul.f32 %v5498, %v5537
        %v5539 = vrcp.pop %v5520
        %v5540 = vmul.f32 %v5500, %v5539
        %v5541 = vrcp.pop %v5523
        %v5542 = vmul.f32 %v5502, %v5541
        %v5543 = vrcp.pop %v5526
        %v5544 = vmul.f32 %v5504, %v5543
        %v5545 = vrcp.pop %v5529
        %v5546 = vmul.f32 %v5506, %v5545
        %v5547 = vrcp.pop %v5532
        %v5548 = vmul.f32 %v5508, %v5547
        %5549 = vrot.lane.b32.xlu0 %v283, 80
        %v5550 = vpop.permute.xlu0 %5549
        %5551 = vrot.lane.b32.xlu0 %v287, 80
        %v5552 = vpop.permute.xlu0 %5551
        %v5556 = vsel %vm676, %v5534, 0
        %v5559 = vsel %vm676, %v5536, 0
        %5561 = vmatprep.subr.mxu0 0.0
        %5562 = vmatpush1.msra.mxu0 %v5550
        %5563 = vmatprep.subr.mxu0 0.0
        %5564 = vmatpush1.msra.mxu0 %v5552
        %5565 = vmatprep.subr.mxu0 0.0
        %5566 = vmatpush1.msra.mxu0 0.0
        %5567 = vmatprep.subr.mxu0 0.0
        %5568 = vmatpush1.msra.mxu0 0.0
        %5569 = vmatprep.subr.mxu0 0.0
        %5570 = vmatpush1.msra.mxu0 0.0
        %5571 = vmatprep.subr.mxu0 0.0
        %5572 = vmatpush1.msra.mxu0 0.0
        %5573 = vmatprep.subr.mxu0 0.0
        %5574 = vmatpush1.msra.mxu0 0.0
        %5575 = vmatprep.subr.mxu0 0.0
        %5576 = vmatpush1.msra.mxu0 0.0
        %5577 = vmatprep.subr.mxu0 0.0
        %5578 = vmatpush1.msra.mxu0 0.0
        %5579 = vmatprep.subr.mxu0 0.0
        %5580 = vmatpush1.msra.mxu0 0.0
        %5581 = vmatprep.subr.mxu0 0.0
        %5582 = vmatpush1.msra.mxu0 0.0
        %5583 = vmatprep.subr.mxu0 0.0
        %5584 = vmatpush1.msra.mxu0 0.0
        %5585 = vmatprep.subr.mxu0 0.0
        %5586 = vmatpush1.msra.mxu0 0.0
        %5587 = vmatprep.subr.mxu0 0.0
        %5588 = vmatpush1.msra.mxu0 0.0
        %5589 = vmatprep.subr.mxu0 0.0
        %5590 = vmatpush1.msra.mxu0 0.0
        %5591 = vmatprep.subr.mxu0 0.0
        %5592 = vmatpush1.msra.mxu0 0.0
        %5593 = vmatprep.subr.mxu0 0.0
        %5594 = vmatpush1.msra.mxu0 0.0
        %5595 = vmatprep.subr.mxu0 0.0
        %5596 = vmatpush1.msra.mxu0 0.0
        %5597 = vmatprep.subr.mxu0 0.0
        %5598 = vmatpush1.msra.mxu0 0.0
        %5599 = vmatprep.subr.mxu0 0.0
        %5600 = vmatpush1.msra.mxu0 0.0
        %5601 = vmatprep.subr.mxu0 0.0
        %5602 = vmatpush1.msra.mxu0 0.0
        %5603 = vmatprep.subr.mxu0 0.0
        %5604 = vmatpush1.msra.mxu0 0.0
        %5605 = vmatprep.subr.mxu0 0.0
        %5606 = vmatpush1.msra.mxu0 0.0
        %5607 = vmatprep.subr.mxu0 0.0
        %5608 = vmatpush1.msra.mxu0 0.0
        %5609 = vmatprep.subr.mxu0 0.0
        %5610 = vmatpush1.msra.mxu0 0.0
        %5611 = vmatprep.subr.mxu0 0.0
        %5612 = vmatpush1.msra.mxu0 0.0
        %5613 = vmatprep.subr.mxu0 0.0
        %5614 = vmatpush1.msra.mxu0 0.0
        %5615 = vmatprep.subr.mxu0 0.0
        %5616 = vmatpush1.msra.mxu0 0.0
        %5617 = vmatprep.subr.mxu0 0.0
        %5618 = vmatpush1.msra.mxu0 0.0
        %5619 = vmatprep.subr.mxu0 0.0
        %5620 = vmatpush1.msra.mxu0 0.0
        %5621 = vmatprep.subr.mxu0 0.0
        %5622 = vmatpush1.msra.mxu0 0.0
        %5623 = vmatprep.subr.mxu0 0.0
        %5624 = vmatpush1.msra.mxu0 0.0
        %5625 = vmatprep.mubr.f32.mxu0 0.0
        %5626 = vmatmul.mubr.f32.gmra.mrb[0].mxu0 %v5556
        %v5627 = vpop.f32.mrb[0].mxu0
        %v5628 = vadd.f32 0.0, %v5627
        %v5629 = vpop.f32.mrb[0].mxu0
        %5630 = vmatprep.mubr.f32.mxu0 0.0
        %5631 = vmatmul.mubr.f32.gmra.mrb[0].mxu0 %v5559
        %v5632 = vpop.f32.mrb[0].mxu0
        %v5633 = vadd.f32 0.0, %v5632
        %v5634 = vpop.f32.mrb[0].mxu0
        %5635 = vdwg.mxu0
        %5636 = vrot.lane.b32.xlu0 %v293, 80
        %v5637 = vpop.permute.xlu0 %5636
        %5638 = vrot.lane.b32.xlu0 %v297, 80
        %v5639 = vpop.permute.xlu0 %5638
        %v5643 = vsel %vm676, %v5538, 0
        %v5646 = vsel %vm676, %v5540, 0
        %5648 = vmatprep.subr.mxu0 0.0
        %5649 = vmatpush1.msra.mxu0 %v5637
        %5650 = vmatprep.subr.mxu0 0.0
        %5651 = vmatpush1.msra.mxu0 %v5639
        %5652 = vmatprep.subr.mxu0 0.0
        %5653 = vmatpush1.msra.mxu0 0.0
        %5654 = vmatprep.subr.mxu0 0.0
        %5655 = vmatpush1.msra.mxu0 0.0
        %5656 = vmatprep.subr.mxu0 0.0
        %5657 = vmatpush1.msra.mxu0 0.0
        %5658 = vmatprep.subr.mxu0 0.0
        %5659 = vmatpush1.msra.mxu0 0.0
        %5660 = vmatprep.subr.mxu0 0.0
        %5661 = vmatpush1.msra.mxu0 0.0
        %5662 = vmatprep.subr.mxu0 0.0
        %5663 = vmatpush1.msra.mxu0 0.0
        %5664 = vmatprep.subr.mxu0 0.0
        %5665 = vmatpush1.msra.mxu0 0.0
        %5666 = vmatprep.subr.mxu0 0.0
        %5667 = vmatpush1.msra.mxu0 0.0
        %5668 = vmatprep.subr.mxu0 0.0
        %5669 = vmatpush1.msra.mxu0 0.0
        %5670 = vmatprep.subr.mxu0 0.0
        %5671 = vmatpush1.msra.mxu0 0.0
        %5672 = vmatprep.subr.mxu0 0.0
        %5673 = vmatpush1.msra.mxu0 0.0
        %5674 = vmatprep.subr.mxu0 0.0
        %5675 = vmatpush1.msra.mxu0 0.0
        %5676 = vmatprep.subr.mxu0 0.0
        %5677 = vmatpush1.msra.mxu0 0.0
        %5678 = vmatprep.subr.mxu0 0.0
        %5679 = vmatpush1.msra.mxu0 0.0
        %5680 = vmatprep.subr.mxu0 0.0
        %5681 = vmatpush1.msra.mxu0 0.0
        %5682 = vmatprep.subr.mxu0 0.0
        %5683 = vmatpush1.msra.mxu0 0.0
        %5684 = vmatprep.subr.mxu0 0.0
        %5685 = vmatpush1.msra.mxu0 0.0
        %5686 = vmatprep.subr.mxu0 0.0
        %5687 = vmatpush1.msra.mxu0 0.0
        %5688 = vmatprep.subr.mxu0 0.0
        %5689 = vmatpush1.msra.mxu0 0.0
        %5690 = vmatprep.subr.mxu0 0.0
        %5691 = vmatpush1.msra.mxu0 0.0
        %5692 = vmatprep.subr.mxu0 0.0
        %5693 = vmatpush1.msra.mxu0 0.0
        %5694 = vmatprep.subr.mxu0 0.0
        %5695 = vmatpush1.msra.mxu0 0.0
        %5696 = vmatprep.subr.mxu0 0.0
        %5697 = vmatpush1.msra.mxu0 0.0
        %5698 = vmatprep.subr.mxu0 0.0
        %5699 = vmatpush1.msra.mxu0 0.0
        %5700 = vmatprep.subr.mxu0 0.0
        %5701 = vmatpush1.msra.mxu0 0.0
        %5702 = vmatprep.subr.mxu0 0.0
        %5703 = vmatpush1.msra.mxu0 0.0
        %5704 = vmatprep.subr.mxu0 0.0
        %5705 = vmatpush1.msra.mxu0 0.0
        %5706 = vmatprep.subr.mxu0 0.0
        %5707 = vmatpush1.msra.mxu0 0.0
        %5708 = vmatprep.subr.mxu0 0.0
        %5709 = vmatpush1.msra.mxu0 0.0
        %5710 = vmatprep.subr.mxu0 0.0
        %5711 = vmatpush1.msra.mxu0 0.0
        %5712 = vmatprep.mubr.f32.mxu0 0.0
        %5713 = vmatmul.mubr.f32.gmra.mrb[0].mxu0 %v5643
        %v5714 = vpop.f32.mrb[0].mxu0
        %v5715 = vadd.f32 0.0, %v5714
        %v5716 = vpop.f32.mrb[0].mxu0
        %5717 = vmatprep.mubr.f32.mxu0 0.0
        %5718 = vmatmul.mubr.f32.gmra.mrb[0].mxu0 %v5646
        %v5719 = vpop.f32.mrb[0].mxu0
        %v5720 = vadd.f32 0.0, %v5719
        %v5721 = vpop.f32.mrb[0].mxu0
        %5722 = vdwg.mxu0
        %5723 = vrot.lane.b32.xlu0 %v303, 80
        %v5724 = vpop.permute.xlu0 %5723
        %5725 = vrot.lane.b32.xlu0 %v307, 80
        %v5726 = vpop.permute.xlu0 %5725
        %v5730 = vsel %vm676, %v5542, 0
        %v5733 = vsel %vm676, %v5544, 0
        %5735 = vmatprep.subr.mxu0 0.0
        %5736 = vmatpush1.msra.mxu0 %v5724
        %5737 = vmatprep.subr.mxu0 0.0
        %5738 = vmatpush1.msra.mxu0 %v5726
        %5739 = vmatprep.subr.mxu0 0.0
        %5740 = vmatpush1.msra.mxu0 0.0
        %5741 = vmatprep.subr.mxu0 0.0
        %5742 = vmatpush1.msra.mxu0 0.0
        %5743 = vmatprep.subr.mxu0 0.0
        %5744 = vmatpush1.msra.mxu0 0.0
        %5745 = vmatprep.subr.mxu0 0.0
        %5746 = vmatpush1.msra.mxu0 0.0
        %5747 = vmatprep.subr.mxu0 0.0
        %5748 = vmatpush1.msra.mxu0 0.0
        %5749 = vmatprep.subr.mxu0 0.0
        %5750 = vmatpush1.msra.mxu0 0.0
        %5751 = vmatprep.subr.mxu0 0.0
        %5752 = vmatpush1.msra.mxu0 0.0
        %5753 = vmatprep.subr.mxu0 0.0
        %5754 = vmatpush1.msra.mxu0 0.0
        %5755 = vmatprep.subr.mxu0 0.0
        %5756 = vmatpush1.msra.mxu0 0.0
        %5757 = vmatprep.subr.mxu0 0.0
        %5758 = vmatpush1.msra.mxu0 0.0
        %5759 = vmatprep.subr.mxu0 0.0
        %5760 = vmatpush1.msra.mxu0 0.0
        %5761 = vmatprep.subr.mxu0 0.0
        %5762 = vmatpush1.msra.mxu0 0.0
        %5763 = vmatprep.subr.mxu0 0.0
        %5764 = vmatpush1.msra.mxu0 0.0
        %5765 = vmatprep.subr.mxu0 0.0
        %5766 = vmatpush1.msra.mxu0 0.0
        %5767 = vmatprep.subr.mxu0 0.0
        %5768 = vmatpush1.msra.mxu0 0.0
        %5769 = vmatprep.subr.mxu0 0.0
        %5770 = vmatpush1.msra.mxu0 0.0
        %5771 = vmatprep.subr.mxu0 0.0
        %5772 = vmatpush1.msra.mxu0 0.0
        %5773 = vmatprep.subr.mxu0 0.0
        %5774 = vmatpush1.msra.mxu0 0.0
        %5775 = vmatprep.subr.mxu0 0.0
        %5776 = vmatpush1.msra.mxu0 0.0
        %5777 = vmatprep.subr.mxu0 0.0
        %5778 = vmatpush1.msra.mxu0 0.0
        %5779 = vmatprep.subr.mxu0 0.0
        %5780 = vmatpush1.msra.mxu0 0.0
        %5781 = vmatprep.subr.mxu0 0.0
        %5782 = vmatpush1.msra.mxu0 0.0
        %5783 = vmatprep.subr.mxu0 0.0
        %5784 = vmatpush1.msra.mxu0 0.0
        %5785 = vmatprep.subr.mxu0 0.0
        %5786 = vmatpush1.msra.mxu0 0.0
        %5787 = vmatprep.subr.mxu0 0.0
        %5788 = vmatpush1.msra.mxu0 0.0
        %5789 = vmatprep.subr.mxu0 0.0
        %5790 = vmatpush1.msra.mxu0 0.0
        %5791 = vmatprep.subr.mxu0 0.0
        %5792 = vmatpush1.msra.mxu0 0.0
        %5793 = vmatprep.subr.mxu0 0.0
        %5794 = vmatpush1.msra.mxu0 0.0
        %5795 = vmatprep.subr.mxu0 0.0
        %5796 = vmatpush1.msra.mxu0 0.0
        %5797 = vmatprep.subr.mxu0 0.0
        %5798 = vmatpush1.msra.mxu0 0.0
        %5799 = vmatprep.mubr.f32.mxu0 0.0
        %5800 = vmatmul.mubr.f32.gmra.mrb[0].mxu0 %v5730
        %v5801 = vpop.f32.mrb[0].mxu0
        %v5802 = vadd.f32 0.0, %v5801
        %v5803 = vpop.f32.mrb[0].mxu0
        %5804 = vmatprep.mubr.f32.mxu0 0.0
        %5805 = vmatmul.mubr.f32.gmra.mrb[0].mxu0 %v5733
        %v5806 = vpop.f32.mrb[0].mxu0
        %v5807 = vadd.f32 0.0, %v5806
        %v5808 = vpop.f32.mrb[0].mxu0
        %5809 = vdwg.mxu0
        %5810 = vrot.lane.b32.xlu0 %v313, 80
        %v5811 = vpop.permute.xlu0 %5810
        %5812 = vrot.lane.b32.xlu0 %v317, 80
        %v5813 = vpop.permute.xlu0 %5812
        %v5817 = vsel %vm676, %v5546, 0
        %v5820 = vsel %vm676, %v5548, 0
        %5822 = vmatprep.subr.mxu0 0.0
        %5823 = vmatpush1.msra.mxu0 %v5811
        %5824 = vmatprep.subr.mxu0 0.0
        %5825 = vmatpush1.msra.mxu0 %v5813
        %5826 = vmatprep.subr.mxu0 0.0
        %5827 = vmatpush1.msra.mxu0 0.0
        %5828 = vmatprep.subr.mxu0 0.0
        %5829 = vmatpush1.msra.mxu0 0.0
        %5830 = vmatprep.subr.mxu0 0.0
        %5831 = vmatpush1.msra.mxu0 0.0
        %5832 = vmatprep.subr.mxu0 0.0
        %5833 = vmatpush1.msra.mxu0 0.0
        %5834 = vmatprep.subr.mxu0 0.0
        %5835 = vmatpush1.msra.mxu0 0.0
        %5836 = vmatprep.subr.mxu0 0.0
        %5837 = vmatpush1.msra.mxu0 0.0
        %5838 = vmatprep.subr.mxu0 0.0
        %5839 = vmatpush1.msra.mxu0 0.0
        %5840 = vmatprep.subr.mxu0 0.0
        %5841 = vmatpush1.msra.mxu0 0.0
        %5842 = vmatprep.subr.mxu0 0.0
        %5843 = vmatpush1.msra.mxu0 0.0
        %5844 = vmatprep.subr.mxu0 0.0
        %5845 = vmatpush1.msra.mxu0 0.0
        %5846 = vmatprep.subr.mxu0 0.0
        %5847 = vmatpush1.msra.mxu0 0.0
        %5848 = vmatprep.subr.mxu0 0.0
        %5849 = vmatpush1.msra.mxu0 0.0
        %5850 = vmatprep.subr.mxu0 0.0
        %5851 = vmatpush1.msra.mxu0 0.0
        %5852 = vmatprep.subr.mxu0 0.0
        %5853 = vmatpush1.msra.mxu0 0.0
        %5854 = vmatprep.subr.mxu0 0.0
        %5855 = vmatpush1.msra.mxu0 0.0
        %5856 = vmatprep.subr.mxu0 0.0
        %5857 = vmatpush1.msra.mxu0 0.0
        %5858 = vmatprep.subr.mxu0 0.0
        %5859 = vmatpush1.msra.mxu0 0.0
        %5860 = vmatprep.subr.mxu0 0.0
        %5861 = vmatpush1.msra.mxu0 0.0
        %5862 = vmatprep.subr.mxu0 0.0
        %5863 = vmatpush1.msra.mxu0 0.0
        %5864 = vmatprep.subr.mxu0 0.0
        %5865 = vmatpush1.msra.mxu0 0.0
        %5866 = vmatprep.subr.mxu0 0.0
        %5867 = vmatpush1.msra.mxu0 0.0
        %5868 = vmatprep.subr.mxu0 0.0
        %5869 = vmatpush1.msra.mxu0 0.0
        %5870 = vmatprep.subr.mxu0 0.0
        %5871 = vmatpush1.msra.mxu0 0.0
        %5872 = vmatprep.subr.mxu0 0.0
        %5873 = vmatpush1.msra.mxu0 0.0
        %5874 = vmatprep.subr.mxu0 0.0
        %5875 = vmatpush1.msra.mxu0 0.0
        %5876 = vmatprep.subr.mxu0 0.0
        %5877 = vmatpush1.msra.mxu0 0.0
        %5878 = vmatprep.subr.mxu0 0.0
        %5879 = vmatpush1.msra.mxu0 0.0
        %5880 = vmatprep.subr.mxu0 0.0
        %5881 = vmatpush1.msra.mxu0 0.0
        %5882 = vmatprep.subr.mxu0 0.0
        %5883 = vmatpush1.msra.mxu0 0.0
        %5884 = vmatprep.subr.mxu0 0.0
        %5885 = vmatpush1.msra.mxu0 0.0
        %5886 = vmatprep.mubr.f32.mxu0 0.0
        %5887 = vmatmul.mubr.f32.gmra.mrb[0].mxu0 %v5817
        %v5888 = vpop.f32.mrb[0].mxu0
        %v5889 = vadd.f32 0.0, %v5888
        %v5890 = vpop.f32.mrb[0].mxu0
        %5891 = vmatprep.mubr.f32.mxu0 0.0
        %5892 = vmatmul.mubr.f32.gmra.mrb[0].mxu0 %v5820
        %v5893 = vpop.f32.mrb[0].mxu0
        %v5894 = vadd.f32 0.0, %v5893
        %v5895 = vpop.f32.mrb[0].mxu0
        %5896 = vdwg.mxu0
        %5897 = vrot.lane.b32.xlu0 %v281, 72
        %v5898 = vpop.permute.xlu0 %5897
        %5899 = vrot.lane.b32.xlu0 %v285, 72
        %v5900 = vpop.permute.xlu0 %5899
        %5901 = vrot.lane.b32.xlu0 %v281, 8
        %v5902 = vpop.permute.xlu0 %5901
        %5903 = vrot.lane.b32.xlu0 %v285, 8
        %v5904 = vpop.permute.xlu0 %5903
        %v5905 = vsel %vm325, %v5898, 0
        %v5907 = vsel %vm325, %v5900, 0
        %v5909 = vsel %vm325, %v5902, 0
        %v5911 = vsel %vm325, %v5904, 0
        %5913 = vmatprep.subr.mxu0 0.0
        %5914 = vmatpush1.xpose.msra.mxu0 %v5909
        %5915 = vmatprep.subr.mxu0 0.0
        %5916 = vmatpush1.xpose.msra.mxu0 %v5911
        %5917 = vmatprep.subr.mxu0 0.0
        %5918 = vmatpush1.xpose.msra.mxu0 0.0
        %5919 = vmatprep.subr.mxu0 0.0
        %5920 = vmatpush1.xpose.msra.mxu0 0.0
        %5921 = vmatprep.subr.mxu0 0.0
        %5922 = vmatpush1.xpose.msra.mxu0 0.0
        %5923 = vmatprep.subr.mxu0 0.0
        %5924 = vmatpush1.xpose.msra.mxu0 0.0
        %5925 = vmatprep.subr.mxu0 0.0
        %5926 = vmatpush1.xpose.msra.mxu0 0.0
        %5927 = vmatprep.subr.mxu0 0.0
        %5928 = vmatpush1.xpose.msra.mxu0 0.0
        %5929 = vmatprep.subr.mxu0 0.0
        %5930 = vmatpush1.xpose.msra.mxu0 0.0
        %5931 = vmatprep.subr.mxu0 0.0
        %5932 = vmatpush1.xpose.msra.mxu0 0.0
        %5933 = vmatprep.subr.mxu0 0.0
        %5934 = vmatpush1.xpose.msra.mxu0 0.0
        %5935 = vmatprep.subr.mxu0 0.0
        %5936 = vmatpush1.xpose.msra.mxu0 0.0
        %5937 = vmatprep.subr.mxu0 0.0
        %5938 = vmatpush1.xpose.msra.mxu0 0.0
        %5939 = vmatprep.subr.mxu0 0.0
        %5940 = vmatpush1.xpose.msra.mxu0 0.0
        %5941 = vmatprep.subr.mxu0 0.0
        %5942 = vmatpush1.xpose.msra.mxu0 0.0
        %5943 = vmatprep.subr.mxu0 0.0
        %5944 = vmatpush1.xpose.msra.mxu0 0.0
        %5945 = vmatprep.subr.mxu0 0.0
        %5946 = vmatpush1.xpose.msra.mxu0 0.0
        %5947 = vmatprep.subr.mxu0 0.0
        %5948 = vmatpush1.xpose.msra.mxu0 0.0
        %5949 = vmatprep.subr.mxu0 0.0
        %5950 = vmatpush1.xpose.msra.mxu0 0.0
        %5951 = vmatprep.subr.mxu0 0.0
        %5952 = vmatpush1.xpose.msra.mxu0 0.0
        %5953 = vmatprep.subr.mxu0 0.0
        %5954 = vmatpush1.xpose.msra.mxu0 0.0
        %5955 = vmatprep.subr.mxu0 0.0
        %5956 = vmatpush1.xpose.msra.mxu0 0.0
        %5957 = vmatprep.subr.mxu0 0.0
        %5958 = vmatpush1.xpose.msra.mxu0 0.0
        %5959 = vmatprep.subr.mxu0 0.0
        %5960 = vmatpush1.xpose.msra.mxu0 0.0
        %5961 = vmatprep.subr.mxu0 0.0
        %5962 = vmatpush1.xpose.msra.mxu0 0.0
        %5963 = vmatprep.subr.mxu0 0.0
        %5964 = vmatpush1.xpose.msra.mxu0 0.0
        %5965 = vmatprep.subr.mxu0 0.0
        %5966 = vmatpush1.xpose.msra.mxu0 0.0
        %5967 = vmatprep.subr.mxu0 0.0
        %5968 = vmatpush1.xpose.msra.mxu0 0.0
        %5969 = vmatprep.subr.mxu0 0.0
        %5970 = vmatpush1.xpose.msra.mxu0 0.0
        %5971 = vmatprep.subr.mxu0 0.0
        %5972 = vmatpush1.xpose.msra.mxu0 0.0
        %5973 = vmatprep.subr.mxu0 0.0
        %5974 = vmatpush1.xpose.msra.mxu0 0.0
        %5975 = vmatprep.subr.mxu0 0.0
        %5976 = vmatpush1.xpose.msra.mxu0 0.0
        %5977 = vmatprep.mubr.f32.mxu0 0.0
        %5978 = vmatmul.mubr.f32.gmra.mrb[0].mxu0 %v5905
        %v5979 = vpop.f32.mrb[0].mxu0
        %v5980 = vadd.f32 0.0, %v5979
        %v5981 = vpop.f32.mrb[0].mxu0
        %5982 = vmatprep.mubr.f32.mxu0 0.0
        %5983 = vmatmul.mubr.f32.gmra.mrb[0].mxu0 %v5907
        %v5984 = vpop.f32.mrb[0].mxu0
        %v5985 = vadd.f32 0.0, %v5984
        %v5986 = vpop.f32.mrb[0].mxu0
        %5987 = vdwg.mxu0
        %5988 = vrot.lane.b32.xlu0 %v291, 72
        %v5989 = vpop.permute.xlu0 %5988
        %5990 = vrot.lane.b32.xlu0 %v295, 72
        %v5991 = vpop.permute.xlu0 %5990
        %5992 = vrot.lane.b32.xlu0 %v291, 8
        %v5993 = vpop.permute.xlu0 %5992
        %5994 = vrot.lane.b32.xlu0 %v295, 8
        %v5995 = vpop.permute.xlu0 %5994
        %v5996 = vsel %vm325, %v5989, 0
        %v5998 = vsel %vm325, %v5991, 0
        %v6000 = vsel %vm325, %v5993, 0
        %v6002 = vsel %vm325, %v5995, 0
        %6004 = vmatprep.subr.mxu0 0.0
        %6005 = vmatpush1.xpose.msra.mxu0 %v6000
        %6006 = vmatprep.subr.mxu0 0.0
        %6007 = vmatpush1.xpose.msra.mxu0 %v6002
        %6008 = vmatprep.subr.mxu0 0.0
        %6009 = vmatpush1.xpose.msra.mxu0 0.0
        %6010 = vmatprep.subr.mxu0 0.0
        %6011 = vmatpush1.xpose.msra.mxu0 0.0
        %6012 = vmatprep.subr.mxu0 0.0
        %6013 = vmatpush1.xpose.msra.mxu0 0.0
        %6014 = vmatprep.subr.mxu0 0.0
        %6015 = vmatpush1.xpose.msra.mxu0 0.0
        %6016 = vmatprep.subr.mxu0 0.0
        %6017 = vmatpush1.xpose.msra.mxu0 0.0
        %6018 = vmatprep.subr.mxu0 0.0
        %6019 = vmatpush1.xpose.msra.mxu0 0.0
        %6020 = vmatprep.subr.mxu0 0.0
        %6021 = vmatpush1.xpose.msra.mxu0 0.0
        %6022 = vmatprep.subr.mxu0 0.0
        %6023 = vmatpush1.xpose.msra.mxu0 0.0
        %6024 = vmatprep.subr.mxu0 0.0
        %6025 = vmatpush1.xpose.msra.mxu0 0.0
        %6026 = vmatprep.subr.mxu0 0.0
        %6027 = vmatpush1.xpose.msra.mxu0 0.0
        %6028 = vmatprep.subr.mxu0 0.0
        %6029 = vmatpush1.xpose.msra.mxu0 0.0
        %6030 = vmatprep.subr.mxu0 0.0
        %6031 = vmatpush1.xpose.msra.mxu0 0.0
        %6032 = vmatprep.subr.mxu0 0.0
        %6033 = vmatpush1.xpose.msra.mxu0 0.0
        %6034 = vmatprep.subr.mxu0 0.0
        %6035 = vmatpush1.xpose.msra.mxu0 0.0
        %6036 = vmatprep.subr.mxu0 0.0
        %6037 = vmatpush1.xpose.msra.mxu0 0.0
        %6038 = vmatprep.subr.mxu0 0.0
        %6039 = vmatpush1.xpose.msra.mxu0 0.0
        %6040 = vmatprep.subr.mxu0 0.0
        %6041 = vmatpush1.xpose.msra.mxu0 0.0
        %6042 = vmatprep.subr.mxu0 0.0
        %6043 = vmatpush1.xpose.msra.mxu0 0.0
        %6044 = vmatprep.subr.mxu0 0.0
        %6045 = vmatpush1.xpose.msra.mxu0 0.0
        %6046 = vmatprep.subr.mxu0 0.0
        %6047 = vmatpush1.xpose.msra.mxu0 0.0
        %6048 = vmatprep.subr.mxu0 0.0
        %6049 = vmatpush1.xpose.msra.mxu0 0.0
        %6050 = vmatprep.subr.mxu0 0.0
        %6051 = vmatpush1.xpose.msra.mxu0 0.0
        %6052 = vmatprep.subr.mxu0 0.0
        %6053 = vmatpush1.xpose.msra.mxu0 0.0
        %6054 = vmatprep.subr.mxu0 0.0
        %6055 = vmatpush1.xpose.msra.mxu0 0.0
        %6056 = vmatprep.subr.mxu0 0.0
        %6057 = vmatpush1.xpose.msra.mxu0 0.0
        %6058 = vmatprep.subr.mxu0 0.0
        %6059 = vmatpush1.xpose.msra.mxu0 0.0
        %6060 = vmatprep.subr.mxu0 0.0
        %6061 = vmatpush1.xpose.msra.mxu0 0.0
        %6062 = vmatprep.subr.mxu0 0.0
        %6063 = vmatpush1.xpose.msra.mxu0 0.0
        %6064 = vmatprep.subr.mxu0 0.0
        %6065 = vmatpush1.xpose.msra.mxu0 0.0
        %6066 = vmatprep.subr.mxu0 0.0
        %6067 = vmatpush1.xpose.msra.mxu0 0.0
        %6068 = vmatprep.mubr.f32.mxu0 0.0
        %6069 = vmatmul.mubr.f32.gmra.mrb[0].mxu0 %v5996
        %v6070 = vpop.f32.mrb[0].mxu0
        %v6071 = vadd.f32 0.0, %v6070
        %v6072 = vpop.f32.mrb[0].mxu0
        %6073 = vmatprep.mubr.f32.mxu0 0.0
        %6074 = vmatmul.mubr.f32.gmra.mrb[0].mxu0 %v5998
        %v6075 = vpop.f32.mrb[0].mxu0
        %v6076 = vadd.f32 0.0, %v6075
        %v6077 = vpop.f32.mrb[0].mxu0
        %6078 = vdwg.mxu0
        %6079 = vrot.lane.b32.xlu0 %v301, 72
        %v6080 = vpop.permute.xlu0 %6079
        %6081 = vrot.lane.b32.xlu0 %v305, 72
        %v6082 = vpop.permute.xlu0 %6081
        %6083 = vrot.lane.b32.xlu0 %v301, 8
        %v6084 = vpop.permute.xlu0 %6083
        %6085 = vrot.lane.b32.xlu0 %v305, 8
        %v6086 = vpop.permute.xlu0 %6085
        %v6087 = vsel %vm325, %v6080, 0
        %v6089 = vsel %vm325, %v6082, 0
        %v6091 = vsel %vm325, %v6084, 0
        %v6093 = vsel %vm325, %v6086, 0
        %6095 = vmatprep.subr.mxu0 0.0
        %6096 = vmatpush1.xpose.msra.mxu0 %v6091
        %6097 = vmatprep.subr.mxu0 0.0
        %6098 = vmatpush1.xpose.msra.mxu0 %v6093
        %6099 = vmatprep.subr.mxu0 0.0
        %6100 = vmatpush1.xpose.msra.mxu0 0.0
        %6101 = vmatprep.subr.mxu0 0.0
        %6102 = vmatpush1.xpose.msra.mxu0 0.0
        %6103 = vmatprep.subr.mxu0 0.0
        %6104 = vmatpush1.xpose.msra.mxu0 0.0
        %6105 = vmatprep.subr.mxu0 0.0
        %6106 = vmatpush1.xpose.msra.mxu0 0.0
        %6107 = vmatprep.subr.mxu0 0.0
        %6108 = vmatpush1.xpose.msra.mxu0 0.0
        %6109 = vmatprep.subr.mxu0 0.0
        %6110 = vmatpush1.xpose.msra.mxu0 0.0
        %6111 = vmatprep.subr.mxu0 0.0
        %6112 = vmatpush1.xpose.msra.mxu0 0.0
        %6113 = vmatprep.subr.mxu0 0.0
        %6114 = vmatpush1.xpose.msra.mxu0 0.0
        %6115 = vmatprep.subr.mxu0 0.0
        %6116 = vmatpush1.xpose.msra.mxu0 0.0
        %6117 = vmatprep.subr.mxu0 0.0
        %6118 = vmatpush1.xpose.msra.mxu0 0.0
        %6119 = vmatprep.subr.mxu0 0.0
        %6120 = vmatpush1.xpose.msra.mxu0 0.0
        %6121 = vmatprep.subr.mxu0 0.0
        %6122 = vmatpush1.xpose.msra.mxu0 0.0
        %6123 = vmatprep.subr.mxu0 0.0
        %6124 = vmatpush1.xpose.msra.mxu0 0.0
        %6125 = vmatprep.subr.mxu0 0.0
        %6126 = vmatpush1.xpose.msra.mxu0 0.0
        %6127 = vmatprep.subr.mxu0 0.0
        %6128 = vmatpush1.xpose.msra.mxu0 0.0
        %6129 = vmatprep.subr.mxu0 0.0
        %6130 = vmatpush1.xpose.msra.mxu0 0.0
        %6131 = vmatprep.subr.mxu0 0.0
        %6132 = vmatpush1.xpose.msra.mxu0 0.0
        %6133 = vmatprep.subr.mxu0 0.0
        %6134 = vmatpush1.xpose.msra.mxu0 0.0
        %6135 = vmatprep.subr.mxu0 0.0
        %6136 = vmatpush1.xpose.msra.mxu0 0.0
        %6137 = vmatprep.subr.mxu0 0.0
        %6138 = vmatpush1.xpose.msra.mxu0 0.0
        %6139 = vmatprep.subr.mxu0 0.0
        %6140 = vmatpush1.xpose.msra.mxu0 0.0
        %6141 = vmatprep.subr.mxu0 0.0
        %6142 = vmatpush1.xpose.msra.mxu0 0.0
        %6143 = vmatprep.subr.mxu0 0.0
        %6144 = vmatpush1.xpose.msra.mxu0 0.0
        %6145 = vmatprep.subr.mxu0 0.0
        %6146 = vmatpush1.xpose.msra.mxu0 0.0
        %6147 = vmatprep.subr.mxu0 0.0
        %6148 = vmatpush1.xpose.msra.mxu0 0.0
        %6149 = vmatprep.subr.mxu0 0.0
        %6150 = vmatpush1.xpose.msra.mxu0 0.0
        %6151 = vmatprep.subr.mxu0 0.0
        %6152 = vmatpush1.xpose.msra.mxu0 0.0
        %6153 = vmatprep.subr.mxu0 0.0
        %6154 = vmatpush1.xpose.msra.mxu0 0.0
        %6155 = vmatprep.subr.mxu0 0.0
        %6156 = vmatpush1.xpose.msra.mxu0 0.0
        %6157 = vmatprep.subr.mxu0 0.0
        %6158 = vmatpush1.xpose.msra.mxu0 0.0
        %6159 = vmatprep.mubr.f32.mxu0 0.0
        %6160 = vmatmul.mubr.f32.gmra.mrb[0].mxu0 %v6087
        %v6161 = vpop.f32.mrb[0].mxu0
        %v6162 = vadd.f32 0.0, %v6161
        %v6163 = vpop.f32.mrb[0].mxu0
        %6164 = vmatprep.mubr.f32.mxu0 0.0
        %6165 = vmatmul.mubr.f32.gmra.mrb[0].mxu0 %v6089
        %v6166 = vpop.f32.mrb[0].mxu0
        %v6167 = vadd.f32 0.0, %v6166
        %v6168 = vpop.f32.mrb[0].mxu0
        %6169 = vdwg.mxu0
        %6170 = vrot.lane.b32.xlu0 %v311, 72
        %v6171 = vpop.permute.xlu0 %6170
        %6172 = vrot.lane.b32.xlu0 %v315, 72
        %v6173 = vpop.permute.xlu0 %6172
        %6174 = vrot.lane.b32.xlu0 %v311, 8
        %v6175 = vpop.permute.xlu0 %6174
        %6176 = vrot.lane.b32.xlu0 %v315, 8
        %v6177 = vpop.permute.xlu0 %6176
        %v6178 = vsel %vm325, %v6171, 0
        %v6180 = vsel %vm325, %v6173, 0
        %v6182 = vsel %vm325, %v6175, 0
        %v6184 = vsel %vm325, %v6177, 0
        %6186 = vmatprep.subr.mxu0 0.0
        %6187 = vmatpush1.xpose.msra.mxu0 %v6182
        %6188 = vmatprep.subr.mxu0 0.0
        %6189 = vmatpush1.xpose.msra.mxu0 %v6184
        %6190 = vmatprep.subr.mxu0 0.0
        %6191 = vmatpush1.xpose.msra.mxu0 0.0
        %6192 = vmatprep.subr.mxu0 0.0
        %6193 = vmatpush1.xpose.msra.mxu0 0.0
        %6194 = vmatprep.subr.mxu0 0.0
        %6195 = vmatpush1.xpose.msra.mxu0 0.0
        %6196 = vmatprep.subr.mxu0 0.0
        %6197 = vmatpush1.xpose.msra.mxu0 0.0
        %6198 = vmatprep.subr.mxu0 0.0
        %6199 = vmatpush1.xpose.msra.mxu0 0.0
        %6200 = vmatprep.subr.mxu0 0.0
        %6201 = vmatpush1.xpose.msra.mxu0 0.0
        %6202 = vmatprep.subr.mxu0 0.0
        %6203 = vmatpush1.xpose.msra.mxu0 0.0
        %6204 = vmatprep.subr.mxu0 0.0
        %6205 = vmatpush1.xpose.msra.mxu0 0.0
        %6206 = vmatprep.subr.mxu0 0.0
        %6207 = vmatpush1.xpose.msra.mxu0 0.0
        %6208 = vmatprep.subr.mxu0 0.0
        %6209 = vmatpush1.xpose.msra.mxu0 0.0
        %6210 = vmatprep.subr.mxu0 0.0
        %6211 = vmatpush1.xpose.msra.mxu0 0.0
        %6212 = vmatprep.subr.mxu0 0.0
        %6213 = vmatpush1.xpose.msra.mxu0 0.0
        %6214 = vmatprep.subr.mxu0 0.0
        %6215 = vmatpush1.xpose.msra.mxu0 0.0
        %6216 = vmatprep.subr.mxu0 0.0
        %6217 = vmatpush1.xpose.msra.mxu0 0.0
        %6218 = vmatprep.subr.mxu0 0.0
        %6219 = vmatpush1.xpose.msra.mxu0 0.0
        %6220 = vmatprep.subr.mxu0 0.0
        %6221 = vmatpush1.xpose.msra.mxu0 0.0
        %6222 = vmatprep.subr.mxu0 0.0
        %6223 = vmatpush1.xpose.msra.mxu0 0.0
        %6224 = vmatprep.subr.mxu0 0.0
        %6225 = vmatpush1.xpose.msra.mxu0 0.0
        %6226 = vmatprep.subr.mxu0 0.0
        %6227 = vmatpush1.xpose.msra.mxu0 0.0
        %6228 = vmatprep.subr.mxu0 0.0
        %6229 = vmatpush1.xpose.msra.mxu0 0.0
        %6230 = vmatprep.subr.mxu0 0.0
        %6231 = vmatpush1.xpose.msra.mxu0 0.0
        %6232 = vmatprep.subr.mxu0 0.0
        %6233 = vmatpush1.xpose.msra.mxu0 0.0
        %6234 = vmatprep.subr.mxu0 0.0
        %6235 = vmatpush1.xpose.msra.mxu0 0.0
        %6236 = vmatprep.subr.mxu0 0.0
        %6237 = vmatpush1.xpose.msra.mxu0 0.0
        %6238 = vmatprep.subr.mxu0 0.0
        %6239 = vmatpush1.xpose.msra.mxu0 0.0
        %6240 = vmatprep.subr.mxu0 0.0
        %6241 = vmatpush1.xpose.msra.mxu0 0.0
        %6242 = vmatprep.subr.mxu0 0.0
        %6243 = vmatpush1.xpose.msra.mxu0 0.0
        %6244 = vmatprep.subr.mxu0 0.0
        %6245 = vmatpush1.xpose.msra.mxu0 0.0
        %6246 = vmatprep.subr.mxu0 0.0
        %6247 = vmatpush1.xpose.msra.mxu0 0.0
        %6248 = vmatprep.subr.mxu0 0.0
        %6249 = vmatpush1.xpose.msra.mxu0 0.0
        %6250 = vmatprep.mubr.f32.mxu0 0.0
        %6251 = vmatmul.mubr.f32.gmra.mrb[0].mxu0 %v6178
        %v6252 = vpop.f32.mrb[0].mxu0
        %v6253 = vadd.f32 0.0, %v6252
        %v6254 = vpop.f32.mrb[0].mxu0
        %6255 = vmatprep.mubr.f32.mxu0 0.0
        %6256 = vmatmul.mubr.f32.gmra.mrb[0].mxu0 %v6180
        %v6257 = vpop.f32.mrb[0].mxu0
        %v6258 = vadd.f32 0.0, %v6257
        %v6259 = vpop.f32.mrb[0].mxu0
        %6260 = vdwg.mxu0
        %v6261 = vsel %vm676, %v5980, -inf
        %6262 = vmax.xlane.f32.xlu0 %v6261
        %v6263 = vpop.xlane.xlu0 %6262
        %v6264 = vsel %vm676, %v5985, -inf
        %6265 = vmax.xlane.f32.xlu0 %v6264
        %v6266 = vpop.xlane.xlu0 %6265
        %v6267 = vsel %vm676, %v6071, -inf
        %6268 = vmax.xlane.f32.xlu0 %v6267
        %v6269 = vpop.xlane.xlu0 %6268
        %v6270 = vsel %vm676, %v6076, -inf
        %6271 = vmax.xlane.f32.xlu0 %v6270
        %v6272 = vpop.xlane.xlu0 %6271
        %v6273 = vsel %vm676, %v6162, -inf
        %6274 = vmax.xlane.f32.xlu0 %v6273
        %v6275 = vpop.xlane.xlu0 %6274
        %v6276 = vsel %vm676, %v6167, -inf
        %6277 = vmax.xlane.f32.xlu0 %v6276
        %v6278 = vpop.xlane.xlu0 %6277
        %v6279 = vsel %vm676, %v6253, -inf
        %6280 = vmax.xlane.f32.xlu0 %v6279
        %v6281 = vpop.xlane.xlu0 %6280
        %v6282 = vsel %vm676, %v6258, -inf
        %6283 = vmax.xlane.f32.xlu0 %v6282
        %v6284 = vpop.xlane.xlu0 %6283
        %v6285 = vsub.f32 %v5980, %v6263
        %v6286 = vsub.f32 %v5985, %v6266
        %v6287 = vsub.f32 %v6071, %v6269
        %v6288 = vsub.f32 %v6076, %v6272
        %v6289 = vsub.f32 %v6162, %v6275
        %v6290 = vsub.f32 %v6167, %v6278
        %v6291 = vsub.f32 %v6253, %v6281
        %v6292 = vsub.f32 %v6258, %v6284
        %v6293 = vmul.f32 %v6285, 1.442695
        %v6294 = vpow.pop %v6293
        %v6295 = vmul.f32 %v6286, 1.442695
        %v6296 = vpow.pop %v6295
        %v6297 = vmul.f32 %v6287, 1.442695
        %v6298 = vpow.pop %v6297
        %v6299 = vmul.f32 %v6288, 1.442695
        %v6300 = vpow.pop %v6299
        %v6301 = vmul.f32 %v6289, 1.442695
        %v6302 = vpow.pop %v6301
        %v6303 = vmul.f32 %v6290, 1.442695
        %v6304 = vpow.pop %v6303
        %v6305 = vmul.f32 %v6291, 1.442695
        %v6306 = vpow.pop %v6305
        %v6307 = vmul.f32 %v6292, 1.442695
        %v6308 = vpow.pop %v6307
        %v6309 = vsel %vm676, %v6294, 0.0
        %6310 = vadd.xlane.f32.xlu0 %v6309
        %v6311 = vpop.xlane.xlu0 %6310
        %v6312 = vsel %vm676, %v6296, 0.0
        %6313 = vadd.xlane.f32.xlu0 %v6312
        %v6314 = vpop.xlane.xlu0 %6313
        %v6315 = vsel %vm676, %v6298, 0.0
        %6316 = vadd.xlane.f32.xlu0 %v6315
        %v6317 = vpop.xlane.xlu0 %6316
        %v6318 = vsel %vm676, %v6300, 0.0
        %6319 = vadd.xlane.f32.xlu0 %v6318
        %v6320 = vpop.xlane.xlu0 %6319
        %v6321 = vsel %vm676, %v6302, 0.0
        %6322 = vadd.xlane.f32.xlu0 %v6321
        %v6323 = vpop.xlane.xlu0 %6322
        %v6324 = vsel %vm676, %v6304, 0.0
        %6325 = vadd.xlane.f32.xlu0 %v6324
        %v6326 = vpop.xlane.xlu0 %6325
        %v6327 = vsel %vm676, %v6306, 0.0
        %6328 = vadd.xlane.f32.xlu0 %v6327
        %v6329 = vpop.xlane.xlu0 %6328
        %v6330 = vsel %vm676, %v6308, 0.0
        %6331 = vadd.xlane.f32.xlu0 %v6330
        %v6332 = vpop.xlane.xlu0 %6331
        %v6333 = vrcp.pop %v6311
        %v6334 = vmul.f32 %v6294, %v6333
        %v6335 = vrcp.pop %v6314
        %v6336 = vmul.f32 %v6296, %v6335
        %v6337 = vrcp.pop %v6317
        %v6338 = vmul.f32 %v6298, %v6337
        %v6339 = vrcp.pop %v6320
        %v6340 = vmul.f32 %v6300, %v6339
        %v6341 = vrcp.pop %v6323
        %v6342 = vmul.f32 %v6302, %v6341
        %v6343 = vrcp.pop %v6326
        %v6344 = vmul.f32 %v6304, %v6343
        %v6345 = vrcp.pop %v6329
        %v6346 = vmul.f32 %v6306, %v6345
        %v6347 = vrcp.pop %v6332
        %v6348 = vmul.f32 %v6308, %v6347
        %6349 = vrot.lane.b32.xlu0 %v283, 72
        %v6350 = vpop.permute.xlu0 %6349
        %6351 = vrot.lane.b32.xlu0 %v287, 72
        %v6352 = vpop.permute.xlu0 %6351
        %v6356 = vsel %vm676, %v6334, 0
        %v6359 = vsel %vm676, %v6336, 0
        %6361 = vmatprep.subr.mxu0 0.0
        %6362 = vmatpush1.msra.mxu0 %v6350
        %6363 = vmatprep.subr.mxu0 0.0
        %6364 = vmatpush1.msra.mxu0 %v6352
        %6365 = vmatprep.subr.mxu0 0.0
        %6366 = vmatpush1.msra.mxu0 0.0
        %6367 = vmatprep.subr.mxu0 0.0
        %6368 = vmatpush1.msra.mxu0 0.0
        %6369 = vmatprep.subr.mxu0 0.0
        %6370 = vmatpush1.msra.mxu0 0.0
        %6371 = vmatprep.subr.mxu0 0.0
        %6372 = vmatpush1.msra.mxu0 0.0
        %6373 = vmatprep.subr.mxu0 0.0
        %6374 = vmatpush1.msra.mxu0 0.0
        %6375 = vmatprep.subr.mxu0 0.0
        %6376 = vmatpush1.msra.mxu0 0.0
        %6377 = vmatprep.subr.mxu0 0.0
        %6378 = vmatpush1.msra.mxu0 0.0
        %6379 = vmatprep.subr.mxu0 0.0
        %6380 = vmatpush1.msra.mxu0 0.0
        %6381 = vmatprep.subr.mxu0 0.0
        %6382 = vmatpush1.msra.mxu0 0.0
        %6383 = vmatprep.subr.mxu0 0.0
        %6384 = vmatpush1.msra.mxu0 0.0
        %6385 = vmatprep.subr.mxu0 0.0
        %6386 = vmatpush1.msra.mxu0 0.0
        %6387 = vmatprep.subr.mxu0 0.0
        %6388 = vmatpush1.msra.mxu0 0.0
        %6389 = vmatprep.subr.mxu0 0.0
        %6390 = vmatpush1.msra.mxu0 0.0
        %6391 = vmatprep.subr.mxu0 0.0
        %6392 = vmatpush1.msra.mxu0 0.0
        %6393 = vmatprep.subr.mxu0 0.0
        %6394 = vmatpush1.msra.mxu0 0.0
        %6395 = vmatprep.subr.mxu0 0.0
        %6396 = vmatpush1.msra.mxu0 0.0
        %6397 = vmatprep.subr.mxu0 0.0
        %6398 = vmatpush1.msra.mxu0 0.0
        %6399 = vmatprep.subr.mxu0 0.0
        %6400 = vmatpush1.msra.mxu0 0.0
        %6401 = vmatprep.subr.mxu0 0.0
        %6402 = vmatpush1.msra.mxu0 0.0
        %6403 = vmatprep.subr.mxu0 0.0
        %6404 = vmatpush1.msra.mxu0 0.0
        %6405 = vmatprep.subr.mxu0 0.0
        %6406 = vmatpush1.msra.mxu0 0.0
        %6407 = vmatprep.subr.mxu0 0.0
        %6408 = vmatpush1.msra.mxu0 0.0
        %6409 = vmatprep.subr.mxu0 0.0
        %6410 = vmatpush1.msra.mxu0 0.0
        %6411 = vmatprep.subr.mxu0 0.0
        %6412 = vmatpush1.msra.mxu0 0.0
        %6413 = vmatprep.subr.mxu0 0.0
        %6414 = vmatpush1.msra.mxu0 0.0
        %6415 = vmatprep.subr.mxu0 0.0
        %6416 = vmatpush1.msra.mxu0 0.0
        %6417 = vmatprep.subr.mxu0 0.0
        %6418 = vmatpush1.msra.mxu0 0.0
        %6419 = vmatprep.subr.mxu0 0.0
        %6420 = vmatpush1.msra.mxu0 0.0
        %6421 = vmatprep.subr.mxu0 0.0
        %6422 = vmatpush1.msra.mxu0 0.0
        %6423 = vmatprep.subr.mxu0 0.0
        %6424 = vmatpush1.msra.mxu0 0.0
        %6425 = vmatprep.mubr.f32.mxu0 0.0
        %6426 = vmatmul.mubr.f32.gmra.mrb[0].mxu0 %v6356
        %v6427 = vpop.f32.mrb[0].mxu0
        %v6428 = vadd.f32 0.0, %v6427
        %v6429 = vpop.f32.mrb[0].mxu0
        %6430 = vmatprep.mubr.f32.mxu0 0.0
        %6431 = vmatmul.mubr.f32.gmra.mrb[0].mxu0 %v6359
        %v6432 = vpop.f32.mrb[0].mxu0
        %v6433 = vadd.f32 0.0, %v6432
        %v6434 = vpop.f32.mrb[0].mxu0
        %6435 = vdwg.mxu0
        %6436 = vrot.lane.b32.xlu0 %v293, 72
        %v6437 = vpop.permute.xlu0 %6436
        %6438 = vrot.lane.b32.xlu0 %v297, 72
        %v6439 = vpop.permute.xlu0 %6438
        %v6443 = vsel %vm676, %v6338, 0
        %v6446 = vsel %vm676, %v6340, 0
        %6448 = vmatprep.subr.mxu0 0.0
        %6449 = vmatpush1.msra.mxu0 %v6437
        %6450 = vmatprep.subr.mxu0 0.0
        %6451 = vmatpush1.msra.mxu0 %v6439
        %6452 = vmatprep.subr.mxu0 0.0
        %6453 = vmatpush1.msra.mxu0 0.0
        %6454 = vmatprep.subr.mxu0 0.0
        %6455 = vmatpush1.msra.mxu0 0.0
        %6456 = vmatprep.subr.mxu0 0.0
        %6457 = vmatpush1.msra.mxu0 0.0
        %6458 = vmatprep.subr.mxu0 0.0
        %6459 = vmatpush1.msra.mxu0 0.0
        %6460 = vmatprep.subr.mxu0 0.0
        %6461 = vmatpush1.msra.mxu0 0.0
        %6462 = vmatprep.subr.mxu0 0.0
        %6463 = vmatpush1.msra.mxu0 0.0
        %6464 = vmatprep.subr.mxu0 0.0
        %6465 = vmatpush1.msra.mxu0 0.0
        %6466 = vmatprep.subr.mxu0 0.0
        %6467 = vmatpush1.msra.mxu0 0.0
        %6468 = vmatprep.subr.mxu0 0.0
        %6469 = vmatpush1.msra.mxu0 0.0
        %6470 = vmatprep.subr.mxu0 0.0
        %6471 = vmatpush1.msra.mxu0 0.0
        %6472 = vmatprep.subr.mxu0 0.0
        %6473 = vmatpush1.msra.mxu0 0.0
        %6474 = vmatprep.subr.mxu0 0.0
        %6475 = vmatpush1.msra.mxu0 0.0
        %6476 = vmatprep.subr.mxu0 0.0
        %6477 = vmatpush1.msra.mxu0 0.0
        %6478 = vmatprep.subr.mxu0 0.0
        %6479 = vmatpush1.msra.mxu0 0.0
        %6480 = vmatprep.subr.mxu0 0.0
        %6481 = vmatpush1.msra.mxu0 0.0
        %6482 = vmatprep.subr.mxu0 0.0
        %6483 = vmatpush1.msra.mxu0 0.0
        %6484 = vmatprep.subr.mxu0 0.0
        %6485 = vmatpush1.msra.mxu0 0.0
        %6486 = vmatprep.subr.mxu0 0.0
        %6487 = vmatpush1.msra.mxu0 0.0
        %6488 = vmatprep.subr.mxu0 0.0
        %6489 = vmatpush1.msra.mxu0 0.0
        %6490 = vmatprep.subr.mxu0 0.0
        %6491 = vmatpush1.msra.mxu0 0.0
        %6492 = vmatprep.subr.mxu0 0.0
        %6493 = vmatpush1.msra.mxu0 0.0
        %6494 = vmatprep.subr.mxu0 0.0
        %6495 = vmatpush1.msra.mxu0 0.0
        %6496 = vmatprep.subr.mxu0 0.0
        %6497 = vmatpush1.msra.mxu0 0.0
        %6498 = vmatprep.subr.mxu0 0.0
        %6499 = vmatpush1.msra.mxu0 0.0
        %6500 = vmatprep.subr.mxu0 0.0
        %6501 = vmatpush1.msra.mxu0 0.0
        %6502 = vmatprep.subr.mxu0 0.0
        %6503 = vmatpush1.msra.mxu0 0.0
        %6504 = vmatprep.subr.mxu0 0.0
        %6505 = vmatpush1.msra.mxu0 0.0
        %6506 = vmatprep.subr.mxu0 0.0
        %6507 = vmatpush1.msra.mxu0 0.0
        %6508 = vmatprep.subr.mxu0 0.0
        %6509 = vmatpush1.msra.mxu0 0.0
        %6510 = vmatprep.subr.mxu0 0.0
        %6511 = vmatpush1.msra.mxu0 0.0
        %6512 = vmatprep.mubr.f32.mxu0 0.0
        %6513 = vmatmul.mubr.f32.gmra.mrb[0].mxu0 %v6443
        %v6514 = vpop.f32.mrb[0].mxu0
        %v6515 = vadd.f32 0.0, %v6514
        %v6516 = vpop.f32.mrb[0].mxu0
        %6517 = vmatprep.mubr.f32.mxu0 0.0
        %6518 = vmatmul.mubr.f32.gmra.mrb[0].mxu0 %v6446
        %v6519 = vpop.f32.mrb[0].mxu0
        %v6520 = vadd.f32 0.0, %v6519
        %v6521 = vpop.f32.mrb[0].mxu0
        %6522 = vdwg.mxu0
        %6523 = vrot.lane.b32.xlu0 %v303, 72
        %v6524 = vpop.permute.xlu0 %6523
        %6525 = vrot.lane.b32.xlu0 %v307, 72
        %v6526 = vpop.permute.xlu0 %6525
        %v6530 = vsel %vm676, %v6342, 0
        %v6533 = vsel %vm676, %v6344, 0
        %6535 = vmatprep.subr.mxu0 0.0
        %6536 = vmatpush1.msra.mxu0 %v6524
        %6537 = vmatprep.subr.mxu0 0.0
        %6538 = vmatpush1.msra.mxu0 %v6526
        %6539 = vmatprep.subr.mxu0 0.0
        %6540 = vmatpush1.msra.mxu0 0.0
        %6541 = vmatprep.subr.mxu0 0.0
        %6542 = vmatpush1.msra.mxu0 0.0
        %6543 = vmatprep.subr.mxu0 0.0
        %6544 = vmatpush1.msra.mxu0 0.0
        %6545 = vmatprep.subr.mxu0 0.0
        %6546 = vmatpush1.msra.mxu0 0.0
        %6547 = vmatprep.subr.mxu0 0.0
        %6548 = vmatpush1.msra.mxu0 0.0
        %6549 = vmatprep.subr.mxu0 0.0
        %6550 = vmatpush1.msra.mxu0 0.0
        %6551 = vmatprep.subr.mxu0 0.0
        %6552 = vmatpush1.msra.mxu0 0.0
        %6553 = vmatprep.subr.mxu0 0.0
        %6554 = vmatpush1.msra.mxu0 0.0
        %6555 = vmatprep.subr.mxu0 0.0
        %6556 = vmatpush1.msra.mxu0 0.0
        %6557 = vmatprep.subr.mxu0 0.0
        %6558 = vmatpush1.msra.mxu0 0.0
        %6559 = vmatprep.subr.mxu0 0.0
        %6560 = vmatpush1.msra.mxu0 0.0
        %6561 = vmatprep.subr.mxu0 0.0
        %6562 = vmatpush1.msra.mxu0 0.0
        %6563 = vmatprep.subr.mxu0 0.0
        %6564 = vmatpush1.msra.mxu0 0.0
        %6565 = vmatprep.subr.mxu0 0.0
        %6566 = vmatpush1.msra.mxu0 0.0
        %6567 = vmatprep.subr.mxu0 0.0
        %6568 = vmatpush1.msra.mxu0 0.0
        %6569 = vmatprep.subr.mxu0 0.0
        %6570 = vmatpush1.msra.mxu0 0.0
        %6571 = vmatprep.subr.mxu0 0.0
        %6572 = vmatpush1.msra.mxu0 0.0
        %6573 = vmatprep.subr.mxu0 0.0
        %6574 = vmatpush1.msra.mxu0 0.0
        %6575 = vmatprep.subr.mxu0 0.0
        %6576 = vmatpush1.msra.mxu0 0.0
        %6577 = vmatprep.subr.mxu0 0.0
        %6578 = vmatpush1.msra.mxu0 0.0
        %6579 = vmatprep.subr.mxu0 0.0
        %6580 = vmatpush1.msra.mxu0 0.0
        %6581 = vmatprep.subr.mxu0 0.0
        %6582 = vmatpush1.msra.mxu0 0.0
        %6583 = vmatprep.subr.mxu0 0.0
        %6584 = vmatpush1.msra.mxu0 0.0
        %6585 = vmatprep.subr.mxu0 0.0
        %6586 = vmatpush1.msra.mxu0 0.0
        %6587 = vmatprep.subr.mxu0 0.0
        %6588 = vmatpush1.msra.mxu0 0.0
        %6589 = vmatprep.subr.mxu0 0.0
        %6590 = vmatpush1.msra.mxu0 0.0
        %6591 = vmatprep.subr.mxu0 0.0
        %6592 = vmatpush1.msra.mxu0 0.0
        %6593 = vmatprep.subr.mxu0 0.0
        %6594 = vmatpush1.msra.mxu0 0.0
        %6595 = vmatprep.subr.mxu0 0.0
        %6596 = vmatpush1.msra.mxu0 0.0
        %6597 = vmatprep.subr.mxu0 0.0
        %6598 = vmatpush1.msra.mxu0 0.0
        %6599 = vmatprep.mubr.f32.mxu0 0.0
        %6600 = vmatmul.mubr.f32.gmra.mrb[0].mxu0 %v6530
        %v6601 = vpop.f32.mrb[0].mxu0
        %v6602 = vadd.f32 0.0, %v6601
        %v6603 = vpop.f32.mrb[0].mxu0
        %6604 = vmatprep.mubr.f32.mxu0 0.0
        %6605 = vmatmul.mubr.f32.gmra.mrb[0].mxu0 %v6533
        %v6606 = vpop.f32.mrb[0].mxu0
        %v6607 = vadd.f32 0.0, %v6606
        %v6608 = vpop.f32.mrb[0].mxu0
        %6609 = vdwg.mxu0
        %6610 = vrot.lane.b32.xlu0 %v313, 72
        %v6611 = vpop.permute.xlu0 %6610
        %6612 = vrot.lane.b32.xlu0 %v317, 72
        %v6613 = vpop.permute.xlu0 %6612
        %v6617 = vsel %vm676, %v6346, 0
        %v6620 = vsel %vm676, %v6348, 0
        %6622 = vmatprep.subr.mxu0 0.0
        %6623 = vmatpush1.msra.mxu0 %v6611
        %6624 = vmatprep.subr.mxu0 0.0
        %6625 = vmatpush1.msra.mxu0 %v6613
        %6626 = vmatprep.subr.mxu0 0.0
        %6627 = vmatpush1.msra.mxu0 0.0
        %6628 = vmatprep.subr.mxu0 0.0
        %6629 = vmatpush1.msra.mxu0 0.0
        %6630 = vmatprep.subr.mxu0 0.0
        %6631 = vmatpush1.msra.mxu0 0.0
        %6632 = vmatprep.subr.mxu0 0.0
        %6633 = vmatpush1.msra.mxu0 0.0
        %6634 = vmatprep.subr.mxu0 0.0
        %6635 = vmatpush1.msra.mxu0 0.0
        %6636 = vmatprep.subr.mxu0 0.0
        %6637 = vmatpush1.msra.mxu0 0.0
        %6638 = vmatprep.subr.mxu0 0.0
        %6639 = vmatpush1.msra.mxu0 0.0
        %6640 = vmatprep.subr.mxu0 0.0
        %6641 = vmatpush1.msra.mxu0 0.0
        %6642 = vmatprep.subr.mxu0 0.0
        %6643 = vmatpush1.msra.mxu0 0.0
        %6644 = vmatprep.subr.mxu0 0.0
        %6645 = vmatpush1.msra.mxu0 0.0
        %6646 = vmatprep.subr.mxu0 0.0
        %6647 = vmatpush1.msra.mxu0 0.0
        %6648 = vmatprep.subr.mxu0 0.0
        %6649 = vmatpush1.msra.mxu0 0.0
        %6650 = vmatprep.subr.mxu0 0.0
        %6651 = vmatpush1.msra.mxu0 0.0
        %6652 = vmatprep.subr.mxu0 0.0
        %6653 = vmatpush1.msra.mxu0 0.0
        %6654 = vmatprep.subr.mxu0 0.0
        %6655 = vmatpush1.msra.mxu0 0.0
        %6656 = vmatprep.subr.mxu0 0.0
        %6657 = vmatpush1.msra.mxu0 0.0
        %6658 = vmatprep.subr.mxu0 0.0
        %6659 = vmatpush1.msra.mxu0 0.0
        %6660 = vmatprep.subr.mxu0 0.0
        %6661 = vmatpush1.msra.mxu0 0.0
        %6662 = vmatprep.subr.mxu0 0.0
        %6663 = vmatpush1.msra.mxu0 0.0
        %6664 = vmatprep.subr.mxu0 0.0
        %6665 = vmatpush1.msra.mxu0 0.0
        %6666 = vmatprep.subr.mxu0 0.0
        %6667 = vmatpush1.msra.mxu0 0.0
        %6668 = vmatprep.subr.mxu0 0.0
        %6669 = vmatpush1.msra.mxu0 0.0
        %6670 = vmatprep.subr.mxu0 0.0
        %6671 = vmatpush1.msra.mxu0 0.0
        %6672 = vmatprep.subr.mxu0 0.0
        %6673 = vmatpush1.msra.mxu0 0.0
        %6674 = vmatprep.subr.mxu0 0.0
        %6675 = vmatpush1.msra.mxu0 0.0
        %6676 = vmatprep.subr.mxu0 0.0
        %6677 = vmatpush1.msra.mxu0 0.0
        %6678 = vmatprep.subr.mxu0 0.0
        %6679 = vmatpush1.msra.mxu0 0.0
        %6680 = vmatprep.subr.mxu0 0.0
        %6681 = vmatpush1.msra.mxu0 0.0
        %6682 = vmatprep.subr.mxu0 0.0
        %6683 = vmatpush1.msra.mxu0 0.0
        %6684 = vmatprep.subr.mxu0 0.0
        %6685 = vmatpush1.msra.mxu0 0.0
        %6686 = vmatprep.mubr.f32.mxu0 0.0
        %6687 = vmatmul.mubr.f32.gmra.mrb[0].mxu0 %v6617
        %v6688 = vpop.f32.mrb[0].mxu0
        %v6689 = vadd.f32 0.0, %v6688
        %v6690 = vpop.f32.mrb[0].mxu0
        %6691 = vmatprep.mubr.f32.mxu0 0.0
        %6692 = vmatmul.mubr.f32.gmra.mrb[0].mxu0 %v6620
        %v6693 = vpop.f32.mrb[0].mxu0
        %v6694 = vadd.f32 0.0, %v6693
        %v6695 = vpop.f32.mrb[0].mxu0
        %6696 = vdwg.mxu0
        %6705 = vrot.lane.b32.xlu0 %v1622, 8
        %v6706 = vpop.permute.xlu0 %6705
        %6707 = vrot.lane.b32.xlu0 %v1627, 8
        %v6708 = vpop.permute.xlu0 %6707
        %6709 = vrot.lane.b32.xlu0 %v1711, 8
        %v6710 = vpop.permute.xlu0 %6709
        %6711 = vrot.lane.b32.xlu0 %v1716, 8
        %v6712 = vpop.permute.xlu0 %6711
        %6713 = vrot.lane.b32.xlu0 %v1800, 8
        %v6714 = vpop.permute.xlu0 %6713
        %6715 = vrot.lane.b32.xlu0 %v1805, 8
        %v6716 = vpop.permute.xlu0 %6715
        %6717 = vrot.lane.b32.xlu0 %v1889, 8
        %v6718 = vpop.permute.xlu0 %6717
        %6719 = vrot.lane.b32.xlu0 %v1894, 8
        %v6720 = vpop.permute.xlu0 %6719
        %6737 = vrot.lane.b32.xlu0 %v2428, 16
        %v6738 = vpop.permute.xlu0 %6737
        %6739 = vrot.lane.b32.xlu0 %v2433, 16
        %v6740 = vpop.permute.xlu0 %6739
        %6741 = vrot.lane.b32.xlu0 %v2515, 16
        %v6742 = vpop.permute.xlu0 %6741
        %6743 = vrot.lane.b32.xlu0 %v2520, 16
        %v6744 = vpop.permute.xlu0 %6743
        %6745 = vrot.lane.b32.xlu0 %v2602, 16
        %v6746 = vpop.permute.xlu0 %6745
        %6747 = vrot.lane.b32.xlu0 %v2607, 16
        %v6748 = vpop.permute.xlu0 %6747
        %6749 = vrot.lane.b32.xlu0 %v2689, 16
        %v6750 = vpop.permute.xlu0 %6749
        %6751 = vrot.lane.b32.xlu0 %v2694, 16
        %v6752 = vpop.permute.xlu0 %6751
        %6769 = vrot.lane.b32.xlu0 %v3228, 24
        %v6770 = vpop.permute.xlu0 %6769
        %6771 = vrot.lane.b32.xlu0 %v3233, 24
        %v6772 = vpop.permute.xlu0 %6771
        %6773 = vrot.lane.b32.xlu0 %v3315, 24
        %v6774 = vpop.permute.xlu0 %6773
        %6775 = vrot.lane.b32.xlu0 %v3320, 24
        %v6776 = vpop.permute.xlu0 %6775
        %6777 = vrot.lane.b32.xlu0 %v3402, 24
        %v6778 = vpop.permute.xlu0 %6777
        %6779 = vrot.lane.b32.xlu0 %v3407, 24
        %v6780 = vpop.permute.xlu0 %6779
        %6781 = vrot.lane.b32.xlu0 %v3489, 24
        %v6782 = vpop.permute.xlu0 %6781
        %6783 = vrot.lane.b32.xlu0 %v3494, 24
        %v6784 = vpop.permute.xlu0 %6783
        %6801 = vrot.lane.b32.xlu0 %v4028, 32
        %v6802 = vpop.permute.xlu0 %6801
        %6803 = vrot.lane.b32.xlu0 %v4033, 32
        %v6804 = vpop.permute.xlu0 %6803
        %6805 = vrot.lane.b32.xlu0 %v4115, 32
        %v6806 = vpop.permute.xlu0 %6805
        %6807 = vrot.lane.b32.xlu0 %v4120, 32
        %v6808 = vpop.permute.xlu0 %6807
        %6809 = vrot.lane.b32.xlu0 %v4202, 32
        %v6810 = vpop.permute.xlu0 %6809
        %6811 = vrot.lane.b32.xlu0 %v4207, 32
        %v6812 = vpop.permute.xlu0 %6811
        %6813 = vrot.lane.b32.xlu0 %v4289, 32
        %v6814 = vpop.permute.xlu0 %6813
        %6815 = vrot.lane.b32.xlu0 %v4294, 32
        %v6816 = vpop.permute.xlu0 %6815
        %6833 = vrot.lane.b32.xlu0 %v4828, 40
        %v6834 = vpop.permute.xlu0 %6833
        %6835 = vrot.lane.b32.xlu0 %v4833, 40
        %v6836 = vpop.permute.xlu0 %6835
        %6837 = vrot.lane.b32.xlu0 %v4915, 40
        %v6838 = vpop.permute.xlu0 %6837
        %6839 = vrot.lane.b32.xlu0 %v4920, 40
        %v6840 = vpop.permute.xlu0 %6839
        %6841 = vrot.lane.b32.xlu0 %v5002, 40
        %v6842 = vpop.permute.xlu0 %6841
        %6843 = vrot.lane.b32.xlu0 %v5007, 40
        %v6844 = vpop.permute.xlu0 %6843
        %6845 = vrot.lane.b32.xlu0 %v5089, 40
        %v6846 = vpop.permute.xlu0 %6845
        %6847 = vrot.lane.b32.xlu0 %v5094, 40
        %v6848 = vpop.permute.xlu0 %6847
        %6865 = vrot.lane.b32.xlu0 %v5628, 48
        %v6866 = vpop.permute.xlu0 %6865
        %6867 = vrot.lane.b32.xlu0 %v5633, 48
        %v6868 = vpop.permute.xlu0 %6867
        %6869 = vrot.lane.b32.xlu0 %v5715, 48
        %v6870 = vpop.permute.xlu0 %6869
        %6871 = vrot.lane.b32.xlu0 %v5720, 48
        %v6872 = vpop.permute.xlu0 %6871
        %6873 = vrot.lane.b32.xlu0 %v5802, 48
        %v6874 = vpop.permute.xlu0 %6873
        %6875 = vrot.lane.b32.xlu0 %v5807, 48
        %v6876 = vpop.permute.xlu0 %6875
        %6877 = vrot.lane.b32.xlu0 %v5889, 48
        %v6878 = vpop.permute.xlu0 %6877
        %6879 = vrot.lane.b32.xlu0 %v5894, 48
        %v6880 = vpop.permute.xlu0 %6879
        %6897 = vrot.lane.b32.xlu0 %v6428, 56
        %v6898 = vpop.permute.xlu0 %6897
        %6899 = vrot.lane.b32.xlu0 %v6433, 56
        %v6900 = vpop.permute.xlu0 %6899
        %6901 = vrot.lane.b32.xlu0 %v6515, 56
        %v6902 = vpop.permute.xlu0 %6901
        %6903 = vrot.lane.b32.xlu0 %v6520, 56
        %v6904 = vpop.permute.xlu0 %6903
        %6905 = vrot.lane.b32.xlu0 %v6602, 56
        %v6906 = vpop.permute.xlu0 %6905
        %6907 = vrot.lane.b32.xlu0 %v6607, 56
        %v6908 = vpop.permute.xlu0 %6907
        %6909 = vrot.lane.b32.xlu0 %v6689, 56
        %v6910 = vpop.permute.xlu0 %6909
        %6911 = vrot.lane.b32.xlu0 %v6694, 56
        %v6912 = vpop.permute.xlu0 %6911
        %v6921 = vsel %vm325, %v838, %v6706
        %v6922 = vsel %vm325, %v843, %v6708
        %v6923 = vsel %vm325, %v919, %v6710
        %v6924 = vsel %vm325, %v924, %v6712
        %v6925 = vsel %vm325, %v1000, %v6714
        %v6926 = vsel %vm325, %v1005, %v6716
        %v6927 = vsel %vm325, %v1081, %v6718
        %v6928 = vsel %vm325, %v1086, %v6720
        %v6929 = vsel %vm676, %v6921, %v6738
        %v6930 = vsel %vm676, %v6922, %v6740
        %v6931 = vsel %vm676, %v6923, %v6742
        %v6932 = vsel %vm676, %v6924, %v6744
        %v6933 = vsel %vm676, %v6925, %v6746
        %v6934 = vsel %vm676, %v6926, %v6748
        %v6935 = vsel %vm676, %v6927, %v6750
        %v6936 = vsel %vm676, %v6928, %v6752
        %vm6937 = vcmask 195584
        %v6938 = vsel %vm6937, %v6929, %v6770
        %v6939 = vsel %vm6937, %v6930, %v6772
        %v6940 = vsel %vm6937, %v6931, %v6774
        %v6941 = vsel %vm6937, %v6932, %v6776
        %v6942 = vsel %vm6937, %v6933, %v6778
        %v6943 = vsel %vm6937, %v6934, %v6780
        %v6944 = vsel %vm6937, %v6935, %v6782
        %v6945 = vsel %vm6937, %v6936, %v6784
        %v6946 = vsel %vm233, %v6938, %v6802
        %v6947 = vsel %vm233, %v6939, %v6804
        %v6948 = vsel %vm233, %v6940, %v6806
        %v6949 = vsel %vm233, %v6941, %v6808
        %v6950 = vsel %vm233, %v6942, %v6810
        %v6951 = vsel %vm233, %v6943, %v6812
        %v6952 = vsel %vm233, %v6944, %v6814
        %v6953 = vsel %vm233, %v6945, %v6816
        %vm6954 = vcmask 326656
        %v6955 = vsel %vm6954, %v6946, %v6834
        %v6956 = vsel %vm6954, %v6947, %v6836
        %v6957 = vsel %vm6954, %v6948, %v6838
        %v6958 = vsel %vm6954, %v6949, %v6840
        %v6959 = vsel %vm6954, %v6950, %v6842
        %v6960 = vsel %vm6954, %v6951, %v6844
        %v6961 = vsel %vm6954, %v6952, %v6846
        %v6962 = vsel %vm6954, %v6953, %v6848
        %vm6963 = vcmask 392192
        %v6964 = vsel %vm6963, %v6955, %v6866
        %v6965 = vsel %vm6963, %v6956, %v6868
        %v6966 = vsel %vm6963, %v6957, %v6870
        %v6967 = vsel %vm6963, %v6958, %v6872
        %v6968 = vsel %vm6963, %v6959, %v6874
        %v6969 = vsel %vm6963, %v6960, %v6876
        %v6970 = vsel %vm6963, %v6961, %v6878
        %v6971 = vsel %vm6963, %v6962, %v6880
        %vm6972 = vcmask 457728
        %v6973 = vsel %vm6972, %v6964, %v6898
        %v6974 = vsel %vm6972, %v6965, %v6900
        %v6975 = vsel %vm6972, %v6966, %v6902
        %v6976 = vsel %vm6972, %v6967, %v6904
        %v6977 = vsel %vm6972, %v6968, %v6906
        %v6978 = vsel %vm6972, %v6969, %v6908
        %v6979 = vsel %vm6972, %v6970, %v6910
        %v6980 = vsel %vm6972, %v6971, %v6912
        %v6981 = vpack.c.bf16 %v6974, %v6973
        %v6982 = vpack.c.bf16 %v6976, %v6975
        %v6983 = vpack.c.bf16 %v6978, %v6977
        %v6984 = vpack.c.bf16 %v6980, %v6979
        %v6989 = vunpack.c.l.b16 %v6981
        %v6990 = vunpack.c.h.b16 %v6981
        %v6991 = vunpack.c.l.b16 %v6982
        %v6992 = vunpack.c.h.b16 %v6982
        %v6993 = vunpack.c.l.b16 %v6983
        %v6994 = vunpack.c.h.b16 %v6983
        %v6995 = vunpack.c.l.b16 %v6984
        %v6996 = vunpack.c.h.b16 %v6984
        %v6997 = vpack.c.b16 %v6989, %v6989
        %v6998 = vpack.c.b16 %v6990, %v6990
        %v6999 = vpack.c.b16 %v6991, %v6991
        %v7000 = vpack.c.b16 %v6992, %v6992
        %v7001 = vpack.c.b16 %v6993, %v6993
        %v7002 = vpack.c.b16 %v6994, %v6994
        %v7003 = vpack.c.b16 %v6995, %v6995
        %v7004 = vpack.c.b16 %v6996, %v6996
        %vm7013 = vcmask 519168
        %7014 = vst.msk [vmem:[%s177] sm:$0xf] %vm7013, %v6997
        %7015 = vst.msk [vmem:[%s177 + $0x4] sm:$0xf] %vm7013, %v6998
        %7016 = vst.msk [vmem:[%s177 + $0x8] sm:$0xf] %vm7013, %v6999
        %7017 = vst.msk [vmem:[%s177 + $0xc] sm:$0xf] %vm7013, %v7000
        %7018 = vst.msk [vmem:[%s177 + $0x10] sm:$0xf] %vm7013, %v7001
        %7019 = vst.msk [vmem:[%s177 + $0x14] sm:$0xf] %vm7013, %v7002
        %7020 = vst.msk [vmem:[%s177 + $0x18] sm:$0xf] %vm7013, %v7003
        %7021 = vst.msk [vmem:[%s177 + $0x1c] sm:$0xf] %vm7013, %v7004
        %s7022 = sand.u32 %s75, 1
        %s7023 = scalar_lea.sflag [#allocation4], %s7022
        %s7024 = sand.u32 %s75, 1
        %s7025 = smul.addr %s7024, 32
        %s7026 = scalar_lea.vmem [#allocation7], %s7025
        // Predicated region
        $region37: #{tpu_custom_call.1} parent=27 // pred_check
          %p7027 = pneg %p85
        $region38: #{tpu_custom_call.1} parent=27 // pred_check_branch
          %7029 = sbr.rel (%p7027) target = $region40
        $region39: #{tpu_custom_call.1} parent=27 // pred_region
          %s7030 = smul.u32 4, %s20
          %s7032 = ssub.s32 512, 512
          %7033 = vsyncadd %s7023, %s7032
          %s7034 = smul.addr %s7030, 2
          %s7035 = smul.addr %s7034, 64
          %s7036 = scalar_lea.hbm %s2, %s7035
          %s7037 = sshll.u32 %s7026, 4
          %s7038 = int_to_ptr.vmem [resolvable:$true] %s7037
          %7043 = dma.vmem_to_hbm [thread:$0]  %s7038, 512, %s7036, %s7023, 64, 64, 4
        $region40: #{tpu_custom_call.1} parent=27 // pred_fallthru
          _
      $region28: #{tpu_custom_call.1} parent=5 // pred_fallthru
        _
      %p7044 = scmp.le.s32.totalorder 2, %s15
      // Predicated region
      $region41: #{tpu_custom_call.1} parent=5 // pred_check
        %p7045 = pneg %p7044
      $region42: #{tpu_custom_call.1} parent=5 // pred_check_branch
        %7047 = sbr.rel (%p7045) target = $region44
      $region43: #{tpu_custom_call.1} parent=5 // pred_region
        %s7048 = ssub.s32 %s15, 2
        // Predicated region
        $region45: #{tpu_custom_call.1} parent=43 // pred_check
          %p7049 = pneg %p91
        $region46: #{tpu_custom_call.1} parent=43 // pred_check_branch
          %7051 = sbr.rel (%p7049) target = $region48
        $region47: #{tpu_custom_call.1} parent=43 // pred_region
          %s7052 = sand.u32 %s76, 1
          %s7053 = scalar_lea.sflag [#allocation4], %s7052
          %s7054 = sand.u32 %s76, 1
          %s7055 = smul.addr %s7054, 32
          %s7056 = scalar_lea.vmem [#allocation7], %s7055
          %7057 = dma.done %s7053, 512
        $region48: #{tpu_custom_call.1} parent=43 // pred_fallthru
          _
      $region44: #{tpu_custom_call.1} parent=5 // pred_fallthru
        _
    $region6: #{tpu_custom_call.1} parent=1 // loop_footer
      %s19 = sadd.s32 1, %s15
    $region7: #{tpu_custom_call.1} parent=1 // loop_footer_branch
      %14 = sbr.rel target = $region3
    $region8: #{tpu_custom_call.1} parent=1 // loop_exit
      _
    %7058 = vsyncpa [#allocation3], 1
    %s7059 = scalar_lea.sflag [#allocation3], 1
    %7060 = vsyncpa %s7059, 1
    %7061 = vsyncpa [#allocation6], 1
    %7062 = vsyncpa [#allocation4], 1
    %s7063 = scalar_lea.sflag [#allocation4], 1
    %7064 = vsyncpa %s7063, 1

</llo_original>
